<compile_context>
chip_gen: v7x
topology: tpu7x:2x2x1
jax: 0.10.0
libtpu: 0.0.40
codegen_flags: <defaults>
</compile_context>

<pallas_src>
import numpy as np
import jax
import jax.numpy as jnp
from jax.experimental import pallas as pl
from jax.experimental.pallas import tpu as pltpu


# --------------------------------------------------------------------------
# Fused head kernel (1x1 conv + eval BN already folded into the weights).
#   hc  = relu(feat @ [W1' | Wc1'] + [b1' | bc1'])        (TM, 2304)
#   det = hc[:, :2048] @ W2 + b2                          (TM, 180)
#   cat = relu(hc[:, 2048:] @ Wc2 + bc2) @ Wc3 + bc3      (TM, 40)
#   out = [det | cat | 0-pad]   packed lane-dense          (TM, 256)
# --------------------------------------------------------------------------
def head_kernel(feat_ref,
                w1c_ref, b1c_ref,
                wc2_ref, bc2_ref,
                w2_ref, b2_ref,
                wc3_ref, bc3_ref,
                out_ref):
    n_hidden = w2_ref.shape[0]          # 2048 (128-aligned slice boundary)
    td = w2_ref.shape[1]                # total_dim (180)
    tc = wc3_ref.shape[1]               # total_cat (40)

    feat = feat_ref[...].astype(jnp.bfloat16)                       # (TM, 900)

    # Fused first layer for both heads (single MXU pass over K=900).
    hc = jnp.dot(feat, w1c_ref[...],
                 preferred_element_type=jnp.float32) + b1c_ref[...]  # (TM, 2304)
    hc = jnp.maximum(hc, 0.0)
    h = hc[:, :n_hidden].astype(jnp.bfloat16)                        # det hidden
    c = hc[:, n_hidden:].astype(jnp.bfloat16)                        # cat hidden (BN folded)

    # Category mid layer.
    c = jnp.dot(c, wc2_ref[...],
                preferred_element_type=jnp.float32) + bc2_ref[...]   # (TM, 100)
    c = jnp.maximum(c, 0.0).astype(jnp.bfloat16)

    # Output projections (no zero-padded columns streamed from HBM).
    det = jnp.dot(h, w2_ref[...],
                  preferred_element_type=jnp.float32) + b2_ref[...]  # (TM, 180)
    cat = jnp.dot(c, wc3_ref[...],
                  preferred_element_type=jnp.float32) + bc3_ref[...]  # (TM, 40)

    # Pack into the lane-dense output slab in VMEM; pad tail stays zero.
    out_ref[...] = jnp.zeros_like(out_ref)
    out_ref[:, :td] = det
    out_ref[:, td:td + tc] = cat


def run_heads(feat, fp):
    """feat: (N, C*H*W) f32. Returns packed (N, out_cols) f32."""
    N, K = feat.shape
    out_cols = fp["out_cols"]

    # Batch tiling: single block for small N, 128-row tiles (weights stay
    # VMEM-resident via constant index_maps) for throughput-sized batches.
    tm = N if N <= 128 else 128
    n_pad = (-N) % tm
    if n_pad:
        feat = jnp.pad(feat, ((0, n_pad), (0, 0)))
    n_padded = feat.shape[0]
    grid = (n_padded // tm,)

    def const_spec(arr):
        return pl.BlockSpec(arr.shape, lambda i: (0, 0))

    out = pl.pallas_call(
        head_kernel,
        out_shape=jax.ShapeDtypeStruct((n_padded, out_cols), jnp.float32),
        grid_spec=pltpu.PrefetchScalarGridSpec(
            num_scalar_prefetch=0,
            grid=grid,
            in_specs=[
                pl.BlockSpec((tm, K), lambda i: (i, 0)),   # feat batch tile
                const_spec(fp["w1cat"]), const_spec(fp["b1cat"]),
                const_spec(fp["wc2"]), const_spec(fp["bc2"]),
                const_spec(fp["w2"]), const_spec(fp["b2"]),
                const_spec(fp["wc3"]), const_spec(fp["bc3"]),
            ],
            out_specs=pl.BlockSpec((tm, out_cols), lambda i: (i, 0)),
        ),
        compiler_params=pltpu.CompilerParams(
            dimension_semantics=("parallel",),
            vmem_limit_bytes=24 * 1024 * 1024,
        ),
    )(
        feat,
        fp["w1cat"], fp["b1cat"],
        fp["wc2"], fp["bc2"],
        fp["w2"], fp["b2"],
        fp["wc3"], fp["bc3"],
    )
    return out[:N]


# --------------------------------------------------------------------------
# LaneCls forward
# --------------------------------------------------------------------------
def lane_cls_forward(x_list, folded_params, dim, cat_dim):
    x = x_list[-1]                                   # (N, C, H, W), NCHW
    N, C, H, W = x.shape
    feat = x.reshape(N, C * H * W).astype(jnp.float32)

    total_dim = int(np.prod(dim))
    total_cat = int(np.prod(cat_dim))

    out = run_heads(feat, folded_params)             # (N, out_cols)

    det = out[:, :total_dim].reshape((N,) + tuple(dim))
    category = out[:, total_dim:total_dim + total_cat].reshape((N,) + tuple(cat_dim))
    return {"det": det, "category": category}


# --------------------------------------------------------------------------
# Parameter construction (PyTorch-like init) and one-time folding
# --------------------------------------------------------------------------
def _linear_init(key, fan_in, fan_out):
    k1, k2 = jax.random.split(key)
    bound = 1.0 / np.sqrt(fan_in)
    w = jax.random.uniform(k1, (fan_in, fan_out), jnp.float32, -bound, bound)
    b = jax.random.uniform(k2, (1, fan_out), jnp.float32, -bound, bound)
    return w, b


def make_raw_params(key, chan, dim, cat_dim):
    total_dim = int(np.prod(dim))
    total_cat = int(np.prod(cat_dim))
    keys = jax.random.split(key, 12)

    bound = 1.0 / np.sqrt(chan)
    pool_w = jax.random.uniform(keys[0], (8, chan), jnp.float32, -bound, bound)
    pool_b = jax.random.uniform(keys[1], (8, 1), jnp.float32, -bound, bound)

    w1, b1 = _linear_init(keys[2], 1800, 2048)
    w2, b2 = _linear_init(keys[3], 2048, total_dim)

    wc1, bc1 = _linear_init(keys[4], 1800, 256)
    wc2, bc2 = _linear_init(keys[5], 256, 100)
    wc3, bc3 = _linear_init(keys[6], 100, total_cat)

    # BatchNorm1d(256) in eval mode (frozen running stats), folded later.
    gamma = jax.random.uniform(keys[7], (1, 256), jnp.float32, 0.5, 1.5)
    beta = jax.random.uniform(keys[8], (1, 256), jnp.float32, -0.5, 0.5)
    run_mean = jax.random.uniform(keys[9], (1, 256), jnp.float32, -0.5, 0.5)
    run_var = jax.random.uniform(keys[10], (1, 256), jnp.float32, 0.5, 1.5)
    eps = 1e-5
    bn_scale = gamma / jnp.sqrt(run_var + eps)
    bn_shift = beta - run_mean * bn_scale

    return {
        "pool_w": pool_w, "pool_b": pool_b,
        "w1": w1, "b1": b1, "w2": w2, "b2": b2,
        "wc1": wc1, "bc1": bc1, "wc2": wc2, "bc2": bc2, "wc3": wc3, "bc3": bc3,
        "bn_scale": bn_scale, "bn_shift": bn_shift,
    }


def fold_params(p, H, W, dim, cat_dim, weight_dtype=jnp.bfloat16):
    """One-time folding:
       * 1x1 conv folded into the first Linears (K: 1800 -> C*HW)
       * eval-mode BatchNorm1d folded into the category first Linear
       * W1 / Wc1 concatenated into one (C*HW, 2304) weight for a fused matmul
       * output projections kept unpadded (no zero columns streamed)
       * big weights cast to bf16 (HBM bandwidth dominated)."""
    HW = H * W
    total_dim = int(np.prod(dim))
    total_cat = int(np.prod(cat_dim))
    out_cols = ((total_dim + total_cat + 127) // 128) * 128     # 256

    pool_w = p["pool_w"]                     # (8, C)
    pool_b = p["pool_b"][:, 0]               # (8,)
    C = pool_w.shape[1]

    def fold_first(w, b):
        # w: (8*HW, F), b: (1, F)
        F = w.shape[1]
        w3 = w.reshape(8, HW, F)                                  # (8, HW, F)
        w_fold = jnp.einsum("oc,ohf->chf", pool_w, w3).reshape(C * HW, F)
        b_fold = b + jnp.einsum("o,ohf->f", pool_b, w3)[None, :]
        return w_fold, b_fold

    w1f, b1f = fold_first(p["w1"], p["b1"])          # (C*HW, 2048), (1, 2048)
    wc1f, bc1f = fold_first(p["wc1"], p["bc1"])      # (C*HW, 256),  (1, 256)

    # Fold eval-mode BatchNorm1d(256) into the first category Linear.
    wc1f = wc1f * p["bn_scale"]
    bc1f = bc1f * p["bn_scale"] + p["bn_shift"]

    # Fuse the two first-layer weights (2048 + 256 = 2304 = 18*128 lanes).
    w1cat = jnp.concatenate([w1f, wc1f], axis=1)                  # (C*HW, 2304)
    b1cat = jnp.concatenate([b1f, bc1f], axis=1)                  # (1, 2304)

    return {
        "w1cat": w1cat.astype(weight_dtype), "b1cat": b1cat,
        "wc2": p["wc2"].astype(weight_dtype), "bc2": p["bc2"],
        "w2": p["w2"].astype(weight_dtype), "b2": p["b2"],
        "wc3": p["wc3"].astype(weight_dtype), "bc3": p["bc3"],
        "out_cols": out_cols,
    }


# --------------------------------------------------------------------------
# Pure-JAX reference (exact PyTorch semantics, f32, unfolded weights)
# --------------------------------------------------------------------------
def reference_forward(x_list, p, dim, cat_dim):
    x = x_list[-1]
    N, C, H, W = x.shape
    xf = x.reshape(N, C, H * W)
    pooled = jnp.einsum("oc,nch->noh", p["pool_w"], xf) + p["pool_b"][None, :, :]
    feat = pooled.reshape(N, 8 * H * W)

    h = jnp.maximum(feat @ p["w1"] + p["b1"], 0.0)
    det = (h @ p["w2"] + p["b2"]).reshape((N,) + tuple(dim))

    c = feat @ p["wc1"] + p["bc1"]
    c = c * p["bn_scale"] + p["bn_shift"]            # BatchNorm1d (eval mode)
    c = jnp.maximum(c, 0.0)
    c = jnp.maximum(c @ p["wc2"] + p["bc2"], 0.0)
    category = (c @ p["wc3"] + p["bc3"]).reshape((N,) + tuple(cat_dim))
    return {"det": det, "category": category}


if __name__ == "__main__":
    # cfg-equivalent settings (cfg.classification = True)
    chan = 4                     # cfg.featuremap_out_channel
    dim = (9, 5, 4)              # (griding_num+1, rows, lanes) -> total 180
    cat_dim = (4, 10)            # -> total 40
    H, W = 9, 25                 # 8 * 9 * 25 = 1800 (required by Linear(1800, .))

    key = jax.random.PRNGKey(0)
    kx, kx2, kp = jax.random.split(key, 3)

    raw_params = make_raw_params(kp, chan, dim, cat_dim)
    folded = fold_params(raw_params, H, W, dim, cat_dim)

    def run_and_check(x):
        n = x.shape[0]
        out = lane_cls_forward([x], folded, dim, cat_dim)
        out = jax.tree_util.tree_map(jax.block_until_ready, out)
        ref = reference_forward([x], raw_params, dim, cat_dim)
        assert out["det"].shape == (n,) + dim
        assert out["category"].shape == (n,) + cat_dim
        # bf16 weight/activation storage -> relaxed tolerance vs f32 reference.
        np.testing.assert_allclose(np.asarray(out["det"]), np.asarray(ref["det"]),
                                   rtol=2e-2, atol=2e-2)
        np.testing.assert_allclose(np.asarray(out["category"]),
                                   np.asarray(ref["category"]),
                                   rtol=2e-2, atol=2e-2)

    # Latency path: tiny batch, single un-gridded block (grid == (1,)).
    run_and_check(jax.random.normal(kx, (2, chan, H, W), jnp.float32))

    # Throughput path: batch-tiled "parallel" grid with VMEM-resident weights
    # (also exercises the non-multiple-of-tile padding path: 200 -> 2 x 128).
    run_and_check(jax.random.normal(kx2, (200, chan, H, W), jnp.float32))

    print("KERNEL_OK")
</pallas_src>

<mosaic_0001>
module attributes {stable_mosaic.version = 11 : i64} {
  func.func @head_kernel(%arg0: i32, %arg1: memref<2x900xf32, #tpu.memory_space<vmem>>, %arg2: memref<900x2304xbf16, #tpu.memory_space<vmem>>, %arg3: memref<1x2304xf32, #tpu.memory_space<vmem>>, %arg4: memref<256x100xbf16, #tpu.memory_space<vmem>>, %arg5: memref<1x100xf32, #tpu.memory_space<vmem>>, %arg6: memref<2048x180xbf16, #tpu.memory_space<vmem>>, %arg7: memref<1x180xf32, #tpu.memory_space<vmem>>, %arg8: memref<100x40xbf16, #tpu.memory_space<vmem>>, %arg9: memref<1x40xf32, #tpu.memory_space<vmem>>, %arg10: memref<2x256xf32, #tpu.memory_space<vmem>>) attributes {dimension_semantics = [#tpu.dimension_semantics<parallel>], iteration_bounds = array<i64: 1>, scalar_prefetch = 0 : i64, scratch_operands = 0 : i64, tpu.core_type = #tpu.core_type<tc>, window_params = [{transform_indices = @transform_0, window_bounds = array<i64: 2, 900>}, {pipeline_mode = #tpu.pipeline_mode<synchronous>, transform_indices = @transform_1, window_bounds = array<i64: 900, 2304>}, {pipeline_mode = #tpu.pipeline_mode<synchronous>, transform_indices = @transform_2, window_bounds = array<i64: 1, 2304>}, {pipeline_mode = #tpu.pipeline_mode<synchronous>, transform_indices = @transform_3, window_bounds = array<i64: 256, 100>}, {pipeline_mode = #tpu.pipeline_mode<synchronous>, transform_indices = @transform_4, window_bounds = array<i64: 1, 100>}, {pipeline_mode = #tpu.pipeline_mode<synchronous>, transform_indices = @transform_5, window_bounds = array<i64: 2048, 180>}, {pipeline_mode = #tpu.pipeline_mode<synchronous>, transform_indices = @transform_6, window_bounds = array<i64: 1, 180>}, {pipeline_mode = #tpu.pipeline_mode<synchronous>, transform_indices = @transform_7, window_bounds = array<i64: 100, 40>}, {pipeline_mode = #tpu.pipeline_mode<synchronous>, transform_indices = @transform_8, window_bounds = array<i64: 1, 40>}, {transform_indices = @transform_9, window_bounds = array<i64: 2, 256>}]} {
    %c0 = arith.constant 0 : index
    %c0_0 = arith.constant 0 : index
    %0 = vector.load %arg1[%c0, %c0_0] : memref<2x900xf32, #tpu.memory_space<vmem>>, vector<2x900xf32>
    %1 = arith.truncf %0 : vector<2x900xf32> to vector<2x900xbf16>
    %c0_1 = arith.constant 0 : index
    %c0_2 = arith.constant 0 : index
    %2 = vector.load %arg2[%c0_1, %c0_2] : memref<900x2304xbf16, #tpu.memory_space<vmem>>, vector<900x2304xbf16>
    %cst = arith.constant dense<0.000000e+00> : vector<2x2304xf32>
    %3 = tpu.matmul %1, %2, %cst {dimension_numbers = #tpu.dot_dimension_numbers<[1], [0], [0], [1], [0, 0, 1, 1], [], []>} : vector<2x900xbf16>, vector<900x2304xbf16>, vector<2x2304xf32> -> vector<2x2304xf32>
    %c0_3 = arith.constant 0 : index
    %c0_4 = arith.constant 0 : index
    %4 = vector.load %arg3[%c0_3, %c0_4] : memref<1x2304xf32, #tpu.memory_space<vmem>>, vector<1x2304xf32>
    %5 = vector.broadcast %4 : vector<1x2304xf32> to vector<2x2304xf32>
    %6 = arith.addf %3, %5 : vector<2x2304xf32>
    %cst_5 = arith.constant 0.000000e+00 : f32
    %7 = vector.broadcast %cst_5 : f32 to vector<2x2304xf32>
    %8 = arith.maximumf %6, %7 : vector<2x2304xf32>
    %9 = vector.extract_strided_slice %8 {offsets = [0, 0], sizes = [2, 2048], strides = [1, 1]} : vector<2x2304xf32> to vector<2x2048xf32>
    %10 = arith.truncf %9 : vector<2x2048xf32> to vector<2x2048xbf16>
    %11 = vector.extract_strided_slice %8 {offsets = [0, 2048], sizes = [2, 256], strides = [1, 1]} : vector<2x2304xf32> to vector<2x256xf32>
    %12 = arith.truncf %11 : vector<2x256xf32> to vector<2x256xbf16>
    %c0_6 = arith.constant 0 : index
    %c0_7 = arith.constant 0 : index
    %13 = vector.load %arg4[%c0_6, %c0_7] : memref<256x100xbf16, #tpu.memory_space<vmem>>, vector<256x100xbf16>
    %cst_8 = arith.constant dense<0.000000e+00> : vector<2x100xf32>
    %14 = tpu.matmul %12, %13, %cst_8 {dimension_numbers = #tpu.dot_dimension_numbers<[1], [0], [0], [1], [0, 0, 1, 1], [], []>} : vector<2x256xbf16>, vector<256x100xbf16>, vector<2x100xf32> -> vector<2x100xf32>
    %c0_9 = arith.constant 0 : index
    %c0_10 = arith.constant 0 : index
    %15 = vector.load %arg5[%c0_9, %c0_10] : memref<1x100xf32, #tpu.memory_space<vmem>>, vector<1x100xf32>
    %16 = vector.broadcast %15 : vector<1x100xf32> to vector<2x100xf32>
    %17 = arith.addf %14, %16 : vector<2x100xf32>
    %cst_11 = arith.constant 0.000000e+00 : f32
    %18 = vector.broadcast %cst_11 : f32 to vector<2x100xf32>
    %19 = arith.maximumf %17, %18 : vector<2x100xf32>
    %20 = arith.truncf %19 : vector<2x100xf32> to vector<2x100xbf16>
    %c0_12 = arith.constant 0 : index
    %c0_13 = arith.constant 0 : index
    %21 = vector.load %arg6[%c0_12, %c0_13] : memref<2048x180xbf16, #tpu.memory_space<vmem>>, vector<2048x180xbf16>
    %cst_14 = arith.constant dense<0.000000e+00> : vector<2x180xf32>
    %22 = tpu.matmul %10, %21, %cst_14 {dimension_numbers = #tpu.dot_dimension_numbers<[1], [0], [0], [1], [0, 0, 1, 1], [], []>} : vector<2x2048xbf16>, vector<2048x180xbf16>, vector<2x180xf32> -> vector<2x180xf32>
    %c0_15 = arith.constant 0 : index
    %c0_16 = arith.constant 0 : index
    %23 = vector.load %arg7[%c0_15, %c0_16] : memref<1x180xf32, #tpu.memory_space<vmem>>, vector<1x180xf32>
    %24 = vector.broadcast %23 : vector<1x180xf32> to vector<2x180xf32>
    %25 = arith.addf %22, %24 : vector<2x180xf32>
    %c0_17 = arith.constant 0 : index
    %c0_18 = arith.constant 0 : index
    %26 = vector.load %arg8[%c0_17, %c0_18] : memref<100x40xbf16, #tpu.memory_space<vmem>>, vector<100x40xbf16>
    %cst_19 = arith.constant dense<0.000000e+00> : vector<2x40xf32>
    %27 = tpu.matmul %20, %26, %cst_19 {dimension_numbers = #tpu.dot_dimension_numbers<[1], [0], [0], [1], [0, 0, 1, 1], [], []>} : vector<2x100xbf16>, vector<100x40xbf16>, vector<2x40xf32> -> vector<2x40xf32>
    %c0_20 = arith.constant 0 : index
    %c0_21 = arith.constant 0 : index
    %28 = vector.load %arg9[%c0_20, %c0_21] : memref<1x40xf32, #tpu.memory_space<vmem>>, vector<1x40xf32>
    %29 = vector.broadcast %28 : vector<1x40xf32> to vector<2x40xf32>
    %30 = arith.addf %27, %29 : vector<2x40xf32>
    %cst_22 = arith.constant 0.000000e+00 : f32
    %31 = vector.broadcast %cst_22 : f32 to vector<2x256xf32>
    %c0_23 = arith.constant 0 : index
    %c0_24 = arith.constant 0 : index
    %32 = vector.load %arg10[%c0_23, %c0_24] : memref<2x256xf32, #tpu.memory_space<vmem>>, vector<2x256xf32>
    tpu.vector_store %arg10[%c0_23, %c0_24], %31 {strides = array<i32>} : memref<2x256xf32, #tpu.memory_space<vmem>>, vector<2x256xf32>,
    %c0_25 = arith.constant 0 : index
    %c0_26 = arith.constant 0 : index
    %33 = vector.load %arg10[%c0_25, %c0_26] : memref<2x256xf32, #tpu.memory_space<vmem>>, vector<2x180xf32>
    tpu.vector_store %arg10[%c0_25, %c0_26], %25 {strides = array<i32>} : memref<2x256xf32, #tpu.memory_space<vmem>>, vector<2x180xf32>,
    %c0_27 = arith.constant 0 : index
    %c180 = arith.constant 180 : index
    %34 = vector.load %arg10[%c0_27, %c180] : memref<2x256xf32, #tpu.memory_space<vmem>>, vector<2x40xf32>
    tpu.vector_store %arg10[%c0_27, %c180], %30 {strides = array<i32>} : memref<2x256xf32, #tpu.memory_space<vmem>>, vector<2x40xf32>,
    return
  }
  func.func @transform_0(%arg0: i32) -> (i32, i32) {
    %c0_i32 = arith.constant 0 : i32
    %c0_i32_0 = arith.constant 0 : i32
    return %arg0, %c0_i32 : i32, i32
  }
  func.func @transform_1(%arg0: i32) -> (i32, i32) {
    %c0_i32 = arith.constant 0 : i32
    %c0_i32_0 = arith.constant 0 : i32
    %c0_i32_1 = arith.constant 0 : i32
    return %c0_i32, %c0_i32_0 : i32, i32
  }
  func.func @transform_2(%arg0: i32) -> (i32, i32) {
    %c0_i32 = arith.constant 0 : i32
    %c0_i32_0 = arith.constant 0 : i32
    %c0_i32_1 = arith.constant 0 : i32
    return %c0_i32, %c0_i32_0 : i32, i32
  }
  func.func @transform_3(%arg0: i32) -> (i32, i32) {
    %c0_i32 = arith.constant 0 : i32
    %c0_i32_0 = arith.constant 0 : i32
    %c0_i32_1 = arith.constant 0 : i32
    return %c0_i32, %c0_i32_0 : i32, i32
  }
  func.func @transform_4(%arg0: i32) -> (i32, i32) {
    %c0_i32 = arith.constant 0 : i32
    %c0_i32_0 = arith.constant 0 : i32
    %c0_i32_1 = arith.constant 0 : i32
    return %c0_i32, %c0_i32_0 : i32, i32
  }
  func.func @transform_5(%arg0: i32) -> (i32, i32) {
    %c0_i32 = arith.constant 0 : i32
    %c0_i32_0 = arith.constant 0 : i32
    %c0_i32_1 = arith.constant 0 : i32
    return %c0_i32, %c0_i32_0 : i32, i32
  }
  func.func @transform_6(%arg0: i32) -> (i32, i32) {
    %c0_i32 = arith.constant 0 : i32
    %c0_i32_0 = arith.constant 0 : i32
    %c0_i32_1 = arith.constant 0 : i32
    return %c0_i32, %c0_i32_0 : i32, i32
  }
  func.func @transform_7(%arg0: i32) -> (i32, i32) {
    %c0_i32 = arith.constant 0 : i32
    %c0_i32_0 = arith.constant 0 : i32
    %c0_i32_1 = arith.constant 0 : i32
    return %c0_i32, %c0_i32_0 : i32, i32
  }
  func.func @transform_8(%arg0: i32) -> (i32, i32) {
    %c0_i32 = arith.constant 0 : i32
    %c0_i32_0 = arith.constant 0 : i32
    %c0_i32_1 = arith.constant 0 : i32
    return %c0_i32, %c0_i32_0 : i32, i32
  }
  func.func @transform_9(%arg0: i32) -> (i32, i32) {
    %c0_i32 = arith.constant 0 : i32
    %c0_i32_0 = arith.constant 0 : i32
    return %arg0, %c0_i32 : i32, i32
  }
}

</mosaic_0001>

<llo_original>
// kernel: tpu_custom_call.1
$region0: #{tpu_custom_call.1}
  #allocation0 [shape = 'u32[]', space=smem, size = 0x4, offset = 0x4, fixed_abs, tag = 'smem constant byte address 0x4 - core index']
  #allocation1 [shape = 'u32[144,128]{1,0:T(1,128)}', space=vmem, size = 0x12000, scoped, tag = 'internal scratch']
  %s0 = inlined_call_operand.hbm [shape: f32[2,900], index: 0, kind: input, shape index: {}]
  %s1 = inlined_call_operand.hbm [shape: bf16[900,2304], index: 1, kind: input, shape index: {}]
  %s2 = inlined_call_operand.hbm [shape: f32[1,2304], index: 2, kind: input, shape index: {}]
  %s3 = inlined_call_operand.vmem [shape: bf16[256,100], index: 3, kind: input, shape index: {}]
  %s4 = inlined_call_operand.hbm [shape: f32[1,100], index: 4, kind: input, shape index: {}]
  %s5 = inlined_call_operand.vmem [shape: bf16[2048,180], index: 5, kind: input, shape index: {}]
  %s6 = inlined_call_operand.hbm [shape: f32[1,180], index: 6, kind: input, shape index: {}]
  %s7 = inlined_call_operand.vmem [shape: bf16[100,40], index: 7, kind: input, shape index: {}]
  %s8 = inlined_call_operand.hbm [shape: f32[1,40], index: 8, kind: input, shape index: {}]
  %s9 = inlined_call_operand.hbm [shape: f32[2,256], index: 9, kind: output, shape index: {}]
  %s10 = sld [smem:[#allocation0]]
  $region70: #{tpu_custom_call.1} parent=0
    _
  %s12 = ssub.s32 1, %s10
  %s13 = scalar_select 0, %s12, %s10
  $region1: #{tpu_custom_call.1} parent=0
    #allocation2 [shape = 'u8[8192]{0}', space=vmem, size = 0x2000, scoped, tag = 'input window, operand 0, single buffered']
    #allocation3 [shape = 's32[1]{0}', space=sflag, size = 0x4, scoped, tag = 'scoped memory for tpu_custom_call.1']
    #allocation4 [shape = 's32[1]{0}', space=sflag, size = 0x4, scoped, tag = 'scoped memory for tpu_custom_call.1']
    #allocation5 [shape = 'u8[4165632]{0}', space=vmem, size = 0x3f9000, scoped, tag = 'input window, operand 1, single buffered']
    #allocation6 [shape = 's32[1]{0}', space=sflag, size = 0x4, scoped, tag = 'scoped memory for tpu_custom_call.1']
    #allocation7 [shape = 'u8[9216]{0}', space=vmem, size = 0x2400, scoped, tag = 'input window, operand 2, single buffered']
    #allocation8 [shape = 'u8[512]{0}', space=vmem, size = 0x400, scoped, tag = 'input window, operand 4, single buffered']
    #allocation9 [shape = 's32[1]{0}', space=sflag, size = 0x4, scoped, tag = 'scoped memory for tpu_custom_call.1']
    #allocation10 [shape = 'u8[1024]{0}', space=vmem, size = 0x400, scoped, tag = 'input window, operand 6, single buffered']
    #allocation11 [shape = 'u8[512]{0}', space=vmem, size = 0x400, scoped, tag = 'input window, operand 8, single buffered']
    #allocation12 [shape = 's32[1]{0}', space=sflag, size = 0x4, scoped, tag = 'scoped memory for tpu_custom_call.1']
    #allocation13 [shape = 'u8[2048]{0}', space=vmem, size = 0x800, scoped, tag = 'output window, operand 0, single buffered']
    %14 = vsyncpa [#allocation3], 0
    %15 = vsyncpa [#allocation6], 0
    %16 = vsyncpa [#allocation9], 0
    %17 = vsyncpa [#allocation12], 0
    %18 = vsyncpa [#allocation4], 0
    // Predicated region
    $region2: #{tpu_custom_call.1} parent=1 // pred_check
      _
    $region3: #{tpu_custom_call.1} parent=1 // pred_check_branch
      %20 = sbr.rel (0) target = $region5
    $region4: #{tpu_custom_call.1} parent=1 // pred_region
      %s22 = ssub.s32 256, 256
      %23 = vsyncadd [#allocation3], %s22
      %s25 = sshll.u32 [#allocation2], 4
      %s26 = int_to_ptr.vmem [resolvable:$true] %s25
      %28 = dma.hbm_to_vmem [thread:$0]  %s0, 256, %s26, [#allocation3]
    $region5: #{tpu_custom_call.1} parent=1 // pred_fallthru
      _
    // Predicated region
    $region6: #{tpu_custom_call.1} parent=1 // pred_check
      _
    $region7: #{tpu_custom_call.1} parent=1 // pred_check_branch
      %30 = sbr.rel (0) target = $region9
    $region8: #{tpu_custom_call.1} parent=1 // pred_region
      %s32 = ssub.s32 130176, 130176
      %33 = vsyncadd [#allocation6], %s32
      %s34 = sshll.u32 [#allocation5], 4
      %s35 = int_to_ptr.vmem [resolvable:$true] %s34
      %40 = dma.hbm_to_vmem [thread:$0]  %s1, 130176, %s35, [#allocation6], 1152, 1152, 72
    $region9: #{tpu_custom_call.1} parent=1 // pred_fallthru
      _
    // Predicated region
    $region10: #{tpu_custom_call.1} parent=1 // pred_check
      _
    $region11: #{tpu_custom_call.1} parent=1 // pred_check_branch
      %42 = sbr.rel (0) target = $region13
    $region12: #{tpu_custom_call.1} parent=1 // pred_region
      %s44 = ssub.s32 288, 288
      %45 = vsyncadd [#allocation6], %s44
      %s47 = sshll.u32 [#allocation7], 4
      %s48 = int_to_ptr.vmem [resolvable:$true] %s47
      %50 = dma.hbm_to_vmem [thread:$0]  %s2, 288, %s48, [#allocation6]
    $region13: #{tpu_custom_call.1} parent=1 // pred_fallthru
      _
    // Predicated region
    $region14: #{tpu_custom_call.1} parent=1 // pred_check
      _
    $region15: #{tpu_custom_call.1} parent=1 // pred_check_branch
      %52 = sbr.rel (0) target = $region17
    $region16: #{tpu_custom_call.1} parent=1 // pred_region
      _
    $region17: #{tpu_custom_call.1} parent=1 // pred_fallthru
      _
    // Predicated region
    $region18: #{tpu_custom_call.1} parent=1 // pred_check
      _
    $region19: #{tpu_custom_call.1} parent=1 // pred_check_branch
      %54 = sbr.rel (0) target = $region21
    $region20: #{tpu_custom_call.1} parent=1 // pred_region
      %s56 = ssub.s32 16, 16
      %57 = vsyncadd [#allocation9], %s56
      %s59 = sshll.u32 [#allocation8], 4
      %s60 = int_to_ptr.vmem [resolvable:$true] %s59
      %62 = dma.hbm_to_vmem [thread:$0]  %s4, 16, %s60, [#allocation9]
    $region21: #{tpu_custom_call.1} parent=1 // pred_fallthru
      _
    // Predicated region
    $region22: #{tpu_custom_call.1} parent=1 // pred_check
      _
    $region23: #{tpu_custom_call.1} parent=1 // pred_check_branch
      %64 = sbr.rel (0) target = $region25
    $region24: #{tpu_custom_call.1} parent=1 // pred_region
      _
    $region25: #{tpu_custom_call.1} parent=1 // pred_fallthru
      _
    // Predicated region
    $region26: #{tpu_custom_call.1} parent=1 // pred_check
      _
    $region27: #{tpu_custom_call.1} parent=1 // pred_check_branch
      %66 = sbr.rel (0) target = $region29
    $region28: #{tpu_custom_call.1} parent=1 // pred_region
      %s68 = ssub.s32 32, 32
      %69 = vsyncadd [#allocation9], %s68
      %s71 = sshll.u32 [#allocation10], 4
      %s72 = int_to_ptr.vmem [resolvable:$true] %s71
      %74 = dma.hbm_to_vmem [thread:$0]  %s6, 32, %s72, [#allocation9]
    $region29: #{tpu_custom_call.1} parent=1 // pred_fallthru
      _
    // Predicated region
    $region30: #{tpu_custom_call.1} parent=1 // pred_check
      _
    $region31: #{tpu_custom_call.1} parent=1 // pred_check_branch
      %76 = sbr.rel (0) target = $region33
    $region32: #{tpu_custom_call.1} parent=1 // pred_region
      _
    $region33: #{tpu_custom_call.1} parent=1 // pred_fallthru
      _
    // Predicated region
    $region34: #{tpu_custom_call.1} parent=1 // pred_check
      _
    $region35: #{tpu_custom_call.1} parent=1 // pred_check_branch
      %78 = sbr.rel (0) target = $region37
    $region36: #{tpu_custom_call.1} parent=1 // pred_region
      %s80 = ssub.s32 16, 16
      %81 = vsyncadd [#allocation12], %s80
      %s83 = sshll.u32 [#allocation11], 4
      %s84 = int_to_ptr.vmem [resolvable:$true] %s83
      %86 = dma.hbm_to_vmem [thread:$0]  %s8, 16, %s84, [#allocation12]
    $region37: #{tpu_custom_call.1} parent=1 // pred_fallthru
      _
    // Predicated region
    $region38: #{tpu_custom_call.1} parent=1 // pred_check
      _
    $region39: #{tpu_custom_call.1} parent=1 // pred_check_branch
      %88 = sbr.rel (0) target = $region41
    $region40: #{tpu_custom_call.1} parent=1 // pred_region
      %89 = dma.done [#allocation3], 256
    $region41: #{tpu_custom_call.1} parent=1 // pred_fallthru
      _
    // Predicated region
    $region42: #{tpu_custom_call.1} parent=1 // pred_check
      _
    $region43: #{tpu_custom_call.1} parent=1 // pred_check_branch
      %91 = sbr.rel (0) target = $region45
    $region44: #{tpu_custom_call.1} parent=1 // pred_region
      %92 = dma.done [#allocation6], 130176
    $region45: #{tpu_custom_call.1} parent=1 // pred_fallthru
      _
    // Predicated region
    $region46: #{tpu_custom_call.1} parent=1 // pred_check
      _
    $region47: #{tpu_custom_call.1} parent=1 // pred_check_branch
      %94 = sbr.rel (0) target = $region49
    $region48: #{tpu_custom_call.1} parent=1 // pred_region
      %95 = dma.done [#allocation6], 288
    $region49: #{tpu_custom_call.1} parent=1 // pred_fallthru
      _
    // Predicated region
    $region50: #{tpu_custom_call.1} parent=1 // pred_check
      _
    $region51: #{tpu_custom_call.1} parent=1 // pred_check_branch
      %97 = sbr.rel (0) target = $region53
    $region52: #{tpu_custom_call.1} parent=1 // pred_region
      %98 = dma.done [#allocation9], 16
    $region53: #{tpu_custom_call.1} parent=1 // pred_fallthru
      _
    // Predicated region
    $region54: #{tpu_custom_call.1} parent=1 // pred_check
      _
    $region55: #{tpu_custom_call.1} parent=1 // pred_check_branch
      %100 = sbr.rel (0) target = $region57
    $region56: #{tpu_custom_call.1} parent=1 // pred_region
      %101 = dma.done [#allocation9], 32
    $region57: #{tpu_custom_call.1} parent=1 // pred_fallthru
      _
    // Predicated region
    $region58: #{tpu_custom_call.1} parent=1 // pred_check
      _
    $region59: #{tpu_custom_call.1} parent=1 // pred_check_branch
      %103 = sbr.rel (0) target = $region61
    $region60: #{tpu_custom_call.1} parent=1 // pred_region
      %104 = dma.done [#allocation12], 16
    $region61: #{tpu_custom_call.1} parent=1 // pred_fallthru
      _
    %v106 = vld [vmem:[#allocation2] sm:$0xff]
    %v107 = vld [vmem:[#allocation2 + $0x8] sm:$0xff]
    %v110 = vcombine.high %v106, %v106
    %v112 = vunpack.c.l.s4 1983009808
    %v113 = vunpack.c.0.s8 %v112
    %v114 = vlaneseq
    %v115 = vshrl.u32 %v114, 7
    %v116 = vsub.s32 %v113, %v115
    %v117 = vrot.slane %v106, %v116
    %v119 = vunpack.c.l.s4 1983009808
    %v120 = vunpack.c.0.s8 %v119
    %v121 = vlaneseq
    %v122 = vshrl.u32 %v121, 7
    %v123 = vsub.s32 %v120, %v122
    %v124 = vrot.slane %v110, %v123
    %v125 = vcombine.high %v117, %v117
    %v126 = vcombine.high %v124, %v124
    %v127 = vcombine.high %v107, %v107
    %v129 = vunpack.c.l.s4 1983009808
    %v130 = vunpack.c.0.s8 %v129
    %v131 = vlaneseq
    %v132 = vshrl.u32 %v131, 7
    %v133 = vsub.s32 %v130, %v132
    %v134 = vrot.slane %v107, %v133
    %v136 = vunpack.c.l.s4 1983009808
    %v137 = vunpack.c.0.s8 %v136
    %v138 = vlaneseq
    %v139 = vshrl.u32 %v138, 7
    %v140 = vsub.s32 %v137, %v139
    %v141 = vrot.slane %v127, %v140
    %v142 = vcombine.high %v134, %v134
    %v143 = vcombine.high %v141, %v141
    %v152 = vpack.c.bf16 %v117, %v117
    %v153 = vpack.c.bf16 %v125, %v125
    %v154 = vpack.c.bf16 %v124, %v124
    %v155 = vpack.c.bf16 %v126, %v126
    %v156 = vpack.c.bf16 %v134, %v134
    %v157 = vpack.c.bf16 %v142, %v142
    %v158 = vpack.c.bf16 %v141, %v141
    %v159 = vpack.c.bf16 %v143, %v143
    %v160 = vld [vmem:[#allocation5] sm:$0xff]
    %v161 = vld [vmem:[#allocation5 + $0x8] sm:$0xff]
    %v162 = vld [vmem:[#allocation5 + $0x10] sm:$0xff]
    %v163 = vld [vmem:[#allocation5 + $0x18] sm:$0xff]
    %v164 = vld [vmem:[#allocation5 + $0x20] sm:$0xff]
    %v165 = vld [vmem:[#allocation5 + $0x28] sm:$0xff]
    %v166 = vld [vmem:[#allocation5 + $0x30] sm:$0xff]
    %v167 = vld [vmem:[#allocation5 + $0x38] sm:$0xff]
    %v168 = vld [vmem:[#allocation5 + $0x40] sm:$0xff]
    %v169 = vld [vmem:[#allocation5 + $0x48] sm:$0xff]
    %v170 = vld [vmem:[#allocation5 + $0x50] sm:$0xff]
    %v171 = vld [vmem:[#allocation5 + $0x58] sm:$0xff]
    %v172 = vld [vmem:[#allocation5 + $0x60] sm:$0xff]
    %v173 = vld [vmem:[#allocation5 + $0x68] sm:$0xff]
    %v174 = vld [vmem:[#allocation5 + $0x70] sm:$0xff]
    %v175 = vld [vmem:[#allocation5 + $0x78] sm:$0xff]
    %v176 = vld [vmem:[#allocation5 + $0x80] sm:$0xff]
    %v177 = vld [vmem:[#allocation5 + $0x88] sm:$0xff]
    %v178 = vld [vmem:[#allocation5 + $0x90] sm:$0xff]
    %v179 = vld [vmem:[#allocation5 + $0x98] sm:$0xff]
    %v180 = vld [vmem:[#allocation5 + $0xa0] sm:$0xff]
    %v181 = vld [vmem:[#allocation5 + $0xa8] sm:$0xff]
    %v182 = vld [vmem:[#allocation5 + $0xb0] sm:$0xff]
    %v183 = vld [vmem:[#allocation5 + $0xb8] sm:$0xff]
    %v184 = vld [vmem:[#allocation5 + $0xc0] sm:$0xff]
    %v185 = vld [vmem:[#allocation5 + $0xc8] sm:$0xff]
    %v186 = vld [vmem:[#allocation5 + $0xd0] sm:$0xff]
    %v187 = vld [vmem:[#allocation5 + $0xd8] sm:$0xff]
    %v188 = vld [vmem:[#allocation5 + $0xe0] sm:$0xff]
    %v189 = vld [vmem:[#allocation5 + $0xe8] sm:$0xff]
    %v190 = vld [vmem:[#allocation5 + $0xf0] sm:$0xff]
    %v191 = vld [vmem:[#allocation5 + $0xf8] sm:$0xff]
    %v192 = vld [vmem:[#allocation5 + $0x100] sm:$0xff]
    %v193 = vld [vmem:[#allocation5 + $0x108] sm:$0xff]
    %v194 = vld [vmem:[#allocation5 + $0x110] sm:$0xff]
    %v195 = vld [vmem:[#allocation5 + $0x118] sm:$0xff]
    %v196 = vld [vmem:[#allocation5 + $0x120] sm:$0xff]
    %v197 = vld [vmem:[#allocation5 + $0x128] sm:$0xff]
    %v198 = vld [vmem:[#allocation5 + $0x130] sm:$0xff]
    %v199 = vld [vmem:[#allocation5 + $0x138] sm:$0xff]
    %v200 = vld [vmem:[#allocation5 + $0x140] sm:$0xff]
    %v201 = vld [vmem:[#allocation5 + $0x148] sm:$0xff]
    %v202 = vld [vmem:[#allocation5 + $0x150] sm:$0xff]
    %v203 = vld [vmem:[#allocation5 + $0x158] sm:$0xff]
    %v204 = vld [vmem:[#allocation5 + $0x160] sm:$0xff]
    %v205 = vld [vmem:[#allocation5 + $0x168] sm:$0xff]
    %v206 = vld [vmem:[#allocation5 + $0x170] sm:$0xff]
    %v207 = vld [vmem:[#allocation5 + $0x178] sm:$0xff]
    %v208 = vld [vmem:[#allocation5 + $0x180] sm:$0xff]
    %v209 = vld [vmem:[#allocation5 + $0x188] sm:$0xff]
    %v210 = vld [vmem:[#allocation5 + $0x190] sm:$0xff]
    %v211 = vld [vmem:[#allocation5 + $0x198] sm:$0xff]
    %v212 = vld [vmem:[#allocation5 + $0x1a0] sm:$0xff]
    %v213 = vld [vmem:[#allocation5 + $0x1a8] sm:$0xff]
    %v214 = vld [vmem:[#allocation5 + $0x1b0] sm:$0xff]
    %v215 = vld [vmem:[#allocation5 + $0x1b8] sm:$0xff]
    %v216 = vld [vmem:[#allocation5 + $0x1c0] sm:$0xff]
    %v217 = vld [vmem:[#allocation5 + $0x1c8] sm:$0xff]
    %v218 = vld [vmem:[#allocation5 + $0x1d0] sm:$0xff]
    %v219 = vld [vmem:[#allocation5 + $0x1d8] sm:$0xff]
    %v220 = vld [vmem:[#allocation5 + $0x1e0] sm:$0xff]
    %v221 = vld [vmem:[#allocation5 + $0x1e8] sm:$0xff]
    %v222 = vld [vmem:[#allocation5 + $0x1f0] sm:$0xff]
    %v223 = vld [vmem:[#allocation5 + $0x1f8] sm:$0xff]
    %v224 = vld [vmem:[#allocation5 + $0x200] sm:$0xff]
    %v225 = vld [vmem:[#allocation5 + $0x208] sm:$0xff]
    %v226 = vld [vmem:[#allocation5 + $0x210] sm:$0xff]
    %v227 = vld [vmem:[#allocation5 + $0x218] sm:$0xff]
    %v228 = vld [vmem:[#allocation5 + $0x220] sm:$0xff]
    %v229 = vld [vmem:[#allocation5 + $0x228] sm:$0xff]
    %v230 = vld [vmem:[#allocation5 + $0x230] sm:$0xff]
    %v231 = vld [vmem:[#allocation5 + $0x238] sm:$0xff]
    %v232 = vld [vmem:[#allocation5 + $0x240] sm:$0xff]
    %v233 = vld [vmem:[#allocation5 + $0x248] sm:$0xff]
    %v234 = vld [vmem:[#allocation5 + $0x250] sm:$0xff]
    %v235 = vld [vmem:[#allocation5 + $0x258] sm:$0xff]
    %v236 = vld [vmem:[#allocation5 + $0x260] sm:$0xff]
    %v237 = vld [vmem:[#allocation5 + $0x268] sm:$0xff]
    %v238 = vld [vmem:[#allocation5 + $0x270] sm:$0xff]
    %v239 = vld [vmem:[#allocation5 + $0x278] sm:$0xff]
    %v240 = vld [vmem:[#allocation5 + $0x280] sm:$0xff]
    %v241 = vld [vmem:[#allocation5 + $0x288] sm:$0xff]
    %v242 = vld [vmem:[#allocation5 + $0x290] sm:$0xff]
    %v243 = vld [vmem:[#allocation5 + $0x298] sm:$0xff]
    %v244 = vld [vmem:[#allocation5 + $0x2a0] sm:$0xff]
    %v245 = vld [vmem:[#allocation5 + $0x2a8] sm:$0xff]
    %v246 = vld [vmem:[#allocation5 + $0x2b0] sm:$0xff]
    %v247 = vld [vmem:[#allocation5 + $0x2b8] sm:$0xff]
    %v248 = vld [vmem:[#allocation5 + $0x2c0] sm:$0xff]
    %v249 = vld [vmem:[#allocation5 + $0x2c8] sm:$0xff]
    %v250 = vld [vmem:[#allocation5 + $0x2d0] sm:$0xff]
    %v251 = vld [vmem:[#allocation5 + $0x2d8] sm:$0xff]
    %v252 = vld [vmem:[#allocation5 + $0x2e0] sm:$0xff]
    %v253 = vld [vmem:[#allocation5 + $0x2e8] sm:$0xff]
    %v254 = vld [vmem:[#allocation5 + $0x2f0] sm:$0xff]
    %v255 = vld [vmem:[#allocation5 + $0x2f8] sm:$0xff]
    %v256 = vld [vmem:[#allocation5 + $0x300] sm:$0xff]
    %v257 = vld [vmem:[#allocation5 + $0x308] sm:$0xff]
    %v258 = vld [vmem:[#allocation5 + $0x310] sm:$0xff]
    %v259 = vld [vmem:[#allocation5 + $0x318] sm:$0xff]
    %v260 = vld [vmem:[#allocation5 + $0x320] sm:$0xff]
    %v261 = vld [vmem:[#allocation5 + $0x328] sm:$0xff]
    %v262 = vld [vmem:[#allocation5 + $0x330] sm:$0xff]
    %v263 = vld [vmem:[#allocation5 + $0x338] sm:$0xff]
    %v264 = vld [vmem:[#allocation5 + $0x340] sm:$0xff]
    %v265 = vld [vmem:[#allocation5 + $0x348] sm:$0xff]
    %v266 = vld [vmem:[#allocation5 + $0x350] sm:$0xff]
    %v267 = vld [vmem:[#allocation5 + $0x358] sm:$0xff]
    %v268 = vld [vmem:[#allocation5 + $0x360] sm:$0xff]
    %v269 = vld [vmem:[#allocation5 + $0x368] sm:$0xff]
    %v270 = vld [vmem:[#allocation5 + $0x370] sm:$0xff]
    %v271 = vld [vmem:[#allocation5 + $0x378] sm:$0xff]
    %v272 = vld [vmem:[#allocation5 + $0x380] sm:$0xff]
    %v273 = vld [vmem:[#allocation5 + $0x388] sm:$0xff]
    %v274 = vld [vmem:[#allocation5 + $0x390] sm:$0xff]
    %v275 = vld [vmem:[#allocation5 + $0x398] sm:$0xff]
    %v276 = vld [vmem:[#allocation5 + $0x3a0] sm:$0xff]
    %v277 = vld [vmem:[#allocation5 + $0x3a8] sm:$0xff]
    %v278 = vld [vmem:[#allocation5 + $0x3b0] sm:$0xff]
    %v279 = vld [vmem:[#allocation5 + $0x3b8] sm:$0xff]
    %v280 = vld [vmem:[#allocation5 + $0x3c0] sm:$0xff]
    %v281 = vld [vmem:[#allocation5 + $0x3c8] sm:$0xff]
    %v282 = vld [vmem:[#allocation5 + $0x3d0] sm:$0xff]
    %v283 = vld [vmem:[#allocation5 + $0x3d8] sm:$0xff]
    %v284 = vld [vmem:[#allocation5 + $0x3e0] sm:$0xff]
    %v285 = vld [vmem:[#allocation5 + $0x3e8] sm:$0xff]
    %v286 = vld [vmem:[#allocation5 + $0x3f0] sm:$0xff]
    %v287 = vld [vmem:[#allocation5 + $0x3f8] sm:$0xff]
    %v288 = vld [vmem:[#allocation5 + $0x400] sm:$0xff]
    %v289 = vld [vmem:[#allocation5 + $0x408] sm:$0xff]
    %v290 = vld [vmem:[#allocation5 + $0x410] sm:$0xff]
    %v291 = vld [vmem:[#allocation5 + $0x418] sm:$0xff]
    %v292 = vld [vmem:[#allocation5 + $0x420] sm:$0xff]
    %v293 = vld [vmem:[#allocation5 + $0x428] sm:$0xff]
    %v294 = vld [vmem:[#allocation5 + $0x430] sm:$0xff]
    %v295 = vld [vmem:[#allocation5 + $0x438] sm:$0xff]
    %v296 = vld [vmem:[#allocation5 + $0x440] sm:$0xff]
    %v297 = vld [vmem:[#allocation5 + $0x448] sm:$0xff]
    %v298 = vld [vmem:[#allocation5 + $0x450] sm:$0xff]
    %v299 = vld [vmem:[#allocation5 + $0x458] sm:$0xff]
    %v300 = vld [vmem:[#allocation5 + $0x460] sm:$0xff]
    %v301 = vld [vmem:[#allocation5 + $0x468] sm:$0xff]
    %v302 = vld [vmem:[#allocation5 + $0x470] sm:$0xff]
    %v303 = vld [vmem:[#allocation5 + $0x478] sm:$0xff]
    %v304 = vld [vmem:[#allocation5 + $0x480] sm:$0xff]
    %v305 = vld [vmem:[#allocation5 + $0x488] sm:$0xff]
    %v306 = vld [vmem:[#allocation5 + $0x490] sm:$0xff]
    %v307 = vld [vmem:[#allocation5 + $0x498] sm:$0xff]
    %v308 = vld [vmem:[#allocation5 + $0x4a0] sm:$0xff]
    %v309 = vld [vmem:[#allocation5 + $0x4a8] sm:$0xff]
    %v310 = vld [vmem:[#allocation5 + $0x4b0] sm:$0xff]
    %v311 = vld [vmem:[#allocation5 + $0x4b8] sm:$0xff]
    %v312 = vld [vmem:[#allocation5 + $0x4c0] sm:$0xff]
    %v313 = vld [vmem:[#allocation5 + $0x4c8] sm:$0xff]
    %v314 = vld [vmem:[#allocation5 + $0x4d0] sm:$0xff]
    %v315 = vld [vmem:[#allocation5 + $0x4d8] sm:$0xff]
    %v316 = vld [vmem:[#allocation5 + $0x4e0] sm:$0xff]
    %v317 = vld [vmem:[#allocation5 + $0x4e8] sm:$0xff]
    %v318 = vld [vmem:[#allocation5 + $0x4f0] sm:$0xff]
    %v319 = vld [vmem:[#allocation5 + $0x4f8] sm:$0xff]
    %v320 = vld [vmem:[#allocation5 + $0x500] sm:$0xff]
    %v321 = vld [vmem:[#allocation5 + $0x508] sm:$0xff]
    %v322 = vld [vmem:[#allocation5 + $0x510] sm:$0xff]
    %v323 = vld [vmem:[#allocation5 + $0x518] sm:$0xff]
    %v324 = vld [vmem:[#allocation5 + $0x520] sm:$0xff]
    %v325 = vld [vmem:[#allocation5 + $0x528] sm:$0xff]
    %v326 = vld [vmem:[#allocation5 + $0x530] sm:$0xff]
    %v327 = vld [vmem:[#allocation5 + $0x538] sm:$0xff]
    %v328 = vld [vmem:[#allocation5 + $0x540] sm:$0xff]
    %v329 = vld [vmem:[#allocation5 + $0x548] sm:$0xff]
    %v330 = vld [vmem:[#allocation5 + $0x550] sm:$0xff]
    %v331 = vld [vmem:[#allocation5 + $0x558] sm:$0xff]
    %v332 = vld [vmem:[#allocation5 + $0x560] sm:$0xff]
    %v333 = vld [vmem:[#allocation5 + $0x568] sm:$0xff]
    %v334 = vld [vmem:[#allocation5 + $0x570] sm:$0xff]
    %v335 = vld [vmem:[#allocation5 + $0x578] sm:$0xff]
    %v336 = vld [vmem:[#allocation5 + $0x580] sm:$0xff]
    %v337 = vld [vmem:[#allocation5 + $0x588] sm:$0xff]
    %v338 = vld [vmem:[#allocation5 + $0x590] sm:$0xff]
    %v339 = vld [vmem:[#allocation5 + $0x598] sm:$0xff]
    %v340 = vld [vmem:[#allocation5 + $0x5a0] sm:$0xff]
    %v341 = vld [vmem:[#allocation5 + $0x5a8] sm:$0xff]
    %v342 = vld [vmem:[#allocation5 + $0x5b0] sm:$0xff]
    %v343 = vld [vmem:[#allocation5 + $0x5b8] sm:$0xff]
    %v344 = vld [vmem:[#allocation5 + $0x5c0] sm:$0xff]
    %v345 = vld [vmem:[#allocation5 + $0x5c8] sm:$0xff]
    %v346 = vld [vmem:[#allocation5 + $0x5d0] sm:$0xff]
    %v347 = vld [vmem:[#allocation5 + $0x5d8] sm:$0xff]
    %v348 = vld [vmem:[#allocation5 + $0x5e0] sm:$0xff]
    %v349 = vld [vmem:[#allocation5 + $0x5e8] sm:$0xff]
    %v350 = vld [vmem:[#allocation5 + $0x5f0] sm:$0xff]
    %v351 = vld [vmem:[#allocation5 + $0x5f8] sm:$0xff]
    %v352 = vld [vmem:[#allocation5 + $0x600] sm:$0xff]
    %v353 = vld [vmem:[#allocation5 + $0x608] sm:$0xff]
    %v354 = vld [vmem:[#allocation5 + $0x610] sm:$0xff]
    %v355 = vld [vmem:[#allocation5 + $0x618] sm:$0xff]
    %v356 = vld [vmem:[#allocation5 + $0x620] sm:$0xff]
    %v357 = vld [vmem:[#allocation5 + $0x628] sm:$0xff]
    %v358 = vld [vmem:[#allocation5 + $0x630] sm:$0xff]
    %v359 = vld [vmem:[#allocation5 + $0x638] sm:$0xff]
    %v360 = vld [vmem:[#allocation5 + $0x640] sm:$0xff]
    %v361 = vld [vmem:[#allocation5 + $0x648] sm:$0xff]
    %v362 = vld [vmem:[#allocation5 + $0x650] sm:$0xff]
    %v363 = vld [vmem:[#allocation5 + $0x658] sm:$0xff]
    %v364 = vld [vmem:[#allocation5 + $0x660] sm:$0xff]
    %v365 = vld [vmem:[#allocation5 + $0x668] sm:$0xff]
    %v366 = vld [vmem:[#allocation5 + $0x670] sm:$0xff]
    %v367 = vld [vmem:[#allocation5 + $0x678] sm:$0xff]
    %v368 = vld [vmem:[#allocation5 + $0x680] sm:$0xff]
    %v369 = vld [vmem:[#allocation5 + $0x688] sm:$0xff]
    %v370 = vld [vmem:[#allocation5 + $0x690] sm:$0xff]
    %v371 = vld [vmem:[#allocation5 + $0x698] sm:$0xff]
    %v372 = vld [vmem:[#allocation5 + $0x6a0] sm:$0xff]
    %v373 = vld [vmem:[#allocation5 + $0x6a8] sm:$0xff]
    %v374 = vld [vmem:[#allocation5 + $0x6b0] sm:$0xff]
    %v375 = vld [vmem:[#allocation5 + $0x6b8] sm:$0xff]
    %v376 = vld [vmem:[#allocation5 + $0x6c0] sm:$0xff]
    %v377 = vld [vmem:[#allocation5 + $0x6c8] sm:$0xff]
    %v378 = vld [vmem:[#allocation5 + $0x6d0] sm:$0xff]
    %v379 = vld [vmem:[#allocation5 + $0x6d8] sm:$0xff]
    %v380 = vld [vmem:[#allocation5 + $0x6e0] sm:$0xff]
    %v381 = vld [vmem:[#allocation5 + $0x6e8] sm:$0xff]
    %v382 = vld [vmem:[#allocation5 + $0x6f0] sm:$0xff]
    %v383 = vld [vmem:[#allocation5 + $0x6f8] sm:$0xff]
    %v384 = vld [vmem:[#allocation5 + $0x700] sm:$0xff]
    %v385 = vld [vmem:[#allocation5 + $0x708] sm:$0xff]
    %v386 = vld [vmem:[#allocation5 + $0x710] sm:$0xff]
    %v387 = vld [vmem:[#allocation5 + $0x718] sm:$0xff]
    %v388 = vld [vmem:[#allocation5 + $0x720] sm:$0xff]
    %v389 = vld [vmem:[#allocation5 + $0x728] sm:$0xff]
    %v390 = vld [vmem:[#allocation5 + $0x730] sm:$0xff]
    %v391 = vld [vmem:[#allocation5 + $0x738] sm:$0xff]
    %v392 = vld [vmem:[#allocation5 + $0x740] sm:$0xff]
    %v393 = vld [vmem:[#allocation5 + $0x748] sm:$0xff]
    %v394 = vld [vmem:[#allocation5 + $0x750] sm:$0xff]
    %v395 = vld [vmem:[#allocation5 + $0x758] sm:$0xff]
    %v396 = vld [vmem:[#allocation5 + $0x760] sm:$0xff]
    %v397 = vld [vmem:[#allocation5 + $0x768] sm:$0xff]
    %v398 = vld [vmem:[#allocation5 + $0x770] sm:$0xff]
    %v399 = vld [vmem:[#allocation5 + $0x778] sm:$0xff]
    %v400 = vld [vmem:[#allocation5 + $0x780] sm:$0xff]
    %v401 = vld [vmem:[#allocation5 + $0x788] sm:$0xff]
    %v402 = vld [vmem:[#allocation5 + $0x790] sm:$0xff]
    %v403 = vld [vmem:[#allocation5 + $0x798] sm:$0xff]
    %v404 = vld [vmem:[#allocation5 + $0x7a0] sm:$0xff]
    %v405 = vld [vmem:[#allocation5 + $0x7a8] sm:$0xff]
    %v406 = vld [vmem:[#allocation5 + $0x7b0] sm:$0xff]
    %v407 = vld [vmem:[#allocation5 + $0x7b8] sm:$0xff]
    %v408 = vld [vmem:[#allocation5 + $0x7c0] sm:$0xff]
    %v409 = vld [vmem:[#allocation5 + $0x7c8] sm:$0xff]
    %v410 = vld [vmem:[#allocation5 + $0x7d0] sm:$0xff]
    %v411 = vld [vmem:[#allocation5 + $0x7d8] sm:$0xff]
    %v412 = vld [vmem:[#allocation5 + $0x7e0] sm:$0xff]
    %v413 = vld [vmem:[#allocation5 + $0x7e8] sm:$0xff]
    %v414 = vld [vmem:[#allocation5 + $0x7f0] sm:$0xff]
    %v415 = vld [vmem:[#allocation5 + $0x7f8] sm:$0xff]
    %v416 = vld [vmem:[#allocation5 + $0x800] sm:$0xff]
    %v417 = vld [vmem:[#allocation5 + $0x808] sm:$0xff]
    %v418 = vld [vmem:[#allocation5 + $0x810] sm:$0xff]
    %v419 = vld [vmem:[#allocation5 + $0x818] sm:$0xff]
    %v420 = vld [vmem:[#allocation5 + $0x820] sm:$0xff]
    %v421 = vld [vmem:[#allocation5 + $0x828] sm:$0xff]
    %v422 = vld [vmem:[#allocation5 + $0x830] sm:$0xff]
    %v423 = vld [vmem:[#allocation5 + $0x838] sm:$0xff]
    %v424 = vld [vmem:[#allocation5 + $0x840] sm:$0xff]
    %v425 = vld [vmem:[#allocation5 + $0x848] sm:$0xff]
    %v426 = vld [vmem:[#allocation5 + $0x850] sm:$0xff]
    %v427 = vld [vmem:[#allocation5 + $0x858] sm:$0xff]
    %v428 = vld [vmem:[#allocation5 + $0x860] sm:$0xff]
    %v429 = vld [vmem:[#allocation5 + $0x868] sm:$0xff]
    %v430 = vld [vmem:[#allocation5 + $0x870] sm:$0xff]
    %v431 = vld [vmem:[#allocation5 + $0x878] sm:$0xff]
    %v432 = vld [vmem:[#allocation5 + $0x880] sm:$0xff]
    %v433 = vld [vmem:[#allocation5 + $0x888] sm:$0xff]
    %v434 = vld [vmem:[#allocation5 + $0x890] sm:$0xff]
    %v435 = vld [vmem:[#allocation5 + $0x898] sm:$0xff]
    %v436 = vld [vmem:[#allocation5 + $0x8a0] sm:$0xff]
    %v437 = vld [vmem:[#allocation5 + $0x8a8] sm:$0xff]
    %v438 = vld [vmem:[#allocation5 + $0x8b0] sm:$0xff]
    %v439 = vld [vmem:[#allocation5 + $0x8b8] sm:$0xff]
    %v440 = vld [vmem:[#allocation5 + $0x8c0] sm:$0xff]
    %v441 = vld [vmem:[#allocation5 + $0x8c8] sm:$0xff]
    %v442 = vld [vmem:[#allocation5 + $0x8d0] sm:$0xff]
    %v443 = vld [vmem:[#allocation5 + $0x8d8] sm:$0xff]
    %v444 = vld [vmem:[#allocation5 + $0x8e0] sm:$0xff]
    %v445 = vld [vmem:[#allocation5 + $0x8e8] sm:$0xff]
    %v446 = vld [vmem:[#allocation5 + $0x8f0] sm:$0xff]
    %v447 = vld [vmem:[#allocation5 + $0x8f8] sm:$0xff]
    %v448 = vld [vmem:[#allocation5 + $0x900] sm:$0xff]
    %v449 = vld [vmem:[#allocation5 + $0x908] sm:$0xff]
    %v450 = vld [vmem:[#allocation5 + $0x910] sm:$0xff]
    %v451 = vld [vmem:[#allocation5 + $0x918] sm:$0xff]
    %v452 = vld [vmem:[#allocation5 + $0x920] sm:$0xff]
    %v453 = vld [vmem:[#allocation5 + $0x928] sm:$0xff]
    %v454 = vld [vmem:[#allocation5 + $0x930] sm:$0xff]
    %v455 = vld [vmem:[#allocation5 + $0x938] sm:$0xff]
    %v456 = vld [vmem:[#allocation5 + $0x940] sm:$0xff]
    %v457 = vld [vmem:[#allocation5 + $0x948] sm:$0xff]
    %v458 = vld [vmem:[#allocation5 + $0x950] sm:$0xff]
    %v459 = vld [vmem:[#allocation5 + $0x958] sm:$0xff]
    %v460 = vld [vmem:[#allocation5 + $0x960] sm:$0xff]
    %v461 = vld [vmem:[#allocation5 + $0x968] sm:$0xff]
    %v462 = vld [vmem:[#allocation5 + $0x970] sm:$0xff]
    %v463 = vld [vmem:[#allocation5 + $0x978] sm:$0xff]
    %v464 = vld [vmem:[#allocation5 + $0x980] sm:$0xff]
    %v465 = vld [vmem:[#allocation5 + $0x988] sm:$0xff]
    %v466 = vld [vmem:[#allocation5 + $0x990] sm:$0xff]
    %v467 = vld [vmem:[#allocation5 + $0x998] sm:$0xff]
    %v468 = vld [vmem:[#allocation5 + $0x9a0] sm:$0xff]
    %v469 = vld [vmem:[#allocation5 + $0x9a8] sm:$0xff]
    %v470 = vld [vmem:[#allocation5 + $0x9b0] sm:$0xff]
    %v471 = vld [vmem:[#allocation5 + $0x9b8] sm:$0xff]
    %v472 = vld [vmem:[#allocation5 + $0x9c0] sm:$0xff]
    %v473 = vld [vmem:[#allocation5 + $0x9c8] sm:$0xff]
    %v474 = vld [vmem:[#allocation5 + $0x9d0] sm:$0xff]
    %v475 = vld [vmem:[#allocation5 + $0x9d8] sm:$0xff]
    %v476 = vld [vmem:[#allocation5 + $0x9e0] sm:$0xff]
    %v477 = vld [vmem:[#allocation5 + $0x9e8] sm:$0xff]
    %v478 = vld [vmem:[#allocation5 + $0x9f0] sm:$0xff]
    %v479 = vld [vmem:[#allocation5 + $0x9f8] sm:$0xff]
    %v480 = vld [vmem:[#allocation5 + $0xa00] sm:$0xff]
    %v481 = vld [vmem:[#allocation5 + $0xa08] sm:$0xff]
    %v482 = vld [vmem:[#allocation5 + $0xa10] sm:$0xff]
    %v483 = vld [vmem:[#allocation5 + $0xa18] sm:$0xff]
    %v484 = vld [vmem:[#allocation5 + $0xa20] sm:$0xff]
    %v485 = vld [vmem:[#allocation5 + $0xa28] sm:$0xff]
    %v486 = vld [vmem:[#allocation5 + $0xa30] sm:$0xff]
    %v487 = vld [vmem:[#allocation5 + $0xa38] sm:$0xff]
    %v488 = vld [vmem:[#allocation5 + $0xa40] sm:$0xff]
    %v489 = vld [vmem:[#allocation5 + $0xa48] sm:$0xff]
    %v490 = vld [vmem:[#allocation5 + $0xa50] sm:$0xff]
    %v491 = vld [vmem:[#allocation5 + $0xa58] sm:$0xff]
    %v492 = vld [vmem:[#allocation5 + $0xa60] sm:$0xff]
    %v493 = vld [vmem:[#allocation5 + $0xa68] sm:$0xff]
    %v494 = vld [vmem:[#allocation5 + $0xa70] sm:$0xff]
    %v495 = vld [vmem:[#allocation5 + $0xa78] sm:$0xff]
    %v496 = vld [vmem:[#allocation5 + $0xa80] sm:$0xff]
    %v497 = vld [vmem:[#allocation5 + $0xa88] sm:$0xff]
    %v498 = vld [vmem:[#allocation5 + $0xa90] sm:$0xff]
    %v499 = vld [vmem:[#allocation5 + $0xa98] sm:$0xff]
    %v500 = vld [vmem:[#allocation5 + $0xaa0] sm:$0xff]
    %v501 = vld [vmem:[#allocation5 + $0xaa8] sm:$0xff]
    %v502 = vld [vmem:[#allocation5 + $0xab0] sm:$0xff]
    %v503 = vld [vmem:[#allocation5 + $0xab8] sm:$0xff]
    %v504 = vld [vmem:[#allocation5 + $0xac0] sm:$0xff]
    %v505 = vld [vmem:[#allocation5 + $0xac8] sm:$0xff]
    %v506 = vld [vmem:[#allocation5 + $0xad0] sm:$0xff]
    %v507 = vld [vmem:[#allocation5 + $0xad8] sm:$0xff]
    %v508 = vld [vmem:[#allocation5 + $0xae0] sm:$0xff]
    %v509 = vld [vmem:[#allocation5 + $0xae8] sm:$0xff]
    %v510 = vld [vmem:[#allocation5 + $0xaf0] sm:$0xff]
    %v511 = vld [vmem:[#allocation5 + $0xaf8] sm:$0xff]
    %v512 = vld [vmem:[#allocation5 + $0xb00] sm:$0xff]
    %v513 = vld [vmem:[#allocation5 + $0xb08] sm:$0xff]
    %v514 = vld [vmem:[#allocation5 + $0xb10] sm:$0xff]
    %v515 = vld [vmem:[#allocation5 + $0xb18] sm:$0xff]
    %v516 = vld [vmem:[#allocation5 + $0xb20] sm:$0xff]
    %v517 = vld [vmem:[#allocation5 + $0xb28] sm:$0xff]
    %v518 = vld [vmem:[#allocation5 + $0xb30] sm:$0xff]
    %v519 = vld [vmem:[#allocation5 + $0xb38] sm:$0xff]
    %v520 = vld [vmem:[#allocation5 + $0xb40] sm:$0xff]
    %v521 = vld [vmem:[#allocation5 + $0xb48] sm:$0xff]
    %v522 = vld [vmem:[#allocation5 + $0xb50] sm:$0xff]
    %v523 = vld [vmem:[#allocation5 + $0xb58] sm:$0xff]
    %v524 = vld [vmem:[#allocation5 + $0xb60] sm:$0xff]
    %v525 = vld [vmem:[#allocation5 + $0xb68] sm:$0xff]
    %v526 = vld [vmem:[#allocation5 + $0xb70] sm:$0xff]
    %v527 = vld [vmem:[#allocation5 + $0xb78] sm:$0xff]
    %v528 = vld [vmem:[#allocation5 + $0xb80] sm:$0xff]
    %v529 = vld [vmem:[#allocation5 + $0xb88] sm:$0xff]
    %v530 = vld [vmem:[#allocation5 + $0xb90] sm:$0xff]
    %v531 = vld [vmem:[#allocation5 + $0xb98] sm:$0xff]
    %v532 = vld [vmem:[#allocation5 + $0xba0] sm:$0xff]
    %v533 = vld [vmem:[#allocation5 + $0xba8] sm:$0xff]
    %v534 = vld [vmem:[#allocation5 + $0xbb0] sm:$0xff]
    %v535 = vld [vmem:[#allocation5 + $0xbb8] sm:$0xff]
    %v536 = vld [vmem:[#allocation5 + $0xbc0] sm:$0xff]
    %v537 = vld [vmem:[#allocation5 + $0xbc8] sm:$0xff]
    %v538 = vld [vmem:[#allocation5 + $0xbd0] sm:$0xff]
    %v539 = vld [vmem:[#allocation5 + $0xbd8] sm:$0xff]
    %v540 = vld [vmem:[#allocation5 + $0xbe0] sm:$0xff]
    %v541 = vld [vmem:[#allocation5 + $0xbe8] sm:$0xff]
    %v542 = vld [vmem:[#allocation5 + $0xbf0] sm:$0xff]
    %v543 = vld [vmem:[#allocation5 + $0xbf8] sm:$0xff]
    %v544 = vld [vmem:[#allocation5 + $0xc00] sm:$0xff]
    %v545 = vld [vmem:[#allocation5 + $0xc08] sm:$0xff]
    %v546 = vld [vmem:[#allocation5 + $0xc10] sm:$0xff]
    %v547 = vld [vmem:[#allocation5 + $0xc18] sm:$0xff]
    %v548 = vld [vmem:[#allocation5 + $0xc20] sm:$0xff]
    %v549 = vld [vmem:[#allocation5 + $0xc28] sm:$0xff]
    %v550 = vld [vmem:[#allocation5 + $0xc30] sm:$0xff]
    %v551 = vld [vmem:[#allocation5 + $0xc38] sm:$0xff]
    %v552 = vld [vmem:[#allocation5 + $0xc40] sm:$0xff]
    %v553 = vld [vmem:[#allocation5 + $0xc48] sm:$0xff]
    %v554 = vld [vmem:[#allocation5 + $0xc50] sm:$0xff]
    %v555 = vld [vmem:[#allocation5 + $0xc58] sm:$0xff]
    %v556 = vld [vmem:[#allocation5 + $0xc60] sm:$0xff]
    %v557 = vld [vmem:[#allocation5 + $0xc68] sm:$0xff]
    %v558 = vld [vmem:[#allocation5 + $0xc70] sm:$0xff]
    %v559 = vld [vmem:[#allocation5 + $0xc78] sm:$0xff]
    %v560 = vld [vmem:[#allocation5 + $0xc80] sm:$0xff]
    %v561 = vld [vmem:[#allocation5 + $0xc88] sm:$0xff]
    %v562 = vld [vmem:[#allocation5 + $0xc90] sm:$0xff]
    %v563 = vld [vmem:[#allocation5 + $0xc98] sm:$0xff]
    %v564 = vld [vmem:[#allocation5 + $0xca0] sm:$0xff]
    %v565 = vld [vmem:[#allocation5 + $0xca8] sm:$0xff]
    %v566 = vld [vmem:[#allocation5 + $0xcb0] sm:$0xff]
    %v567 = vld [vmem:[#allocation5 + $0xcb8] sm:$0xff]
    %v568 = vld [vmem:[#allocation5 + $0xcc0] sm:$0xff]
    %v569 = vld [vmem:[#allocation5 + $0xcc8] sm:$0xff]
    %v570 = vld [vmem:[#allocation5 + $0xcd0] sm:$0xff]
    %v571 = vld [vmem:[#allocation5 + $0xcd8] sm:$0xff]
    %v572 = vld [vmem:[#allocation5 + $0xce0] sm:$0xff]
    %v573 = vld [vmem:[#allocation5 + $0xce8] sm:$0xff]
    %v574 = vld [vmem:[#allocation5 + $0xcf0] sm:$0xff]
    %v575 = vld [vmem:[#allocation5 + $0xcf8] sm:$0xff]
    %v576 = vld [vmem:[#allocation5 + $0xd00] sm:$0xff]
    %v577 = vld [vmem:[#allocation5 + $0xd08] sm:$0xff]
    %v578 = vld [vmem:[#allocation5 + $0xd10] sm:$0xff]
    %v579 = vld [vmem:[#allocation5 + $0xd18] sm:$0xff]
    %v580 = vld [vmem:[#allocation5 + $0xd20] sm:$0xff]
    %v581 = vld [vmem:[#allocation5 + $0xd28] sm:$0xff]
    %v582 = vld [vmem:[#allocation5 + $0xd30] sm:$0xff]
    %v583 = vld [vmem:[#allocation5 + $0xd38] sm:$0xff]
    %v584 = vld [vmem:[#allocation5 + $0xd40] sm:$0xff]
    %v585 = vld [vmem:[#allocation5 + $0xd48] sm:$0xff]
    %v586 = vld [vmem:[#allocation5 + $0xd50] sm:$0xff]
    %v587 = vld [vmem:[#allocation5 + $0xd58] sm:$0xff]
    %v588 = vld [vmem:[#allocation5 + $0xd60] sm:$0xff]
    %v589 = vld [vmem:[#allocation5 + $0xd68] sm:$0xff]
    %v590 = vld [vmem:[#allocation5 + $0xd70] sm:$0xff]
    %v591 = vld [vmem:[#allocation5 + $0xd78] sm:$0xff]
    %v592 = vld [vmem:[#allocation5 + $0xd80] sm:$0xff]
    %v593 = vld [vmem:[#allocation5 + $0xd88] sm:$0xff]
    %v594 = vld [vmem:[#allocation5 + $0xd90] sm:$0xff]
    %v595 = vld [vmem:[#allocation5 + $0xd98] sm:$0xff]
    %v596 = vld [vmem:[#allocation5 + $0xda0] sm:$0xff]
    %v597 = vld [vmem:[#allocation5 + $0xda8] sm:$0xff]
    %v598 = vld [vmem:[#allocation5 + $0xdb0] sm:$0xff]
    %v599 = vld [vmem:[#allocation5 + $0xdb8] sm:$0xff]
    %v600 = vld [vmem:[#allocation5 + $0xdc0] sm:$0xff]
    %v601 = vld [vmem:[#allocation5 + $0xdc8] sm:$0xff]
    %v602 = vld [vmem:[#allocation5 + $0xdd0] sm:$0xff]
    %v603 = vld [vmem:[#allocation5 + $0xdd8] sm:$0xff]
    %v604 = vld [vmem:[#allocation5 + $0xde0] sm:$0xff]
    %v605 = vld [vmem:[#allocation5 + $0xde8] sm:$0xff]
    %v606 = vld [vmem:[#allocation5 + $0xdf0] sm:$0xff]
    %v607 = vld [vmem:[#allocation5 + $0xdf8] sm:$0xff]
    %v608 = vld [vmem:[#allocation5 + $0xe00] sm:$0xff]
    %v609 = vld [vmem:[#allocation5 + $0xe08] sm:$0xff]
    %v610 = vld [vmem:[#allocation5 + $0xe10] sm:$0xff]
    %v611 = vld [vmem:[#allocation5 + $0xe18] sm:$0xff]
    %v612 = vld [vmem:[#allocation5 + $0xe20] sm:$0xff]
    %v613 = vld [vmem:[#allocation5 + $0xe28] sm:$0xff]
    %v614 = vld [vmem:[#allocation5 + $0xe30] sm:$0xff]
    %v615 = vld [vmem:[#allocation5 + $0xe38] sm:$0xff]
    %v616 = vld [vmem:[#allocation5 + $0xe40] sm:$0xff]
    %v617 = vld [vmem:[#allocation5 + $0xe48] sm:$0xff]
    %v618 = vld [vmem:[#allocation5 + $0xe50] sm:$0xff]
    %v619 = vld [vmem:[#allocation5 + $0xe58] sm:$0xff]
    %v620 = vld [vmem:[#allocation5 + $0xe60] sm:$0xff]
    %v621 = vld [vmem:[#allocation5 + $0xe68] sm:$0xff]
    %v622 = vld [vmem:[#allocation5 + $0xe70] sm:$0xff]
    %v623 = vld [vmem:[#allocation5 + $0xe78] sm:$0xff]
    %v624 = vld [vmem:[#allocation5 + $0xe80] sm:$0xff]
    %v625 = vld [vmem:[#allocation5 + $0xe88] sm:$0xff]
    %v626 = vld [vmem:[#allocation5 + $0xe90] sm:$0xff]
    %v627 = vld [vmem:[#allocation5 + $0xe98] sm:$0xff]
    %v628 = vld [vmem:[#allocation5 + $0xea0] sm:$0xff]
    %v629 = vld [vmem:[#allocation5 + $0xea8] sm:$0xff]
    %v630 = vld [vmem:[#allocation5 + $0xeb0] sm:$0xff]
    %v631 = vld [vmem:[#allocation5 + $0xeb8] sm:$0xff]
    %v632 = vld [vmem:[#allocation5 + $0xec0] sm:$0xff]
    %v633 = vld [vmem:[#allocation5 + $0xec8] sm:$0xff]
    %v634 = vld [vmem:[#allocation5 + $0xed0] sm:$0xff]
    %v635 = vld [vmem:[#allocation5 + $0xed8] sm:$0xff]
    %v636 = vld [vmem:[#allocation5 + $0xee0] sm:$0xff]
    %v637 = vld [vmem:[#allocation5 + $0xee8] sm:$0xff]
    %v638 = vld [vmem:[#allocation5 + $0xef0] sm:$0xff]
    %v639 = vld [vmem:[#allocation5 + $0xef8] sm:$0xff]
    %v640 = vld [vmem:[#allocation5 + $0xf00] sm:$0xff]
    %v641 = vld [vmem:[#allocation5 + $0xf08] sm:$0xff]
    %v642 = vld [vmem:[#allocation5 + $0xf10] sm:$0xff]
    %v643 = vld [vmem:[#allocation5 + $0xf18] sm:$0xff]
    %v644 = vld [vmem:[#allocation5 + $0xf20] sm:$0xff]
    %v645 = vld [vmem:[#allocation5 + $0xf28] sm:$0xff]
    %v646 = vld [vmem:[#allocation5 + $0xf30] sm:$0xff]
    %v647 = vld [vmem:[#allocation5 + $0xf38] sm:$0xff]
    %v648 = vld [vmem:[#allocation5 + $0xf40] sm:$0xff]
    %v649 = vld [vmem:[#allocation5 + $0xf48] sm:$0xff]
    %v650 = vld [vmem:[#allocation5 + $0xf50] sm:$0xff]
    %v651 = vld [vmem:[#allocation5 + $0xf58] sm:$0xff]
    %v652 = vld [vmem:[#allocation5 + $0xf60] sm:$0xff]
    %v653 = vld [vmem:[#allocation5 + $0xf68] sm:$0xff]
    %v654 = vld [vmem:[#allocation5 + $0xf70] sm:$0xff]
    %v655 = vld [vmem:[#allocation5 + $0xf78] sm:$0xff]
    %v656 = vld [vmem:[#allocation5 + $0xf80] sm:$0xff]
    %v657 = vld [vmem:[#allocation5 + $0xf88] sm:$0xff]
    %v658 = vld [vmem:[#allocation5 + $0xf90] sm:$0xff]
    %v659 = vld [vmem:[#allocation5 + $0xf98] sm:$0xff]
    %v660 = vld [vmem:[#allocation5 + $0xfa0] sm:$0xff]
    %v661 = vld [vmem:[#allocation5 + $0xfa8] sm:$0xff]
    %v662 = vld [vmem:[#allocation5 + $0xfb0] sm:$0xff]
    %v663 = vld [vmem:[#allocation5 + $0xfb8] sm:$0xff]
    %v664 = vld [vmem:[#allocation5 + $0xfc0] sm:$0xff]
    %v665 = vld [vmem:[#allocation5 + $0xfc8] sm:$0xff]
    %v666 = vld [vmem:[#allocation5 + $0xfd0] sm:$0xff]
    %v667 = vld [vmem:[#allocation5 + $0xfd8] sm:$0xff]
    %v668 = vld [vmem:[#allocation5 + $0xfe0] sm:$0xff]
    %v669 = vld [vmem:[#allocation5 + $0xfe8] sm:$0xff]
    %v670 = vld [vmem:[#allocation5 + $0xff0] sm:$0xff]
    %v671 = vld [vmem:[#allocation5 + $0xff8] sm:$0xff]
    %v672 = vld [vmem:[#allocation5 + $0x1000] sm:$0xff]
    %v673 = vld [vmem:[#allocation5 + $0x1008] sm:$0xff]
    %v674 = vld [vmem:[#allocation5 + $0x1010] sm:$0xff]
    %v675 = vld [vmem:[#allocation5 + $0x1018] sm:$0xff]
    %v676 = vld [vmem:[#allocation5 + $0x1020] sm:$0xff]
    %v677 = vld [vmem:[#allocation5 + $0x1028] sm:$0xff]
    %v678 = vld [vmem:[#allocation5 + $0x1030] sm:$0xff]
    %v679 = vld [vmem:[#allocation5 + $0x1038] sm:$0xff]
    %v680 = vld [vmem:[#allocation5 + $0x1040] sm:$0xff]
    %v681 = vld [vmem:[#allocation5 + $0x1048] sm:$0xff]
    %v682 = vld [vmem:[#allocation5 + $0x1050] sm:$0xff]
    %v683 = vld [vmem:[#allocation5 + $0x1058] sm:$0xff]
    %v684 = vld [vmem:[#allocation5 + $0x1060] sm:$0xff]
    %v685 = vld [vmem:[#allocation5 + $0x1068] sm:$0xff]
    %v686 = vld [vmem:[#allocation5 + $0x1070] sm:$0xff]
    %v687 = vld [vmem:[#allocation5 + $0x1078] sm:$0xff]
    %v688 = vld [vmem:[#allocation5 + $0x1080] sm:$0xff]
    %v689 = vld [vmem:[#allocation5 + $0x1088] sm:$0xff]
    %v690 = vld [vmem:[#allocation5 + $0x1090] sm:$0xff]
    %v691 = vld [vmem:[#allocation5 + $0x1098] sm:$0xff]
    %v692 = vld [vmem:[#allocation5 + $0x10a0] sm:$0xff]
    %v693 = vld [vmem:[#allocation5 + $0x10a8] sm:$0xff]
    %v694 = vld [vmem:[#allocation5 + $0x10b0] sm:$0xff]
    %v695 = vld [vmem:[#allocation5 + $0x10b8] sm:$0xff]
    %v696 = vld [vmem:[#allocation5 + $0x10c0] sm:$0xff]
    %v697 = vld [vmem:[#allocation5 + $0x10c8] sm:$0xff]
    %v698 = vld [vmem:[#allocation5 + $0x10d0] sm:$0xff]
    %v699 = vld [vmem:[#allocation5 + $0x10d8] sm:$0xff]
    %v700 = vld [vmem:[#allocation5 + $0x10e0] sm:$0xff]
    %v701 = vld [vmem:[#allocation5 + $0x10e8] sm:$0xff]
    %v702 = vld [vmem:[#allocation5 + $0x10f0] sm:$0xff]
    %v703 = vld [vmem:[#allocation5 + $0x10f8] sm:$0xff]
    %v704 = vld [vmem:[#allocation5 + $0x1100] sm:$0xff]
    %v705 = vld [vmem:[#allocation5 + $0x1108] sm:$0xff]
    %v706 = vld [vmem:[#allocation5 + $0x1110] sm:$0xff]
    %v707 = vld [vmem:[#allocation5 + $0x1118] sm:$0xff]
    %v708 = vld [vmem:[#allocation5 + $0x1120] sm:$0xff]
    %v709 = vld [vmem:[#allocation5 + $0x1128] sm:$0xff]
    %v710 = vld [vmem:[#allocation5 + $0x1130] sm:$0xff]
    %v711 = vld [vmem:[#allocation5 + $0x1138] sm:$0xff]
    %v712 = vld [vmem:[#allocation5 + $0x1140] sm:$0xff]
    %v713 = vld [vmem:[#allocation5 + $0x1148] sm:$0xff]
    %v714 = vld [vmem:[#allocation5 + $0x1150] sm:$0xff]
    %v715 = vld [vmem:[#allocation5 + $0x1158] sm:$0xff]
    %v716 = vld [vmem:[#allocation5 + $0x1160] sm:$0xff]
    %v717 = vld [vmem:[#allocation5 + $0x1168] sm:$0xff]
    %v718 = vld [vmem:[#allocation5 + $0x1170] sm:$0xff]
    %v719 = vld [vmem:[#allocation5 + $0x1178] sm:$0xff]
    %v720 = vld [vmem:[#allocation5 + $0x1180] sm:$0xff]
    %v721 = vld [vmem:[#allocation5 + $0x1188] sm:$0xff]
    %v722 = vld [vmem:[#allocation5 + $0x1190] sm:$0xff]
    %v723 = vld [vmem:[#allocation5 + $0x1198] sm:$0xff]
    %v724 = vld [vmem:[#allocation5 + $0x11a0] sm:$0xff]
    %v725 = vld [vmem:[#allocation5 + $0x11a8] sm:$0xff]
    %v726 = vld [vmem:[#allocation5 + $0x11b0] sm:$0xff]
    %v727 = vld [vmem:[#allocation5 + $0x11b8] sm:$0xff]
    %v728 = vld [vmem:[#allocation5 + $0x11c0] sm:$0xff]
    %v729 = vld [vmem:[#allocation5 + $0x11c8] sm:$0xff]
    %v730 = vld [vmem:[#allocation5 + $0x11d0] sm:$0xff]
    %v731 = vld [vmem:[#allocation5 + $0x11d8] sm:$0xff]
    %v732 = vld [vmem:[#allocation5 + $0x11e0] sm:$0xff]
    %v733 = vld [vmem:[#allocation5 + $0x11e8] sm:$0xff]
    %v734 = vld [vmem:[#allocation5 + $0x11f0] sm:$0xff]
    %v735 = vld [vmem:[#allocation5 + $0x11f8] sm:$0xff]
    %v736 = vld [vmem:[#allocation5 + $0x1200] sm:$0xff]
    %v737 = vld [vmem:[#allocation5 + $0x1208] sm:$0xff]
    %v738 = vld [vmem:[#allocation5 + $0x1210] sm:$0xff]
    %v739 = vld [vmem:[#allocation5 + $0x1218] sm:$0xff]
    %v740 = vld [vmem:[#allocation5 + $0x1220] sm:$0xff]
    %v741 = vld [vmem:[#allocation5 + $0x1228] sm:$0xff]
    %v742 = vld [vmem:[#allocation5 + $0x1230] sm:$0xff]
    %v743 = vld [vmem:[#allocation5 + $0x1238] sm:$0xff]
    %v744 = vld [vmem:[#allocation5 + $0x1240] sm:$0xff]
    %v745 = vld [vmem:[#allocation5 + $0x1248] sm:$0xff]
    %v746 = vld [vmem:[#allocation5 + $0x1250] sm:$0xff]
    %v747 = vld [vmem:[#allocation5 + $0x1258] sm:$0xff]
    %v748 = vld [vmem:[#allocation5 + $0x1260] sm:$0xff]
    %v749 = vld [vmem:[#allocation5 + $0x1268] sm:$0xff]
    %v750 = vld [vmem:[#allocation5 + $0x1270] sm:$0xff]
    %v751 = vld [vmem:[#allocation5 + $0x1278] sm:$0xff]
    %v752 = vld [vmem:[#allocation5 + $0x1280] sm:$0xff]
    %v753 = vld [vmem:[#allocation5 + $0x1288] sm:$0xff]
    %v754 = vld [vmem:[#allocation5 + $0x1290] sm:$0xff]
    %v755 = vld [vmem:[#allocation5 + $0x1298] sm:$0xff]
    %v756 = vld [vmem:[#allocation5 + $0x12a0] sm:$0xff]
    %v757 = vld [vmem:[#allocation5 + $0x12a8] sm:$0xff]
    %v758 = vld [vmem:[#allocation5 + $0x12b0] sm:$0xff]
    %v759 = vld [vmem:[#allocation5 + $0x12b8] sm:$0xff]
    %v760 = vld [vmem:[#allocation5 + $0x12c0] sm:$0xff]
    %v761 = vld [vmem:[#allocation5 + $0x12c8] sm:$0xff]
    %v762 = vld [vmem:[#allocation5 + $0x12d0] sm:$0xff]
    %v763 = vld [vmem:[#allocation5 + $0x12d8] sm:$0xff]
    %v764 = vld [vmem:[#allocation5 + $0x12e0] sm:$0xff]
    %v765 = vld [vmem:[#allocation5 + $0x12e8] sm:$0xff]
    %v766 = vld [vmem:[#allocation5 + $0x12f0] sm:$0xff]
    %v767 = vld [vmem:[#allocation5 + $0x12f8] sm:$0xff]
    %v768 = vld [vmem:[#allocation5 + $0x1300] sm:$0xff]
    %v769 = vld [vmem:[#allocation5 + $0x1308] sm:$0xff]
    %v770 = vld [vmem:[#allocation5 + $0x1310] sm:$0xff]
    %v771 = vld [vmem:[#allocation5 + $0x1318] sm:$0xff]
    %v772 = vld [vmem:[#allocation5 + $0x1320] sm:$0xff]
    %v773 = vld [vmem:[#allocation5 + $0x1328] sm:$0xff]
    %v774 = vld [vmem:[#allocation5 + $0x1330] sm:$0xff]
    %v775 = vld [vmem:[#allocation5 + $0x1338] sm:$0xff]
    %v776 = vld [vmem:[#allocation5 + $0x1340] sm:$0xff]
    %v777 = vld [vmem:[#allocation5 + $0x1348] sm:$0xff]
    %v778 = vld [vmem:[#allocation5 + $0x1350] sm:$0xff]
    %v779 = vld [vmem:[#allocation5 + $0x1358] sm:$0xff]
    %v780 = vld [vmem:[#allocation5 + $0x1360] sm:$0xff]
    %v781 = vld [vmem:[#allocation5 + $0x1368] sm:$0xff]
    %v782 = vld [vmem:[#allocation5 + $0x1370] sm:$0xff]
    %v783 = vld [vmem:[#allocation5 + $0x1378] sm:$0xff]
    %v784 = vld [vmem:[#allocation5 + $0x1380] sm:$0xff]
    %v785 = vld [vmem:[#allocation5 + $0x1388] sm:$0xff]
    %v786 = vld [vmem:[#allocation5 + $0x1390] sm:$0xff]
    %v787 = vld [vmem:[#allocation5 + $0x1398] sm:$0xff]
    %v788 = vld [vmem:[#allocation5 + $0x13a0] sm:$0xff]
    %v789 = vld [vmem:[#allocation5 + $0x13a8] sm:$0xff]
    %v790 = vld [vmem:[#allocation5 + $0x13b0] sm:$0xff]
    %v791 = vld [vmem:[#allocation5 + $0x13b8] sm:$0xff]
    %v792 = vld [vmem:[#allocation5 + $0x13c0] sm:$0xff]
    %v793 = vld [vmem:[#allocation5 + $0x13c8] sm:$0xff]
    %v794 = vld [vmem:[#allocation5 + $0x13d0] sm:$0xff]
    %v795 = vld [vmem:[#allocation5 + $0x13d8] sm:$0xff]
    %v796 = vld [vmem:[#allocation5 + $0x13e0] sm:$0xff]
    %v797 = vld [vmem:[#allocation5 + $0x13e8] sm:$0xff]
    %v798 = vld [vmem:[#allocation5 + $0x13f0] sm:$0xff]
    %v799 = vld [vmem:[#allocation5 + $0x13f8] sm:$0xff]
    %v800 = vld [vmem:[#allocation5 + $0x1400] sm:$0xff]
    %v801 = vld [vmem:[#allocation5 + $0x1408] sm:$0xff]
    %v802 = vld [vmem:[#allocation5 + $0x1410] sm:$0xff]
    %v803 = vld [vmem:[#allocation5 + $0x1418] sm:$0xff]
    %v804 = vld [vmem:[#allocation5 + $0x1420] sm:$0xff]
    %v805 = vld [vmem:[#allocation5 + $0x1428] sm:$0xff]
    %v806 = vld [vmem:[#allocation5 + $0x1430] sm:$0xff]
    %v807 = vld [vmem:[#allocation5 + $0x1438] sm:$0xff]
    %v808 = vld [vmem:[#allocation5 + $0x1440] sm:$0xff]
    %v809 = vld [vmem:[#allocation5 + $0x1448] sm:$0xff]
    %v810 = vld [vmem:[#allocation5 + $0x1450] sm:$0xff]
    %v811 = vld [vmem:[#allocation5 + $0x1458] sm:$0xff]
    %v812 = vld [vmem:[#allocation5 + $0x1460] sm:$0xff]
    %v813 = vld [vmem:[#allocation5 + $0x1468] sm:$0xff]
    %v814 = vld [vmem:[#allocation5 + $0x1470] sm:$0xff]
    %v815 = vld [vmem:[#allocation5 + $0x1478] sm:$0xff]
    %v816 = vld [vmem:[#allocation5 + $0x1480] sm:$0xff]
    %v817 = vld [vmem:[#allocation5 + $0x1488] sm:$0xff]
    %v818 = vld [vmem:[#allocation5 + $0x1490] sm:$0xff]
    %v819 = vld [vmem:[#allocation5 + $0x1498] sm:$0xff]
    %v820 = vld [vmem:[#allocation5 + $0x14a0] sm:$0xff]
    %v821 = vld [vmem:[#allocation5 + $0x14a8] sm:$0xff]
    %v822 = vld [vmem:[#allocation5 + $0x14b0] sm:$0xff]
    %v823 = vld [vmem:[#allocation5 + $0x14b8] sm:$0xff]
    %v824 = vld [vmem:[#allocation5 + $0x14c0] sm:$0xff]
    %v825 = vld [vmem:[#allocation5 + $0x14c8] sm:$0xff]
    %v826 = vld [vmem:[#allocation5 + $0x14d0] sm:$0xff]
    %v827 = vld [vmem:[#allocation5 + $0x14d8] sm:$0xff]
    %v828 = vld [vmem:[#allocation5 + $0x14e0] sm:$0xff]
    %v829 = vld [vmem:[#allocation5 + $0x14e8] sm:$0xff]
    %v830 = vld [vmem:[#allocation5 + $0x14f0] sm:$0xff]
    %v831 = vld [vmem:[#allocation5 + $0x14f8] sm:$0xff]
    %v832 = vld [vmem:[#allocation5 + $0x1500] sm:$0xff]
    %v833 = vld [vmem:[#allocation5 + $0x1508] sm:$0xff]
    %v834 = vld [vmem:[#allocation5 + $0x1510] sm:$0xff]
    %v835 = vld [vmem:[#allocation5 + $0x1518] sm:$0xff]
    %v836 = vld [vmem:[#allocation5 + $0x1520] sm:$0xff]
    %v837 = vld [vmem:[#allocation5 + $0x1528] sm:$0xff]
    %v838 = vld [vmem:[#allocation5 + $0x1530] sm:$0xff]
    %v839 = vld [vmem:[#allocation5 + $0x1538] sm:$0xff]
    %v840 = vld [vmem:[#allocation5 + $0x1540] sm:$0xff]
    %v841 = vld [vmem:[#allocation5 + $0x1548] sm:$0xff]
    %v842 = vld [vmem:[#allocation5 + $0x1550] sm:$0xff]
    %v843 = vld [vmem:[#allocation5 + $0x1558] sm:$0xff]
    %v844 = vld [vmem:[#allocation5 + $0x1560] sm:$0xff]
    %v845 = vld [vmem:[#allocation5 + $0x1568] sm:$0xff]
    %v846 = vld [vmem:[#allocation5 + $0x1570] sm:$0xff]
    %v847 = vld [vmem:[#allocation5 + $0x1578] sm:$0xff]
    %v848 = vld [vmem:[#allocation5 + $0x1580] sm:$0xff]
    %v849 = vld [vmem:[#allocation5 + $0x1588] sm:$0xff]
    %v850 = vld [vmem:[#allocation5 + $0x1590] sm:$0xff]
    %v851 = vld [vmem:[#allocation5 + $0x1598] sm:$0xff]
    %v852 = vld [vmem:[#allocation5 + $0x15a0] sm:$0xff]
    %v853 = vld [vmem:[#allocation5 + $0x15a8] sm:$0xff]
    %v854 = vld [vmem:[#allocation5 + $0x15b0] sm:$0xff]
    %v855 = vld [vmem:[#allocation5 + $0x15b8] sm:$0xff]
    %v856 = vld [vmem:[#allocation5 + $0x15c0] sm:$0xff]
    %v857 = vld [vmem:[#allocation5 + $0x15c8] sm:$0xff]
    %v858 = vld [vmem:[#allocation5 + $0x15d0] sm:$0xff]
    %v859 = vld [vmem:[#allocation5 + $0x15d8] sm:$0xff]
    %v860 = vld [vmem:[#allocation5 + $0x15e0] sm:$0xff]
    %v861 = vld [vmem:[#allocation5 + $0x15e8] sm:$0xff]
    %v862 = vld [vmem:[#allocation5 + $0x15f0] sm:$0xff]
    %v863 = vld [vmem:[#allocation5 + $0x15f8] sm:$0xff]
    %v864 = vld [vmem:[#allocation5 + $0x1600] sm:$0xff]
    %v865 = vld [vmem:[#allocation5 + $0x1608] sm:$0xff]
    %v866 = vld [vmem:[#allocation5 + $0x1610] sm:$0xff]
    %v867 = vld [vmem:[#allocation5 + $0x1618] sm:$0xff]
    %v868 = vld [vmem:[#allocation5 + $0x1620] sm:$0xff]
    %v869 = vld [vmem:[#allocation5 + $0x1628] sm:$0xff]
    %v870 = vld [vmem:[#allocation5 + $0x1630] sm:$0xff]
    %v871 = vld [vmem:[#allocation5 + $0x1638] sm:$0xff]
    %v872 = vld [vmem:[#allocation5 + $0x1640] sm:$0xff]
    %v873 = vld [vmem:[#allocation5 + $0x1648] sm:$0xff]
    %v874 = vld [vmem:[#allocation5 + $0x1650] sm:$0xff]
    %v875 = vld [vmem:[#allocation5 + $0x1658] sm:$0xff]
    %v876 = vld [vmem:[#allocation5 + $0x1660] sm:$0xff]
    %v877 = vld [vmem:[#allocation5 + $0x1668] sm:$0xff]
    %v878 = vld [vmem:[#allocation5 + $0x1670] sm:$0xff]
    %v879 = vld [vmem:[#allocation5 + $0x1678] sm:$0xff]
    %v880 = vld [vmem:[#allocation5 + $0x1680] sm:$0xff]
    %v881 = vld [vmem:[#allocation5 + $0x1688] sm:$0xff]
    %v882 = vld [vmem:[#allocation5 + $0x1690] sm:$0xff]
    %v883 = vld [vmem:[#allocation5 + $0x1698] sm:$0xff]
    %v884 = vld [vmem:[#allocation5 + $0x16a0] sm:$0xff]
    %v885 = vld [vmem:[#allocation5 + $0x16a8] sm:$0xff]
    %v886 = vld [vmem:[#allocation5 + $0x16b0] sm:$0xff]
    %v887 = vld [vmem:[#allocation5 + $0x16b8] sm:$0xff]
    %v888 = vld [vmem:[#allocation5 + $0x16c0] sm:$0xff]
    %v889 = vld [vmem:[#allocation5 + $0x16c8] sm:$0xff]
    %v890 = vld [vmem:[#allocation5 + $0x16d0] sm:$0xff]
    %v891 = vld [vmem:[#allocation5 + $0x16d8] sm:$0xff]
    %v892 = vld [vmem:[#allocation5 + $0x16e0] sm:$0xff]
    %v893 = vld [vmem:[#allocation5 + $0x16e8] sm:$0xff]
    %v894 = vld [vmem:[#allocation5 + $0x16f0] sm:$0xff]
    %v895 = vld [vmem:[#allocation5 + $0x16f8] sm:$0xff]
    %v896 = vld [vmem:[#allocation5 + $0x1700] sm:$0xff]
    %v897 = vld [vmem:[#allocation5 + $0x1708] sm:$0xff]
    %v898 = vld [vmem:[#allocation5 + $0x1710] sm:$0xff]
    %v899 = vld [vmem:[#allocation5 + $0x1718] sm:$0xff]
    %v900 = vld [vmem:[#allocation5 + $0x1720] sm:$0xff]
    %v901 = vld [vmem:[#allocation5 + $0x1728] sm:$0xff]
    %v902 = vld [vmem:[#allocation5 + $0x1730] sm:$0xff]
    %v903 = vld [vmem:[#allocation5 + $0x1738] sm:$0xff]
    %v904 = vld [vmem:[#allocation5 + $0x1740] sm:$0xff]
    %v905 = vld [vmem:[#allocation5 + $0x1748] sm:$0xff]
    %v906 = vld [vmem:[#allocation5 + $0x1750] sm:$0xff]
    %v907 = vld [vmem:[#allocation5 + $0x1758] sm:$0xff]
    %v908 = vld [vmem:[#allocation5 + $0x1760] sm:$0xff]
    %v909 = vld [vmem:[#allocation5 + $0x1768] sm:$0xff]
    %v910 = vld [vmem:[#allocation5 + $0x1770] sm:$0xff]
    %v911 = vld [vmem:[#allocation5 + $0x1778] sm:$0xff]
    %v912 = vld [vmem:[#allocation5 + $0x1780] sm:$0xff]
    %v913 = vld [vmem:[#allocation5 + $0x1788] sm:$0xff]
    %v914 = vld [vmem:[#allocation5 + $0x1790] sm:$0xff]
    %v915 = vld [vmem:[#allocation5 + $0x1798] sm:$0xff]
    %v916 = vld [vmem:[#allocation5 + $0x17a0] sm:$0xff]
    %v917 = vld [vmem:[#allocation5 + $0x17a8] sm:$0xff]
    %v918 = vld [vmem:[#allocation5 + $0x17b0] sm:$0xff]
    %v919 = vld [vmem:[#allocation5 + $0x17b8] sm:$0xff]
    %v920 = vld [vmem:[#allocation5 + $0x17c0] sm:$0xff]
    %v921 = vld [vmem:[#allocation5 + $0x17c8] sm:$0xff]
    %v922 = vld [vmem:[#allocation5 + $0x17d0] sm:$0xff]
    %v923 = vld [vmem:[#allocation5 + $0x17d8] sm:$0xff]
    %v924 = vld [vmem:[#allocation5 + $0x17e0] sm:$0xff]
    %v925 = vld [vmem:[#allocation5 + $0x17e8] sm:$0xff]
    %v926 = vld [vmem:[#allocation5 + $0x17f0] sm:$0xff]
    %v927 = vld [vmem:[#allocation5 + $0x17f8] sm:$0xff]
    %v928 = vld [vmem:[#allocation5 + $0x1800] sm:$0xff]
    %v929 = vld [vmem:[#allocation5 + $0x1808] sm:$0xff]
    %v930 = vld [vmem:[#allocation5 + $0x1810] sm:$0xff]
    %v931 = vld [vmem:[#allocation5 + $0x1818] sm:$0xff]
    %v932 = vld [vmem:[#allocation5 + $0x1820] sm:$0xff]
    %v933 = vld [vmem:[#allocation5 + $0x1828] sm:$0xff]
    %v934 = vld [vmem:[#allocation5 + $0x1830] sm:$0xff]
    %v935 = vld [vmem:[#allocation5 + $0x1838] sm:$0xff]
    %v936 = vld [vmem:[#allocation5 + $0x1840] sm:$0xff]
    %v937 = vld [vmem:[#allocation5 + $0x1848] sm:$0xff]
    %v938 = vld [vmem:[#allocation5 + $0x1850] sm:$0xff]
    %v939 = vld [vmem:[#allocation5 + $0x1858] sm:$0xff]
    %v940 = vld [vmem:[#allocation5 + $0x1860] sm:$0xff]
    %v941 = vld [vmem:[#allocation5 + $0x1868] sm:$0xff]
    %v942 = vld [vmem:[#allocation5 + $0x1870] sm:$0xff]
    %v943 = vld [vmem:[#allocation5 + $0x1878] sm:$0xff]
    %v944 = vld [vmem:[#allocation5 + $0x1880] sm:$0xff]
    %v945 = vld [vmem:[#allocation5 + $0x1888] sm:$0xff]
    %v946 = vld [vmem:[#allocation5 + $0x1890] sm:$0xff]
    %v947 = vld [vmem:[#allocation5 + $0x1898] sm:$0xff]
    %v948 = vld [vmem:[#allocation5 + $0x18a0] sm:$0xff]
    %v949 = vld [vmem:[#allocation5 + $0x18a8] sm:$0xff]
    %v950 = vld [vmem:[#allocation5 + $0x18b0] sm:$0xff]
    %v951 = vld [vmem:[#allocation5 + $0x18b8] sm:$0xff]
    %v952 = vld [vmem:[#allocation5 + $0x18c0] sm:$0xff]
    %v953 = vld [vmem:[#allocation5 + $0x18c8] sm:$0xff]
    %v954 = vld [vmem:[#allocation5 + $0x18d0] sm:$0xff]
    %v955 = vld [vmem:[#allocation5 + $0x18d8] sm:$0xff]
    %v956 = vld [vmem:[#allocation5 + $0x18e0] sm:$0xff]
    %v957 = vld [vmem:[#allocation5 + $0x18e8] sm:$0xff]
    %v958 = vld [vmem:[#allocation5 + $0x18f0] sm:$0xff]
    %v959 = vld [vmem:[#allocation5 + $0x18f8] sm:$0xff]
    %v960 = vld [vmem:[#allocation5 + $0x1900] sm:$0xff]
    %v961 = vld [vmem:[#allocation5 + $0x1908] sm:$0xff]
    %v962 = vld [vmem:[#allocation5 + $0x1910] sm:$0xff]
    %v963 = vld [vmem:[#allocation5 + $0x1918] sm:$0xff]
    %v964 = vld [vmem:[#allocation5 + $0x1920] sm:$0xff]
    %v965 = vld [vmem:[#allocation5 + $0x1928] sm:$0xff]
    %v966 = vld [vmem:[#allocation5 + $0x1930] sm:$0xff]
    %v967 = vld [vmem:[#allocation5 + $0x1938] sm:$0xff]
    %v968 = vld [vmem:[#allocation5 + $0x1940] sm:$0xff]
    %v969 = vld [vmem:[#allocation5 + $0x1948] sm:$0xff]
    %v970 = vld [vmem:[#allocation5 + $0x1950] sm:$0xff]
    %v971 = vld [vmem:[#allocation5 + $0x1958] sm:$0xff]
    %v972 = vld [vmem:[#allocation5 + $0x1960] sm:$0xff]
    %v973 = vld [vmem:[#allocation5 + $0x1968] sm:$0xff]
    %v974 = vld [vmem:[#allocation5 + $0x1970] sm:$0xff]
    %v975 = vld [vmem:[#allocation5 + $0x1978] sm:$0xff]
    %v976 = vld [vmem:[#allocation5 + $0x1980] sm:$0xff]
    %v977 = vld [vmem:[#allocation5 + $0x1988] sm:$0xff]
    %v978 = vld [vmem:[#allocation5 + $0x1990] sm:$0xff]
    %v979 = vld [vmem:[#allocation5 + $0x1998] sm:$0xff]
    %v980 = vld [vmem:[#allocation5 + $0x19a0] sm:$0xff]
    %v981 = vld [vmem:[#allocation5 + $0x19a8] sm:$0xff]
    %v982 = vld [vmem:[#allocation5 + $0x19b0] sm:$0xff]
    %v983 = vld [vmem:[#allocation5 + $0x19b8] sm:$0xff]
    %v984 = vld [vmem:[#allocation5 + $0x19c0] sm:$0xff]
    %v985 = vld [vmem:[#allocation5 + $0x19c8] sm:$0xff]
    %v986 = vld [vmem:[#allocation5 + $0x19d0] sm:$0xff]
    %v987 = vld [vmem:[#allocation5 + $0x19d8] sm:$0xff]
    %v988 = vld [vmem:[#allocation5 + $0x19e0] sm:$0xff]
    %v989 = vld [vmem:[#allocation5 + $0x19e8] sm:$0xff]
    %v990 = vld [vmem:[#allocation5 + $0x19f0] sm:$0xff]
    %v991 = vld [vmem:[#allocation5 + $0x19f8] sm:$0xff]
    %v992 = vld [vmem:[#allocation5 + $0x1a00] sm:$0xff]
    %v993 = vld [vmem:[#allocation5 + $0x1a08] sm:$0xff]
    %v994 = vld [vmem:[#allocation5 + $0x1a10] sm:$0xff]
    %v995 = vld [vmem:[#allocation5 + $0x1a18] sm:$0xff]
    %v996 = vld [vmem:[#allocation5 + $0x1a20] sm:$0xff]
    %v997 = vld [vmem:[#allocation5 + $0x1a28] sm:$0xff]
    %v998 = vld [vmem:[#allocation5 + $0x1a30] sm:$0xff]
    %v999 = vld [vmem:[#allocation5 + $0x1a38] sm:$0xff]
    %v1000 = vld [vmem:[#allocation5 + $0x1a40] sm:$0xff]
    %v1001 = vld [vmem:[#allocation5 + $0x1a48] sm:$0xff]
    %v1002 = vld [vmem:[#allocation5 + $0x1a50] sm:$0xff]
    %v1003 = vld [vmem:[#allocation5 + $0x1a58] sm:$0xff]
    %v1004 = vld [vmem:[#allocation5 + $0x1a60] sm:$0xff]
    %v1005 = vld [vmem:[#allocation5 + $0x1a68] sm:$0xff]
    %v1006 = vld [vmem:[#allocation5 + $0x1a70] sm:$0xff]
    %v1007 = vld [vmem:[#allocation5 + $0x1a78] sm:$0xff]
    %v1008 = vld [vmem:[#allocation5 + $0x1a80] sm:$0xff]
    %v1009 = vld [vmem:[#allocation5 + $0x1a88] sm:$0xff]
    %v1010 = vld [vmem:[#allocation5 + $0x1a90] sm:$0xff]
    %v1011 = vld [vmem:[#allocation5 + $0x1a98] sm:$0xff]
    %v1012 = vld [vmem:[#allocation5 + $0x1aa0] sm:$0xff]
    %v1013 = vld [vmem:[#allocation5 + $0x1aa8] sm:$0xff]
    %v1014 = vld [vmem:[#allocation5 + $0x1ab0] sm:$0xff]
    %v1015 = vld [vmem:[#allocation5 + $0x1ab8] sm:$0xff]
    %v1016 = vld [vmem:[#allocation5 + $0x1ac0] sm:$0xff]
    %v1017 = vld [vmem:[#allocation5 + $0x1ac8] sm:$0xff]
    %v1018 = vld [vmem:[#allocation5 + $0x1ad0] sm:$0xff]
    %v1019 = vld [vmem:[#allocation5 + $0x1ad8] sm:$0xff]
    %v1020 = vld [vmem:[#allocation5 + $0x1ae0] sm:$0xff]
    %v1021 = vld [vmem:[#allocation5 + $0x1ae8] sm:$0xff]
    %v1022 = vld [vmem:[#allocation5 + $0x1af0] sm:$0xff]
    %v1023 = vld [vmem:[#allocation5 + $0x1af8] sm:$0xff]
    %v1024 = vld [vmem:[#allocation5 + $0x1b00] sm:$0xff]
    %v1025 = vld [vmem:[#allocation5 + $0x1b08] sm:$0xff]
    %v1026 = vld [vmem:[#allocation5 + $0x1b10] sm:$0xff]
    %v1027 = vld [vmem:[#allocation5 + $0x1b18] sm:$0xff]
    %v1028 = vld [vmem:[#allocation5 + $0x1b20] sm:$0xff]
    %v1029 = vld [vmem:[#allocation5 + $0x1b28] sm:$0xff]
    %v1030 = vld [vmem:[#allocation5 + $0x1b30] sm:$0xff]
    %v1031 = vld [vmem:[#allocation5 + $0x1b38] sm:$0xff]
    %v1032 = vld [vmem:[#allocation5 + $0x1b40] sm:$0xff]
    %v1033 = vld [vmem:[#allocation5 + $0x1b48] sm:$0xff]
    %v1034 = vld [vmem:[#allocation5 + $0x1b50] sm:$0xff]
    %v1035 = vld [vmem:[#allocation5 + $0x1b58] sm:$0xff]
    %v1036 = vld [vmem:[#allocation5 + $0x1b60] sm:$0xff]
    %v1037 = vld [vmem:[#allocation5 + $0x1b68] sm:$0xff]
    %v1038 = vld [vmem:[#allocation5 + $0x1b70] sm:$0xff]
    %v1039 = vld [vmem:[#allocation5 + $0x1b78] sm:$0xff]
    %v1040 = vld [vmem:[#allocation5 + $0x1b80] sm:$0xff]
    %v1041 = vld [vmem:[#allocation5 + $0x1b88] sm:$0xff]
    %v1042 = vld [vmem:[#allocation5 + $0x1b90] sm:$0xff]
    %v1043 = vld [vmem:[#allocation5 + $0x1b98] sm:$0xff]
    %v1044 = vld [vmem:[#allocation5 + $0x1ba0] sm:$0xff]
    %v1045 = vld [vmem:[#allocation5 + $0x1ba8] sm:$0xff]
    %v1046 = vld [vmem:[#allocation5 + $0x1bb0] sm:$0xff]
    %v1047 = vld [vmem:[#allocation5 + $0x1bb8] sm:$0xff]
    %v1048 = vld [vmem:[#allocation5 + $0x1bc0] sm:$0xff]
    %v1049 = vld [vmem:[#allocation5 + $0x1bc8] sm:$0xff]
    %v1050 = vld [vmem:[#allocation5 + $0x1bd0] sm:$0xff]
    %v1051 = vld [vmem:[#allocation5 + $0x1bd8] sm:$0xff]
    %v1052 = vld [vmem:[#allocation5 + $0x1be0] sm:$0xff]
    %v1053 = vld [vmem:[#allocation5 + $0x1be8] sm:$0xff]
    %v1054 = vld [vmem:[#allocation5 + $0x1bf0] sm:$0xff]
    %v1055 = vld [vmem:[#allocation5 + $0x1bf8] sm:$0xff]
    %v1056 = vld [vmem:[#allocation5 + $0x1c00] sm:$0xff]
    %v1057 = vld [vmem:[#allocation5 + $0x1c08] sm:$0xff]
    %v1058 = vld [vmem:[#allocation5 + $0x1c10] sm:$0xff]
    %v1059 = vld [vmem:[#allocation5 + $0x1c18] sm:$0xff]
    %v1060 = vld [vmem:[#allocation5 + $0x1c20] sm:$0xff]
    %v1061 = vld [vmem:[#allocation5 + $0x1c28] sm:$0xff]
    %v1062 = vld [vmem:[#allocation5 + $0x1c30] sm:$0xff]
    %v1063 = vld [vmem:[#allocation5 + $0x1c38] sm:$0xff]
    %v1064 = vld [vmem:[#allocation5 + $0x1c40] sm:$0xff]
    %v1065 = vld [vmem:[#allocation5 + $0x1c48] sm:$0xff]
    %v1066 = vld [vmem:[#allocation5 + $0x1c50] sm:$0xff]
    %v1067 = vld [vmem:[#allocation5 + $0x1c58] sm:$0xff]
    %v1068 = vld [vmem:[#allocation5 + $0x1c60] sm:$0xff]
    %v1069 = vld [vmem:[#allocation5 + $0x1c68] sm:$0xff]
    %v1070 = vld [vmem:[#allocation5 + $0x1c70] sm:$0xff]
    %v1071 = vld [vmem:[#allocation5 + $0x1c78] sm:$0xff]
    %v1072 = vld [vmem:[#allocation5 + $0x1c80] sm:$0xff]
    %v1073 = vld [vmem:[#allocation5 + $0x1c88] sm:$0xff]
    %v1074 = vld [vmem:[#allocation5 + $0x1c90] sm:$0xff]
    %v1075 = vld [vmem:[#allocation5 + $0x1c98] sm:$0xff]
    %v1076 = vld [vmem:[#allocation5 + $0x1ca0] sm:$0xff]
    %v1077 = vld [vmem:[#allocation5 + $0x1ca8] sm:$0xff]
    %v1078 = vld [vmem:[#allocation5 + $0x1cb0] sm:$0xff]
    %v1079 = vld [vmem:[#allocation5 + $0x1cb8] sm:$0xff]
    %v1080 = vld [vmem:[#allocation5 + $0x1cc0] sm:$0xff]
    %v1081 = vld [vmem:[#allocation5 + $0x1cc8] sm:$0xff]
    %v1082 = vld [vmem:[#allocation5 + $0x1cd0] sm:$0xff]
    %v1083 = vld [vmem:[#allocation5 + $0x1cd8] sm:$0xff]
    %v1084 = vld [vmem:[#allocation5 + $0x1ce0] sm:$0xff]
    %v1085 = vld [vmem:[#allocation5 + $0x1ce8] sm:$0xff]
    %v1086 = vld [vmem:[#allocation5 + $0x1cf0] sm:$0xff]
    %v1087 = vld [vmem:[#allocation5 + $0x1cf8] sm:$0xff]
    %v1088 = vld [vmem:[#allocation5 + $0x1d00] sm:$0xff]
    %v1089 = vld [vmem:[#allocation5 + $0x1d08] sm:$0xff]
    %v1090 = vld [vmem:[#allocation5 + $0x1d10] sm:$0xff]
    %v1091 = vld [vmem:[#allocation5 + $0x1d18] sm:$0xff]
    %v1092 = vld [vmem:[#allocation5 + $0x1d20] sm:$0xff]
    %v1093 = vld [vmem:[#allocation5 + $0x1d28] sm:$0xff]
    %v1094 = vld [vmem:[#allocation5 + $0x1d30] sm:$0xff]
    %v1095 = vld [vmem:[#allocation5 + $0x1d38] sm:$0xff]
    %v1096 = vld [vmem:[#allocation5 + $0x1d40] sm:$0xff]
    %v1097 = vld [vmem:[#allocation5 + $0x1d48] sm:$0xff]
    %v1098 = vld [vmem:[#allocation5 + $0x1d50] sm:$0xff]
    %v1099 = vld [vmem:[#allocation5 + $0x1d58] sm:$0xff]
    %v1100 = vld [vmem:[#allocation5 + $0x1d60] sm:$0xff]
    %v1101 = vld [vmem:[#allocation5 + $0x1d68] sm:$0xff]
    %v1102 = vld [vmem:[#allocation5 + $0x1d70] sm:$0xff]
    %v1103 = vld [vmem:[#allocation5 + $0x1d78] sm:$0xff]
    %v1104 = vld [vmem:[#allocation5 + $0x1d80] sm:$0xff]
    %v1105 = vld [vmem:[#allocation5 + $0x1d88] sm:$0xff]
    %v1106 = vld [vmem:[#allocation5 + $0x1d90] sm:$0xff]
    %v1107 = vld [vmem:[#allocation5 + $0x1d98] sm:$0xff]
    %v1108 = vld [vmem:[#allocation5 + $0x1da0] sm:$0xff]
    %v1109 = vld [vmem:[#allocation5 + $0x1da8] sm:$0xff]
    %v1110 = vld [vmem:[#allocation5 + $0x1db0] sm:$0xff]
    %v1111 = vld [vmem:[#allocation5 + $0x1db8] sm:$0xff]
    %v1112 = vld [vmem:[#allocation5 + $0x1dc0] sm:$0xff]
    %v1113 = vld [vmem:[#allocation5 + $0x1dc8] sm:$0xff]
    %v1114 = vld [vmem:[#allocation5 + $0x1dd0] sm:$0xff]
    %v1115 = vld [vmem:[#allocation5 + $0x1dd8] sm:$0xff]
    %v1116 = vld [vmem:[#allocation5 + $0x1de0] sm:$0xff]
    %v1117 = vld [vmem:[#allocation5 + $0x1de8] sm:$0xff]
    %v1118 = vld [vmem:[#allocation5 + $0x1df0] sm:$0xff]
    %v1119 = vld [vmem:[#allocation5 + $0x1df8] sm:$0xff]
    %v1120 = vld [vmem:[#allocation5 + $0x1e00] sm:$0xff]
    %v1121 = vld [vmem:[#allocation5 + $0x1e08] sm:$0xff]
    %v1122 = vld [vmem:[#allocation5 + $0x1e10] sm:$0xff]
    %v1123 = vld [vmem:[#allocation5 + $0x1e18] sm:$0xff]
    %v1124 = vld [vmem:[#allocation5 + $0x1e20] sm:$0xff]
    %v1125 = vld [vmem:[#allocation5 + $0x1e28] sm:$0xff]
    %v1126 = vld [vmem:[#allocation5 + $0x1e30] sm:$0xff]
    %v1127 = vld [vmem:[#allocation5 + $0x1e38] sm:$0xff]
    %v1128 = vld [vmem:[#allocation5 + $0x1e40] sm:$0xff]
    %v1129 = vld [vmem:[#allocation5 + $0x1e48] sm:$0xff]
    %v1130 = vld [vmem:[#allocation5 + $0x1e50] sm:$0xff]
    %v1131 = vld [vmem:[#allocation5 + $0x1e58] sm:$0xff]
    %v1132 = vld [vmem:[#allocation5 + $0x1e60] sm:$0xff]
    %v1133 = vld [vmem:[#allocation5 + $0x1e68] sm:$0xff]
    %v1134 = vld [vmem:[#allocation5 + $0x1e70] sm:$0xff]
    %v1135 = vld [vmem:[#allocation5 + $0x1e78] sm:$0xff]
    %v1136 = vld [vmem:[#allocation5 + $0x1e80] sm:$0xff]
    %v1137 = vld [vmem:[#allocation5 + $0x1e88] sm:$0xff]
    %v1138 = vld [vmem:[#allocation5 + $0x1e90] sm:$0xff]
    %v1139 = vld [vmem:[#allocation5 + $0x1e98] sm:$0xff]
    %v1140 = vld [vmem:[#allocation5 + $0x1ea0] sm:$0xff]
    %v1141 = vld [vmem:[#allocation5 + $0x1ea8] sm:$0xff]
    %v1142 = vld [vmem:[#allocation5 + $0x1eb0] sm:$0xff]
    %v1143 = vld [vmem:[#allocation5 + $0x1eb8] sm:$0xff]
    %v1144 = vld [vmem:[#allocation5 + $0x1ec0] sm:$0xff]
    %v1145 = vld [vmem:[#allocation5 + $0x1ec8] sm:$0xff]
    %v1146 = vld [vmem:[#allocation5 + $0x1ed0] sm:$0xff]
    %v1147 = vld [vmem:[#allocation5 + $0x1ed8] sm:$0xff]
    %v1148 = vld [vmem:[#allocation5 + $0x1ee0] sm:$0xff]
    %v1149 = vld [vmem:[#allocation5 + $0x1ee8] sm:$0xff]
    %v1150 = vld [vmem:[#allocation5 + $0x1ef0] sm:$0xff]
    %v1151 = vld [vmem:[#allocation5 + $0x1ef8] sm:$0xff]
    %v1152 = vld [vmem:[#allocation5 + $0x1f00] sm:$0xff]
    %v1153 = vld [vmem:[#allocation5 + $0x1f08] sm:$0xff]
    %v1154 = vld [vmem:[#allocation5 + $0x1f10] sm:$0xff]
    %v1155 = vld [vmem:[#allocation5 + $0x1f18] sm:$0xff]
    %v1156 = vld [vmem:[#allocation5 + $0x1f20] sm:$0xff]
    %v1157 = vld [vmem:[#allocation5 + $0x1f28] sm:$0xff]
    %v1158 = vld [vmem:[#allocation5 + $0x1f30] sm:$0xff]
    %v1159 = vld [vmem:[#allocation5 + $0x1f38] sm:$0xff]
    %v1160 = vld [vmem:[#allocation5 + $0x1f40] sm:$0xff]
    %v1161 = vld [vmem:[#allocation5 + $0x1f48] sm:$0xff]
    %v1162 = vld [vmem:[#allocation5 + $0x1f50] sm:$0xff]
    %v1163 = vld [vmem:[#allocation5 + $0x1f58] sm:$0xff]
    %v1164 = vld [vmem:[#allocation5 + $0x1f60] sm:$0xff]
    %v1165 = vld [vmem:[#allocation5 + $0x1f68] sm:$0xff]
    %v1166 = vld [vmem:[#allocation5 + $0x1f70] sm:$0xff]
    %v1167 = vld [vmem:[#allocation5 + $0x1f78] sm:$0xff]
    %v1168 = vld [vmem:[#allocation5 + $0x1f80] sm:$0x33]
    %v1169 = vld [vmem:[#allocation5 + $0x1f88] sm:$0x33]
    %v1170 = vld [vmem:[#allocation5 + $0x1f90] sm:$0x33]
    %v1171 = vld [vmem:[#allocation5 + $0x1f98] sm:$0x33]
    %v1172 = vld [vmem:[#allocation5 + $0x1fa0] sm:$0x33]
    %v1173 = vld [vmem:[#allocation5 + $0x1fa8] sm:$0x33]
    %v1174 = vld [vmem:[#allocation5 + $0x1fb0] sm:$0x33]
    %v1175 = vld [vmem:[#allocation5 + $0x1fb8] sm:$0x33]
    %v1176 = vld [vmem:[#allocation5 + $0x1fc0] sm:$0x33]
    %v1177 = vld [vmem:[#allocation7] sm:$0xff]
    %v1178 = vld [vmem:[#allocation7 + $0x8] sm:$0xff]
    %v1179 = vld [vmem:[#allocation7 + $0x10] sm:$0x3]
    %v1183 = vlaneseq
    %v1184 = vshrl.u32 %v1183, 7
    %v1185 = vsub.s32 0, %v1184
    %v1186 = vrot.slane %v1177, %v1185
    %v1187 = vlaneseq
    %v1188 = vshrl.u32 %v1187, 7
    %v1189 = vsub.s32 1, %v1188
    %v1190 = vrot.slane %v1177, %v1189
    %v1191 = vlaneseq
    %v1192 = vshrl.u32 %v1191, 7
    %v1193 = vsub.s32 2, %v1192
    %v1194 = vrot.slane %v1177, %v1193
    %v1195 = vlaneseq
    %v1196 = vshrl.u32 %v1195, 7
    %v1197 = vsub.s32 3, %v1196
    %v1198 = vrot.slane %v1177, %v1197
    %v1199 = vlaneseq
    %v1200 = vshrl.u32 %v1199, 7
    %v1201 = vsub.s32 4, %v1200
    %v1202 = vrot.slane %v1177, %v1201
    %v1203 = vlaneseq
    %v1204 = vshrl.u32 %v1203, 7
    %v1205 = vsub.s32 5, %v1204
    %v1206 = vrot.slane %v1177, %v1205
    %v1207 = vlaneseq
    %v1208 = vshrl.u32 %v1207, 7
    %v1209 = vsub.s32 6, %v1208
    %v1210 = vrot.slane %v1177, %v1209
    %v1211 = vlaneseq
    %v1212 = vshrl.u32 %v1211, 7
    %v1213 = vsub.s32 7, %v1212
    %v1214 = vrot.slane %v1177, %v1213
    %v1215 = vlaneseq
    %v1216 = vshrl.u32 %v1215, 7
    %v1217 = vsub.s32 0, %v1216
    %v1218 = vrot.slane %v1178, %v1217
    %v1219 = vlaneseq
    %v1220 = vshrl.u32 %v1219, 7
    %v1221 = vsub.s32 1, %v1220
    %v1222 = vrot.slane %v1178, %v1221
    %v1223 = vlaneseq
    %v1224 = vshrl.u32 %v1223, 7
    %v1225 = vsub.s32 2, %v1224
    %v1226 = vrot.slane %v1178, %v1225
    %v1227 = vlaneseq
    %v1228 = vshrl.u32 %v1227, 7
    %v1229 = vsub.s32 3, %v1228
    %v1230 = vrot.slane %v1178, %v1229
    %v1231 = vlaneseq
    %v1232 = vshrl.u32 %v1231, 7
    %v1233 = vsub.s32 4, %v1232
    %v1234 = vrot.slane %v1178, %v1233
    %v1235 = vlaneseq
    %v1236 = vshrl.u32 %v1235, 7
    %v1237 = vsub.s32 5, %v1236
    %v1238 = vrot.slane %v1178, %v1237
    %v1239 = vlaneseq
    %v1240 = vshrl.u32 %v1239, 7
    %v1241 = vsub.s32 6, %v1240
    %v1242 = vrot.slane %v1178, %v1241
    %v1243 = vlaneseq
    %v1244 = vshrl.u32 %v1243, 7
    %v1245 = vsub.s32 7, %v1244
    %v1246 = vrot.slane %v1178, %v1245
    %v1247 = vlaneseq
    %v1248 = vshrl.u32 %v1247, 7
    %v1249 = vsub.s32 0, %v1248
    %v1250 = vrot.slane %v1179, %v1249
    %v1251 = vlaneseq
    %v1252 = vshrl.u32 %v1251, 7
    %v1253 = vsub.s32 1, %v1252
    %v1254 = vrot.slane %v1179, %v1253
    %v2290 = vunpack.c.l.b16 %v160
    %v2291 = vunpack.c.h.b16 %v160
    %v2292 = vunpack.c.l.b16 %v161
    %v2293 = vunpack.c.h.b16 %v161
    %v2294 = vunpack.c.l.b16 %v162
    %v2295 = vunpack.c.h.b16 %v162
    %v2296 = vunpack.c.l.b16 %v163
    %v2297 = vunpack.c.h.b16 %v163
    %v2298 = vunpack.c.l.b16 %v164
    %v2299 = vunpack.c.h.b16 %v164
    %v2300 = vunpack.c.l.b16 %v165
    %v2301 = vunpack.c.h.b16 %v165
    %v2302 = vunpack.c.l.b16 %v166
    %v2303 = vunpack.c.h.b16 %v166
    %v2304 = vunpack.c.l.b16 %v167
    %v2305 = vunpack.c.h.b16 %v167
    %v2306 = vunpack.c.l.b16 %v168
    %v2307 = vunpack.c.h.b16 %v168
    %v2308 = vunpack.c.l.b16 %v169
    %v2309 = vunpack.c.h.b16 %v169
    %v2310 = vunpack.c.l.b16 %v170
    %v2311 = vunpack.c.h.b16 %v170
    %v2312 = vunpack.c.l.b16 %v171
    %v2313 = vunpack.c.h.b16 %v171
    %v2314 = vunpack.c.l.b16 %v172
    %v2315 = vunpack.c.h.b16 %v172
    %v2316 = vunpack.c.l.b16 %v173
    %v2317 = vunpack.c.h.b16 %v173
    %v2318 = vunpack.c.l.b16 %v174
    %v2319 = vunpack.c.h.b16 %v174
    %v2320 = vunpack.c.l.b16 %v175
    %v2321 = vunpack.c.h.b16 %v175
    %v2322 = vunpack.c.l.b16 %v176
    %v2323 = vunpack.c.h.b16 %v176
    %v2324 = vunpack.c.l.b16 %v177
    %v2325 = vunpack.c.h.b16 %v177
    %v2326 = vunpack.c.l.b16 %v178
    %v2327 = vunpack.c.h.b16 %v178
    %v2328 = vunpack.c.l.b16 %v179
    %v2329 = vunpack.c.h.b16 %v179
    %v2330 = vunpack.c.l.b16 %v180
    %v2331 = vunpack.c.h.b16 %v180
    %v2332 = vunpack.c.l.b16 %v181
    %v2333 = vunpack.c.h.b16 %v181
    %v2334 = vunpack.c.l.b16 %v182
    %v2335 = vunpack.c.h.b16 %v182
    %v2336 = vunpack.c.l.b16 %v183
    %v2337 = vunpack.c.h.b16 %v183
    %v2338 = vunpack.c.l.b16 %v184
    %v2339 = vunpack.c.h.b16 %v184
    %v2340 = vunpack.c.l.b16 %v185
    %v2341 = vunpack.c.h.b16 %v185
    %v2342 = vunpack.c.l.b16 %v186
    %v2343 = vunpack.c.h.b16 %v186
    %v2344 = vunpack.c.l.b16 %v187
    %v2345 = vunpack.c.h.b16 %v187
    %v2346 = vunpack.c.l.b16 %v188
    %v2347 = vunpack.c.h.b16 %v188
    %v2348 = vunpack.c.l.b16 %v189
    %v2349 = vunpack.c.h.b16 %v189
    %v2350 = vunpack.c.l.b16 %v190
    %v2351 = vunpack.c.h.b16 %v190
    %v2352 = vunpack.c.l.b16 %v191
    %v2353 = vunpack.c.h.b16 %v191
    %v2354 = vunpack.c.l.b16 %v192
    %v2355 = vunpack.c.h.b16 %v192
    %v2356 = vunpack.c.l.b16 %v193
    %v2357 = vunpack.c.h.b16 %v193
    %v2358 = vunpack.c.l.b16 %v194
    %v2359 = vunpack.c.h.b16 %v194
    %v2360 = vunpack.c.l.b16 %v195
    %v2361 = vunpack.c.h.b16 %v195
    %v2362 = vunpack.c.l.b16 %v196
    %v2363 = vunpack.c.h.b16 %v196
    %v2364 = vunpack.c.l.b16 %v197
    %v2365 = vunpack.c.h.b16 %v197
    %v2366 = vunpack.c.l.b16 %v198
    %v2367 = vunpack.c.h.b16 %v198
    %v2368 = vunpack.c.l.b16 %v199
    %v2369 = vunpack.c.h.b16 %v199
    %v2370 = vunpack.c.l.b16 %v200
    %v2371 = vunpack.c.h.b16 %v200
    %v2372 = vunpack.c.l.b16 %v201
    %v2373 = vunpack.c.h.b16 %v201
    %v2374 = vunpack.c.l.b16 %v202
    %v2375 = vunpack.c.h.b16 %v202
    %v2376 = vunpack.c.l.b16 %v203
    %v2377 = vunpack.c.h.b16 %v203
    %v2378 = vunpack.c.l.b16 %v204
    %v2379 = vunpack.c.h.b16 %v204
    %v2380 = vunpack.c.l.b16 %v205
    %v2381 = vunpack.c.h.b16 %v205
    %v2382 = vunpack.c.l.b16 %v206
    %v2383 = vunpack.c.h.b16 %v206
    %v2384 = vunpack.c.l.b16 %v207
    %v2385 = vunpack.c.h.b16 %v207
    %v2386 = vunpack.c.l.b16 %v208
    %v2387 = vunpack.c.h.b16 %v208
    %v2388 = vunpack.c.l.b16 %v209
    %v2389 = vunpack.c.h.b16 %v209
    %v2390 = vunpack.c.l.b16 %v210
    %v2391 = vunpack.c.h.b16 %v210
    %v2392 = vunpack.c.l.b16 %v211
    %v2393 = vunpack.c.h.b16 %v211
    %v2394 = vunpack.c.l.b16 %v212
    %v2395 = vunpack.c.h.b16 %v212
    %v2396 = vunpack.c.l.b16 %v213
    %v2397 = vunpack.c.h.b16 %v213
    %v2398 = vunpack.c.l.b16 %v214
    %v2399 = vunpack.c.h.b16 %v214
    %v2400 = vunpack.c.l.b16 %v215
    %v2401 = vunpack.c.h.b16 %v215
    %v2402 = vunpack.c.l.b16 %v216
    %v2403 = vunpack.c.h.b16 %v216
    %v2404 = vunpack.c.l.b16 %v217
    %v2405 = vunpack.c.h.b16 %v217
    %v2406 = vunpack.c.l.b16 %v218
    %v2407 = vunpack.c.h.b16 %v218
    %v2408 = vunpack.c.l.b16 %v219
    %v2409 = vunpack.c.h.b16 %v219
    %v2410 = vunpack.c.l.b16 %v220
    %v2411 = vunpack.c.h.b16 %v220
    %v2412 = vunpack.c.l.b16 %v221
    %v2413 = vunpack.c.h.b16 %v221
    %v2414 = vunpack.c.l.b16 %v222
    %v2415 = vunpack.c.h.b16 %v222
    %v2416 = vunpack.c.l.b16 %v223
    %v2417 = vunpack.c.h.b16 %v223
    %v2418 = vunpack.c.l.b16 %v224
    %v2419 = vunpack.c.h.b16 %v224
    %v2420 = vunpack.c.l.b16 %v225
    %v2421 = vunpack.c.h.b16 %v225
    %v2422 = vunpack.c.l.b16 %v226
    %v2423 = vunpack.c.h.b16 %v226
    %v2424 = vunpack.c.l.b16 %v227
    %v2425 = vunpack.c.h.b16 %v227
    %v2426 = vunpack.c.l.b16 %v228
    %v2427 = vunpack.c.h.b16 %v228
    %v2428 = vunpack.c.l.b16 %v229
    %v2429 = vunpack.c.h.b16 %v229
    %v2430 = vunpack.c.l.b16 %v230
    %v2431 = vunpack.c.h.b16 %v230
    %v2432 = vunpack.c.l.b16 %v231
    %v2433 = vunpack.c.h.b16 %v231
    %v2434 = vunpack.c.l.b16 %v232
    %v2435 = vunpack.c.h.b16 %v232
    %v2436 = vunpack.c.l.b16 %v233
    %v2437 = vunpack.c.h.b16 %v233
    %v2438 = vunpack.c.l.b16 %v234
    %v2439 = vunpack.c.h.b16 %v234
    %v2440 = vunpack.c.l.b16 %v235
    %v2441 = vunpack.c.h.b16 %v235
    %v2442 = vunpack.c.l.b16 %v236
    %v2443 = vunpack.c.h.b16 %v236
    %v2444 = vunpack.c.l.b16 %v237
    %v2445 = vunpack.c.h.b16 %v237
    %v2446 = vunpack.c.l.b16 %v238
    %v2447 = vunpack.c.h.b16 %v238
    %v2448 = vunpack.c.l.b16 %v239
    %v2449 = vunpack.c.h.b16 %v239
    %v2450 = vunpack.c.l.b16 %v240
    %v2451 = vunpack.c.h.b16 %v240
    %v2452 = vunpack.c.l.b16 %v241
    %v2453 = vunpack.c.h.b16 %v241
    %v2454 = vunpack.c.l.b16 %v242
    %v2455 = vunpack.c.h.b16 %v242
    %v2456 = vunpack.c.l.b16 %v243
    %v2457 = vunpack.c.h.b16 %v243
    %v2458 = vunpack.c.l.b16 %v244
    %v2459 = vunpack.c.h.b16 %v244
    %v2460 = vunpack.c.l.b16 %v245
    %v2461 = vunpack.c.h.b16 %v245
    %v2462 = vunpack.c.l.b16 %v246
    %v2463 = vunpack.c.h.b16 %v246
    %v2464 = vunpack.c.l.b16 %v247
    %v2465 = vunpack.c.h.b16 %v247
    %v2466 = vunpack.c.l.b16 %v248
    %v2467 = vunpack.c.h.b16 %v248
    %v2468 = vunpack.c.l.b16 %v249
    %v2469 = vunpack.c.h.b16 %v249
    %v2470 = vunpack.c.l.b16 %v250
    %v2471 = vunpack.c.h.b16 %v250
    %v2472 = vunpack.c.l.b16 %v251
    %v2473 = vunpack.c.h.b16 %v251
    %v2474 = vunpack.c.l.b16 %v252
    %v2475 = vunpack.c.h.b16 %v252
    %v2476 = vunpack.c.l.b16 %v253
    %v2477 = vunpack.c.h.b16 %v253
    %v2478 = vunpack.c.l.b16 %v254
    %v2479 = vunpack.c.h.b16 %v254
    %v2480 = vunpack.c.l.b16 %v255
    %v2481 = vunpack.c.h.b16 %v255
    %v2482 = vunpack.c.l.b16 %v256
    %v2483 = vunpack.c.h.b16 %v256
    %v2484 = vunpack.c.l.b16 %v257
    %v2485 = vunpack.c.h.b16 %v257
    %v2486 = vunpack.c.l.b16 %v258
    %v2487 = vunpack.c.h.b16 %v258
    %v2488 = vunpack.c.l.b16 %v259
    %v2489 = vunpack.c.h.b16 %v259
    %v2490 = vunpack.c.l.b16 %v260
    %v2491 = vunpack.c.h.b16 %v260
    %v2492 = vunpack.c.l.b16 %v261
    %v2493 = vunpack.c.h.b16 %v261
    %v2494 = vunpack.c.l.b16 %v262
    %v2495 = vunpack.c.h.b16 %v262
    %v2496 = vunpack.c.l.b16 %v263
    %v2497 = vunpack.c.h.b16 %v263
    %v2498 = vunpack.c.l.b16 %v264
    %v2499 = vunpack.c.h.b16 %v264
    %v2500 = vunpack.c.l.b16 %v265
    %v2501 = vunpack.c.h.b16 %v265
    %v2502 = vunpack.c.l.b16 %v266
    %v2503 = vunpack.c.h.b16 %v266
    %v2504 = vunpack.c.l.b16 %v267
    %v2505 = vunpack.c.h.b16 %v267
    %v2506 = vunpack.c.l.b16 %v268
    %v2507 = vunpack.c.h.b16 %v268
    %v2508 = vunpack.c.l.b16 %v269
    %v2509 = vunpack.c.h.b16 %v269
    %v2510 = vunpack.c.l.b16 %v270
    %v2511 = vunpack.c.h.b16 %v270
    %v2512 = vunpack.c.l.b16 %v271
    %v2513 = vunpack.c.h.b16 %v271
    %v2514 = vunpack.c.l.b16 %v272
    %v2515 = vunpack.c.h.b16 %v272
    %v2516 = vunpack.c.l.b16 %v273
    %v2517 = vunpack.c.h.b16 %v273
    %v2518 = vunpack.c.l.b16 %v274
    %v2519 = vunpack.c.h.b16 %v274
    %v2520 = vunpack.c.l.b16 %v275
    %v2521 = vunpack.c.h.b16 %v275
    %v2522 = vunpack.c.l.b16 %v276
    %v2523 = vunpack.c.h.b16 %v276
    %v2524 = vunpack.c.l.b16 %v277
    %v2525 = vunpack.c.h.b16 %v277
    %v2526 = vunpack.c.l.b16 %v278
    %v2527 = vunpack.c.h.b16 %v278
    %v2528 = vunpack.c.l.b16 %v279
    %v2529 = vunpack.c.h.b16 %v279
    %v2530 = vunpack.c.l.b16 %v280
    %v2531 = vunpack.c.h.b16 %v280
    %v2532 = vunpack.c.l.b16 %v281
    %v2533 = vunpack.c.h.b16 %v281
    %v2534 = vunpack.c.l.b16 %v282
    %v2535 = vunpack.c.h.b16 %v282
    %v2536 = vunpack.c.l.b16 %v283
    %v2537 = vunpack.c.h.b16 %v283
    %v2538 = vunpack.c.l.b16 %v284
    %v2539 = vunpack.c.h.b16 %v284
    %v2540 = vunpack.c.l.b16 %v285
    %v2541 = vunpack.c.h.b16 %v285
    %v2542 = vunpack.c.l.b16 %v286
    %v2543 = vunpack.c.h.b16 %v286
    %v2544 = vunpack.c.l.b16 %v287
    %v2545 = vunpack.c.h.b16 %v287
    %v2546 = vunpack.c.l.b16 %v288
    %v2547 = vunpack.c.h.b16 %v288
    %v2548 = vunpack.c.l.b16 %v289
    %v2549 = vunpack.c.h.b16 %v289
    %v2550 = vunpack.c.l.b16 %v290
    %v2551 = vunpack.c.h.b16 %v290
    %v2552 = vunpack.c.l.b16 %v291
    %v2553 = vunpack.c.h.b16 %v291
    %v2554 = vunpack.c.l.b16 %v292
    %v2555 = vunpack.c.h.b16 %v292
    %v2556 = vunpack.c.l.b16 %v293
    %v2557 = vunpack.c.h.b16 %v293
    %v2558 = vunpack.c.l.b16 %v294
    %v2559 = vunpack.c.h.b16 %v294
    %v2560 = vunpack.c.l.b16 %v295
    %v2561 = vunpack.c.h.b16 %v295
    %v2562 = vunpack.c.l.b16 %v296
    %v2563 = vunpack.c.h.b16 %v296
    %v2564 = vunpack.c.l.b16 %v297
    %v2565 = vunpack.c.h.b16 %v297
    %v2566 = vunpack.c.l.b16 %v298
    %v2567 = vunpack.c.h.b16 %v298
    %v2568 = vunpack.c.l.b16 %v299
    %v2569 = vunpack.c.h.b16 %v299
    %v2570 = vunpack.c.l.b16 %v300
    %v2571 = vunpack.c.h.b16 %v300
    %v2572 = vunpack.c.l.b16 %v301
    %v2573 = vunpack.c.h.b16 %v301
    %v2574 = vunpack.c.l.b16 %v302
    %v2575 = vunpack.c.h.b16 %v302
    %v2576 = vunpack.c.l.b16 %v303
    %v2577 = vunpack.c.h.b16 %v303
    %v2578 = vunpack.c.l.b16 %v304
    %v2579 = vunpack.c.h.b16 %v304
    %v2580 = vunpack.c.l.b16 %v305
    %v2581 = vunpack.c.h.b16 %v305
    %v2582 = vunpack.c.l.b16 %v306
    %v2583 = vunpack.c.h.b16 %v306
    %v2584 = vunpack.c.l.b16 %v307
    %v2585 = vunpack.c.h.b16 %v307
    %v2586 = vunpack.c.l.b16 %v308
    %v2587 = vunpack.c.h.b16 %v308
    %v2588 = vunpack.c.l.b16 %v309
    %v2589 = vunpack.c.h.b16 %v309
    %v2590 = vunpack.c.l.b16 %v310
    %v2591 = vunpack.c.h.b16 %v310
    %v2592 = vunpack.c.l.b16 %v311
    %v2593 = vunpack.c.h.b16 %v311
    %v2594 = vunpack.c.l.b16 %v312
    %v2595 = vunpack.c.h.b16 %v312
    %v2596 = vunpack.c.l.b16 %v313
    %v2597 = vunpack.c.h.b16 %v313
    %v2598 = vunpack.c.l.b16 %v314
    %v2599 = vunpack.c.h.b16 %v314
    %v2600 = vunpack.c.l.b16 %v315
    %v2601 = vunpack.c.h.b16 %v315
    %v2602 = vunpack.c.l.b16 %v316
    %v2603 = vunpack.c.h.b16 %v316
    %v2604 = vunpack.c.l.b16 %v317
    %v2605 = vunpack.c.h.b16 %v317
    %v2606 = vunpack.c.l.b16 %v318
    %v2607 = vunpack.c.h.b16 %v318
    %v2608 = vunpack.c.l.b16 %v319
    %v2609 = vunpack.c.h.b16 %v319
    %v2610 = vunpack.c.l.b16 %v320
    %v2611 = vunpack.c.h.b16 %v320
    %v2612 = vunpack.c.l.b16 %v321
    %v2613 = vunpack.c.h.b16 %v321
    %v2614 = vunpack.c.l.b16 %v322
    %v2615 = vunpack.c.h.b16 %v322
    %v2616 = vunpack.c.l.b16 %v323
    %v2617 = vunpack.c.h.b16 %v323
    %v2618 = vunpack.c.l.b16 %v324
    %v2619 = vunpack.c.h.b16 %v324
    %v2620 = vunpack.c.l.b16 %v325
    %v2621 = vunpack.c.h.b16 %v325
    %v2622 = vunpack.c.l.b16 %v326
    %v2623 = vunpack.c.h.b16 %v326
    %v2624 = vunpack.c.l.b16 %v327
    %v2625 = vunpack.c.h.b16 %v327
    %v2626 = vunpack.c.l.b16 %v328
    %v2627 = vunpack.c.h.b16 %v328
    %v2628 = vunpack.c.l.b16 %v329
    %v2629 = vunpack.c.h.b16 %v329
    %v2630 = vunpack.c.l.b16 %v330
    %v2631 = vunpack.c.h.b16 %v330
    %v2632 = vunpack.c.l.b16 %v331
    %v2633 = vunpack.c.h.b16 %v331
    %v2634 = vunpack.c.l.b16 %v332
    %v2635 = vunpack.c.h.b16 %v332
    %v2636 = vunpack.c.l.b16 %v333
    %v2637 = vunpack.c.h.b16 %v333
    %v2638 = vunpack.c.l.b16 %v334
    %v2639 = vunpack.c.h.b16 %v334
    %v2640 = vunpack.c.l.b16 %v335
    %v2641 = vunpack.c.h.b16 %v335
    %v2642 = vunpack.c.l.b16 %v336
    %v2643 = vunpack.c.h.b16 %v336
    %v2644 = vunpack.c.l.b16 %v337
    %v2645 = vunpack.c.h.b16 %v337
    %v2646 = vunpack.c.l.b16 %v338
    %v2647 = vunpack.c.h.b16 %v338
    %v2648 = vunpack.c.l.b16 %v339
    %v2649 = vunpack.c.h.b16 %v339
    %v2650 = vunpack.c.l.b16 %v340
    %v2651 = vunpack.c.h.b16 %v340
    %v2652 = vunpack.c.l.b16 %v341
    %v2653 = vunpack.c.h.b16 %v341
    %v2654 = vunpack.c.l.b16 %v342
    %v2655 = vunpack.c.h.b16 %v342
    %v2656 = vunpack.c.l.b16 %v343
    %v2657 = vunpack.c.h.b16 %v343
    %v2658 = vunpack.c.l.b16 %v344
    %v2659 = vunpack.c.h.b16 %v344
    %v2660 = vunpack.c.l.b16 %v345
    %v2661 = vunpack.c.h.b16 %v345
    %v2662 = vunpack.c.l.b16 %v346
    %v2663 = vunpack.c.h.b16 %v346
    %v2664 = vunpack.c.l.b16 %v347
    %v2665 = vunpack.c.h.b16 %v347
    %v2666 = vunpack.c.l.b16 %v348
    %v2667 = vunpack.c.h.b16 %v348
    %v2668 = vunpack.c.l.b16 %v349
    %v2669 = vunpack.c.h.b16 %v349
    %v2670 = vunpack.c.l.b16 %v350
    %v2671 = vunpack.c.h.b16 %v350
    %v2672 = vunpack.c.l.b16 %v351
    %v2673 = vunpack.c.h.b16 %v351
    %v2674 = vunpack.c.l.b16 %v352
    %v2675 = vunpack.c.h.b16 %v352
    %v2676 = vunpack.c.l.b16 %v353
    %v2677 = vunpack.c.h.b16 %v353
    %v2678 = vunpack.c.l.b16 %v354
    %v2679 = vunpack.c.h.b16 %v354
    %v2680 = vunpack.c.l.b16 %v355
    %v2681 = vunpack.c.h.b16 %v355
    %v2682 = vunpack.c.l.b16 %v356
    %v2683 = vunpack.c.h.b16 %v356
    %v2684 = vunpack.c.l.b16 %v357
    %v2685 = vunpack.c.h.b16 %v357
    %v2686 = vunpack.c.l.b16 %v358
    %v2687 = vunpack.c.h.b16 %v358
    %v2688 = vunpack.c.l.b16 %v359
    %v2689 = vunpack.c.h.b16 %v359
    %v2690 = vunpack.c.l.b16 %v360
    %v2691 = vunpack.c.h.b16 %v360
    %v2692 = vunpack.c.l.b16 %v361
    %v2693 = vunpack.c.h.b16 %v361
    %v2694 = vunpack.c.l.b16 %v362
    %v2695 = vunpack.c.h.b16 %v362
    %v2696 = vunpack.c.l.b16 %v363
    %v2697 = vunpack.c.h.b16 %v363
    %v2698 = vunpack.c.l.b16 %v364
    %v2699 = vunpack.c.h.b16 %v364
    %v2700 = vunpack.c.l.b16 %v365
    %v2701 = vunpack.c.h.b16 %v365
    %v2702 = vunpack.c.l.b16 %v366
    %v2703 = vunpack.c.h.b16 %v366
    %v2704 = vunpack.c.l.b16 %v367
    %v2705 = vunpack.c.h.b16 %v367
    %v2706 = vunpack.c.l.b16 %v368
    %v2707 = vunpack.c.h.b16 %v368
    %v2708 = vunpack.c.l.b16 %v369
    %v2709 = vunpack.c.h.b16 %v369
    %v2710 = vunpack.c.l.b16 %v370
    %v2711 = vunpack.c.h.b16 %v370
    %v2712 = vunpack.c.l.b16 %v371
    %v2713 = vunpack.c.h.b16 %v371
    %v2714 = vunpack.c.l.b16 %v372
    %v2715 = vunpack.c.h.b16 %v372
    %v2716 = vunpack.c.l.b16 %v373
    %v2717 = vunpack.c.h.b16 %v373
    %v2718 = vunpack.c.l.b16 %v374
    %v2719 = vunpack.c.h.b16 %v374
    %v2720 = vunpack.c.l.b16 %v375
    %v2721 = vunpack.c.h.b16 %v375
    %v2722 = vunpack.c.l.b16 %v376
    %v2723 = vunpack.c.h.b16 %v376
    %v2724 = vunpack.c.l.b16 %v377
    %v2725 = vunpack.c.h.b16 %v377
    %v2726 = vunpack.c.l.b16 %v378
    %v2727 = vunpack.c.h.b16 %v378
    %v2728 = vunpack.c.l.b16 %v379
    %v2729 = vunpack.c.h.b16 %v379
    %v2730 = vunpack.c.l.b16 %v380
    %v2731 = vunpack.c.h.b16 %v380
    %v2732 = vunpack.c.l.b16 %v381
    %v2733 = vunpack.c.h.b16 %v381
    %v2734 = vunpack.c.l.b16 %v382
    %v2735 = vunpack.c.h.b16 %v382
    %v2736 = vunpack.c.l.b16 %v383
    %v2737 = vunpack.c.h.b16 %v383
    %v2738 = vunpack.c.l.b16 %v384
    %v2739 = vunpack.c.h.b16 %v384
    %v2740 = vunpack.c.l.b16 %v385
    %v2741 = vunpack.c.h.b16 %v385
    %v2742 = vunpack.c.l.b16 %v386
    %v2743 = vunpack.c.h.b16 %v386
    %v2744 = vunpack.c.l.b16 %v387
    %v2745 = vunpack.c.h.b16 %v387
    %v2746 = vunpack.c.l.b16 %v388
    %v2747 = vunpack.c.h.b16 %v388
    %v2748 = vunpack.c.l.b16 %v389
    %v2749 = vunpack.c.h.b16 %v389
    %v2750 = vunpack.c.l.b16 %v390
    %v2751 = vunpack.c.h.b16 %v390
    %v2752 = vunpack.c.l.b16 %v391
    %v2753 = vunpack.c.h.b16 %v391
    %v2754 = vunpack.c.l.b16 %v392
    %v2755 = vunpack.c.h.b16 %v392
    %v2756 = vunpack.c.l.b16 %v393
    %v2757 = vunpack.c.h.b16 %v393
    %v2758 = vunpack.c.l.b16 %v394
    %v2759 = vunpack.c.h.b16 %v394
    %v2760 = vunpack.c.l.b16 %v395
    %v2761 = vunpack.c.h.b16 %v395
    %v2762 = vunpack.c.l.b16 %v396
    %v2763 = vunpack.c.h.b16 %v396
    %v2764 = vunpack.c.l.b16 %v397
    %v2765 = vunpack.c.h.b16 %v397
    %v2766 = vunpack.c.l.b16 %v398
    %v2767 = vunpack.c.h.b16 %v398
    %v2768 = vunpack.c.l.b16 %v399
    %v2769 = vunpack.c.h.b16 %v399
    %v2770 = vunpack.c.l.b16 %v400
    %v2771 = vunpack.c.h.b16 %v400
    %v2772 = vunpack.c.l.b16 %v401
    %v2773 = vunpack.c.h.b16 %v401
    %v2774 = vunpack.c.l.b16 %v402
    %v2775 = vunpack.c.h.b16 %v402
    %v2776 = vunpack.c.l.b16 %v403
    %v2777 = vunpack.c.h.b16 %v403
    %v2778 = vunpack.c.l.b16 %v404
    %v2779 = vunpack.c.h.b16 %v404
    %v2780 = vunpack.c.l.b16 %v405
    %v2781 = vunpack.c.h.b16 %v405
    %v2782 = vunpack.c.l.b16 %v406
    %v2783 = vunpack.c.h.b16 %v406
    %v2784 = vunpack.c.l.b16 %v407
    %v2785 = vunpack.c.h.b16 %v407
    %v2786 = vunpack.c.l.b16 %v408
    %v2787 = vunpack.c.h.b16 %v408
    %v2788 = vunpack.c.l.b16 %v409
    %v2789 = vunpack.c.h.b16 %v409
    %v2790 = vunpack.c.l.b16 %v410
    %v2791 = vunpack.c.h.b16 %v410
    %v2792 = vunpack.c.l.b16 %v411
    %v2793 = vunpack.c.h.b16 %v411
    %v2794 = vunpack.c.l.b16 %v412
    %v2795 = vunpack.c.h.b16 %v412
    %v2796 = vunpack.c.l.b16 %v413
    %v2797 = vunpack.c.h.b16 %v413
    %v2798 = vunpack.c.l.b16 %v414
    %v2799 = vunpack.c.h.b16 %v414
    %v2800 = vunpack.c.l.b16 %v415
    %v2801 = vunpack.c.h.b16 %v415
    %v2802 = vunpack.c.l.b16 %v416
    %v2803 = vunpack.c.h.b16 %v416
    %v2804 = vunpack.c.l.b16 %v417
    %v2805 = vunpack.c.h.b16 %v417
    %v2806 = vunpack.c.l.b16 %v418
    %v2807 = vunpack.c.h.b16 %v418
    %v2808 = vunpack.c.l.b16 %v419
    %v2809 = vunpack.c.h.b16 %v419
    %v2810 = vunpack.c.l.b16 %v420
    %v2811 = vunpack.c.h.b16 %v420
    %v2812 = vunpack.c.l.b16 %v421
    %v2813 = vunpack.c.h.b16 %v421
    %v2814 = vunpack.c.l.b16 %v422
    %v2815 = vunpack.c.h.b16 %v422
    %v2816 = vunpack.c.l.b16 %v423
    %v2817 = vunpack.c.h.b16 %v423
    %v2818 = vunpack.c.l.b16 %v424
    %v2819 = vunpack.c.h.b16 %v424
    %v2820 = vunpack.c.l.b16 %v425
    %v2821 = vunpack.c.h.b16 %v425
    %v2822 = vunpack.c.l.b16 %v426
    %v2823 = vunpack.c.h.b16 %v426
    %v2824 = vunpack.c.l.b16 %v427
    %v2825 = vunpack.c.h.b16 %v427
    %v2826 = vunpack.c.l.b16 %v428
    %v2827 = vunpack.c.h.b16 %v428
    %v2828 = vunpack.c.l.b16 %v429
    %v2829 = vunpack.c.h.b16 %v429
    %v2830 = vunpack.c.l.b16 %v430
    %v2831 = vunpack.c.h.b16 %v430
    %v2832 = vunpack.c.l.b16 %v431
    %v2833 = vunpack.c.h.b16 %v431
    %v2834 = vunpack.c.l.b16 %v432
    %v2835 = vunpack.c.h.b16 %v432
    %v2836 = vunpack.c.l.b16 %v433
    %v2837 = vunpack.c.h.b16 %v433
    %v2838 = vunpack.c.l.b16 %v434
    %v2839 = vunpack.c.h.b16 %v434
    %v2840 = vunpack.c.l.b16 %v435
    %v2841 = vunpack.c.h.b16 %v435
    %v2842 = vunpack.c.l.b16 %v436
    %v2843 = vunpack.c.h.b16 %v436
    %v2844 = vunpack.c.l.b16 %v437
    %v2845 = vunpack.c.h.b16 %v437
    %v2846 = vunpack.c.l.b16 %v438
    %v2847 = vunpack.c.h.b16 %v438
    %v2848 = vunpack.c.l.b16 %v439
    %v2849 = vunpack.c.h.b16 %v439
    %v2850 = vunpack.c.l.b16 %v440
    %v2851 = vunpack.c.h.b16 %v440
    %v2852 = vunpack.c.l.b16 %v441
    %v2853 = vunpack.c.h.b16 %v441
    %v2854 = vunpack.c.l.b16 %v442
    %v2855 = vunpack.c.h.b16 %v442
    %v2856 = vunpack.c.l.b16 %v443
    %v2857 = vunpack.c.h.b16 %v443
    %v2858 = vunpack.c.l.b16 %v444
    %v2859 = vunpack.c.h.b16 %v444
    %v2860 = vunpack.c.l.b16 %v445
    %v2861 = vunpack.c.h.b16 %v445
    %v2862 = vunpack.c.l.b16 %v446
    %v2863 = vunpack.c.h.b16 %v446
    %v2864 = vunpack.c.l.b16 %v447
    %v2865 = vunpack.c.h.b16 %v447
    %v2866 = vunpack.c.l.b16 %v448
    %v2867 = vunpack.c.h.b16 %v448
    %v2868 = vunpack.c.l.b16 %v449
    %v2869 = vunpack.c.h.b16 %v449
    %v2870 = vunpack.c.l.b16 %v450
    %v2871 = vunpack.c.h.b16 %v450
    %v2872 = vunpack.c.l.b16 %v451
    %v2873 = vunpack.c.h.b16 %v451
    %v2874 = vunpack.c.l.b16 %v452
    %v2875 = vunpack.c.h.b16 %v452
    %v2876 = vunpack.c.l.b16 %v453
    %v2877 = vunpack.c.h.b16 %v453
    %v2878 = vunpack.c.l.b16 %v454
    %v2879 = vunpack.c.h.b16 %v454
    %v2880 = vunpack.c.l.b16 %v455
    %v2881 = vunpack.c.h.b16 %v455
    %v2882 = vunpack.c.l.b16 %v456
    %v2883 = vunpack.c.h.b16 %v456
    %v2884 = vunpack.c.l.b16 %v457
    %v2885 = vunpack.c.h.b16 %v457
    %v2886 = vunpack.c.l.b16 %v458
    %v2887 = vunpack.c.h.b16 %v458
    %v2888 = vunpack.c.l.b16 %v459
    %v2889 = vunpack.c.h.b16 %v459
    %v2890 = vunpack.c.l.b16 %v460
    %v2891 = vunpack.c.h.b16 %v460
    %v2892 = vunpack.c.l.b16 %v461
    %v2893 = vunpack.c.h.b16 %v461
    %v2894 = vunpack.c.l.b16 %v462
    %v2895 = vunpack.c.h.b16 %v462
    %v2896 = vunpack.c.l.b16 %v463
    %v2897 = vunpack.c.h.b16 %v463
    %v2898 = vunpack.c.l.b16 %v464
    %v2899 = vunpack.c.h.b16 %v464
    %v2900 = vunpack.c.l.b16 %v465
    %v2901 = vunpack.c.h.b16 %v465
    %v2902 = vunpack.c.l.b16 %v466
    %v2903 = vunpack.c.h.b16 %v466
    %v2904 = vunpack.c.l.b16 %v467
    %v2905 = vunpack.c.h.b16 %v467
    %v2906 = vunpack.c.l.b16 %v468
    %v2907 = vunpack.c.h.b16 %v468
    %v2908 = vunpack.c.l.b16 %v469
    %v2909 = vunpack.c.h.b16 %v469
    %v2910 = vunpack.c.l.b16 %v470
    %v2911 = vunpack.c.h.b16 %v470
    %v2912 = vunpack.c.l.b16 %v471
    %v2913 = vunpack.c.h.b16 %v471
    %v2914 = vunpack.c.l.b16 %v472
    %v2915 = vunpack.c.h.b16 %v472
    %v2916 = vunpack.c.l.b16 %v473
    %v2917 = vunpack.c.h.b16 %v473
    %v2918 = vunpack.c.l.b16 %v474
    %v2919 = vunpack.c.h.b16 %v474
    %v2920 = vunpack.c.l.b16 %v475
    %v2921 = vunpack.c.h.b16 %v475
    %v2922 = vunpack.c.l.b16 %v476
    %v2923 = vunpack.c.h.b16 %v476
    %v2924 = vunpack.c.l.b16 %v477
    %v2925 = vunpack.c.h.b16 %v477
    %v2926 = vunpack.c.l.b16 %v478
    %v2927 = vunpack.c.h.b16 %v478
    %v2928 = vunpack.c.l.b16 %v479
    %v2929 = vunpack.c.h.b16 %v479
    %v2930 = vunpack.c.l.b16 %v480
    %v2931 = vunpack.c.h.b16 %v480
    %v2932 = vunpack.c.l.b16 %v481
    %v2933 = vunpack.c.h.b16 %v481
    %v2934 = vunpack.c.l.b16 %v482
    %v2935 = vunpack.c.h.b16 %v482
    %v2936 = vunpack.c.l.b16 %v483
    %v2937 = vunpack.c.h.b16 %v483
    %v2938 = vunpack.c.l.b16 %v484
    %v2939 = vunpack.c.h.b16 %v484
    %v2940 = vunpack.c.l.b16 %v485
    %v2941 = vunpack.c.h.b16 %v485
    %v2942 = vunpack.c.l.b16 %v486
    %v2943 = vunpack.c.h.b16 %v486
    %v2944 = vunpack.c.l.b16 %v487
    %v2945 = vunpack.c.h.b16 %v487
    %v2946 = vunpack.c.l.b16 %v488
    %v2947 = vunpack.c.h.b16 %v488
    %v2948 = vunpack.c.l.b16 %v489
    %v2949 = vunpack.c.h.b16 %v489
    %v2950 = vunpack.c.l.b16 %v490
    %v2951 = vunpack.c.h.b16 %v490
    %v2952 = vunpack.c.l.b16 %v491
    %v2953 = vunpack.c.h.b16 %v491
    %v2954 = vunpack.c.l.b16 %v492
    %v2955 = vunpack.c.h.b16 %v492
    %v2956 = vunpack.c.l.b16 %v493
    %v2957 = vunpack.c.h.b16 %v493
    %v2958 = vunpack.c.l.b16 %v494
    %v2959 = vunpack.c.h.b16 %v494
    %v2960 = vunpack.c.l.b16 %v495
    %v2961 = vunpack.c.h.b16 %v495
    %v2962 = vunpack.c.l.b16 %v496
    %v2963 = vunpack.c.h.b16 %v496
    %v2964 = vunpack.c.l.b16 %v497
    %v2965 = vunpack.c.h.b16 %v497
    %v2966 = vunpack.c.l.b16 %v498
    %v2967 = vunpack.c.h.b16 %v498
    %v2968 = vunpack.c.l.b16 %v499
    %v2969 = vunpack.c.h.b16 %v499
    %v2970 = vunpack.c.l.b16 %v500
    %v2971 = vunpack.c.h.b16 %v500
    %v2972 = vunpack.c.l.b16 %v501
    %v2973 = vunpack.c.h.b16 %v501
    %v2974 = vunpack.c.l.b16 %v502
    %v2975 = vunpack.c.h.b16 %v502
    %v2976 = vunpack.c.l.b16 %v503
    %v2977 = vunpack.c.h.b16 %v503
    %v2978 = vunpack.c.l.b16 %v504
    %v2979 = vunpack.c.h.b16 %v504
    %v2980 = vunpack.c.l.b16 %v505
    %v2981 = vunpack.c.h.b16 %v505
    %v2982 = vunpack.c.l.b16 %v506
    %v2983 = vunpack.c.h.b16 %v506
    %v2984 = vunpack.c.l.b16 %v507
    %v2985 = vunpack.c.h.b16 %v507
    %v2986 = vunpack.c.l.b16 %v508
    %v2987 = vunpack.c.h.b16 %v508
    %v2988 = vunpack.c.l.b16 %v509
    %v2989 = vunpack.c.h.b16 %v509
    %v2990 = vunpack.c.l.b16 %v510
    %v2991 = vunpack.c.h.b16 %v510
    %v2992 = vunpack.c.l.b16 %v511
    %v2993 = vunpack.c.h.b16 %v511
    %v2994 = vunpack.c.l.b16 %v512
    %v2995 = vunpack.c.h.b16 %v512
    %v2996 = vunpack.c.l.b16 %v513
    %v2997 = vunpack.c.h.b16 %v513
    %v2998 = vunpack.c.l.b16 %v514
    %v2999 = vunpack.c.h.b16 %v514
    %v3000 = vunpack.c.l.b16 %v515
    %v3001 = vunpack.c.h.b16 %v515
    %v3002 = vunpack.c.l.b16 %v516
    %v3003 = vunpack.c.h.b16 %v516
    %v3004 = vunpack.c.l.b16 %v517
    %v3005 = vunpack.c.h.b16 %v517
    %v3006 = vunpack.c.l.b16 %v518
    %v3007 = vunpack.c.h.b16 %v518
    %v3008 = vunpack.c.l.b16 %v519
    %v3009 = vunpack.c.h.b16 %v519
    %v3010 = vunpack.c.l.b16 %v520
    %v3011 = vunpack.c.h.b16 %v520
    %v3012 = vunpack.c.l.b16 %v521
    %v3013 = vunpack.c.h.b16 %v521
    %v3014 = vunpack.c.l.b16 %v522
    %v3015 = vunpack.c.h.b16 %v522
    %v3016 = vunpack.c.l.b16 %v523
    %v3017 = vunpack.c.h.b16 %v523
    %v3018 = vunpack.c.l.b16 %v524
    %v3019 = vunpack.c.h.b16 %v524
    %v3020 = vunpack.c.l.b16 %v525
    %v3021 = vunpack.c.h.b16 %v525
    %v3022 = vunpack.c.l.b16 %v526
    %v3023 = vunpack.c.h.b16 %v526
    %v3024 = vunpack.c.l.b16 %v527
    %v3025 = vunpack.c.h.b16 %v527
    %v3026 = vunpack.c.l.b16 %v528
    %v3027 = vunpack.c.h.b16 %v528
    %v3028 = vunpack.c.l.b16 %v529
    %v3029 = vunpack.c.h.b16 %v529
    %v3030 = vunpack.c.l.b16 %v530
    %v3031 = vunpack.c.h.b16 %v530
    %v3032 = vunpack.c.l.b16 %v531
    %v3033 = vunpack.c.h.b16 %v531
    %v3034 = vunpack.c.l.b16 %v532
    %v3035 = vunpack.c.h.b16 %v532
    %v3036 = vunpack.c.l.b16 %v533
    %v3037 = vunpack.c.h.b16 %v533
    %v3038 = vunpack.c.l.b16 %v534
    %v3039 = vunpack.c.h.b16 %v534
    %v3040 = vunpack.c.l.b16 %v535
    %v3041 = vunpack.c.h.b16 %v535
    %v3042 = vunpack.c.l.b16 %v536
    %v3043 = vunpack.c.h.b16 %v536
    %v3044 = vunpack.c.l.b16 %v537
    %v3045 = vunpack.c.h.b16 %v537
    %v3046 = vunpack.c.l.b16 %v538
    %v3047 = vunpack.c.h.b16 %v538
    %v3048 = vunpack.c.l.b16 %v539
    %v3049 = vunpack.c.h.b16 %v539
    %v3050 = vunpack.c.l.b16 %v540
    %v3051 = vunpack.c.h.b16 %v540
    %v3052 = vunpack.c.l.b16 %v541
    %v3053 = vunpack.c.h.b16 %v541
    %v3054 = vunpack.c.l.b16 %v542
    %v3055 = vunpack.c.h.b16 %v542
    %v3056 = vunpack.c.l.b16 %v543
    %v3057 = vunpack.c.h.b16 %v543
    %v3058 = vunpack.c.l.b16 %v544
    %v3059 = vunpack.c.h.b16 %v544
    %v3060 = vunpack.c.l.b16 %v545
    %v3061 = vunpack.c.h.b16 %v545
    %v3062 = vunpack.c.l.b16 %v546
    %v3063 = vunpack.c.h.b16 %v546
    %v3064 = vunpack.c.l.b16 %v547
    %v3065 = vunpack.c.h.b16 %v547
    %v3066 = vunpack.c.l.b16 %v548
    %v3067 = vunpack.c.h.b16 %v548
    %v3068 = vunpack.c.l.b16 %v549
    %v3069 = vunpack.c.h.b16 %v549
    %v3070 = vunpack.c.l.b16 %v550
    %v3071 = vunpack.c.h.b16 %v550
    %v3072 = vunpack.c.l.b16 %v551
    %v3073 = vunpack.c.h.b16 %v551
    %v3074 = vunpack.c.l.b16 %v552
    %v3075 = vunpack.c.h.b16 %v552
    %v3076 = vunpack.c.l.b16 %v553
    %v3077 = vunpack.c.h.b16 %v553
    %v3078 = vunpack.c.l.b16 %v554
    %v3079 = vunpack.c.h.b16 %v554
    %v3080 = vunpack.c.l.b16 %v555
    %v3081 = vunpack.c.h.b16 %v555
    %v3082 = vunpack.c.l.b16 %v556
    %v3083 = vunpack.c.h.b16 %v556
    %v3084 = vunpack.c.l.b16 %v557
    %v3085 = vunpack.c.h.b16 %v557
    %v3086 = vunpack.c.l.b16 %v558
    %v3087 = vunpack.c.h.b16 %v558
    %v3088 = vunpack.c.l.b16 %v559
    %v3089 = vunpack.c.h.b16 %v559
    %v3090 = vunpack.c.l.b16 %v560
    %v3091 = vunpack.c.h.b16 %v560
    %v3092 = vunpack.c.l.b16 %v561
    %v3093 = vunpack.c.h.b16 %v561
    %v3094 = vunpack.c.l.b16 %v562
    %v3095 = vunpack.c.h.b16 %v562
    %v3096 = vunpack.c.l.b16 %v563
    %v3097 = vunpack.c.h.b16 %v563
    %v3098 = vunpack.c.l.b16 %v564
    %v3099 = vunpack.c.h.b16 %v564
    %v3100 = vunpack.c.l.b16 %v565
    %v3101 = vunpack.c.h.b16 %v565
    %v3102 = vunpack.c.l.b16 %v566
    %v3103 = vunpack.c.h.b16 %v566
    %v3104 = vunpack.c.l.b16 %v567
    %v3105 = vunpack.c.h.b16 %v567
    %v3106 = vunpack.c.l.b16 %v568
    %v3107 = vunpack.c.h.b16 %v568
    %v3108 = vunpack.c.l.b16 %v569
    %v3109 = vunpack.c.h.b16 %v569
    %v3110 = vunpack.c.l.b16 %v570
    %v3111 = vunpack.c.h.b16 %v570
    %v3112 = vunpack.c.l.b16 %v571
    %v3113 = vunpack.c.h.b16 %v571
    %v3114 = vunpack.c.l.b16 %v572
    %v3115 = vunpack.c.h.b16 %v572
    %v3116 = vunpack.c.l.b16 %v573
    %v3117 = vunpack.c.h.b16 %v573
    %v3118 = vunpack.c.l.b16 %v574
    %v3119 = vunpack.c.h.b16 %v574
    %v3120 = vunpack.c.l.b16 %v575
    %v3121 = vunpack.c.h.b16 %v575
    %v3122 = vunpack.c.l.b16 %v576
    %v3123 = vunpack.c.h.b16 %v576
    %v3124 = vunpack.c.l.b16 %v577
    %v3125 = vunpack.c.h.b16 %v577
    %v3126 = vunpack.c.l.b16 %v578
    %v3127 = vunpack.c.h.b16 %v578
    %v3128 = vunpack.c.l.b16 %v579
    %v3129 = vunpack.c.h.b16 %v579
    %v3130 = vunpack.c.l.b16 %v580
    %v3131 = vunpack.c.h.b16 %v580
    %v3132 = vunpack.c.l.b16 %v581
    %v3133 = vunpack.c.h.b16 %v581
    %v3134 = vunpack.c.l.b16 %v582
    %v3135 = vunpack.c.h.b16 %v582
    %v3136 = vunpack.c.l.b16 %v583
    %v3137 = vunpack.c.h.b16 %v583
    %v3138 = vunpack.c.l.b16 %v584
    %v3139 = vunpack.c.h.b16 %v584
    %v3140 = vunpack.c.l.b16 %v585
    %v3141 = vunpack.c.h.b16 %v585
    %v3142 = vunpack.c.l.b16 %v586
    %v3143 = vunpack.c.h.b16 %v586
    %v3144 = vunpack.c.l.b16 %v587
    %v3145 = vunpack.c.h.b16 %v587
    %v3146 = vunpack.c.l.b16 %v588
    %v3147 = vunpack.c.h.b16 %v588
    %v3148 = vunpack.c.l.b16 %v589
    %v3149 = vunpack.c.h.b16 %v589
    %v3150 = vunpack.c.l.b16 %v590
    %v3151 = vunpack.c.h.b16 %v590
    %v3152 = vunpack.c.l.b16 %v591
    %v3153 = vunpack.c.h.b16 %v591
    %v3154 = vunpack.c.l.b16 %v592
    %v3155 = vunpack.c.h.b16 %v592
    %v3156 = vunpack.c.l.b16 %v593
    %v3157 = vunpack.c.h.b16 %v593
    %v3158 = vunpack.c.l.b16 %v594
    %v3159 = vunpack.c.h.b16 %v594
    %v3160 = vunpack.c.l.b16 %v595
    %v3161 = vunpack.c.h.b16 %v595
    %v3162 = vunpack.c.l.b16 %v596
    %v3163 = vunpack.c.h.b16 %v596
    %v3164 = vunpack.c.l.b16 %v597
    %v3165 = vunpack.c.h.b16 %v597
    %v3166 = vunpack.c.l.b16 %v598
    %v3167 = vunpack.c.h.b16 %v598
    %v3168 = vunpack.c.l.b16 %v599
    %v3169 = vunpack.c.h.b16 %v599
    %v3170 = vunpack.c.l.b16 %v600
    %v3171 = vunpack.c.h.b16 %v600
    %v3172 = vunpack.c.l.b16 %v601
    %v3173 = vunpack.c.h.b16 %v601
    %v3174 = vunpack.c.l.b16 %v602
    %v3175 = vunpack.c.h.b16 %v602
    %v3176 = vunpack.c.l.b16 %v603
    %v3177 = vunpack.c.h.b16 %v603
    %v3178 = vunpack.c.l.b16 %v604
    %v3179 = vunpack.c.h.b16 %v604
    %v3180 = vunpack.c.l.b16 %v605
    %v3181 = vunpack.c.h.b16 %v605
    %v3182 = vunpack.c.l.b16 %v606
    %v3183 = vunpack.c.h.b16 %v606
    %v3184 = vunpack.c.l.b16 %v607
    %v3185 = vunpack.c.h.b16 %v607
    %v3186 = vunpack.c.l.b16 %v608
    %v3187 = vunpack.c.h.b16 %v608
    %v3188 = vunpack.c.l.b16 %v609
    %v3189 = vunpack.c.h.b16 %v609
    %v3190 = vunpack.c.l.b16 %v610
    %v3191 = vunpack.c.h.b16 %v610
    %v3192 = vunpack.c.l.b16 %v611
    %v3193 = vunpack.c.h.b16 %v611
    %v3194 = vunpack.c.l.b16 %v612
    %v3195 = vunpack.c.h.b16 %v612
    %v3196 = vunpack.c.l.b16 %v613
    %v3197 = vunpack.c.h.b16 %v613
    %v3198 = vunpack.c.l.b16 %v614
    %v3199 = vunpack.c.h.b16 %v614
    %v3200 = vunpack.c.l.b16 %v615
    %v3201 = vunpack.c.h.b16 %v615
    %v3202 = vunpack.c.l.b16 %v616
    %v3203 = vunpack.c.h.b16 %v616
    %v3204 = vunpack.c.l.b16 %v617
    %v3205 = vunpack.c.h.b16 %v617
    %v3206 = vunpack.c.l.b16 %v618
    %v3207 = vunpack.c.h.b16 %v618
    %v3208 = vunpack.c.l.b16 %v619
    %v3209 = vunpack.c.h.b16 %v619
    %v3210 = vunpack.c.l.b16 %v620
    %v3211 = vunpack.c.h.b16 %v620
    %v3212 = vunpack.c.l.b16 %v621
    %v3213 = vunpack.c.h.b16 %v621
    %v3214 = vunpack.c.l.b16 %v622
    %v3215 = vunpack.c.h.b16 %v622
    %v3216 = vunpack.c.l.b16 %v623
    %v3217 = vunpack.c.h.b16 %v623
    %v3218 = vunpack.c.l.b16 %v624
    %v3219 = vunpack.c.h.b16 %v624
    %v3220 = vunpack.c.l.b16 %v625
    %v3221 = vunpack.c.h.b16 %v625
    %v3222 = vunpack.c.l.b16 %v626
    %v3223 = vunpack.c.h.b16 %v626
    %v3224 = vunpack.c.l.b16 %v627
    %v3225 = vunpack.c.h.b16 %v627
    %v3226 = vunpack.c.l.b16 %v628
    %v3227 = vunpack.c.h.b16 %v628
    %v3228 = vunpack.c.l.b16 %v629
    %v3229 = vunpack.c.h.b16 %v629
    %v3230 = vunpack.c.l.b16 %v630
    %v3231 = vunpack.c.h.b16 %v630
    %v3232 = vunpack.c.l.b16 %v631
    %v3233 = vunpack.c.h.b16 %v631
    %v3234 = vunpack.c.l.b16 %v632
    %v3235 = vunpack.c.h.b16 %v632
    %v3236 = vunpack.c.l.b16 %v633
    %v3237 = vunpack.c.h.b16 %v633
    %v3238 = vunpack.c.l.b16 %v634
    %v3239 = vunpack.c.h.b16 %v634
    %v3240 = vunpack.c.l.b16 %v635
    %v3241 = vunpack.c.h.b16 %v635
    %v3242 = vunpack.c.l.b16 %v636
    %v3243 = vunpack.c.h.b16 %v636
    %v3244 = vunpack.c.l.b16 %v637
    %v3245 = vunpack.c.h.b16 %v637
    %v3246 = vunpack.c.l.b16 %v638
    %v3247 = vunpack.c.h.b16 %v638
    %v3248 = vunpack.c.l.b16 %v639
    %v3249 = vunpack.c.h.b16 %v639
    %v3250 = vunpack.c.l.b16 %v640
    %v3251 = vunpack.c.h.b16 %v640
    %v3252 = vunpack.c.l.b16 %v641
    %v3253 = vunpack.c.h.b16 %v641
    %v3254 = vunpack.c.l.b16 %v642
    %v3255 = vunpack.c.h.b16 %v642
    %v3256 = vunpack.c.l.b16 %v643
    %v3257 = vunpack.c.h.b16 %v643
    %v3258 = vunpack.c.l.b16 %v644
    %v3259 = vunpack.c.h.b16 %v644
    %v3260 = vunpack.c.l.b16 %v645
    %v3261 = vunpack.c.h.b16 %v645
    %v3262 = vunpack.c.l.b16 %v646
    %v3263 = vunpack.c.h.b16 %v646
    %v3264 = vunpack.c.l.b16 %v647
    %v3265 = vunpack.c.h.b16 %v647
    %v3266 = vunpack.c.l.b16 %v648
    %v3267 = vunpack.c.h.b16 %v648
    %v3268 = vunpack.c.l.b16 %v649
    %v3269 = vunpack.c.h.b16 %v649
    %v3270 = vunpack.c.l.b16 %v650
    %v3271 = vunpack.c.h.b16 %v650
    %v3272 = vunpack.c.l.b16 %v651
    %v3273 = vunpack.c.h.b16 %v651
    %v3274 = vunpack.c.l.b16 %v652
    %v3275 = vunpack.c.h.b16 %v652
    %v3276 = vunpack.c.l.b16 %v653
    %v3277 = vunpack.c.h.b16 %v653
    %v3278 = vunpack.c.l.b16 %v654
    %v3279 = vunpack.c.h.b16 %v654
    %v3280 = vunpack.c.l.b16 %v655
    %v3281 = vunpack.c.h.b16 %v655
    %v3282 = vunpack.c.l.b16 %v656
    %v3283 = vunpack.c.h.b16 %v656
    %v3284 = vunpack.c.l.b16 %v657
    %v3285 = vunpack.c.h.b16 %v657
    %v3286 = vunpack.c.l.b16 %v658
    %v3287 = vunpack.c.h.b16 %v658
    %v3288 = vunpack.c.l.b16 %v659
    %v3289 = vunpack.c.h.b16 %v659
    %v3290 = vunpack.c.l.b16 %v660
    %v3291 = vunpack.c.h.b16 %v660
    %v3292 = vunpack.c.l.b16 %v661
    %v3293 = vunpack.c.h.b16 %v661
    %v3294 = vunpack.c.l.b16 %v662
    %v3295 = vunpack.c.h.b16 %v662
    %v3296 = vunpack.c.l.b16 %v663
    %v3297 = vunpack.c.h.b16 %v663
    %v3298 = vunpack.c.l.b16 %v664
    %v3299 = vunpack.c.h.b16 %v664
    %v3300 = vunpack.c.l.b16 %v665
    %v3301 = vunpack.c.h.b16 %v665
    %v3302 = vunpack.c.l.b16 %v666
    %v3303 = vunpack.c.h.b16 %v666
    %v3304 = vunpack.c.l.b16 %v667
    %v3305 = vunpack.c.h.b16 %v667
    %v3306 = vunpack.c.l.b16 %v668
    %v3307 = vunpack.c.h.b16 %v668
    %v3308 = vunpack.c.l.b16 %v669
    %v3309 = vunpack.c.h.b16 %v669
    %v3310 = vunpack.c.l.b16 %v670
    %v3311 = vunpack.c.h.b16 %v670
    %v3312 = vunpack.c.l.b16 %v671
    %v3313 = vunpack.c.h.b16 %v671
    %v3314 = vunpack.c.l.b16 %v672
    %v3315 = vunpack.c.h.b16 %v672
    %v3316 = vunpack.c.l.b16 %v673
    %v3317 = vunpack.c.h.b16 %v673
    %v3318 = vunpack.c.l.b16 %v674
    %v3319 = vunpack.c.h.b16 %v674
    %v3320 = vunpack.c.l.b16 %v675
    %v3321 = vunpack.c.h.b16 %v675
    %v3322 = vunpack.c.l.b16 %v676
    %v3323 = vunpack.c.h.b16 %v676
    %v3324 = vunpack.c.l.b16 %v677
    %v3325 = vunpack.c.h.b16 %v677
    %v3326 = vunpack.c.l.b16 %v678
    %v3327 = vunpack.c.h.b16 %v678
    %v3328 = vunpack.c.l.b16 %v679
    %v3329 = vunpack.c.h.b16 %v679
    %v3330 = vunpack.c.l.b16 %v680
    %v3331 = vunpack.c.h.b16 %v680
    %v3332 = vunpack.c.l.b16 %v681
    %v3333 = vunpack.c.h.b16 %v681
    %v3334 = vunpack.c.l.b16 %v682
    %v3335 = vunpack.c.h.b16 %v682
    %v3336 = vunpack.c.l.b16 %v683
    %v3337 = vunpack.c.h.b16 %v683
    %v3338 = vunpack.c.l.b16 %v684
    %v3339 = vunpack.c.h.b16 %v684
    %v3340 = vunpack.c.l.b16 %v685
    %v3341 = vunpack.c.h.b16 %v685
    %v3342 = vunpack.c.l.b16 %v686
    %v3343 = vunpack.c.h.b16 %v686
    %v3344 = vunpack.c.l.b16 %v687
    %v3345 = vunpack.c.h.b16 %v687
    %v3346 = vunpack.c.l.b16 %v688
    %v3347 = vunpack.c.h.b16 %v688
    %v3348 = vunpack.c.l.b16 %v689
    %v3349 = vunpack.c.h.b16 %v689
    %v3350 = vunpack.c.l.b16 %v690
    %v3351 = vunpack.c.h.b16 %v690
    %v3352 = vunpack.c.l.b16 %v691
    %v3353 = vunpack.c.h.b16 %v691
    %v3354 = vunpack.c.l.b16 %v692
    %v3355 = vunpack.c.h.b16 %v692
    %v3356 = vunpack.c.l.b16 %v693
    %v3357 = vunpack.c.h.b16 %v693
    %v3358 = vunpack.c.l.b16 %v694
    %v3359 = vunpack.c.h.b16 %v694
    %v3360 = vunpack.c.l.b16 %v695
    %v3361 = vunpack.c.h.b16 %v695
    %v3362 = vunpack.c.l.b16 %v696
    %v3363 = vunpack.c.h.b16 %v696
    %v3364 = vunpack.c.l.b16 %v697
    %v3365 = vunpack.c.h.b16 %v697
    %v3366 = vunpack.c.l.b16 %v698
    %v3367 = vunpack.c.h.b16 %v698
    %v3368 = vunpack.c.l.b16 %v699
    %v3369 = vunpack.c.h.b16 %v699
    %v3370 = vunpack.c.l.b16 %v700
    %v3371 = vunpack.c.h.b16 %v700
    %v3372 = vunpack.c.l.b16 %v701
    %v3373 = vunpack.c.h.b16 %v701
    %v3374 = vunpack.c.l.b16 %v702
    %v3375 = vunpack.c.h.b16 %v702
    %v3376 = vunpack.c.l.b16 %v703
    %v3377 = vunpack.c.h.b16 %v703
    %v3378 = vunpack.c.l.b16 %v704
    %v3379 = vunpack.c.h.b16 %v704
    %v3380 = vunpack.c.l.b16 %v705
    %v3381 = vunpack.c.h.b16 %v705
    %v3382 = vunpack.c.l.b16 %v706
    %v3383 = vunpack.c.h.b16 %v706
    %v3384 = vunpack.c.l.b16 %v707
    %v3385 = vunpack.c.h.b16 %v707
    %v3386 = vunpack.c.l.b16 %v708
    %v3387 = vunpack.c.h.b16 %v708
    %v3388 = vunpack.c.l.b16 %v709
    %v3389 = vunpack.c.h.b16 %v709
    %v3390 = vunpack.c.l.b16 %v710
    %v3391 = vunpack.c.h.b16 %v710
    %v3392 = vunpack.c.l.b16 %v711
    %v3393 = vunpack.c.h.b16 %v711
    %v3394 = vunpack.c.l.b16 %v712
    %v3395 = vunpack.c.h.b16 %v712
    %v3396 = vunpack.c.l.b16 %v713
    %v3397 = vunpack.c.h.b16 %v713
    %v3398 = vunpack.c.l.b16 %v714
    %v3399 = vunpack.c.h.b16 %v714
    %v3400 = vunpack.c.l.b16 %v715
    %v3401 = vunpack.c.h.b16 %v715
    %v3402 = vunpack.c.l.b16 %v716
    %v3403 = vunpack.c.h.b16 %v716
    %v3404 = vunpack.c.l.b16 %v717
    %v3405 = vunpack.c.h.b16 %v717
    %v3406 = vunpack.c.l.b16 %v718
    %v3407 = vunpack.c.h.b16 %v718
    %v3408 = vunpack.c.l.b16 %v719
    %v3409 = vunpack.c.h.b16 %v719
    %v3410 = vunpack.c.l.b16 %v720
    %v3411 = vunpack.c.h.b16 %v720
    %v3412 = vunpack.c.l.b16 %v721
    %v3413 = vunpack.c.h.b16 %v721
    %v3414 = vunpack.c.l.b16 %v722
    %v3415 = vunpack.c.h.b16 %v722
    %v3416 = vunpack.c.l.b16 %v723
    %v3417 = vunpack.c.h.b16 %v723
    %v3418 = vunpack.c.l.b16 %v724
    %v3419 = vunpack.c.h.b16 %v724
    %v3420 = vunpack.c.l.b16 %v725
    %v3421 = vunpack.c.h.b16 %v725
    %v3422 = vunpack.c.l.b16 %v726
    %v3423 = vunpack.c.h.b16 %v726
    %v3424 = vunpack.c.l.b16 %v727
    %v3425 = vunpack.c.h.b16 %v727
    %v3426 = vunpack.c.l.b16 %v728
    %v3427 = vunpack.c.h.b16 %v728
    %v3428 = vunpack.c.l.b16 %v729
    %v3429 = vunpack.c.h.b16 %v729
    %v3430 = vunpack.c.l.b16 %v730
    %v3431 = vunpack.c.h.b16 %v730
    %v3432 = vunpack.c.l.b16 %v731
    %v3433 = vunpack.c.h.b16 %v731
    %v3434 = vunpack.c.l.b16 %v732
    %v3435 = vunpack.c.h.b16 %v732
    %v3436 = vunpack.c.l.b16 %v733
    %v3437 = vunpack.c.h.b16 %v733
    %v3438 = vunpack.c.l.b16 %v734
    %v3439 = vunpack.c.h.b16 %v734
    %v3440 = vunpack.c.l.b16 %v735
    %v3441 = vunpack.c.h.b16 %v735
    %v3442 = vunpack.c.l.b16 %v736
    %v3443 = vunpack.c.h.b16 %v736
    %v3444 = vunpack.c.l.b16 %v737
    %v3445 = vunpack.c.h.b16 %v737
    %v3446 = vunpack.c.l.b16 %v738
    %v3447 = vunpack.c.h.b16 %v738
    %v3448 = vunpack.c.l.b16 %v739
    %v3449 = vunpack.c.h.b16 %v739
    %v3450 = vunpack.c.l.b16 %v740
    %v3451 = vunpack.c.h.b16 %v740
    %v3452 = vunpack.c.l.b16 %v741
    %v3453 = vunpack.c.h.b16 %v741
    %v3454 = vunpack.c.l.b16 %v742
    %v3455 = vunpack.c.h.b16 %v742
    %v3456 = vunpack.c.l.b16 %v743
    %v3457 = vunpack.c.h.b16 %v743
    %v3458 = vunpack.c.l.b16 %v744
    %v3459 = vunpack.c.h.b16 %v744
    %v3460 = vunpack.c.l.b16 %v745
    %v3461 = vunpack.c.h.b16 %v745
    %v3462 = vunpack.c.l.b16 %v746
    %v3463 = vunpack.c.h.b16 %v746
    %v3464 = vunpack.c.l.b16 %v747
    %v3465 = vunpack.c.h.b16 %v747
    %v3466 = vunpack.c.l.b16 %v748
    %v3467 = vunpack.c.h.b16 %v748
    %v3468 = vunpack.c.l.b16 %v749
    %v3469 = vunpack.c.h.b16 %v749
    %v3470 = vunpack.c.l.b16 %v750
    %v3471 = vunpack.c.h.b16 %v750
    %v3472 = vunpack.c.l.b16 %v751
    %v3473 = vunpack.c.h.b16 %v751
    %v3474 = vunpack.c.l.b16 %v752
    %v3475 = vunpack.c.h.b16 %v752
    %v3476 = vunpack.c.l.b16 %v753
    %v3477 = vunpack.c.h.b16 %v753
    %v3478 = vunpack.c.l.b16 %v754
    %v3479 = vunpack.c.h.b16 %v754
    %v3480 = vunpack.c.l.b16 %v755
    %v3481 = vunpack.c.h.b16 %v755
    %v3482 = vunpack.c.l.b16 %v756
    %v3483 = vunpack.c.h.b16 %v756
    %v3484 = vunpack.c.l.b16 %v757
    %v3485 = vunpack.c.h.b16 %v757
    %v3486 = vunpack.c.l.b16 %v758
    %v3487 = vunpack.c.h.b16 %v758
    %v3488 = vunpack.c.l.b16 %v759
    %v3489 = vunpack.c.h.b16 %v759
    %v3490 = vunpack.c.l.b16 %v760
    %v3491 = vunpack.c.h.b16 %v760
    %v3492 = vunpack.c.l.b16 %v761
    %v3493 = vunpack.c.h.b16 %v761
    %v3494 = vunpack.c.l.b16 %v762
    %v3495 = vunpack.c.h.b16 %v762
    %v3496 = vunpack.c.l.b16 %v763
    %v3497 = vunpack.c.h.b16 %v763
    %v3498 = vunpack.c.l.b16 %v764
    %v3499 = vunpack.c.h.b16 %v764
    %v3500 = vunpack.c.l.b16 %v765
    %v3501 = vunpack.c.h.b16 %v765
    %v3502 = vunpack.c.l.b16 %v766
    %v3503 = vunpack.c.h.b16 %v766
    %v3504 = vunpack.c.l.b16 %v767
    %v3505 = vunpack.c.h.b16 %v767
    %v3506 = vunpack.c.l.b16 %v768
    %v3507 = vunpack.c.h.b16 %v768
    %v3508 = vunpack.c.l.b16 %v769
    %v3509 = vunpack.c.h.b16 %v769
    %v3510 = vunpack.c.l.b16 %v770
    %v3511 = vunpack.c.h.b16 %v770
    %v3512 = vunpack.c.l.b16 %v771
    %v3513 = vunpack.c.h.b16 %v771
    %v3514 = vunpack.c.l.b16 %v772
    %v3515 = vunpack.c.h.b16 %v772
    %v3516 = vunpack.c.l.b16 %v773
    %v3517 = vunpack.c.h.b16 %v773
    %v3518 = vunpack.c.l.b16 %v774
    %v3519 = vunpack.c.h.b16 %v774
    %v3520 = vunpack.c.l.b16 %v775
    %v3521 = vunpack.c.h.b16 %v775
    %v3522 = vunpack.c.l.b16 %v776
    %v3523 = vunpack.c.h.b16 %v776
    %v3524 = vunpack.c.l.b16 %v777
    %v3525 = vunpack.c.h.b16 %v777
    %v3526 = vunpack.c.l.b16 %v778
    %v3527 = vunpack.c.h.b16 %v778
    %v3528 = vunpack.c.l.b16 %v779
    %v3529 = vunpack.c.h.b16 %v779
    %v3530 = vunpack.c.l.b16 %v780
    %v3531 = vunpack.c.h.b16 %v780
    %v3532 = vunpack.c.l.b16 %v781
    %v3533 = vunpack.c.h.b16 %v781
    %v3534 = vunpack.c.l.b16 %v782
    %v3535 = vunpack.c.h.b16 %v782
    %v3536 = vunpack.c.l.b16 %v783
    %v3537 = vunpack.c.h.b16 %v783
    %v3538 = vunpack.c.l.b16 %v784
    %v3539 = vunpack.c.h.b16 %v784
    %v3540 = vunpack.c.l.b16 %v785
    %v3541 = vunpack.c.h.b16 %v785
    %v3542 = vunpack.c.l.b16 %v786
    %v3543 = vunpack.c.h.b16 %v786
    %v3544 = vunpack.c.l.b16 %v787
    %v3545 = vunpack.c.h.b16 %v787
    %v3546 = vunpack.c.l.b16 %v788
    %v3547 = vunpack.c.h.b16 %v788
    %v3548 = vunpack.c.l.b16 %v789
    %v3549 = vunpack.c.h.b16 %v789
    %v3550 = vunpack.c.l.b16 %v790
    %v3551 = vunpack.c.h.b16 %v790
    %v3552 = vunpack.c.l.b16 %v791
    %v3553 = vunpack.c.h.b16 %v791
    %v3554 = vunpack.c.l.b16 %v792
    %v3555 = vunpack.c.h.b16 %v792
    %v3556 = vunpack.c.l.b16 %v793
    %v3557 = vunpack.c.h.b16 %v793
    %v3558 = vunpack.c.l.b16 %v794
    %v3559 = vunpack.c.h.b16 %v794
    %v3560 = vunpack.c.l.b16 %v795
    %v3561 = vunpack.c.h.b16 %v795
    %v3562 = vunpack.c.l.b16 %v796
    %v3563 = vunpack.c.h.b16 %v796
    %v3564 = vunpack.c.l.b16 %v797
    %v3565 = vunpack.c.h.b16 %v797
    %v3566 = vunpack.c.l.b16 %v798
    %v3567 = vunpack.c.h.b16 %v798
    %v3568 = vunpack.c.l.b16 %v799
    %v3569 = vunpack.c.h.b16 %v799
    %v3570 = vunpack.c.l.b16 %v800
    %v3571 = vunpack.c.h.b16 %v800
    %v3572 = vunpack.c.l.b16 %v801
    %v3573 = vunpack.c.h.b16 %v801
    %v3574 = vunpack.c.l.b16 %v802
    %v3575 = vunpack.c.h.b16 %v802
    %v3576 = vunpack.c.l.b16 %v803
    %v3577 = vunpack.c.h.b16 %v803
    %v3578 = vunpack.c.l.b16 %v804
    %v3579 = vunpack.c.h.b16 %v804
    %v3580 = vunpack.c.l.b16 %v805
    %v3581 = vunpack.c.h.b16 %v805
    %v3582 = vunpack.c.l.b16 %v806
    %v3583 = vunpack.c.h.b16 %v806
    %v3584 = vunpack.c.l.b16 %v807
    %v3585 = vunpack.c.h.b16 %v807
    %v3586 = vunpack.c.l.b16 %v808
    %v3587 = vunpack.c.h.b16 %v808
    %v3588 = vunpack.c.l.b16 %v809
    %v3589 = vunpack.c.h.b16 %v809
    %v3590 = vunpack.c.l.b16 %v810
    %v3591 = vunpack.c.h.b16 %v810
    %v3592 = vunpack.c.l.b16 %v811
    %v3593 = vunpack.c.h.b16 %v811
    %v3594 = vunpack.c.l.b16 %v812
    %v3595 = vunpack.c.h.b16 %v812
    %v3596 = vunpack.c.l.b16 %v813
    %v3597 = vunpack.c.h.b16 %v813
    %v3598 = vunpack.c.l.b16 %v814
    %v3599 = vunpack.c.h.b16 %v814
    %v3600 = vunpack.c.l.b16 %v815
    %v3601 = vunpack.c.h.b16 %v815
    %v3602 = vunpack.c.l.b16 %v816
    %v3603 = vunpack.c.h.b16 %v816
    %v3604 = vunpack.c.l.b16 %v817
    %v3605 = vunpack.c.h.b16 %v817
    %v3606 = vunpack.c.l.b16 %v818
    %v3607 = vunpack.c.h.b16 %v818
    %v3608 = vunpack.c.l.b16 %v819
    %v3609 = vunpack.c.h.b16 %v819
    %v3610 = vunpack.c.l.b16 %v820
    %v3611 = vunpack.c.h.b16 %v820
    %v3612 = vunpack.c.l.b16 %v821
    %v3613 = vunpack.c.h.b16 %v821
    %v3614 = vunpack.c.l.b16 %v822
    %v3615 = vunpack.c.h.b16 %v822
    %v3616 = vunpack.c.l.b16 %v823
    %v3617 = vunpack.c.h.b16 %v823
    %v3618 = vunpack.c.l.b16 %v824
    %v3619 = vunpack.c.h.b16 %v824
    %v3620 = vunpack.c.l.b16 %v825
    %v3621 = vunpack.c.h.b16 %v825
    %v3622 = vunpack.c.l.b16 %v826
    %v3623 = vunpack.c.h.b16 %v826
    %v3624 = vunpack.c.l.b16 %v827
    %v3625 = vunpack.c.h.b16 %v827
    %v3626 = vunpack.c.l.b16 %v828
    %v3627 = vunpack.c.h.b16 %v828
    %v3628 = vunpack.c.l.b16 %v829
    %v3629 = vunpack.c.h.b16 %v829
    %v3630 = vunpack.c.l.b16 %v830
    %v3631 = vunpack.c.h.b16 %v830
    %v3632 = vunpack.c.l.b16 %v831
    %v3633 = vunpack.c.h.b16 %v831
    %v3634 = vunpack.c.l.b16 %v832
    %v3635 = vunpack.c.h.b16 %v832
    %v3636 = vunpack.c.l.b16 %v833
    %v3637 = vunpack.c.h.b16 %v833
    %v3638 = vunpack.c.l.b16 %v834
    %v3639 = vunpack.c.h.b16 %v834
    %v3640 = vunpack.c.l.b16 %v835
    %v3641 = vunpack.c.h.b16 %v835
    %v3642 = vunpack.c.l.b16 %v836
    %v3643 = vunpack.c.h.b16 %v836
    %v3644 = vunpack.c.l.b16 %v837
    %v3645 = vunpack.c.h.b16 %v837
    %v3646 = vunpack.c.l.b16 %v838
    %v3647 = vunpack.c.h.b16 %v838
    %v3648 = vunpack.c.l.b16 %v839
    %v3649 = vunpack.c.h.b16 %v839
    %v3650 = vunpack.c.l.b16 %v840
    %v3651 = vunpack.c.h.b16 %v840
    %v3652 = vunpack.c.l.b16 %v841
    %v3653 = vunpack.c.h.b16 %v841
    %v3654 = vunpack.c.l.b16 %v842
    %v3655 = vunpack.c.h.b16 %v842
    %v3656 = vunpack.c.l.b16 %v843
    %v3657 = vunpack.c.h.b16 %v843
    %v3658 = vunpack.c.l.b16 %v844
    %v3659 = vunpack.c.h.b16 %v844
    %v3660 = vunpack.c.l.b16 %v845
    %v3661 = vunpack.c.h.b16 %v845
    %v3662 = vunpack.c.l.b16 %v846
    %v3663 = vunpack.c.h.b16 %v846
    %v3664 = vunpack.c.l.b16 %v847
    %v3665 = vunpack.c.h.b16 %v847
    %v3666 = vunpack.c.l.b16 %v848
    %v3667 = vunpack.c.h.b16 %v848
    %v3668 = vunpack.c.l.b16 %v849
    %v3669 = vunpack.c.h.b16 %v849
    %v3670 = vunpack.c.l.b16 %v850
    %v3671 = vunpack.c.h.b16 %v850
    %v3672 = vunpack.c.l.b16 %v851
    %v3673 = vunpack.c.h.b16 %v851
    %v3674 = vunpack.c.l.b16 %v852
    %v3675 = vunpack.c.h.b16 %v852
    %v3676 = vunpack.c.l.b16 %v853
    %v3677 = vunpack.c.h.b16 %v853
    %v3678 = vunpack.c.l.b16 %v854
    %v3679 = vunpack.c.h.b16 %v854
    %v3680 = vunpack.c.l.b16 %v855
    %v3681 = vunpack.c.h.b16 %v855
    %v3682 = vunpack.c.l.b16 %v856
    %v3683 = vunpack.c.h.b16 %v856
    %v3684 = vunpack.c.l.b16 %v857
    %v3685 = vunpack.c.h.b16 %v857
    %v3686 = vunpack.c.l.b16 %v858
    %v3687 = vunpack.c.h.b16 %v858
    %v3688 = vunpack.c.l.b16 %v859
    %v3689 = vunpack.c.h.b16 %v859
    %v3690 = vunpack.c.l.b16 %v860
    %v3691 = vunpack.c.h.b16 %v860
    %v3692 = vunpack.c.l.b16 %v861
    %v3693 = vunpack.c.h.b16 %v861
    %v3694 = vunpack.c.l.b16 %v862
    %v3695 = vunpack.c.h.b16 %v862
    %v3696 = vunpack.c.l.b16 %v863
    %v3697 = vunpack.c.h.b16 %v863
    %v3698 = vunpack.c.l.b16 %v864
    %v3699 = vunpack.c.h.b16 %v864
    %v3700 = vunpack.c.l.b16 %v865
    %v3701 = vunpack.c.h.b16 %v865
    %v3702 = vunpack.c.l.b16 %v866
    %v3703 = vunpack.c.h.b16 %v866
    %v3704 = vunpack.c.l.b16 %v867
    %v3705 = vunpack.c.h.b16 %v867
    %v3706 = vunpack.c.l.b16 %v868
    %v3707 = vunpack.c.h.b16 %v868
    %v3708 = vunpack.c.l.b16 %v869
    %v3709 = vunpack.c.h.b16 %v869
    %v3710 = vunpack.c.l.b16 %v870
    %v3711 = vunpack.c.h.b16 %v870
    %v3712 = vunpack.c.l.b16 %v871
    %v3713 = vunpack.c.h.b16 %v871
    %v3714 = vunpack.c.l.b16 %v872
    %v3715 = vunpack.c.h.b16 %v872
    %v3716 = vunpack.c.l.b16 %v873
    %v3717 = vunpack.c.h.b16 %v873
    %v3718 = vunpack.c.l.b16 %v874
    %v3719 = vunpack.c.h.b16 %v874
    %v3720 = vunpack.c.l.b16 %v875
    %v3721 = vunpack.c.h.b16 %v875
    %v3722 = vunpack.c.l.b16 %v876
    %v3723 = vunpack.c.h.b16 %v876
    %v3724 = vunpack.c.l.b16 %v877
    %v3725 = vunpack.c.h.b16 %v877
    %v3726 = vunpack.c.l.b16 %v878
    %v3727 = vunpack.c.h.b16 %v878
    %v3728 = vunpack.c.l.b16 %v879
    %v3729 = vunpack.c.h.b16 %v879
    %v3730 = vunpack.c.l.b16 %v880
    %v3731 = vunpack.c.h.b16 %v880
    %v3732 = vunpack.c.l.b16 %v881
    %v3733 = vunpack.c.h.b16 %v881
    %v3734 = vunpack.c.l.b16 %v882
    %v3735 = vunpack.c.h.b16 %v882
    %v3736 = vunpack.c.l.b16 %v883
    %v3737 = vunpack.c.h.b16 %v883
    %v3738 = vunpack.c.l.b16 %v884
    %v3739 = vunpack.c.h.b16 %v884
    %v3740 = vunpack.c.l.b16 %v885
    %v3741 = vunpack.c.h.b16 %v885
    %v3742 = vunpack.c.l.b16 %v886
    %v3743 = vunpack.c.h.b16 %v886
    %v3744 = vunpack.c.l.b16 %v887
    %v3745 = vunpack.c.h.b16 %v887
    %v3746 = vunpack.c.l.b16 %v888
    %v3747 = vunpack.c.h.b16 %v888
    %v3748 = vunpack.c.l.b16 %v889
    %v3749 = vunpack.c.h.b16 %v889
    %v3750 = vunpack.c.l.b16 %v890
    %v3751 = vunpack.c.h.b16 %v890
    %v3752 = vunpack.c.l.b16 %v891
    %v3753 = vunpack.c.h.b16 %v891
    %v3754 = vunpack.c.l.b16 %v892
    %v3755 = vunpack.c.h.b16 %v892
    %v3756 = vunpack.c.l.b16 %v893
    %v3757 = vunpack.c.h.b16 %v893
    %v3758 = vunpack.c.l.b16 %v894
    %v3759 = vunpack.c.h.b16 %v894
    %v3760 = vunpack.c.l.b16 %v895
    %v3761 = vunpack.c.h.b16 %v895
    %v3762 = vunpack.c.l.b16 %v896
    %v3763 = vunpack.c.h.b16 %v896
    %v3764 = vunpack.c.l.b16 %v897
    %v3765 = vunpack.c.h.b16 %v897
    %v3766 = vunpack.c.l.b16 %v898
    %v3767 = vunpack.c.h.b16 %v898
    %v3768 = vunpack.c.l.b16 %v899
    %v3769 = vunpack.c.h.b16 %v899
    %v3770 = vunpack.c.l.b16 %v900
    %v3771 = vunpack.c.h.b16 %v900
    %v3772 = vunpack.c.l.b16 %v901
    %v3773 = vunpack.c.h.b16 %v901
    %v3774 = vunpack.c.l.b16 %v902
    %v3775 = vunpack.c.h.b16 %v902
    %v3776 = vunpack.c.l.b16 %v903
    %v3777 = vunpack.c.h.b16 %v903
    %v3778 = vunpack.c.l.b16 %v904
    %v3779 = vunpack.c.h.b16 %v904
    %v3780 = vunpack.c.l.b16 %v905
    %v3781 = vunpack.c.h.b16 %v905
    %v3782 = vunpack.c.l.b16 %v906
    %v3783 = vunpack.c.h.b16 %v906
    %v3784 = vunpack.c.l.b16 %v907
    %v3785 = vunpack.c.h.b16 %v907
    %v3786 = vunpack.c.l.b16 %v908
    %v3787 = vunpack.c.h.b16 %v908
    %v3788 = vunpack.c.l.b16 %v909
    %v3789 = vunpack.c.h.b16 %v909
    %v3790 = vunpack.c.l.b16 %v910
    %v3791 = vunpack.c.h.b16 %v910
    %v3792 = vunpack.c.l.b16 %v911
    %v3793 = vunpack.c.h.b16 %v911
    %v3794 = vunpack.c.l.b16 %v912
    %v3795 = vunpack.c.h.b16 %v912
    %v3796 = vunpack.c.l.b16 %v913
    %v3797 = vunpack.c.h.b16 %v913
    %v3798 = vunpack.c.l.b16 %v914
    %v3799 = vunpack.c.h.b16 %v914
    %v3800 = vunpack.c.l.b16 %v915
    %v3801 = vunpack.c.h.b16 %v915
    %v3802 = vunpack.c.l.b16 %v916
    %v3803 = vunpack.c.h.b16 %v916
    %v3804 = vunpack.c.l.b16 %v917
    %v3805 = vunpack.c.h.b16 %v917
    %v3806 = vunpack.c.l.b16 %v918
    %v3807 = vunpack.c.h.b16 %v918
    %v3808 = vunpack.c.l.b16 %v919
    %v3809 = vunpack.c.h.b16 %v919
    %v3810 = vunpack.c.l.b16 %v920
    %v3811 = vunpack.c.h.b16 %v920
    %v3812 = vunpack.c.l.b16 %v921
    %v3813 = vunpack.c.h.b16 %v921
    %v3814 = vunpack.c.l.b16 %v922
    %v3815 = vunpack.c.h.b16 %v922
    %v3816 = vunpack.c.l.b16 %v923
    %v3817 = vunpack.c.h.b16 %v923
    %v3818 = vunpack.c.l.b16 %v924
    %v3819 = vunpack.c.h.b16 %v924
    %v3820 = vunpack.c.l.b16 %v925
    %v3821 = vunpack.c.h.b16 %v925
    %v3822 = vunpack.c.l.b16 %v926
    %v3823 = vunpack.c.h.b16 %v926
    %v3824 = vunpack.c.l.b16 %v927
    %v3825 = vunpack.c.h.b16 %v927
    %v3826 = vunpack.c.l.b16 %v928
    %v3827 = vunpack.c.h.b16 %v928
    %v3828 = vunpack.c.l.b16 %v929
    %v3829 = vunpack.c.h.b16 %v929
    %v3830 = vunpack.c.l.b16 %v930
    %v3831 = vunpack.c.h.b16 %v930
    %v3832 = vunpack.c.l.b16 %v931
    %v3833 = vunpack.c.h.b16 %v931
    %v3834 = vunpack.c.l.b16 %v932
    %v3835 = vunpack.c.h.b16 %v932
    %v3836 = vunpack.c.l.b16 %v933
    %v3837 = vunpack.c.h.b16 %v933
    %v3838 = vunpack.c.l.b16 %v934
    %v3839 = vunpack.c.h.b16 %v934
    %v3840 = vunpack.c.l.b16 %v935
    %v3841 = vunpack.c.h.b16 %v935
    %v3842 = vunpack.c.l.b16 %v936
    %v3843 = vunpack.c.h.b16 %v936
    %v3844 = vunpack.c.l.b16 %v937
    %v3845 = vunpack.c.h.b16 %v937
    %v3846 = vunpack.c.l.b16 %v938
    %v3847 = vunpack.c.h.b16 %v938
    %v3848 = vunpack.c.l.b16 %v939
    %v3849 = vunpack.c.h.b16 %v939
    %v3850 = vunpack.c.l.b16 %v940
    %v3851 = vunpack.c.h.b16 %v940
    %v3852 = vunpack.c.l.b16 %v941
    %v3853 = vunpack.c.h.b16 %v941
    %v3854 = vunpack.c.l.b16 %v942
    %v3855 = vunpack.c.h.b16 %v942
    %v3856 = vunpack.c.l.b16 %v943
    %v3857 = vunpack.c.h.b16 %v943
    %v3858 = vunpack.c.l.b16 %v944
    %v3859 = vunpack.c.h.b16 %v944
    %v3860 = vunpack.c.l.b16 %v945
    %v3861 = vunpack.c.h.b16 %v945
    %v3862 = vunpack.c.l.b16 %v946
    %v3863 = vunpack.c.h.b16 %v946
    %v3864 = vunpack.c.l.b16 %v947
    %v3865 = vunpack.c.h.b16 %v947
    %v3866 = vunpack.c.l.b16 %v948
    %v3867 = vunpack.c.h.b16 %v948
    %v3868 = vunpack.c.l.b16 %v949
    %v3869 = vunpack.c.h.b16 %v949
    %v3870 = vunpack.c.l.b16 %v950
    %v3871 = vunpack.c.h.b16 %v950
    %v3872 = vunpack.c.l.b16 %v951
    %v3873 = vunpack.c.h.b16 %v951
    %v3874 = vunpack.c.l.b16 %v952
    %v3875 = vunpack.c.h.b16 %v952
    %v3876 = vunpack.c.l.b16 %v953
    %v3877 = vunpack.c.h.b16 %v953
    %v3878 = vunpack.c.l.b16 %v954
    %v3879 = vunpack.c.h.b16 %v954
    %v3880 = vunpack.c.l.b16 %v955
    %v3881 = vunpack.c.h.b16 %v955
    %v3882 = vunpack.c.l.b16 %v956
    %v3883 = vunpack.c.h.b16 %v956
    %v3884 = vunpack.c.l.b16 %v957
    %v3885 = vunpack.c.h.b16 %v957
    %v3886 = vunpack.c.l.b16 %v958
    %v3887 = vunpack.c.h.b16 %v958
    %v3888 = vunpack.c.l.b16 %v959
    %v3889 = vunpack.c.h.b16 %v959
    %v3890 = vunpack.c.l.b16 %v960
    %v3891 = vunpack.c.h.b16 %v960
    %v3892 = vunpack.c.l.b16 %v961
    %v3893 = vunpack.c.h.b16 %v961
    %v3894 = vunpack.c.l.b16 %v962
    %v3895 = vunpack.c.h.b16 %v962
    %v3896 = vunpack.c.l.b16 %v963
    %v3897 = vunpack.c.h.b16 %v963
    %v3898 = vunpack.c.l.b16 %v964
    %v3899 = vunpack.c.h.b16 %v964
    %v3900 = vunpack.c.l.b16 %v965
    %v3901 = vunpack.c.h.b16 %v965
    %v3902 = vunpack.c.l.b16 %v966
    %v3903 = vunpack.c.h.b16 %v966
    %v3904 = vunpack.c.l.b16 %v967
    %v3905 = vunpack.c.h.b16 %v967
    %v3906 = vunpack.c.l.b16 %v968
    %v3907 = vunpack.c.h.b16 %v968
    %v3908 = vunpack.c.l.b16 %v969
    %v3909 = vunpack.c.h.b16 %v969
    %v3910 = vunpack.c.l.b16 %v970
    %v3911 = vunpack.c.h.b16 %v970
    %v3912 = vunpack.c.l.b16 %v971
    %v3913 = vunpack.c.h.b16 %v971
    %v3914 = vunpack.c.l.b16 %v972
    %v3915 = vunpack.c.h.b16 %v972
    %v3916 = vunpack.c.l.b16 %v973
    %v3917 = vunpack.c.h.b16 %v973
    %v3918 = vunpack.c.l.b16 %v974
    %v3919 = vunpack.c.h.b16 %v974
    %v3920 = vunpack.c.l.b16 %v975
    %v3921 = vunpack.c.h.b16 %v975
    %v3922 = vunpack.c.l.b16 %v976
    %v3923 = vunpack.c.h.b16 %v976
    %v3924 = vunpack.c.l.b16 %v977
    %v3925 = vunpack.c.h.b16 %v977
    %v3926 = vunpack.c.l.b16 %v978
    %v3927 = vunpack.c.h.b16 %v978
    %v3928 = vunpack.c.l.b16 %v979
    %v3929 = vunpack.c.h.b16 %v979
    %v3930 = vunpack.c.l.b16 %v980
    %v3931 = vunpack.c.h.b16 %v980
    %v3932 = vunpack.c.l.b16 %v981
    %v3933 = vunpack.c.h.b16 %v981
    %v3934 = vunpack.c.l.b16 %v982
    %v3935 = vunpack.c.h.b16 %v982
    %v3936 = vunpack.c.l.b16 %v983
    %v3937 = vunpack.c.h.b16 %v983
    %v3938 = vunpack.c.l.b16 %v984
    %v3939 = vunpack.c.h.b16 %v984
    %v3940 = vunpack.c.l.b16 %v985
    %v3941 = vunpack.c.h.b16 %v985
    %v3942 = vunpack.c.l.b16 %v986
    %v3943 = vunpack.c.h.b16 %v986
    %v3944 = vunpack.c.l.b16 %v987
    %v3945 = vunpack.c.h.b16 %v987
    %v3946 = vunpack.c.l.b16 %v988
    %v3947 = vunpack.c.h.b16 %v988
    %v3948 = vunpack.c.l.b16 %v989
    %v3949 = vunpack.c.h.b16 %v989
    %v3950 = vunpack.c.l.b16 %v990
    %v3951 = vunpack.c.h.b16 %v990
    %v3952 = vunpack.c.l.b16 %v991
    %v3953 = vunpack.c.h.b16 %v991
    %v3954 = vunpack.c.l.b16 %v992
    %v3955 = vunpack.c.h.b16 %v992
    %v3956 = vunpack.c.l.b16 %v993
    %v3957 = vunpack.c.h.b16 %v993
    %v3958 = vunpack.c.l.b16 %v994
    %v3959 = vunpack.c.h.b16 %v994
    %v3960 = vunpack.c.l.b16 %v995
    %v3961 = vunpack.c.h.b16 %v995
    %v3962 = vunpack.c.l.b16 %v996
    %v3963 = vunpack.c.h.b16 %v996
    %v3964 = vunpack.c.l.b16 %v997
    %v3965 = vunpack.c.h.b16 %v997
    %v3966 = vunpack.c.l.b16 %v998
    %v3967 = vunpack.c.h.b16 %v998
    %v3968 = vunpack.c.l.b16 %v999
    %v3969 = vunpack.c.h.b16 %v999
    %v3970 = vunpack.c.l.b16 %v1000
    %v3971 = vunpack.c.h.b16 %v1000
    %v3972 = vunpack.c.l.b16 %v1001
    %v3973 = vunpack.c.h.b16 %v1001
    %v3974 = vunpack.c.l.b16 %v1002
    %v3975 = vunpack.c.h.b16 %v1002
    %v3976 = vunpack.c.l.b16 %v1003
    %v3977 = vunpack.c.h.b16 %v1003
    %v3978 = vunpack.c.l.b16 %v1004
    %v3979 = vunpack.c.h.b16 %v1004
    %v3980 = vunpack.c.l.b16 %v1005
    %v3981 = vunpack.c.h.b16 %v1005
    %v3982 = vunpack.c.l.b16 %v1006
    %v3983 = vunpack.c.h.b16 %v1006
    %v3984 = vunpack.c.l.b16 %v1007
    %v3985 = vunpack.c.h.b16 %v1007
    %v3986 = vunpack.c.l.b16 %v1008
    %v3987 = vunpack.c.h.b16 %v1008
    %v3988 = vunpack.c.l.b16 %v1009
    %v3989 = vunpack.c.h.b16 %v1009
    %v3990 = vunpack.c.l.b16 %v1010
    %v3991 = vunpack.c.h.b16 %v1010
    %v3992 = vunpack.c.l.b16 %v1011
    %v3993 = vunpack.c.h.b16 %v1011
    %v3994 = vunpack.c.l.b16 %v1012
    %v3995 = vunpack.c.h.b16 %v1012
    %v3996 = vunpack.c.l.b16 %v1013
    %v3997 = vunpack.c.h.b16 %v1013
    %v3998 = vunpack.c.l.b16 %v1014
    %v3999 = vunpack.c.h.b16 %v1014
    %v4000 = vunpack.c.l.b16 %v1015
    %v4001 = vunpack.c.h.b16 %v1015
    %v4002 = vunpack.c.l.b16 %v1016
    %v4003 = vunpack.c.h.b16 %v1016
    %v4004 = vunpack.c.l.b16 %v1017
    %v4005 = vunpack.c.h.b16 %v1017
    %v4006 = vunpack.c.l.b16 %v1018
    %v4007 = vunpack.c.h.b16 %v1018
    %v4008 = vunpack.c.l.b16 %v1019
    %v4009 = vunpack.c.h.b16 %v1019
    %v4010 = vunpack.c.l.b16 %v1020
    %v4011 = vunpack.c.h.b16 %v1020
    %v4012 = vunpack.c.l.b16 %v1021
    %v4013 = vunpack.c.h.b16 %v1021
    %v4014 = vunpack.c.l.b16 %v1022
    %v4015 = vunpack.c.h.b16 %v1022
    %v4016 = vunpack.c.l.b16 %v1023
    %v4017 = vunpack.c.h.b16 %v1023
    %v4018 = vunpack.c.l.b16 %v1024
    %v4019 = vunpack.c.h.b16 %v1024
    %v4020 = vunpack.c.l.b16 %v1025
    %v4021 = vunpack.c.h.b16 %v1025
    %v4022 = vunpack.c.l.b16 %v1026
    %v4023 = vunpack.c.h.b16 %v1026
    %v4024 = vunpack.c.l.b16 %v1027
    %v4025 = vunpack.c.h.b16 %v1027
    %v4026 = vunpack.c.l.b16 %v1028
    %v4027 = vunpack.c.h.b16 %v1028
    %v4028 = vunpack.c.l.b16 %v1029
    %v4029 = vunpack.c.h.b16 %v1029
    %v4030 = vunpack.c.l.b16 %v1030
    %v4031 = vunpack.c.h.b16 %v1030
    %v4032 = vunpack.c.l.b16 %v1031
    %v4033 = vunpack.c.h.b16 %v1031
    %v4034 = vunpack.c.l.b16 %v1032
    %v4035 = vunpack.c.h.b16 %v1032
    %v4036 = vunpack.c.l.b16 %v1033
    %v4037 = vunpack.c.h.b16 %v1033
    %v4038 = vunpack.c.l.b16 %v1034
    %v4039 = vunpack.c.h.b16 %v1034
    %v4040 = vunpack.c.l.b16 %v1035
    %v4041 = vunpack.c.h.b16 %v1035
    %v4042 = vunpack.c.l.b16 %v1036
    %v4043 = vunpack.c.h.b16 %v1036
    %v4044 = vunpack.c.l.b16 %v1037
    %v4045 = vunpack.c.h.b16 %v1037
    %v4046 = vunpack.c.l.b16 %v1038
    %v4047 = vunpack.c.h.b16 %v1038
    %v4048 = vunpack.c.l.b16 %v1039
    %v4049 = vunpack.c.h.b16 %v1039
    %v4050 = vunpack.c.l.b16 %v1040
    %v4051 = vunpack.c.h.b16 %v1040
    %v4052 = vunpack.c.l.b16 %v1041
    %v4053 = vunpack.c.h.b16 %v1041
    %v4054 = vunpack.c.l.b16 %v1042
    %v4055 = vunpack.c.h.b16 %v1042
    %v4056 = vunpack.c.l.b16 %v1043
    %v4057 = vunpack.c.h.b16 %v1043
    %v4058 = vunpack.c.l.b16 %v1044
    %v4059 = vunpack.c.h.b16 %v1044
    %v4060 = vunpack.c.l.b16 %v1045
    %v4061 = vunpack.c.h.b16 %v1045
    %v4062 = vunpack.c.l.b16 %v1046
    %v4063 = vunpack.c.h.b16 %v1046
    %v4064 = vunpack.c.l.b16 %v1047
    %v4065 = vunpack.c.h.b16 %v1047
    %v4066 = vunpack.c.l.b16 %v1048
    %v4067 = vunpack.c.h.b16 %v1048
    %v4068 = vunpack.c.l.b16 %v1049
    %v4069 = vunpack.c.h.b16 %v1049
    %v4070 = vunpack.c.l.b16 %v1050
    %v4071 = vunpack.c.h.b16 %v1050
    %v4072 = vunpack.c.l.b16 %v1051
    %v4073 = vunpack.c.h.b16 %v1051
    %v4074 = vunpack.c.l.b16 %v1052
    %v4075 = vunpack.c.h.b16 %v1052
    %v4076 = vunpack.c.l.b16 %v1053
    %v4077 = vunpack.c.h.b16 %v1053
    %v4078 = vunpack.c.l.b16 %v1054
    %v4079 = vunpack.c.h.b16 %v1054
    %v4080 = vunpack.c.l.b16 %v1055
    %v4081 = vunpack.c.h.b16 %v1055
    %v4082 = vunpack.c.l.b16 %v1056
    %v4083 = vunpack.c.h.b16 %v1056
    %v4084 = vunpack.c.l.b16 %v1057
    %v4085 = vunpack.c.h.b16 %v1057
    %v4086 = vunpack.c.l.b16 %v1058
    %v4087 = vunpack.c.h.b16 %v1058
    %v4088 = vunpack.c.l.b16 %v1059
    %v4089 = vunpack.c.h.b16 %v1059
    %v4090 = vunpack.c.l.b16 %v1060
    %v4091 = vunpack.c.h.b16 %v1060
    %v4092 = vunpack.c.l.b16 %v1061
    %v4093 = vunpack.c.h.b16 %v1061
    %v4094 = vunpack.c.l.b16 %v1062
    %v4095 = vunpack.c.h.b16 %v1062
    %v4096 = vunpack.c.l.b16 %v1063
    %v4097 = vunpack.c.h.b16 %v1063
    %v4098 = vunpack.c.l.b16 %v1064
    %v4099 = vunpack.c.h.b16 %v1064
    %v4100 = vunpack.c.l.b16 %v1065
    %v4101 = vunpack.c.h.b16 %v1065
    %v4102 = vunpack.c.l.b16 %v1066
    %v4103 = vunpack.c.h.b16 %v1066
    %v4104 = vunpack.c.l.b16 %v1067
    %v4105 = vunpack.c.h.b16 %v1067
    %v4106 = vunpack.c.l.b16 %v1068
    %v4107 = vunpack.c.h.b16 %v1068
    %v4108 = vunpack.c.l.b16 %v1069
    %v4109 = vunpack.c.h.b16 %v1069
    %v4110 = vunpack.c.l.b16 %v1070
    %v4111 = vunpack.c.h.b16 %v1070
    %v4112 = vunpack.c.l.b16 %v1071
    %v4113 = vunpack.c.h.b16 %v1071
    %v4114 = vunpack.c.l.b16 %v1072
    %v4115 = vunpack.c.h.b16 %v1072
    %v4116 = vunpack.c.l.b16 %v1073
    %v4117 = vunpack.c.h.b16 %v1073
    %v4118 = vunpack.c.l.b16 %v1074
    %v4119 = vunpack.c.h.b16 %v1074
    %v4120 = vunpack.c.l.b16 %v1075
    %v4121 = vunpack.c.h.b16 %v1075
    %v4122 = vunpack.c.l.b16 %v1076
    %v4123 = vunpack.c.h.b16 %v1076
    %v4124 = vunpack.c.l.b16 %v1077
    %v4125 = vunpack.c.h.b16 %v1077
    %v4126 = vunpack.c.l.b16 %v1078
    %v4127 = vunpack.c.h.b16 %v1078
    %v4128 = vunpack.c.l.b16 %v1079
    %v4129 = vunpack.c.h.b16 %v1079
    %v4130 = vunpack.c.l.b16 %v1080
    %v4131 = vunpack.c.h.b16 %v1080
    %v4132 = vunpack.c.l.b16 %v1081
    %v4133 = vunpack.c.h.b16 %v1081
    %v4134 = vunpack.c.l.b16 %v1082
    %v4135 = vunpack.c.h.b16 %v1082
    %v4136 = vunpack.c.l.b16 %v1083
    %v4137 = vunpack.c.h.b16 %v1083
    %v4138 = vunpack.c.l.b16 %v1084
    %v4139 = vunpack.c.h.b16 %v1084
    %v4140 = vunpack.c.l.b16 %v1085
    %v4141 = vunpack.c.h.b16 %v1085
    %v4142 = vunpack.c.l.b16 %v1086
    %v4143 = vunpack.c.h.b16 %v1086
    %v4144 = vunpack.c.l.b16 %v1087
    %v4145 = vunpack.c.h.b16 %v1087
    %v4146 = vunpack.c.l.b16 %v1088
    %v4147 = vunpack.c.h.b16 %v1088
    %v4148 = vunpack.c.l.b16 %v1089
    %v4149 = vunpack.c.h.b16 %v1089
    %v4150 = vunpack.c.l.b16 %v1090
    %v4151 = vunpack.c.h.b16 %v1090
    %v4152 = vunpack.c.l.b16 %v1091
    %v4153 = vunpack.c.h.b16 %v1091
    %v4154 = vunpack.c.l.b16 %v1092
    %v4155 = vunpack.c.h.b16 %v1092
    %v4156 = vunpack.c.l.b16 %v1093
    %v4157 = vunpack.c.h.b16 %v1093
    %v4158 = vunpack.c.l.b16 %v1094
    %v4159 = vunpack.c.h.b16 %v1094
    %v4160 = vunpack.c.l.b16 %v1095
    %v4161 = vunpack.c.h.b16 %v1095
    %v4162 = vunpack.c.l.b16 %v1096
    %v4163 = vunpack.c.h.b16 %v1096
    %v4164 = vunpack.c.l.b16 %v1097
    %v4165 = vunpack.c.h.b16 %v1097
    %v4166 = vunpack.c.l.b16 %v1098
    %v4167 = vunpack.c.h.b16 %v1098
    %v4168 = vunpack.c.l.b16 %v1099
    %v4169 = vunpack.c.h.b16 %v1099
    %v4170 = vunpack.c.l.b16 %v1100
    %v4171 = vunpack.c.h.b16 %v1100
    %v4172 = vunpack.c.l.b16 %v1101
    %v4173 = vunpack.c.h.b16 %v1101
    %v4174 = vunpack.c.l.b16 %v1102
    %v4175 = vunpack.c.h.b16 %v1102
    %v4176 = vunpack.c.l.b16 %v1103
    %v4177 = vunpack.c.h.b16 %v1103
    %v4178 = vunpack.c.l.b16 %v1104
    %v4179 = vunpack.c.h.b16 %v1104
    %v4180 = vunpack.c.l.b16 %v1105
    %v4181 = vunpack.c.h.b16 %v1105
    %v4182 = vunpack.c.l.b16 %v1106
    %v4183 = vunpack.c.h.b16 %v1106
    %v4184 = vunpack.c.l.b16 %v1107
    %v4185 = vunpack.c.h.b16 %v1107
    %v4186 = vunpack.c.l.b16 %v1108
    %v4187 = vunpack.c.h.b16 %v1108
    %v4188 = vunpack.c.l.b16 %v1109
    %v4189 = vunpack.c.h.b16 %v1109
    %v4190 = vunpack.c.l.b16 %v1110
    %v4191 = vunpack.c.h.b16 %v1110
    %v4192 = vunpack.c.l.b16 %v1111
    %v4193 = vunpack.c.h.b16 %v1111
    %v4194 = vunpack.c.l.b16 %v1112
    %v4195 = vunpack.c.h.b16 %v1112
    %v4196 = vunpack.c.l.b16 %v1113
    %v4197 = vunpack.c.h.b16 %v1113
    %v4198 = vunpack.c.l.b16 %v1114
    %v4199 = vunpack.c.h.b16 %v1114
    %v4200 = vunpack.c.l.b16 %v1115
    %v4201 = vunpack.c.h.b16 %v1115
    %v4202 = vunpack.c.l.b16 %v1116
    %v4203 = vunpack.c.h.b16 %v1116
    %v4204 = vunpack.c.l.b16 %v1117
    %v4205 = vunpack.c.h.b16 %v1117
    %v4206 = vunpack.c.l.b16 %v1118
    %v4207 = vunpack.c.h.b16 %v1118
    %v4208 = vunpack.c.l.b16 %v1119
    %v4209 = vunpack.c.h.b16 %v1119
    %v4210 = vunpack.c.l.b16 %v1120
    %v4211 = vunpack.c.h.b16 %v1120
    %v4212 = vunpack.c.l.b16 %v1121
    %v4213 = vunpack.c.h.b16 %v1121
    %v4214 = vunpack.c.l.b16 %v1122
    %v4215 = vunpack.c.h.b16 %v1122
    %v4216 = vunpack.c.l.b16 %v1123
    %v4217 = vunpack.c.h.b16 %v1123
    %v4218 = vunpack.c.l.b16 %v1124
    %v4219 = vunpack.c.h.b16 %v1124
    %v4220 = vunpack.c.l.b16 %v1125
    %v4221 = vunpack.c.h.b16 %v1125
    %v4222 = vunpack.c.l.b16 %v1126
    %v4223 = vunpack.c.h.b16 %v1126
    %v4224 = vunpack.c.l.b16 %v1127
    %v4225 = vunpack.c.h.b16 %v1127
    %v4226 = vunpack.c.l.b16 %v1128
    %v4227 = vunpack.c.h.b16 %v1128
    %v4228 = vunpack.c.l.b16 %v1129
    %v4229 = vunpack.c.h.b16 %v1129
    %v4230 = vunpack.c.l.b16 %v1130
    %v4231 = vunpack.c.h.b16 %v1130
    %v4232 = vunpack.c.l.b16 %v1131
    %v4233 = vunpack.c.h.b16 %v1131
    %v4234 = vunpack.c.l.b16 %v1132
    %v4235 = vunpack.c.h.b16 %v1132
    %v4236 = vunpack.c.l.b16 %v1133
    %v4237 = vunpack.c.h.b16 %v1133
    %v4238 = vunpack.c.l.b16 %v1134
    %v4239 = vunpack.c.h.b16 %v1134
    %v4240 = vunpack.c.l.b16 %v1135
    %v4241 = vunpack.c.h.b16 %v1135
    %v4242 = vunpack.c.l.b16 %v1136
    %v4243 = vunpack.c.h.b16 %v1136
    %v4244 = vunpack.c.l.b16 %v1137
    %v4245 = vunpack.c.h.b16 %v1137
    %v4246 = vunpack.c.l.b16 %v1138
    %v4247 = vunpack.c.h.b16 %v1138
    %v4248 = vunpack.c.l.b16 %v1139
    %v4249 = vunpack.c.h.b16 %v1139
    %v4250 = vunpack.c.l.b16 %v1140
    %v4251 = vunpack.c.h.b16 %v1140
    %v4252 = vunpack.c.l.b16 %v1141
    %v4253 = vunpack.c.h.b16 %v1141
    %v4254 = vunpack.c.l.b16 %v1142
    %v4255 = vunpack.c.h.b16 %v1142
    %v4256 = vunpack.c.l.b16 %v1143
    %v4257 = vunpack.c.h.b16 %v1143
    %v4258 = vunpack.c.l.b16 %v1144
    %v4259 = vunpack.c.h.b16 %v1144
    %v4260 = vunpack.c.l.b16 %v1145
    %v4261 = vunpack.c.h.b16 %v1145
    %v4262 = vunpack.c.l.b16 %v1146
    %v4263 = vunpack.c.h.b16 %v1146
    %v4264 = vunpack.c.l.b16 %v1147
    %v4265 = vunpack.c.h.b16 %v1147
    %v4266 = vunpack.c.l.b16 %v1148
    %v4267 = vunpack.c.h.b16 %v1148
    %v4268 = vunpack.c.l.b16 %v1149
    %v4269 = vunpack.c.h.b16 %v1149
    %v4270 = vunpack.c.l.b16 %v1150
    %v4271 = vunpack.c.h.b16 %v1150
    %v4272 = vunpack.c.l.b16 %v1151
    %v4273 = vunpack.c.h.b16 %v1151
    %v4274 = vunpack.c.l.b16 %v1152
    %v4275 = vunpack.c.h.b16 %v1152
    %v4276 = vunpack.c.l.b16 %v1153
    %v4277 = vunpack.c.h.b16 %v1153
    %v4278 = vunpack.c.l.b16 %v1154
    %v4279 = vunpack.c.h.b16 %v1154
    %v4280 = vunpack.c.l.b16 %v1155
    %v4281 = vunpack.c.h.b16 %v1155
    %v4282 = vunpack.c.l.b16 %v1156
    %v4283 = vunpack.c.h.b16 %v1156
    %v4284 = vunpack.c.l.b16 %v1157
    %v4285 = vunpack.c.h.b16 %v1157
    %v4286 = vunpack.c.l.b16 %v1158
    %v4287 = vunpack.c.h.b16 %v1158
    %v4288 = vunpack.c.l.b16 %v1159
    %v4289 = vunpack.c.h.b16 %v1159
    %v4290 = vunpack.c.l.b16 %v1160
    %v4291 = vunpack.c.h.b16 %v1160
    %v4292 = vunpack.c.l.b16 %v1161
    %v4293 = vunpack.c.h.b16 %v1161
    %v4294 = vunpack.c.l.b16 %v1162
    %v4295 = vunpack.c.h.b16 %v1162
    %v4296 = vunpack.c.l.b16 %v1163
    %v4297 = vunpack.c.h.b16 %v1163
    %v4298 = vunpack.c.l.b16 %v1164
    %v4299 = vunpack.c.h.b16 %v1164
    %v4300 = vunpack.c.l.b16 %v1165
    %v4301 = vunpack.c.h.b16 %v1165
    %v4302 = vunpack.c.l.b16 %v1166
    %v4303 = vunpack.c.h.b16 %v1166
    %v4304 = vunpack.c.l.b16 %v1167
    %v4305 = vunpack.c.h.b16 %v1167
    %v4306 = vunpack.c.l.b16 %v1168
    %v4307 = vunpack.c.h.b16 %v1168
    %v4308 = vunpack.c.l.b16 %v1169
    %v4309 = vunpack.c.h.b16 %v1169
    %v4310 = vunpack.c.l.b16 %v1170
    %v4311 = vunpack.c.h.b16 %v1170
    %v4312 = vunpack.c.l.b16 %v1171
    %v4313 = vunpack.c.h.b16 %v1171
    %v4314 = vunpack.c.l.b16 %v1172
    %v4315 = vunpack.c.h.b16 %v1172
    %v4316 = vunpack.c.l.b16 %v1173
    %v4317 = vunpack.c.h.b16 %v1173
    %v4318 = vunpack.c.l.b16 %v1174
    %v4319 = vunpack.c.h.b16 %v1174
    %v4320 = vunpack.c.l.b16 %v1175
    %v4321 = vunpack.c.h.b16 %v1175
    %v4322 = vunpack.c.l.b16 %v1176
    %v4323 = vunpack.c.h.b16 %v1176
    %v4324 = vpack.c.b16 %v2308, %v2290
    %v4325 = vpack.c.b16 %v2309, %v2291
    %v4326 = vpack.c.b16 %v2310, %v2292
    %v4327 = vpack.c.b16 %v2311, %v2293
    %v4328 = vpack.c.b16 %v2312, %v2294
    %v4329 = vpack.c.b16 %v2313, %v2295
    %v4330 = vpack.c.b16 %v2314, %v2296
    %v4331 = vpack.c.b16 %v2315, %v2297
    %v4332 = vpack.c.b16 %v2316, %v2298
    %v4333 = vpack.c.b16 %v2317, %v2299
    %v4334 = vpack.c.b16 %v2318, %v2300
    %v4335 = vpack.c.b16 %v2319, %v2301
    %v4336 = vpack.c.b16 %v2320, %v2302
    %v4337 = vpack.c.b16 %v2321, %v2303
    %v4338 = vpack.c.b16 %v2322, %v2304
    %v4339 = vpack.c.b16 %v2323, %v2305
    %v4340 = vpack.c.b16 %v2324, %v2306
    %v4341 = vpack.c.b16 %v2325, %v2307
    %v4342 = vpack.c.b16 %v2344, %v2326
    %v4343 = vpack.c.b16 %v2345, %v2327
    %v4344 = vpack.c.b16 %v2346, %v2328
    %v4345 = vpack.c.b16 %v2347, %v2329
    %v4346 = vpack.c.b16 %v2348, %v2330
    %v4347 = vpack.c.b16 %v2349, %v2331
    %v4348 = vpack.c.b16 %v2350, %v2332
    %v4349 = vpack.c.b16 %v2351, %v2333
    %v4350 = vpack.c.b16 %v2352, %v2334
    %v4351 = vpack.c.b16 %v2353, %v2335
    %v4352 = vpack.c.b16 %v2354, %v2336
    %v4353 = vpack.c.b16 %v2355, %v2337
    %v4354 = vpack.c.b16 %v2356, %v2338
    %v4355 = vpack.c.b16 %v2357, %v2339
    %v4356 = vpack.c.b16 %v2358, %v2340
    %v4357 = vpack.c.b16 %v2359, %v2341
    %v4358 = vpack.c.b16 %v2360, %v2342
    %v4359 = vpack.c.b16 %v2361, %v2343
    %v4360 = vpack.c.b16 %v2380, %v2362
    %v4361 = vpack.c.b16 %v2381, %v2363
    %v4362 = vpack.c.b16 %v2382, %v2364
    %v4363 = vpack.c.b16 %v2383, %v2365
    %v4364 = vpack.c.b16 %v2384, %v2366
    %v4365 = vpack.c.b16 %v2385, %v2367
    %v4366 = vpack.c.b16 %v2386, %v2368
    %v4367 = vpack.c.b16 %v2387, %v2369
    %v4368 = vpack.c.b16 %v2388, %v2370
    %v4369 = vpack.c.b16 %v2389, %v2371
    %v4370 = vpack.c.b16 %v2390, %v2372
    %v4371 = vpack.c.b16 %v2391, %v2373
    %v4372 = vpack.c.b16 %v2392, %v2374
    %v4373 = vpack.c.b16 %v2393, %v2375
    %v4374 = vpack.c.b16 %v2394, %v2376
    %v4375 = vpack.c.b16 %v2395, %v2377
    %v4376 = vpack.c.b16 %v2396, %v2378
    %v4377 = vpack.c.b16 %v2397, %v2379
    %v4378 = vpack.c.b16 %v2416, %v2398
    %v4379 = vpack.c.b16 %v2417, %v2399
    %v4380 = vpack.c.b16 %v2418, %v2400
    %v4381 = vpack.c.b16 %v2419, %v2401
    %v4382 = vpack.c.b16 %v2420, %v2402
    %v4383 = vpack.c.b16 %v2421, %v2403
    %v4384 = vpack.c.b16 %v2422, %v2404
    %v4385 = vpack.c.b16 %v2423, %v2405
    %v4386 = vpack.c.b16 %v2424, %v2406
    %v4387 = vpack.c.b16 %v2425, %v2407
    %v4388 = vpack.c.b16 %v2426, %v2408
    %v4389 = vpack.c.b16 %v2427, %v2409
    %v4390 = vpack.c.b16 %v2428, %v2410
    %v4391 = vpack.c.b16 %v2429, %v2411
    %v4392 = vpack.c.b16 %v2430, %v2412
    %v4393 = vpack.c.b16 %v2431, %v2413
    %v4394 = vpack.c.b16 %v2432, %v2414
    %v4395 = vpack.c.b16 %v2433, %v2415
    %v4396 = vpack.c.b16 %v2452, %v2434
    %v4397 = vpack.c.b16 %v2453, %v2435
    %v4398 = vpack.c.b16 %v2454, %v2436
    %v4399 = vpack.c.b16 %v2455, %v2437
    %v4400 = vpack.c.b16 %v2456, %v2438
    %v4401 = vpack.c.b16 %v2457, %v2439
    %v4402 = vpack.c.b16 %v2458, %v2440
    %v4403 = vpack.c.b16 %v2459, %v2441
    %v4404 = vpack.c.b16 %v2460, %v2442
    %v4405 = vpack.c.b16 %v2461, %v2443
    %v4406 = vpack.c.b16 %v2462, %v2444
    %v4407 = vpack.c.b16 %v2463, %v2445
    %v4408 = vpack.c.b16 %v2464, %v2446
    %v4409 = vpack.c.b16 %v2465, %v2447
    %v4410 = vpack.c.b16 %v2466, %v2448
    %v4411 = vpack.c.b16 %v2467, %v2449
    %v4412 = vpack.c.b16 %v2468, %v2450
    %v4413 = vpack.c.b16 %v2469, %v2451
    %v4414 = vpack.c.b16 %v2488, %v2470
    %v4415 = vpack.c.b16 %v2489, %v2471
    %v4416 = vpack.c.b16 %v2490, %v2472
    %v4417 = vpack.c.b16 %v2491, %v2473
    %v4418 = vpack.c.b16 %v2492, %v2474
    %v4419 = vpack.c.b16 %v2493, %v2475
    %v4420 = vpack.c.b16 %v2494, %v2476
    %v4421 = vpack.c.b16 %v2495, %v2477
    %v4422 = vpack.c.b16 %v2496, %v2478
    %v4423 = vpack.c.b16 %v2497, %v2479
    %v4424 = vpack.c.b16 %v2498, %v2480
    %v4425 = vpack.c.b16 %v2499, %v2481
    %v4426 = vpack.c.b16 %v2500, %v2482
    %v4427 = vpack.c.b16 %v2501, %v2483
    %v4428 = vpack.c.b16 %v2502, %v2484
    %v4429 = vpack.c.b16 %v2503, %v2485
    %v4430 = vpack.c.b16 %v2504, %v2486
    %v4431 = vpack.c.b16 %v2505, %v2487
    %v4432 = vpack.c.b16 %v2524, %v2506
    %v4433 = vpack.c.b16 %v2525, %v2507
    %v4434 = vpack.c.b16 %v2526, %v2508
    %v4435 = vpack.c.b16 %v2527, %v2509
    %v4436 = vpack.c.b16 %v2528, %v2510
    %v4437 = vpack.c.b16 %v2529, %v2511
    %v4438 = vpack.c.b16 %v2530, %v2512
    %v4439 = vpack.c.b16 %v2531, %v2513
    %v4440 = vpack.c.b16 %v2532, %v2514
    %v4441 = vpack.c.b16 %v2533, %v2515
    %v4442 = vpack.c.b16 %v2534, %v2516
    %v4443 = vpack.c.b16 %v2535, %v2517
    %v4444 = vpack.c.b16 %v2536, %v2518
    %v4445 = vpack.c.b16 %v2537, %v2519
    %v4446 = vpack.c.b16 %v2538, %v2520
    %v4447 = vpack.c.b16 %v2539, %v2521
    %v4448 = vpack.c.b16 %v2540, %v2522
    %v4449 = vpack.c.b16 %v2541, %v2523
    %v4450 = vpack.c.b16 %v2560, %v2542
    %v4451 = vpack.c.b16 %v2561, %v2543
    %v4452 = vpack.c.b16 %v2562, %v2544
    %v4453 = vpack.c.b16 %v2563, %v2545
    %v4454 = vpack.c.b16 %v2564, %v2546
    %v4455 = vpack.c.b16 %v2565, %v2547
    %v4456 = vpack.c.b16 %v2566, %v2548
    %v4457 = vpack.c.b16 %v2567, %v2549
    %v4458 = vpack.c.b16 %v2568, %v2550
    %v4459 = vpack.c.b16 %v2569, %v2551
    %v4460 = vpack.c.b16 %v2570, %v2552
    %v4461 = vpack.c.b16 %v2571, %v2553
    %v4462 = vpack.c.b16 %v2572, %v2554
    %v4463 = vpack.c.b16 %v2573, %v2555
    %v4464 = vpack.c.b16 %v2574, %v2556
    %v4465 = vpack.c.b16 %v2575, %v2557
    %v4466 = vpack.c.b16 %v2576, %v2558
    %v4467 = vpack.c.b16 %v2577, %v2559
    %v4468 = vpack.c.b16 %v2596, %v2578
    %v4469 = vpack.c.b16 %v2597, %v2579
    %v4470 = vpack.c.b16 %v2598, %v2580
    %v4471 = vpack.c.b16 %v2599, %v2581
    %v4472 = vpack.c.b16 %v2600, %v2582
    %v4473 = vpack.c.b16 %v2601, %v2583
    %v4474 = vpack.c.b16 %v2602, %v2584
    %v4475 = vpack.c.b16 %v2603, %v2585
    %v4476 = vpack.c.b16 %v2604, %v2586
    %v4477 = vpack.c.b16 %v2605, %v2587
    %v4478 = vpack.c.b16 %v2606, %v2588
    %v4479 = vpack.c.b16 %v2607, %v2589
    %v4480 = vpack.c.b16 %v2608, %v2590
    %v4481 = vpack.c.b16 %v2609, %v2591
    %v4482 = vpack.c.b16 %v2610, %v2592
    %v4483 = vpack.c.b16 %v2611, %v2593
    %v4484 = vpack.c.b16 %v2612, %v2594
    %v4485 = vpack.c.b16 %v2613, %v2595
    %v4486 = vpack.c.b16 %v2632, %v2614
    %v4487 = vpack.c.b16 %v2633, %v2615
    %v4488 = vpack.c.b16 %v2634, %v2616
    %v4489 = vpack.c.b16 %v2635, %v2617
    %v4490 = vpack.c.b16 %v2636, %v2618
    %v4491 = vpack.c.b16 %v2637, %v2619
    %v4492 = vpack.c.b16 %v2638, %v2620
    %v4493 = vpack.c.b16 %v2639, %v2621
    %v4494 = vpack.c.b16 %v2640, %v2622
    %v4495 = vpack.c.b16 %v2641, %v2623
    %v4496 = vpack.c.b16 %v2642, %v2624
    %v4497 = vpack.c.b16 %v2643, %v2625
    %v4498 = vpack.c.b16 %v2644, %v2626
    %v4499 = vpack.c.b16 %v2645, %v2627
    %v4500 = vpack.c.b16 %v2646, %v2628
    %v4501 = vpack.c.b16 %v2647, %v2629
    %v4502 = vpack.c.b16 %v2648, %v2630
    %v4503 = vpack.c.b16 %v2649, %v2631
    %v4504 = vpack.c.b16 %v2668, %v2650
    %v4505 = vpack.c.b16 %v2669, %v2651
    %v4506 = vpack.c.b16 %v2670, %v2652
    %v4507 = vpack.c.b16 %v2671, %v2653
    %v4508 = vpack.c.b16 %v2672, %v2654
    %v4509 = vpack.c.b16 %v2673, %v2655
    %v4510 = vpack.c.b16 %v2674, %v2656
    %v4511 = vpack.c.b16 %v2675, %v2657
    %v4512 = vpack.c.b16 %v2676, %v2658
    %v4513 = vpack.c.b16 %v2677, %v2659
    %v4514 = vpack.c.b16 %v2678, %v2660
    %v4515 = vpack.c.b16 %v2679, %v2661
    %v4516 = vpack.c.b16 %v2680, %v2662
    %v4517 = vpack.c.b16 %v2681, %v2663
    %v4518 = vpack.c.b16 %v2682, %v2664
    %v4519 = vpack.c.b16 %v2683, %v2665
    %v4520 = vpack.c.b16 %v2684, %v2666
    %v4521 = vpack.c.b16 %v2685, %v2667
    %v4522 = vpack.c.b16 %v2704, %v2686
    %v4523 = vpack.c.b16 %v2705, %v2687
    %v4524 = vpack.c.b16 %v2706, %v2688
    %v4525 = vpack.c.b16 %v2707, %v2689
    %v4526 = vpack.c.b16 %v2708, %v2690
    %v4527 = vpack.c.b16 %v2709, %v2691
    %v4528 = vpack.c.b16 %v2710, %v2692
    %v4529 = vpack.c.b16 %v2711, %v2693
    %v4530 = vpack.c.b16 %v2712, %v2694
    %v4531 = vpack.c.b16 %v2713, %v2695
    %v4532 = vpack.c.b16 %v2714, %v2696
    %v4533 = vpack.c.b16 %v2715, %v2697
    %v4534 = vpack.c.b16 %v2716, %v2698
    %v4535 = vpack.c.b16 %v2717, %v2699
    %v4536 = vpack.c.b16 %v2718, %v2700
    %v4537 = vpack.c.b16 %v2719, %v2701
    %v4538 = vpack.c.b16 %v2720, %v2702
    %v4539 = vpack.c.b16 %v2721, %v2703
    %v4540 = vpack.c.b16 %v2740, %v2722
    %v4541 = vpack.c.b16 %v2741, %v2723
    %v4542 = vpack.c.b16 %v2742, %v2724
    %v4543 = vpack.c.b16 %v2743, %v2725
    %v4544 = vpack.c.b16 %v2744, %v2726
    %v4545 = vpack.c.b16 %v2745, %v2727
    %v4546 = vpack.c.b16 %v2746, %v2728
    %v4547 = vpack.c.b16 %v2747, %v2729
    %v4548 = vpack.c.b16 %v2748, %v2730
    %v4549 = vpack.c.b16 %v2749, %v2731
    %v4550 = vpack.c.b16 %v2750, %v2732
    %v4551 = vpack.c.b16 %v2751, %v2733
    %v4552 = vpack.c.b16 %v2752, %v2734
    %v4553 = vpack.c.b16 %v2753, %v2735
    %v4554 = vpack.c.b16 %v2754, %v2736
    %v4555 = vpack.c.b16 %v2755, %v2737
    %v4556 = vpack.c.b16 %v2756, %v2738
    %v4557 = vpack.c.b16 %v2757, %v2739
    %v4558 = vpack.c.b16 %v2776, %v2758
    %v4559 = vpack.c.b16 %v2777, %v2759
    %v4560 = vpack.c.b16 %v2778, %v2760
    %v4561 = vpack.c.b16 %v2779, %v2761
    %v4562 = vpack.c.b16 %v2780, %v2762
    %v4563 = vpack.c.b16 %v2781, %v2763
    %v4564 = vpack.c.b16 %v2782, %v2764
    %v4565 = vpack.c.b16 %v2783, %v2765
    %v4566 = vpack.c.b16 %v2784, %v2766
    %v4567 = vpack.c.b16 %v2785, %v2767
    %v4568 = vpack.c.b16 %v2786, %v2768
    %v4569 = vpack.c.b16 %v2787, %v2769
    %v4570 = vpack.c.b16 %v2788, %v2770
    %v4571 = vpack.c.b16 %v2789, %v2771
    %v4572 = vpack.c.b16 %v2790, %v2772
    %v4573 = vpack.c.b16 %v2791, %v2773
    %v4574 = vpack.c.b16 %v2792, %v2774
    %v4575 = vpack.c.b16 %v2793, %v2775
    %v4576 = vpack.c.b16 %v2812, %v2794
    %v4577 = vpack.c.b16 %v2813, %v2795
    %v4578 = vpack.c.b16 %v2814, %v2796
    %v4579 = vpack.c.b16 %v2815, %v2797
    %v4580 = vpack.c.b16 %v2816, %v2798
    %v4581 = vpack.c.b16 %v2817, %v2799
    %v4582 = vpack.c.b16 %v2818, %v2800
    %v4583 = vpack.c.b16 %v2819, %v2801
    %v4584 = vpack.c.b16 %v2820, %v2802
    %v4585 = vpack.c.b16 %v2821, %v2803
    %v4586 = vpack.c.b16 %v2822, %v2804
    %v4587 = vpack.c.b16 %v2823, %v2805
    %v4588 = vpack.c.b16 %v2824, %v2806
    %v4589 = vpack.c.b16 %v2825, %v2807
    %v4590 = vpack.c.b16 %v2826, %v2808
    %v4591 = vpack.c.b16 %v2827, %v2809
    %v4592 = vpack.c.b16 %v2828, %v2810
    %v4593 = vpack.c.b16 %v2829, %v2811
    %v4594 = vpack.c.b16 %v2848, %v2830
    %v4595 = vpack.c.b16 %v2849, %v2831
    %v4596 = vpack.c.b16 %v2850, %v2832
    %v4597 = vpack.c.b16 %v2851, %v2833
    %v4598 = vpack.c.b16 %v2852, %v2834
    %v4599 = vpack.c.b16 %v2853, %v2835
    %v4600 = vpack.c.b16 %v2854, %v2836
    %v4601 = vpack.c.b16 %v2855, %v2837
    %v4602 = vpack.c.b16 %v2856, %v2838
    %v4603 = vpack.c.b16 %v2857, %v2839
    %v4604 = vpack.c.b16 %v2858, %v2840
    %v4605 = vpack.c.b16 %v2859, %v2841
    %v4606 = vpack.c.b16 %v2860, %v2842
    %v4607 = vpack.c.b16 %v2861, %v2843
    %v4608 = vpack.c.b16 %v2862, %v2844
    %v4609 = vpack.c.b16 %v2863, %v2845
    %v4610 = vpack.c.b16 %v2864, %v2846
    %v4611 = vpack.c.b16 %v2865, %v2847
    %v4612 = vpack.c.b16 %v2884, %v2866
    %v4613 = vpack.c.b16 %v2885, %v2867
    %v4614 = vpack.c.b16 %v2886, %v2868
    %v4615 = vpack.c.b16 %v2887, %v2869
    %v4616 = vpack.c.b16 %v2888, %v2870
    %v4617 = vpack.c.b16 %v2889, %v2871
    %v4618 = vpack.c.b16 %v2890, %v2872
    %v4619 = vpack.c.b16 %v2891, %v2873
    %v4620 = vpack.c.b16 %v2892, %v2874
    %v4621 = vpack.c.b16 %v2893, %v2875
    %v4622 = vpack.c.b16 %v2894, %v2876
    %v4623 = vpack.c.b16 %v2895, %v2877
    %v4624 = vpack.c.b16 %v2896, %v2878
    %v4625 = vpack.c.b16 %v2897, %v2879
    %v4626 = vpack.c.b16 %v2898, %v2880
    %v4627 = vpack.c.b16 %v2899, %v2881
    %v4628 = vpack.c.b16 %v2900, %v2882
    %v4629 = vpack.c.b16 %v2901, %v2883
    %v4630 = vpack.c.b16 %v2920, %v2902
    %v4631 = vpack.c.b16 %v2921, %v2903
    %v4632 = vpack.c.b16 %v2922, %v2904
    %v4633 = vpack.c.b16 %v2923, %v2905
    %v4634 = vpack.c.b16 %v2924, %v2906
    %v4635 = vpack.c.b16 %v2925, %v2907
    %v4636 = vpack.c.b16 %v2926, %v2908
    %v4637 = vpack.c.b16 %v2927, %v2909
    %v4638 = vpack.c.b16 %v2928, %v2910
    %v4639 = vpack.c.b16 %v2929, %v2911
    %v4640 = vpack.c.b16 %v2930, %v2912
    %v4641 = vpack.c.b16 %v2931, %v2913
    %v4642 = vpack.c.b16 %v2932, %v2914
    %v4643 = vpack.c.b16 %v2933, %v2915
    %v4644 = vpack.c.b16 %v2934, %v2916
    %v4645 = vpack.c.b16 %v2935, %v2917
    %v4646 = vpack.c.b16 %v2936, %v2918
    %v4647 = vpack.c.b16 %v2937, %v2919
    %v4648 = vpack.c.b16 %v2956, %v2938
    %v4649 = vpack.c.b16 %v2957, %v2939
    %v4650 = vpack.c.b16 %v2958, %v2940
    %v4651 = vpack.c.b16 %v2959, %v2941
    %v4652 = vpack.c.b16 %v2960, %v2942
    %v4653 = vpack.c.b16 %v2961, %v2943
    %v4654 = vpack.c.b16 %v2962, %v2944
    %v4655 = vpack.c.b16 %v2963, %v2945
    %v4656 = vpack.c.b16 %v2964, %v2946
    %v4657 = vpack.c.b16 %v2965, %v2947
    %v4658 = vpack.c.b16 %v2966, %v2948
    %v4659 = vpack.c.b16 %v2967, %v2949
    %v4660 = vpack.c.b16 %v2968, %v2950
    %v4661 = vpack.c.b16 %v2969, %v2951
    %v4662 = vpack.c.b16 %v2970, %v2952
    %v4663 = vpack.c.b16 %v2971, %v2953
    %v4664 = vpack.c.b16 %v2972, %v2954
    %v4665 = vpack.c.b16 %v2973, %v2955
    %v4666 = vpack.c.b16 %v2992, %v2974
    %v4667 = vpack.c.b16 %v2993, %v2975
    %v4668 = vpack.c.b16 %v2994, %v2976
    %v4669 = vpack.c.b16 %v2995, %v2977
    %v4670 = vpack.c.b16 %v2996, %v2978
    %v4671 = vpack.c.b16 %v2997, %v2979
    %v4672 = vpack.c.b16 %v2998, %v2980
    %v4673 = vpack.c.b16 %v2999, %v2981
    %v4674 = vpack.c.b16 %v3000, %v2982
    %v4675 = vpack.c.b16 %v3001, %v2983
    %v4676 = vpack.c.b16 %v3002, %v2984
    %v4677 = vpack.c.b16 %v3003, %v2985
    %v4678 = vpack.c.b16 %v3004, %v2986
    %v4679 = vpack.c.b16 %v3005, %v2987
    %v4680 = vpack.c.b16 %v3006, %v2988
    %v4681 = vpack.c.b16 %v3007, %v2989
    %v4682 = vpack.c.b16 %v3008, %v2990
    %v4683 = vpack.c.b16 %v3009, %v2991
    %v4684 = vpack.c.b16 %v3028, %v3010
    %v4685 = vpack.c.b16 %v3029, %v3011
    %v4686 = vpack.c.b16 %v3030, %v3012
    %v4687 = vpack.c.b16 %v3031, %v3013
    %v4688 = vpack.c.b16 %v3032, %v3014
    %v4689 = vpack.c.b16 %v3033, %v3015
    %v4690 = vpack.c.b16 %v3034, %v3016
    %v4691 = vpack.c.b16 %v3035, %v3017
    %v4692 = vpack.c.b16 %v3036, %v3018
    %v4693 = vpack.c.b16 %v3037, %v3019
    %v4694 = vpack.c.b16 %v3038, %v3020
    %v4695 = vpack.c.b16 %v3039, %v3021
    %v4696 = vpack.c.b16 %v3040, %v3022
    %v4697 = vpack.c.b16 %v3041, %v3023
    %v4698 = vpack.c.b16 %v3042, %v3024
    %v4699 = vpack.c.b16 %v3043, %v3025
    %v4700 = vpack.c.b16 %v3044, %v3026
    %v4701 = vpack.c.b16 %v3045, %v3027
    %v4702 = vpack.c.b16 %v3064, %v3046
    %v4703 = vpack.c.b16 %v3065, %v3047
    %v4704 = vpack.c.b16 %v3066, %v3048
    %v4705 = vpack.c.b16 %v3067, %v3049
    %v4706 = vpack.c.b16 %v3068, %v3050
    %v4707 = vpack.c.b16 %v3069, %v3051
    %v4708 = vpack.c.b16 %v3070, %v3052
    %v4709 = vpack.c.b16 %v3071, %v3053
    %v4710 = vpack.c.b16 %v3072, %v3054
    %v4711 = vpack.c.b16 %v3073, %v3055
    %v4712 = vpack.c.b16 %v3074, %v3056
    %v4713 = vpack.c.b16 %v3075, %v3057
    %v4714 = vpack.c.b16 %v3076, %v3058
    %v4715 = vpack.c.b16 %v3077, %v3059
    %v4716 = vpack.c.b16 %v3078, %v3060
    %v4717 = vpack.c.b16 %v3079, %v3061
    %v4718 = vpack.c.b16 %v3080, %v3062
    %v4719 = vpack.c.b16 %v3081, %v3063
    %v4720 = vpack.c.b16 %v3100, %v3082
    %v4721 = vpack.c.b16 %v3101, %v3083
    %v4722 = vpack.c.b16 %v3102, %v3084
    %v4723 = vpack.c.b16 %v3103, %v3085
    %v4724 = vpack.c.b16 %v3104, %v3086
    %v4725 = vpack.c.b16 %v3105, %v3087
    %v4726 = vpack.c.b16 %v3106, %v3088
    %v4727 = vpack.c.b16 %v3107, %v3089
    %v4728 = vpack.c.b16 %v3108, %v3090
    %v4729 = vpack.c.b16 %v3109, %v3091
    %v4730 = vpack.c.b16 %v3110, %v3092
    %v4731 = vpack.c.b16 %v3111, %v3093
    %v4732 = vpack.c.b16 %v3112, %v3094
    %v4733 = vpack.c.b16 %v3113, %v3095
    %v4734 = vpack.c.b16 %v3114, %v3096
    %v4735 = vpack.c.b16 %v3115, %v3097
    %v4736 = vpack.c.b16 %v3116, %v3098
    %v4737 = vpack.c.b16 %v3117, %v3099
    %v4738 = vpack.c.b16 %v3136, %v3118
    %v4739 = vpack.c.b16 %v3137, %v3119
    %v4740 = vpack.c.b16 %v3138, %v3120
    %v4741 = vpack.c.b16 %v3139, %v3121
    %v4742 = vpack.c.b16 %v3140, %v3122
    %v4743 = vpack.c.b16 %v3141, %v3123
    %v4744 = vpack.c.b16 %v3142, %v3124
    %v4745 = vpack.c.b16 %v3143, %v3125
    %v4746 = vpack.c.b16 %v3144, %v3126
    %v4747 = vpack.c.b16 %v3145, %v3127
    %v4748 = vpack.c.b16 %v3146, %v3128
    %v4749 = vpack.c.b16 %v3147, %v3129
    %v4750 = vpack.c.b16 %v3148, %v3130
    %v4751 = vpack.c.b16 %v3149, %v3131
    %v4752 = vpack.c.b16 %v3150, %v3132
    %v4753 = vpack.c.b16 %v3151, %v3133
    %v4754 = vpack.c.b16 %v3152, %v3134
    %v4755 = vpack.c.b16 %v3153, %v3135
    %v4756 = vpack.c.b16 %v3172, %v3154
    %v4757 = vpack.c.b16 %v3173, %v3155
    %v4758 = vpack.c.b16 %v3174, %v3156
    %v4759 = vpack.c.b16 %v3175, %v3157
    %v4760 = vpack.c.b16 %v3176, %v3158
    %v4761 = vpack.c.b16 %v3177, %v3159
    %v4762 = vpack.c.b16 %v3178, %v3160
    %v4763 = vpack.c.b16 %v3179, %v3161
    %v4764 = vpack.c.b16 %v3180, %v3162
    %v4765 = vpack.c.b16 %v3181, %v3163
    %v4766 = vpack.c.b16 %v3182, %v3164
    %v4767 = vpack.c.b16 %v3183, %v3165
    %v4768 = vpack.c.b16 %v3184, %v3166
    %v4769 = vpack.c.b16 %v3185, %v3167
    %v4770 = vpack.c.b16 %v3186, %v3168
    %v4771 = vpack.c.b16 %v3187, %v3169
    %v4772 = vpack.c.b16 %v3188, %v3170
    %v4773 = vpack.c.b16 %v3189, %v3171
    %v4774 = vpack.c.b16 %v3208, %v3190
    %v4775 = vpack.c.b16 %v3209, %v3191
    %v4776 = vpack.c.b16 %v3210, %v3192
    %v4777 = vpack.c.b16 %v3211, %v3193
    %v4778 = vpack.c.b16 %v3212, %v3194
    %v4779 = vpack.c.b16 %v3213, %v3195
    %v4780 = vpack.c.b16 %v3214, %v3196
    %v4781 = vpack.c.b16 %v3215, %v3197
    %v4782 = vpack.c.b16 %v3216, %v3198
    %v4783 = vpack.c.b16 %v3217, %v3199
    %v4784 = vpack.c.b16 %v3218, %v3200
    %v4785 = vpack.c.b16 %v3219, %v3201
    %v4786 = vpack.c.b16 %v3220, %v3202
    %v4787 = vpack.c.b16 %v3221, %v3203
    %v4788 = vpack.c.b16 %v3222, %v3204
    %v4789 = vpack.c.b16 %v3223, %v3205
    %v4790 = vpack.c.b16 %v3224, %v3206
    %v4791 = vpack.c.b16 %v3225, %v3207
    %v4792 = vpack.c.b16 %v3244, %v3226
    %v4793 = vpack.c.b16 %v3245, %v3227
    %v4794 = vpack.c.b16 %v3246, %v3228
    %v4795 = vpack.c.b16 %v3247, %v3229
    %v4796 = vpack.c.b16 %v3248, %v3230
    %v4797 = vpack.c.b16 %v3249, %v3231
    %v4798 = vpack.c.b16 %v3250, %v3232
    %v4799 = vpack.c.b16 %v3251, %v3233
    %v4800 = vpack.c.b16 %v3252, %v3234
    %v4801 = vpack.c.b16 %v3253, %v3235
    %v4802 = vpack.c.b16 %v3254, %v3236
    %v4803 = vpack.c.b16 %v3255, %v3237
    %v4804 = vpack.c.b16 %v3256, %v3238
    %v4805 = vpack.c.b16 %v3257, %v3239
    %v4806 = vpack.c.b16 %v3258, %v3240
    %v4807 = vpack.c.b16 %v3259, %v3241
    %v4808 = vpack.c.b16 %v3260, %v3242
    %v4809 = vpack.c.b16 %v3261, %v3243
    %v4810 = vpack.c.b16 %v3280, %v3262
    %v4811 = vpack.c.b16 %v3281, %v3263
    %v4812 = vpack.c.b16 %v3282, %v3264
    %v4813 = vpack.c.b16 %v3283, %v3265
    %v4814 = vpack.c.b16 %v3284, %v3266
    %v4815 = vpack.c.b16 %v3285, %v3267
    %v4816 = vpack.c.b16 %v3286, %v3268
    %v4817 = vpack.c.b16 %v3287, %v3269
    %v4818 = vpack.c.b16 %v3288, %v3270
    %v4819 = vpack.c.b16 %v3289, %v3271
    %v4820 = vpack.c.b16 %v3290, %v3272
    %v4821 = vpack.c.b16 %v3291, %v3273
    %v4822 = vpack.c.b16 %v3292, %v3274
    %v4823 = vpack.c.b16 %v3293, %v3275
    %v4824 = vpack.c.b16 %v3294, %v3276
    %v4825 = vpack.c.b16 %v3295, %v3277
    %v4826 = vpack.c.b16 %v3296, %v3278
    %v4827 = vpack.c.b16 %v3297, %v3279
    %v4828 = vpack.c.b16 %v3316, %v3298
    %v4829 = vpack.c.b16 %v3317, %v3299
    %v4830 = vpack.c.b16 %v3318, %v3300
    %v4831 = vpack.c.b16 %v3319, %v3301
    %v4832 = vpack.c.b16 %v3320, %v3302
    %v4833 = vpack.c.b16 %v3321, %v3303
    %v4834 = vpack.c.b16 %v3322, %v3304
    %v4835 = vpack.c.b16 %v3323, %v3305
    %v4836 = vpack.c.b16 %v3324, %v3306
    %v4837 = vpack.c.b16 %v3325, %v3307
    %v4838 = vpack.c.b16 %v3326, %v3308
    %v4839 = vpack.c.b16 %v3327, %v3309
    %v4840 = vpack.c.b16 %v3328, %v3310
    %v4841 = vpack.c.b16 %v3329, %v3311
    %v4842 = vpack.c.b16 %v3330, %v3312
    %v4843 = vpack.c.b16 %v3331, %v3313
    %v4844 = vpack.c.b16 %v3332, %v3314
    %v4845 = vpack.c.b16 %v3333, %v3315
    %v4846 = vpack.c.b16 %v3352, %v3334
    %v4847 = vpack.c.b16 %v3353, %v3335
    %v4848 = vpack.c.b16 %v3354, %v3336
    %v4849 = vpack.c.b16 %v3355, %v3337
    %v4850 = vpack.c.b16 %v3356, %v3338
    %v4851 = vpack.c.b16 %v3357, %v3339
    %v4852 = vpack.c.b16 %v3358, %v3340
    %v4853 = vpack.c.b16 %v3359, %v3341
    %v4854 = vpack.c.b16 %v3360, %v3342
    %v4855 = vpack.c.b16 %v3361, %v3343
    %v4856 = vpack.c.b16 %v3362, %v3344
    %v4857 = vpack.c.b16 %v3363, %v3345
    %v4858 = vpack.c.b16 %v3364, %v3346
    %v4859 = vpack.c.b16 %v3365, %v3347
    %v4860 = vpack.c.b16 %v3366, %v3348
    %v4861 = vpack.c.b16 %v3367, %v3349
    %v4862 = vpack.c.b16 %v3368, %v3350
    %v4863 = vpack.c.b16 %v3369, %v3351
    %v4864 = vpack.c.b16 %v3388, %v3370
    %v4865 = vpack.c.b16 %v3389, %v3371
    %v4866 = vpack.c.b16 %v3390, %v3372
    %v4867 = vpack.c.b16 %v3391, %v3373
    %v4868 = vpack.c.b16 %v3392, %v3374
    %v4869 = vpack.c.b16 %v3393, %v3375
    %v4870 = vpack.c.b16 %v3394, %v3376
    %v4871 = vpack.c.b16 %v3395, %v3377
    %v4872 = vpack.c.b16 %v3396, %v3378
    %v4873 = vpack.c.b16 %v3397, %v3379
    %v4874 = vpack.c.b16 %v3398, %v3380
    %v4875 = vpack.c.b16 %v3399, %v3381
    %v4876 = vpack.c.b16 %v3400, %v3382
    %v4877 = vpack.c.b16 %v3401, %v3383
    %v4878 = vpack.c.b16 %v3402, %v3384
    %v4879 = vpack.c.b16 %v3403, %v3385
    %v4880 = vpack.c.b16 %v3404, %v3386
    %v4881 = vpack.c.b16 %v3405, %v3387
    %v4882 = vpack.c.b16 %v3424, %v3406
    %v4883 = vpack.c.b16 %v3425, %v3407
    %v4884 = vpack.c.b16 %v3426, %v3408
    %v4885 = vpack.c.b16 %v3427, %v3409
    %v4886 = vpack.c.b16 %v3428, %v3410
    %v4887 = vpack.c.b16 %v3429, %v3411
    %v4888 = vpack.c.b16 %v3430, %v3412
    %v4889 = vpack.c.b16 %v3431, %v3413
    %v4890 = vpack.c.b16 %v3432, %v3414
    %v4891 = vpack.c.b16 %v3433, %v3415
    %v4892 = vpack.c.b16 %v3434, %v3416
    %v4893 = vpack.c.b16 %v3435, %v3417
    %v4894 = vpack.c.b16 %v3436, %v3418
    %v4895 = vpack.c.b16 %v3437, %v3419
    %v4896 = vpack.c.b16 %v3438, %v3420
    %v4897 = vpack.c.b16 %v3439, %v3421
    %v4898 = vpack.c.b16 %v3440, %v3422
    %v4899 = vpack.c.b16 %v3441, %v3423
    %v4900 = vpack.c.b16 %v3460, %v3442
    %v4901 = vpack.c.b16 %v3461, %v3443
    %v4902 = vpack.c.b16 %v3462, %v3444
    %v4903 = vpack.c.b16 %v3463, %v3445
    %v4904 = vpack.c.b16 %v3464, %v3446
    %v4905 = vpack.c.b16 %v3465, %v3447
    %v4906 = vpack.c.b16 %v3466, %v3448
    %v4907 = vpack.c.b16 %v3467, %v3449
    %v4908 = vpack.c.b16 %v3468, %v3450
    %v4909 = vpack.c.b16 %v3469, %v3451
    %v4910 = vpack.c.b16 %v3470, %v3452
    %v4911 = vpack.c.b16 %v3471, %v3453
    %v4912 = vpack.c.b16 %v3472, %v3454
    %v4913 = vpack.c.b16 %v3473, %v3455
    %v4914 = vpack.c.b16 %v3474, %v3456
    %v4915 = vpack.c.b16 %v3475, %v3457
    %v4916 = vpack.c.b16 %v3476, %v3458
    %v4917 = vpack.c.b16 %v3477, %v3459
    %v4918 = vpack.c.b16 %v3496, %v3478
    %v4919 = vpack.c.b16 %v3497, %v3479
    %v4920 = vpack.c.b16 %v3498, %v3480
    %v4921 = vpack.c.b16 %v3499, %v3481
    %v4922 = vpack.c.b16 %v3500, %v3482
    %v4923 = vpack.c.b16 %v3501, %v3483
    %v4924 = vpack.c.b16 %v3502, %v3484
    %v4925 = vpack.c.b16 %v3503, %v3485
    %v4926 = vpack.c.b16 %v3504, %v3486
    %v4927 = vpack.c.b16 %v3505, %v3487
    %v4928 = vpack.c.b16 %v3506, %v3488
    %v4929 = vpack.c.b16 %v3507, %v3489
    %v4930 = vpack.c.b16 %v3508, %v3490
    %v4931 = vpack.c.b16 %v3509, %v3491
    %v4932 = vpack.c.b16 %v3510, %v3492
    %v4933 = vpack.c.b16 %v3511, %v3493
    %v4934 = vpack.c.b16 %v3512, %v3494
    %v4935 = vpack.c.b16 %v3513, %v3495
    %v4936 = vpack.c.b16 %v3532, %v3514
    %v4937 = vpack.c.b16 %v3533, %v3515
    %v4938 = vpack.c.b16 %v3534, %v3516
    %v4939 = vpack.c.b16 %v3535, %v3517
    %v4940 = vpack.c.b16 %v3536, %v3518
    %v4941 = vpack.c.b16 %v3537, %v3519
    %v4942 = vpack.c.b16 %v3538, %v3520
    %v4943 = vpack.c.b16 %v3539, %v3521
    %v4944 = vpack.c.b16 %v3540, %v3522
    %v4945 = vpack.c.b16 %v3541, %v3523
    %v4946 = vpack.c.b16 %v3542, %v3524
    %v4947 = vpack.c.b16 %v3543, %v3525
    %v4948 = vpack.c.b16 %v3544, %v3526
    %v4949 = vpack.c.b16 %v3545, %v3527
    %v4950 = vpack.c.b16 %v3546, %v3528
    %v4951 = vpack.c.b16 %v3547, %v3529
    %v4952 = vpack.c.b16 %v3548, %v3530
    %v4953 = vpack.c.b16 %v3549, %v3531
    %v4954 = vpack.c.b16 %v3568, %v3550
    %v4955 = vpack.c.b16 %v3569, %v3551
    %v4956 = vpack.c.b16 %v3570, %v3552
    %v4957 = vpack.c.b16 %v3571, %v3553
    %v4958 = vpack.c.b16 %v3572, %v3554
    %v4959 = vpack.c.b16 %v3573, %v3555
    %v4960 = vpack.c.b16 %v3574, %v3556
    %v4961 = vpack.c.b16 %v3575, %v3557
    %v4962 = vpack.c.b16 %v3576, %v3558
    %v4963 = vpack.c.b16 %v3577, %v3559
    %v4964 = vpack.c.b16 %v3578, %v3560
    %v4965 = vpack.c.b16 %v3579, %v3561
    %v4966 = vpack.c.b16 %v3580, %v3562
    %v4967 = vpack.c.b16 %v3581, %v3563
    %v4968 = vpack.c.b16 %v3582, %v3564
    %v4969 = vpack.c.b16 %v3583, %v3565
    %v4970 = vpack.c.b16 %v3584, %v3566
    %v4971 = vpack.c.b16 %v3585, %v3567
    %v4972 = vpack.c.b16 %v3604, %v3586
    %v4973 = vpack.c.b16 %v3605, %v3587
    %v4974 = vpack.c.b16 %v3606, %v3588
    %v4975 = vpack.c.b16 %v3607, %v3589
    %v4976 = vpack.c.b16 %v3608, %v3590
    %v4977 = vpack.c.b16 %v3609, %v3591
    %v4978 = vpack.c.b16 %v3610, %v3592
    %v4979 = vpack.c.b16 %v3611, %v3593
    %v4980 = vpack.c.b16 %v3612, %v3594
    %v4981 = vpack.c.b16 %v3613, %v3595
    %v4982 = vpack.c.b16 %v3614, %v3596
    %v4983 = vpack.c.b16 %v3615, %v3597
    %v4984 = vpack.c.b16 %v3616, %v3598
    %v4985 = vpack.c.b16 %v3617, %v3599
    %v4986 = vpack.c.b16 %v3618, %v3600
    %v4987 = vpack.c.b16 %v3619, %v3601
    %v4988 = vpack.c.b16 %v3620, %v3602
    %v4989 = vpack.c.b16 %v3621, %v3603
    %v4990 = vpack.c.b16 %v3640, %v3622
    %v4991 = vpack.c.b16 %v3641, %v3623
    %v4992 = vpack.c.b16 %v3642, %v3624
    %v4993 = vpack.c.b16 %v3643, %v3625
    %v4994 = vpack.c.b16 %v3644, %v3626
    %v4995 = vpack.c.b16 %v3645, %v3627
    %v4996 = vpack.c.b16 %v3646, %v3628
    %v4997 = vpack.c.b16 %v3647, %v3629
    %v4998 = vpack.c.b16 %v3648, %v3630
    %v4999 = vpack.c.b16 %v3649, %v3631
    %v5000 = vpack.c.b16 %v3650, %v3632
    %v5001 = vpack.c.b16 %v3651, %v3633
    %v5002 = vpack.c.b16 %v3652, %v3634
    %v5003 = vpack.c.b16 %v3653, %v3635
    %v5004 = vpack.c.b16 %v3654, %v3636
    %v5005 = vpack.c.b16 %v3655, %v3637
    %v5006 = vpack.c.b16 %v3656, %v3638
    %v5007 = vpack.c.b16 %v3657, %v3639
    %v5008 = vpack.c.b16 %v3676, %v3658
    %v5009 = vpack.c.b16 %v3677, %v3659
    %v5010 = vpack.c.b16 %v3678, %v3660
    %v5011 = vpack.c.b16 %v3679, %v3661
    %v5012 = vpack.c.b16 %v3680, %v3662
    %v5013 = vpack.c.b16 %v3681, %v3663
    %v5014 = vpack.c.b16 %v3682, %v3664
    %v5015 = vpack.c.b16 %v3683, %v3665
    %v5016 = vpack.c.b16 %v3684, %v3666
    %v5017 = vpack.c.b16 %v3685, %v3667
    %v5018 = vpack.c.b16 %v3686, %v3668
    %v5019 = vpack.c.b16 %v3687, %v3669
    %v5020 = vpack.c.b16 %v3688, %v3670
    %v5021 = vpack.c.b16 %v3689, %v3671
    %v5022 = vpack.c.b16 %v3690, %v3672
    %v5023 = vpack.c.b16 %v3691, %v3673
    %v5024 = vpack.c.b16 %v3692, %v3674
    %v5025 = vpack.c.b16 %v3693, %v3675
    %v5026 = vpack.c.b16 %v3712, %v3694
    %v5027 = vpack.c.b16 %v3713, %v3695
    %v5028 = vpack.c.b16 %v3714, %v3696
    %v5029 = vpack.c.b16 %v3715, %v3697
    %v5030 = vpack.c.b16 %v3716, %v3698
    %v5031 = vpack.c.b16 %v3717, %v3699
    %v5032 = vpack.c.b16 %v3718, %v3700
    %v5033 = vpack.c.b16 %v3719, %v3701
    %v5034 = vpack.c.b16 %v3720, %v3702
    %v5035 = vpack.c.b16 %v3721, %v3703
    %v5036 = vpack.c.b16 %v3722, %v3704
    %v5037 = vpack.c.b16 %v3723, %v3705
    %v5038 = vpack.c.b16 %v3724, %v3706
    %v5039 = vpack.c.b16 %v3725, %v3707
    %v5040 = vpack.c.b16 %v3726, %v3708
    %v5041 = vpack.c.b16 %v3727, %v3709
    %v5042 = vpack.c.b16 %v3728, %v3710
    %v5043 = vpack.c.b16 %v3729, %v3711
    %v5044 = vpack.c.b16 %v3748, %v3730
    %v5045 = vpack.c.b16 %v3749, %v3731
    %v5046 = vpack.c.b16 %v3750, %v3732
    %v5047 = vpack.c.b16 %v3751, %v3733
    %v5048 = vpack.c.b16 %v3752, %v3734
    %v5049 = vpack.c.b16 %v3753, %v3735
    %v5050 = vpack.c.b16 %v3754, %v3736
    %v5051 = vpack.c.b16 %v3755, %v3737
    %v5052 = vpack.c.b16 %v3756, %v3738
    %v5053 = vpack.c.b16 %v3757, %v3739
    %v5054 = vpack.c.b16 %v3758, %v3740
    %v5055 = vpack.c.b16 %v3759, %v3741
    %v5056 = vpack.c.b16 %v3760, %v3742
    %v5057 = vpack.c.b16 %v3761, %v3743
    %v5058 = vpack.c.b16 %v3762, %v3744
    %v5059 = vpack.c.b16 %v3763, %v3745
    %v5060 = vpack.c.b16 %v3764, %v3746
    %v5061 = vpack.c.b16 %v3765, %v3747
    %v5062 = vpack.c.b16 %v3784, %v3766
    %v5063 = vpack.c.b16 %v3785, %v3767
    %v5064 = vpack.c.b16 %v3786, %v3768
    %v5065 = vpack.c.b16 %v3787, %v3769
    %v5066 = vpack.c.b16 %v3788, %v3770
    %v5067 = vpack.c.b16 %v3789, %v3771
    %v5068 = vpack.c.b16 %v3790, %v3772
    %v5069 = vpack.c.b16 %v3791, %v3773
    %v5070 = vpack.c.b16 %v3792, %v3774
    %v5071 = vpack.c.b16 %v3793, %v3775
    %v5072 = vpack.c.b16 %v3794, %v3776
    %v5073 = vpack.c.b16 %v3795, %v3777
    %v5074 = vpack.c.b16 %v3796, %v3778
    %v5075 = vpack.c.b16 %v3797, %v3779
    %v5076 = vpack.c.b16 %v3798, %v3780
    %v5077 = vpack.c.b16 %v3799, %v3781
    %v5078 = vpack.c.b16 %v3800, %v3782
    %v5079 = vpack.c.b16 %v3801, %v3783
    %v5080 = vpack.c.b16 %v3820, %v3802
    %v5081 = vpack.c.b16 %v3821, %v3803
    %v5082 = vpack.c.b16 %v3822, %v3804
    %v5083 = vpack.c.b16 %v3823, %v3805
    %v5084 = vpack.c.b16 %v3824, %v3806
    %v5085 = vpack.c.b16 %v3825, %v3807
    %v5086 = vpack.c.b16 %v3826, %v3808
    %v5087 = vpack.c.b16 %v3827, %v3809
    %v5088 = vpack.c.b16 %v3828, %v3810
    %v5089 = vpack.c.b16 %v3829, %v3811
    %v5090 = vpack.c.b16 %v3830, %v3812
    %v5091 = vpack.c.b16 %v3831, %v3813
    %v5092 = vpack.c.b16 %v3832, %v3814
    %v5093 = vpack.c.b16 %v3833, %v3815
    %v5094 = vpack.c.b16 %v3834, %v3816
    %v5095 = vpack.c.b16 %v3835, %v3817
    %v5096 = vpack.c.b16 %v3836, %v3818
    %v5097 = vpack.c.b16 %v3837, %v3819
    %v5098 = vpack.c.b16 %v3856, %v3838
    %v5099 = vpack.c.b16 %v3857, %v3839
    %v5100 = vpack.c.b16 %v3858, %v3840
    %v5101 = vpack.c.b16 %v3859, %v3841
    %v5102 = vpack.c.b16 %v3860, %v3842
    %v5103 = vpack.c.b16 %v3861, %v3843
    %v5104 = vpack.c.b16 %v3862, %v3844
    %v5105 = vpack.c.b16 %v3863, %v3845
    %v5106 = vpack.c.b16 %v3864, %v3846
    %v5107 = vpack.c.b16 %v3865, %v3847
    %v5108 = vpack.c.b16 %v3866, %v3848
    %v5109 = vpack.c.b16 %v3867, %v3849
    %v5110 = vpack.c.b16 %v3868, %v3850
    %v5111 = vpack.c.b16 %v3869, %v3851
    %v5112 = vpack.c.b16 %v3870, %v3852
    %v5113 = vpack.c.b16 %v3871, %v3853
    %v5114 = vpack.c.b16 %v3872, %v3854
    %v5115 = vpack.c.b16 %v3873, %v3855
    %v5116 = vpack.c.b16 %v3892, %v3874
    %v5117 = vpack.c.b16 %v3893, %v3875
    %v5118 = vpack.c.b16 %v3894, %v3876
    %v5119 = vpack.c.b16 %v3895, %v3877
    %v5120 = vpack.c.b16 %v3896, %v3878
    %v5121 = vpack.c.b16 %v3897, %v3879
    %v5122 = vpack.c.b16 %v3898, %v3880
    %v5123 = vpack.c.b16 %v3899, %v3881
    %v5124 = vpack.c.b16 %v3900, %v3882
    %v5125 = vpack.c.b16 %v3901, %v3883
    %v5126 = vpack.c.b16 %v3902, %v3884
    %v5127 = vpack.c.b16 %v3903, %v3885
    %v5128 = vpack.c.b16 %v3904, %v3886
    %v5129 = vpack.c.b16 %v3905, %v3887
    %v5130 = vpack.c.b16 %v3906, %v3888
    %v5131 = vpack.c.b16 %v3907, %v3889
    %v5132 = vpack.c.b16 %v3908, %v3890
    %v5133 = vpack.c.b16 %v3909, %v3891
    %v5134 = vpack.c.b16 %v3928, %v3910
    %v5135 = vpack.c.b16 %v3929, %v3911
    %v5136 = vpack.c.b16 %v3930, %v3912
    %v5137 = vpack.c.b16 %v3931, %v3913
    %v5138 = vpack.c.b16 %v3932, %v3914
    %v5139 = vpack.c.b16 %v3933, %v3915
    %v5140 = vpack.c.b16 %v3934, %v3916
    %v5141 = vpack.c.b16 %v3935, %v3917
    %v5142 = vpack.c.b16 %v3936, %v3918
    %v5143 = vpack.c.b16 %v3937, %v3919
    %v5144 = vpack.c.b16 %v3938, %v3920
    %v5145 = vpack.c.b16 %v3939, %v3921
    %v5146 = vpack.c.b16 %v3940, %v3922
    %v5147 = vpack.c.b16 %v3941, %v3923
    %v5148 = vpack.c.b16 %v3942, %v3924
    %v5149 = vpack.c.b16 %v3943, %v3925
    %v5150 = vpack.c.b16 %v3944, %v3926
    %v5151 = vpack.c.b16 %v3945, %v3927
    %v5152 = vpack.c.b16 %v3964, %v3946
    %v5153 = vpack.c.b16 %v3965, %v3947
    %v5154 = vpack.c.b16 %v3966, %v3948
    %v5155 = vpack.c.b16 %v3967, %v3949
    %v5156 = vpack.c.b16 %v3968, %v3950
    %v5157 = vpack.c.b16 %v3969, %v3951
    %v5158 = vpack.c.b16 %v3970, %v3952
    %v5159 = vpack.c.b16 %v3971, %v3953
    %v5160 = vpack.c.b16 %v3972, %v3954
    %v5161 = vpack.c.b16 %v3973, %v3955
    %v5162 = vpack.c.b16 %v3974, %v3956
    %v5163 = vpack.c.b16 %v3975, %v3957
    %v5164 = vpack.c.b16 %v3976, %v3958
    %v5165 = vpack.c.b16 %v3977, %v3959
    %v5166 = vpack.c.b16 %v3978, %v3960
    %v5167 = vpack.c.b16 %v3979, %v3961
    %v5168 = vpack.c.b16 %v3980, %v3962
    %v5169 = vpack.c.b16 %v3981, %v3963
    %v5170 = vpack.c.b16 %v4000, %v3982
    %v5171 = vpack.c.b16 %v4001, %v3983
    %v5172 = vpack.c.b16 %v4002, %v3984
    %v5173 = vpack.c.b16 %v4003, %v3985
    %v5174 = vpack.c.b16 %v4004, %v3986
    %v5175 = vpack.c.b16 %v4005, %v3987
    %v5176 = vpack.c.b16 %v4006, %v3988
    %v5177 = vpack.c.b16 %v4007, %v3989
    %v5178 = vpack.c.b16 %v4008, %v3990
    %v5179 = vpack.c.b16 %v4009, %v3991
    %v5180 = vpack.c.b16 %v4010, %v3992
    %v5181 = vpack.c.b16 %v4011, %v3993
    %v5182 = vpack.c.b16 %v4012, %v3994
    %v5183 = vpack.c.b16 %v4013, %v3995
    %v5184 = vpack.c.b16 %v4014, %v3996
    %v5185 = vpack.c.b16 %v4015, %v3997
    %v5186 = vpack.c.b16 %v4016, %v3998
    %v5187 = vpack.c.b16 %v4017, %v3999
    %v5188 = vpack.c.b16 %v4036, %v4018
    %v5189 = vpack.c.b16 %v4037, %v4019
    %v5190 = vpack.c.b16 %v4038, %v4020
    %v5191 = vpack.c.b16 %v4039, %v4021
    %v5192 = vpack.c.b16 %v4040, %v4022
    %v5193 = vpack.c.b16 %v4041, %v4023
    %v5194 = vpack.c.b16 %v4042, %v4024
    %v5195 = vpack.c.b16 %v4043, %v4025
    %v5196 = vpack.c.b16 %v4044, %v4026
    %v5197 = vpack.c.b16 %v4045, %v4027
    %v5198 = vpack.c.b16 %v4046, %v4028
    %v5199 = vpack.c.b16 %v4047, %v4029
    %v5200 = vpack.c.b16 %v4048, %v4030
    %v5201 = vpack.c.b16 %v4049, %v4031
    %v5202 = vpack.c.b16 %v4050, %v4032
    %v5203 = vpack.c.b16 %v4051, %v4033
    %v5204 = vpack.c.b16 %v4052, %v4034
    %v5205 = vpack.c.b16 %v4053, %v4035
    %v5206 = vpack.c.b16 %v4072, %v4054
    %v5207 = vpack.c.b16 %v4073, %v4055
    %v5208 = vpack.c.b16 %v4074, %v4056
    %v5209 = vpack.c.b16 %v4075, %v4057
    %v5210 = vpack.c.b16 %v4076, %v4058
    %v5211 = vpack.c.b16 %v4077, %v4059
    %v5212 = vpack.c.b16 %v4078, %v4060
    %v5213 = vpack.c.b16 %v4079, %v4061
    %v5214 = vpack.c.b16 %v4080, %v4062
    %v5215 = vpack.c.b16 %v4081, %v4063
    %v5216 = vpack.c.b16 %v4082, %v4064
    %v5217 = vpack.c.b16 %v4083, %v4065
    %v5218 = vpack.c.b16 %v4084, %v4066
    %v5219 = vpack.c.b16 %v4085, %v4067
    %v5220 = vpack.c.b16 %v4086, %v4068
    %v5221 = vpack.c.b16 %v4087, %v4069
    %v5222 = vpack.c.b16 %v4088, %v4070
    %v5223 = vpack.c.b16 %v4089, %v4071
    %v5224 = vpack.c.b16 %v4108, %v4090
    %v5225 = vpack.c.b16 %v4109, %v4091
    %v5226 = vpack.c.b16 %v4110, %v4092
    %v5227 = vpack.c.b16 %v4111, %v4093
    %v5228 = vpack.c.b16 %v4112, %v4094
    %v5229 = vpack.c.b16 %v4113, %v4095
    %v5230 = vpack.c.b16 %v4114, %v4096
    %v5231 = vpack.c.b16 %v4115, %v4097
    %v5232 = vpack.c.b16 %v4116, %v4098
    %v5233 = vpack.c.b16 %v4117, %v4099
    %v5234 = vpack.c.b16 %v4118, %v4100
    %v5235 = vpack.c.b16 %v4119, %v4101
    %v5236 = vpack.c.b16 %v4120, %v4102
    %v5237 = vpack.c.b16 %v4121, %v4103
    %v5238 = vpack.c.b16 %v4122, %v4104
    %v5239 = vpack.c.b16 %v4123, %v4105
    %v5240 = vpack.c.b16 %v4124, %v4106
    %v5241 = vpack.c.b16 %v4125, %v4107
    %v5242 = vpack.c.b16 %v4144, %v4126
    %v5243 = vpack.c.b16 %v4145, %v4127
    %v5244 = vpack.c.b16 %v4146, %v4128
    %v5245 = vpack.c.b16 %v4147, %v4129
    %v5246 = vpack.c.b16 %v4148, %v4130
    %v5247 = vpack.c.b16 %v4149, %v4131
    %v5248 = vpack.c.b16 %v4150, %v4132
    %v5249 = vpack.c.b16 %v4151, %v4133
    %v5250 = vpack.c.b16 %v4152, %v4134
    %v5251 = vpack.c.b16 %v4153, %v4135
    %v5252 = vpack.c.b16 %v4154, %v4136
    %v5253 = vpack.c.b16 %v4155, %v4137
    %v5254 = vpack.c.b16 %v4156, %v4138
    %v5255 = vpack.c.b16 %v4157, %v4139
    %v5256 = vpack.c.b16 %v4158, %v4140
    %v5257 = vpack.c.b16 %v4159, %v4141
    %v5258 = vpack.c.b16 %v4160, %v4142
    %v5259 = vpack.c.b16 %v4161, %v4143
    %v5260 = vpack.c.b16 %v4180, %v4162
    %v5261 = vpack.c.b16 %v4181, %v4163
    %v5262 = vpack.c.b16 %v4182, %v4164
    %v5263 = vpack.c.b16 %v4183, %v4165
    %v5264 = vpack.c.b16 %v4184, %v4166
    %v5265 = vpack.c.b16 %v4185, %v4167
    %v5266 = vpack.c.b16 %v4186, %v4168
    %v5267 = vpack.c.b16 %v4187, %v4169
    %v5268 = vpack.c.b16 %v4188, %v4170
    %v5269 = vpack.c.b16 %v4189, %v4171
    %v5270 = vpack.c.b16 %v4190, %v4172
    %v5271 = vpack.c.b16 %v4191, %v4173
    %v5272 = vpack.c.b16 %v4192, %v4174
    %v5273 = vpack.c.b16 %v4193, %v4175
    %v5274 = vpack.c.b16 %v4194, %v4176
    %v5275 = vpack.c.b16 %v4195, %v4177
    %v5276 = vpack.c.b16 %v4196, %v4178
    %v5277 = vpack.c.b16 %v4197, %v4179
    %v5278 = vpack.c.b16 %v4216, %v4198
    %v5279 = vpack.c.b16 %v4217, %v4199
    %v5280 = vpack.c.b16 %v4218, %v4200
    %v5281 = vpack.c.b16 %v4219, %v4201
    %v5282 = vpack.c.b16 %v4220, %v4202
    %v5283 = vpack.c.b16 %v4221, %v4203
    %v5284 = vpack.c.b16 %v4222, %v4204
    %v5285 = vpack.c.b16 %v4223, %v4205
    %v5286 = vpack.c.b16 %v4224, %v4206
    %v5287 = vpack.c.b16 %v4225, %v4207
    %v5288 = vpack.c.b16 %v4226, %v4208
    %v5289 = vpack.c.b16 %v4227, %v4209
    %v5290 = vpack.c.b16 %v4228, %v4210
    %v5291 = vpack.c.b16 %v4229, %v4211
    %v5292 = vpack.c.b16 %v4230, %v4212
    %v5293 = vpack.c.b16 %v4231, %v4213
    %v5294 = vpack.c.b16 %v4232, %v4214
    %v5295 = vpack.c.b16 %v4233, %v4215
    %v5296 = vpack.c.b16 %v4252, %v4234
    %v5297 = vpack.c.b16 %v4253, %v4235
    %v5298 = vpack.c.b16 %v4254, %v4236
    %v5299 = vpack.c.b16 %v4255, %v4237
    %v5300 = vpack.c.b16 %v4256, %v4238
    %v5301 = vpack.c.b16 %v4257, %v4239
    %v5302 = vpack.c.b16 %v4258, %v4240
    %v5303 = vpack.c.b16 %v4259, %v4241
    %v5304 = vpack.c.b16 %v4260, %v4242
    %v5305 = vpack.c.b16 %v4261, %v4243
    %v5306 = vpack.c.b16 %v4262, %v4244
    %v5307 = vpack.c.b16 %v4263, %v4245
    %v5308 = vpack.c.b16 %v4264, %v4246
    %v5309 = vpack.c.b16 %v4265, %v4247
    %v5310 = vpack.c.b16 %v4266, %v4248
    %v5311 = vpack.c.b16 %v4267, %v4249
    %v5312 = vpack.c.b16 %v4268, %v4250
    %v5313 = vpack.c.b16 %v4269, %v4251
    %v5314 = vpack.c.b16 %v4288, %v4270
    %v5315 = vpack.c.b16 %v4289, %v4271
    %v5316 = vpack.c.b16 %v4290, %v4272
    %v5317 = vpack.c.b16 %v4291, %v4273
    %v5318 = vpack.c.b16 %v4292, %v4274
    %v5319 = vpack.c.b16 %v4293, %v4275
    %v5320 = vpack.c.b16 %v4294, %v4276
    %v5321 = vpack.c.b16 %v4295, %v4277
    %v5322 = vpack.c.b16 %v4296, %v4278
    %v5323 = vpack.c.b16 %v4297, %v4279
    %v5324 = vpack.c.b16 %v4298, %v4280
    %v5325 = vpack.c.b16 %v4299, %v4281
    %v5326 = vpack.c.b16 %v4300, %v4282
    %v5327 = vpack.c.b16 %v4301, %v4283
    %v5328 = vpack.c.b16 %v4302, %v4284
    %v5329 = vpack.c.b16 %v4303, %v4285
    %v5330 = vpack.c.b16 %v4304, %v4286
    %v5331 = vpack.c.b16 %v4305, %v4287
    %v5332 = vpack.c.b16 %v4306, %v4306
    %v5333 = vpack.c.b16 %v4307, %v4307
    %v5334 = vpack.c.b16 %v4308, %v4308
    %v5335 = vpack.c.b16 %v4309, %v4309
    %v5336 = vpack.c.b16 %v4310, %v4310
    %v5337 = vpack.c.b16 %v4311, %v4311
    %v5338 = vpack.c.b16 %v4312, %v4312
    %v5339 = vpack.c.b16 %v4313, %v4313
    %v5340 = vpack.c.b16 %v4314, %v4314
    %v5341 = vpack.c.b16 %v4315, %v4315
    %v5342 = vpack.c.b16 %v4316, %v4316
    %v5343 = vpack.c.b16 %v4317, %v4317
    %v5344 = vpack.c.b16 %v4318, %v4318
    %v5345 = vpack.c.b16 %v4319, %v4319
    %v5346 = vpack.c.b16 %v4320, %v4320
    %v5347 = vpack.c.b16 %v4321, %v4321
    %v5348 = vpack.c.b16 %v4322, %v4322
    %v5349 = vpack.c.b16 %v4323, %v4323
    %vm6358 = vcmask 31744
    %v6360 = vsel %vm6358, %v159, 0
    %vm6362 = vcmask 1041408
    %v6364 = vsel %vm6362, %v5332, 0
    %v6367 = vsel %vm6362, %v5333, 0
    %v6370 = vsel %vm6362, %v5334, 0
    %v6373 = vsel %vm6362, %v5335, 0
    %v6376 = vsel %vm6362, %v5336, 0
    %v6379 = vsel %vm6362, %v5337, 0
    %v6382 = vsel %vm6362, %v5338, 0
    %v6385 = vsel %vm6362, %v5339, 0
    %v6388 = vsel %vm6362, %v5340, 0
    %v6391 = vsel %vm6362, %v5341, 0
    %v6394 = vsel %vm6362, %v5342, 0
    %v6397 = vsel %vm6362, %v5343, 0
    %v6400 = vsel %vm6362, %v5344, 0
    %v6403 = vsel %vm6362, %v5345, 0
    %v6406 = vsel %vm6362, %v5346, 0
    %v6409 = vsel %vm6362, %v5347, 0
    %v6412 = vsel %vm6362, %v5348, 0
    %v6415 = vsel %vm6362, %v5349, 0
    %6417 = vmatprep.subr.bf16.mxu0 %v4325
    %6418 = vmatpush1.bf16.msra.mxu0 %v4324
    %6419 = vmatprep.subr.bf16.mxu0 %v4343
    %6420 = vmatpush1.bf16.msra.mxu0 %v4342
    %6421 = vmatprep.subr.bf16.mxu0 %v4361
    %6422 = vmatpush1.bf16.msra.mxu0 %v4360
    %6423 = vmatprep.subr.bf16.mxu0 %v4379
    %6424 = vmatpush1.bf16.msra.mxu0 %v4378
    %6425 = vmatprep.subr.bf16.mxu0 %v4397
    %6426 = vmatpush1.bf16.msra.mxu0 %v4396
    %6427 = vmatprep.subr.bf16.mxu0 %v4415
    %6428 = vmatpush1.bf16.msra.mxu0 %v4414
    %6429 = vmatprep.subr.bf16.mxu0 %v4433
    %6430 = vmatpush1.bf16.msra.mxu0 %v4432
    %6431 = vmatprep.subr.bf16.mxu0 %v4451
    %6432 = vmatpush1.bf16.msra.mxu0 %v4450
    %6433 = vmatprep.subr.bf16.mxu0 %v4469
    %6434 = vmatpush1.bf16.msra.mxu0 %v4468
    %6435 = vmatprep.subr.bf16.mxu0 %v4487
    %6436 = vmatpush1.bf16.msra.mxu0 %v4486
    %6437 = vmatprep.subr.bf16.mxu0 %v4505
    %6438 = vmatpush1.bf16.msra.mxu0 %v4504
    %6439 = vmatprep.subr.bf16.mxu0 %v4523
    %6440 = vmatpush1.bf16.msra.mxu0 %v4522
    %6441 = vmatprep.subr.bf16.mxu0 %v4541
    %6442 = vmatpush1.bf16.msra.mxu0 %v4540
    %6443 = vmatprep.subr.bf16.mxu0 %v4559
    %6444 = vmatpush1.bf16.msra.mxu0 %v4558
    %6445 = vmatprep.subr.bf16.mxu0 %v4577
    %6446 = vmatpush1.bf16.msra.mxu0 %v4576
    %6447 = vmatprep.subr.bf16.mxu0 %v4595
    %6448 = vmatpush1.bf16.msra.mxu0 %v4594
    %6449 = vmatprep.mubr.bf16.mxu0 %v153
    %6450 = vmatmul.mubr.bf16.gmra.mrb[0].mxu0 %v152
    %v6451 = vpop.f32.mrb[0].mxu0
    %v6452 = vadd.f32 %v1186, %v6451
    %v6453 = vpop.f32.mrb[0].mxu0
    %v6454 = vadd.f32 %v1190, %v6453
    %v6455 = vpop.f32.mrb[0].mxu0
    %v6456 = vpop.f32.mrb[0].mxu0
    %6457 = vdwg.mxu0
    %6458 = vmatprep.subr.bf16.mxu0 %v4613
    %6459 = vmatpush1.bf16.msra.mxu0 %v4612
    %6460 = vmatprep.subr.bf16.mxu0 %v4631
    %6461 = vmatpush1.bf16.msra.mxu0 %v4630
    %6462 = vmatprep.subr.bf16.mxu0 %v4649
    %6463 = vmatpush1.bf16.msra.mxu0 %v4648
    %6464 = vmatprep.subr.bf16.mxu0 %v4667
    %6465 = vmatpush1.bf16.msra.mxu0 %v4666
    %6466 = vmatprep.subr.bf16.mxu0 %v4685
    %6467 = vmatpush1.bf16.msra.mxu0 %v4684
    %6468 = vmatprep.subr.bf16.mxu0 %v4703
    %6469 = vmatpush1.bf16.msra.mxu0 %v4702
    %6470 = vmatprep.subr.bf16.mxu0 %v4721
    %6471 = vmatpush1.bf16.msra.mxu0 %v4720
    %6472 = vmatprep.subr.bf16.mxu0 %v4739
    %6473 = vmatpush1.bf16.msra.mxu0 %v4738
    %6474 = vmatprep.subr.bf16.mxu0 %v4757
    %6475 = vmatpush1.bf16.msra.mxu0 %v4756
    %6476 = vmatprep.subr.bf16.mxu0 %v4775
    %6477 = vmatpush1.bf16.msra.mxu0 %v4774
    %6478 = vmatprep.subr.bf16.mxu0 %v4793
    %6479 = vmatpush1.bf16.msra.mxu0 %v4792
    %6480 = vmatprep.subr.bf16.mxu0 %v4811
    %6481 = vmatpush1.bf16.msra.mxu0 %v4810
    %6482 = vmatprep.subr.bf16.mxu0 %v4829
    %6483 = vmatpush1.bf16.msra.mxu0 %v4828
    %6484 = vmatprep.subr.bf16.mxu0 %v4847
    %6485 = vmatpush1.bf16.msra.mxu0 %v4846
    %6486 = vmatprep.subr.bf16.mxu0 %v4865
    %6487 = vmatpush1.bf16.msra.mxu0 %v4864
    %6488 = vmatprep.subr.bf16.mxu0 %v4883
    %6489 = vmatpush1.bf16.msra.mxu0 %v4882
    %6490 = vmatprep.mubr.bf16.mxu0 %v155
    %6491 = vmatmul.mubr.bf16.gmra.mrb[0].mxu0 %v154
    %v6492 = vpop.f32.mrb[0].mxu0
    %v6493 = vadd.f32 %v6452, %v6492
    %v6494 = vpop.f32.mrb[0].mxu0
    %v6495 = vadd.f32 %v6454, %v6494
    %v6496 = vpop.f32.mrb[0].mxu0
    %v6497 = vpop.f32.mrb[0].mxu0
    %6498 = vdwg.mxu0
    %6499 = vmatprep.subr.bf16.mxu0 %v4901
    %6500 = vmatpush1.bf16.msra.mxu0 %v4900
    %6501 = vmatprep.subr.bf16.mxu0 %v4919
    %6502 = vmatpush1.bf16.msra.mxu0 %v4918
    %6503 = vmatprep.subr.bf16.mxu0 %v4937
    %6504 = vmatpush1.bf16.msra.mxu0 %v4936
    %6505 = vmatprep.subr.bf16.mxu0 %v4955
    %6506 = vmatpush1.bf16.msra.mxu0 %v4954
    %6507 = vmatprep.subr.bf16.mxu0 %v4973
    %6508 = vmatpush1.bf16.msra.mxu0 %v4972
    %6509 = vmatprep.subr.bf16.mxu0 %v4991
    %6510 = vmatpush1.bf16.msra.mxu0 %v4990
    %6511 = vmatprep.subr.bf16.mxu0 %v5009
    %6512 = vmatpush1.bf16.msra.mxu0 %v5008
    %6513 = vmatprep.subr.bf16.mxu0 %v5027
    %6514 = vmatpush1.bf16.msra.mxu0 %v5026
    %6515 = vmatprep.subr.bf16.mxu0 %v5045
    %6516 = vmatpush1.bf16.msra.mxu0 %v5044
    %6517 = vmatprep.subr.bf16.mxu0 %v5063
    %6518 = vmatpush1.bf16.msra.mxu0 %v5062
    %6519 = vmatprep.subr.bf16.mxu0 %v5081
    %6520 = vmatpush1.bf16.msra.mxu0 %v5080
    %6521 = vmatprep.subr.bf16.mxu0 %v5099
    %6522 = vmatpush1.bf16.msra.mxu0 %v5098
    %6523 = vmatprep.subr.bf16.mxu0 %v5117
    %6524 = vmatpush1.bf16.msra.mxu0 %v5116
    %6525 = vmatprep.subr.bf16.mxu0 %v5135
    %6526 = vmatpush1.bf16.msra.mxu0 %v5134
    %6527 = vmatprep.subr.bf16.mxu0 %v5153
    %6528 = vmatpush1.bf16.msra.mxu0 %v5152
    %6529 = vmatprep.subr.bf16.mxu0 %v5171
    %6530 = vmatpush1.bf16.msra.mxu0 %v5170
    %6531 = vmatprep.mubr.bf16.mxu0 %v157
    %6532 = vmatmul.mubr.bf16.gmra.mrb[0].mxu0 %v156
    %v6533 = vpop.f32.mrb[0].mxu0
    %v6534 = vadd.f32 %v6493, %v6533
    %v6535 = vpop.f32.mrb[0].mxu0
    %v6536 = vadd.f32 %v6495, %v6535
    %v6537 = vpop.f32.mrb[0].mxu0
    %v6538 = vpop.f32.mrb[0].mxu0
    %6539 = vdwg.mxu0
    %6540 = vmatprep.subr.bf16.mxu0 %v5189
    %6541 = vmatpush1.bf16.msra.mxu0 %v5188
    %6542 = vmatprep.subr.bf16.mxu0 %v5207
    %6543 = vmatpush1.bf16.msra.mxu0 %v5206
    %6544 = vmatprep.subr.bf16.mxu0 %v5225
    %6545 = vmatpush1.bf16.msra.mxu0 %v5224
    %6546 = vmatprep.subr.bf16.mxu0 %v5243
    %6547 = vmatpush1.bf16.msra.mxu0 %v5242
    %6548 = vmatprep.subr.bf16.mxu0 %v5261
    %6549 = vmatpush1.bf16.msra.mxu0 %v5260
    %6550 = vmatprep.subr.bf16.mxu0 %v5279
    %6551 = vmatpush1.bf16.msra.mxu0 %v5278
    %6552 = vmatprep.subr.bf16.mxu0 %v5297
    %6553 = vmatpush1.bf16.msra.mxu0 %v5296
    %6554 = vmatprep.subr.bf16.mxu0 %v5315
    %6555 = vmatpush1.bf16.msra.mxu0 %v5314
    %6556 = vmatprep.subr.bf16.mxu0 %v6367
    %6557 = vmatpush1.bf16.msra.mxu0 %v6364
    %6558 = vmatprep.subr.bf16.mxu0 0
    %6559 = vmatpush1.bf16.msra.mxu0 0
    %6560 = vmatprep.subr.bf16.mxu0 0
    %6561 = vmatpush1.bf16.msra.mxu0 0
    %6562 = vmatprep.subr.bf16.mxu0 0
    %6563 = vmatpush1.bf16.msra.mxu0 0
    %6564 = vmatprep.subr.bf16.mxu0 0
    %6565 = vmatpush1.bf16.msra.mxu0 0
    %6566 = vmatprep.subr.bf16.mxu0 0
    %6567 = vmatpush1.bf16.msra.mxu0 0
    %6568 = vmatprep.subr.bf16.mxu0 0
    %6569 = vmatpush1.bf16.msra.mxu0 0
    %6570 = vmatprep.subr.bf16.mxu0 0
    %6571 = vmatpush1.bf16.msra.mxu0 0
    %6572 = vmatprep.mubr.bf16.mxu0 %v6360
    %6573 = vmatmul.mubr.bf16.gmra.mrb[0].mxu0 %v158
    %v6574 = vpop.f32.mrb[0].mxu0
    %v6575 = vadd.f32 %v6534, %v6574
    %v6576 = vpop.f32.mrb[0].mxu0
    %v6577 = vadd.f32 %v6536, %v6576
    %v6578 = vpop.f32.mrb[0].mxu0
    %v6579 = vpop.f32.mrb[0].mxu0
    %6580 = vdwg.mxu0
    %6581 = vmatprep.subr.bf16.mxu0 %v4327
    %6582 = vmatpush1.bf16.msra.mxu0 %v4326
    %6583 = vmatprep.subr.bf16.mxu0 %v4345
    %6584 = vmatpush1.bf16.msra.mxu0 %v4344
    %6585 = vmatprep.subr.bf16.mxu0 %v4363
    %6586 = vmatpush1.bf16.msra.mxu0 %v4362
    %6587 = vmatprep.subr.bf16.mxu0 %v4381
    %6588 = vmatpush1.bf16.msra.mxu0 %v4380
    %6589 = vmatprep.subr.bf16.mxu0 %v4399
    %6590 = vmatpush1.bf16.msra.mxu0 %v4398
    %6591 = vmatprep.subr.bf16.mxu0 %v4417
    %6592 = vmatpush1.bf16.msra.mxu0 %v4416
    %6593 = vmatprep.subr.bf16.mxu0 %v4435
    %6594 = vmatpush1.bf16.msra.mxu0 %v4434
    %6595 = vmatprep.subr.bf16.mxu0 %v4453
    %6596 = vmatpush1.bf16.msra.mxu0 %v4452
    %6597 = vmatprep.subr.bf16.mxu0 %v4471
    %6598 = vmatpush1.bf16.msra.mxu0 %v4470
    %6599 = vmatprep.subr.bf16.mxu0 %v4489
    %6600 = vmatpush1.bf16.msra.mxu0 %v4488
    %6601 = vmatprep.subr.bf16.mxu0 %v4507
    %6602 = vmatpush1.bf16.msra.mxu0 %v4506
    %6603 = vmatprep.subr.bf16.mxu0 %v4525
    %6604 = vmatpush1.bf16.msra.mxu0 %v4524
    %6605 = vmatprep.subr.bf16.mxu0 %v4543
    %6606 = vmatpush1.bf16.msra.mxu0 %v4542
    %6607 = vmatprep.subr.bf16.mxu0 %v4561
    %6608 = vmatpush1.bf16.msra.mxu0 %v4560
    %6609 = vmatprep.subr.bf16.mxu0 %v4579
    %6610 = vmatpush1.bf16.msra.mxu0 %v4578
    %6611 = vmatprep.subr.bf16.mxu0 %v4597
    %6612 = vmatpush1.bf16.msra.mxu0 %v4596
    %6613 = vmatprep.mubr.bf16.mxu0 %v153
    %6614 = vmatmul.mubr.bf16.gmra.mrb[0].mxu0 %v152
    %v6615 = vpop.f32.mrb[0].mxu0
    %v6616 = vadd.f32 %v1194, %v6615
    %v6617 = vpop.f32.mrb[0].mxu0
    %v6618 = vadd.f32 %v1198, %v6617
    %v6619 = vpop.f32.mrb[0].mxu0
    %v6620 = vpop.f32.mrb[0].mxu0
    %6621 = vdwg.mxu0
    %6622 = vmatprep.subr.bf16.mxu0 %v4615
    %6623 = vmatpush1.bf16.msra.mxu0 %v4614
    %6624 = vmatprep.subr.bf16.mxu0 %v4633
    %6625 = vmatpush1.bf16.msra.mxu0 %v4632
    %6626 = vmatprep.subr.bf16.mxu0 %v4651
    %6627 = vmatpush1.bf16.msra.mxu0 %v4650
    %6628 = vmatprep.subr.bf16.mxu0 %v4669
    %6629 = vmatpush1.bf16.msra.mxu0 %v4668
    %6630 = vmatprep.subr.bf16.mxu0 %v4687
    %6631 = vmatpush1.bf16.msra.mxu0 %v4686
    %6632 = vmatprep.subr.bf16.mxu0 %v4705
    %6633 = vmatpush1.bf16.msra.mxu0 %v4704
    %6634 = vmatprep.subr.bf16.mxu0 %v4723
    %6635 = vmatpush1.bf16.msra.mxu0 %v4722
    %6636 = vmatprep.subr.bf16.mxu0 %v4741
    %6637 = vmatpush1.bf16.msra.mxu0 %v4740
    %6638 = vmatprep.subr.bf16.mxu0 %v4759
    %6639 = vmatpush1.bf16.msra.mxu0 %v4758
    %6640 = vmatprep.subr.bf16.mxu0 %v4777
    %6641 = vmatpush1.bf16.msra.mxu0 %v4776
    %6642 = vmatprep.subr.bf16.mxu0 %v4795
    %6643 = vmatpush1.bf16.msra.mxu0 %v4794
    %6644 = vmatprep.subr.bf16.mxu0 %v4813
    %6645 = vmatpush1.bf16.msra.mxu0 %v4812
    %6646 = vmatprep.subr.bf16.mxu0 %v4831
    %6647 = vmatpush1.bf16.msra.mxu0 %v4830
    %6648 = vmatprep.subr.bf16.mxu0 %v4849
    %6649 = vmatpush1.bf16.msra.mxu0 %v4848
    %6650 = vmatprep.subr.bf16.mxu0 %v4867
    %6651 = vmatpush1.bf16.msra.mxu0 %v4866
    %6652 = vmatprep.subr.bf16.mxu0 %v4885
    %6653 = vmatpush1.bf16.msra.mxu0 %v4884
    %6654 = vmatprep.mubr.bf16.mxu0 %v155
    %6655 = vmatmul.mubr.bf16.gmra.mrb[0].mxu0 %v154
    %v6656 = vpop.f32.mrb[0].mxu0
    %v6657 = vadd.f32 %v6616, %v6656
    %v6658 = vpop.f32.mrb[0].mxu0
    %v6659 = vadd.f32 %v6618, %v6658
    %v6660 = vpop.f32.mrb[0].mxu0
    %v6661 = vpop.f32.mrb[0].mxu0
    %6662 = vdwg.mxu0
    %6663 = vmatprep.subr.bf16.mxu0 %v4903
    %6664 = vmatpush1.bf16.msra.mxu0 %v4902
    %6665 = vmatprep.subr.bf16.mxu0 %v4921
    %6666 = vmatpush1.bf16.msra.mxu0 %v4920
    %6667 = vmatprep.subr.bf16.mxu0 %v4939
    %6668 = vmatpush1.bf16.msra.mxu0 %v4938
    %6669 = vmatprep.subr.bf16.mxu0 %v4957
    %6670 = vmatpush1.bf16.msra.mxu0 %v4956
    %6671 = vmatprep.subr.bf16.mxu0 %v4975
    %6672 = vmatpush1.bf16.msra.mxu0 %v4974
    %6673 = vmatprep.subr.bf16.mxu0 %v4993
    %6674 = vmatpush1.bf16.msra.mxu0 %v4992
    %6675 = vmatprep.subr.bf16.mxu0 %v5011
    %6676 = vmatpush1.bf16.msra.mxu0 %v5010
    %6677 = vmatprep.subr.bf16.mxu0 %v5029
    %6678 = vmatpush1.bf16.msra.mxu0 %v5028
    %6679 = vmatprep.subr.bf16.mxu0 %v5047
    %6680 = vmatpush1.bf16.msra.mxu0 %v5046
    %6681 = vmatprep.subr.bf16.mxu0 %v5065
    %6682 = vmatpush1.bf16.msra.mxu0 %v5064
    %6683 = vmatprep.subr.bf16.mxu0 %v5083
    %6684 = vmatpush1.bf16.msra.mxu0 %v5082
    %6685 = vmatprep.subr.bf16.mxu0 %v5101
    %6686 = vmatpush1.bf16.msra.mxu0 %v5100
    %6687 = vmatprep.subr.bf16.mxu0 %v5119
    %6688 = vmatpush1.bf16.msra.mxu0 %v5118
    %6689 = vmatprep.subr.bf16.mxu0 %v5137
    %6690 = vmatpush1.bf16.msra.mxu0 %v5136
    %6691 = vmatprep.subr.bf16.mxu0 %v5155
    %6692 = vmatpush1.bf16.msra.mxu0 %v5154
    %6693 = vmatprep.subr.bf16.mxu0 %v5173
    %6694 = vmatpush1.bf16.msra.mxu0 %v5172
    %6695 = vmatprep.mubr.bf16.mxu0 %v157
    %6696 = vmatmul.mubr.bf16.gmra.mrb[0].mxu0 %v156
    %v6697 = vpop.f32.mrb[0].mxu0
    %v6698 = vadd.f32 %v6657, %v6697
    %v6699 = vpop.f32.mrb[0].mxu0
    %v6700 = vadd.f32 %v6659, %v6699
    %v6701 = vpop.f32.mrb[0].mxu0
    %v6702 = vpop.f32.mrb[0].mxu0
    %6703 = vdwg.mxu0
    %6704 = vmatprep.subr.bf16.mxu0 %v5191
    %6705 = vmatpush1.bf16.msra.mxu0 %v5190
    %6706 = vmatprep.subr.bf16.mxu0 %v5209
    %6707 = vmatpush1.bf16.msra.mxu0 %v5208
    %6708 = vmatprep.subr.bf16.mxu0 %v5227
    %6709 = vmatpush1.bf16.msra.mxu0 %v5226
    %6710 = vmatprep.subr.bf16.mxu0 %v5245
    %6711 = vmatpush1.bf16.msra.mxu0 %v5244
    %6712 = vmatprep.subr.bf16.mxu0 %v5263
    %6713 = vmatpush1.bf16.msra.mxu0 %v5262
    %6714 = vmatprep.subr.bf16.mxu0 %v5281
    %6715 = vmatpush1.bf16.msra.mxu0 %v5280
    %6716 = vmatprep.subr.bf16.mxu0 %v5299
    %6717 = vmatpush1.bf16.msra.mxu0 %v5298
    %6718 = vmatprep.subr.bf16.mxu0 %v5317
    %6719 = vmatpush1.bf16.msra.mxu0 %v5316
    %6720 = vmatprep.subr.bf16.mxu0 %v6373
    %6721 = vmatpush1.bf16.msra.mxu0 %v6370
    %6722 = vmatprep.subr.bf16.mxu0 0
    %6723 = vmatpush1.bf16.msra.mxu0 0
    %6724 = vmatprep.subr.bf16.mxu0 0
    %6725 = vmatpush1.bf16.msra.mxu0 0
    %6726 = vmatprep.subr.bf16.mxu0 0
    %6727 = vmatpush1.bf16.msra.mxu0 0
    %6728 = vmatprep.subr.bf16.mxu0 0
    %6729 = vmatpush1.bf16.msra.mxu0 0
    %6730 = vmatprep.subr.bf16.mxu0 0
    %6731 = vmatpush1.bf16.msra.mxu0 0
    %6732 = vmatprep.subr.bf16.mxu0 0
    %6733 = vmatpush1.bf16.msra.mxu0 0
    %6734 = vmatprep.subr.bf16.mxu0 0
    %6735 = vmatpush1.bf16.msra.mxu0 0
    %6736 = vmatprep.mubr.bf16.mxu0 %v6360
    %6737 = vmatmul.mubr.bf16.gmra.mrb[0].mxu0 %v158
    %v6738 = vpop.f32.mrb[0].mxu0
    %v6739 = vadd.f32 %v6698, %v6738
    %v6740 = vpop.f32.mrb[0].mxu0
    %v6741 = vadd.f32 %v6700, %v6740
    %v6742 = vpop.f32.mrb[0].mxu0
    %v6743 = vpop.f32.mrb[0].mxu0
    %6744 = vdwg.mxu0
    %6745 = vmatprep.subr.bf16.mxu0 %v4329
    %6746 = vmatpush1.bf16.msra.mxu0 %v4328
    %6747 = vmatprep.subr.bf16.mxu0 %v4347
    %6748 = vmatpush1.bf16.msra.mxu0 %v4346
    %6749 = vmatprep.subr.bf16.mxu0 %v4365
    %6750 = vmatpush1.bf16.msra.mxu0 %v4364
    %6751 = vmatprep.subr.bf16.mxu0 %v4383
    %6752 = vmatpush1.bf16.msra.mxu0 %v4382
    %6753 = vmatprep.subr.bf16.mxu0 %v4401
    %6754 = vmatpush1.bf16.msra.mxu0 %v4400
    %6755 = vmatprep.subr.bf16.mxu0 %v4419
    %6756 = vmatpush1.bf16.msra.mxu0 %v4418
    %6757 = vmatprep.subr.bf16.mxu0 %v4437
    %6758 = vmatpush1.bf16.msra.mxu0 %v4436
    %6759 = vmatprep.subr.bf16.mxu0 %v4455
    %6760 = vmatpush1.bf16.msra.mxu0 %v4454
    %6761 = vmatprep.subr.bf16.mxu0 %v4473
    %6762 = vmatpush1.bf16.msra.mxu0 %v4472
    %6763 = vmatprep.subr.bf16.mxu0 %v4491
    %6764 = vmatpush1.bf16.msra.mxu0 %v4490
    %6765 = vmatprep.subr.bf16.mxu0 %v4509
    %6766 = vmatpush1.bf16.msra.mxu0 %v4508
    %6767 = vmatprep.subr.bf16.mxu0 %v4527
    %6768 = vmatpush1.bf16.msra.mxu0 %v4526
    %6769 = vmatprep.subr.bf16.mxu0 %v4545
    %6770 = vmatpush1.bf16.msra.mxu0 %v4544
    %6771 = vmatprep.subr.bf16.mxu0 %v4563
    %6772 = vmatpush1.bf16.msra.mxu0 %v4562
    %6773 = vmatprep.subr.bf16.mxu0 %v4581
    %6774 = vmatpush1.bf16.msra.mxu0 %v4580
    %6775 = vmatprep.subr.bf16.mxu0 %v4599
    %6776 = vmatpush1.bf16.msra.mxu0 %v4598
    %6777 = vmatprep.mubr.bf16.mxu0 %v153
    %6778 = vmatmul.mubr.bf16.gmra.mrb[0].mxu0 %v152
    %v6779 = vpop.f32.mrb[0].mxu0
    %v6780 = vadd.f32 %v1202, %v6779
    %v6781 = vpop.f32.mrb[0].mxu0
    %v6782 = vadd.f32 %v1206, %v6781
    %v6783 = vpop.f32.mrb[0].mxu0
    %v6784 = vpop.f32.mrb[0].mxu0
    %6785 = vdwg.mxu0
    %6786 = vmatprep.subr.bf16.mxu0 %v4617
    %6787 = vmatpush1.bf16.msra.mxu0 %v4616
    %6788 = vmatprep.subr.bf16.mxu0 %v4635
    %6789 = vmatpush1.bf16.msra.mxu0 %v4634
    %6790 = vmatprep.subr.bf16.mxu0 %v4653
    %6791 = vmatpush1.bf16.msra.mxu0 %v4652
    %6792 = vmatprep.subr.bf16.mxu0 %v4671
    %6793 = vmatpush1.bf16.msra.mxu0 %v4670
    %6794 = vmatprep.subr.bf16.mxu0 %v4689
    %6795 = vmatpush1.bf16.msra.mxu0 %v4688
    %6796 = vmatprep.subr.bf16.mxu0 %v4707
    %6797 = vmatpush1.bf16.msra.mxu0 %v4706
    %6798 = vmatprep.subr.bf16.mxu0 %v4725
    %6799 = vmatpush1.bf16.msra.mxu0 %v4724
    %6800 = vmatprep.subr.bf16.mxu0 %v4743
    %6801 = vmatpush1.bf16.msra.mxu0 %v4742
    %6802 = vmatprep.subr.bf16.mxu0 %v4761
    %6803 = vmatpush1.bf16.msra.mxu0 %v4760
    %6804 = vmatprep.subr.bf16.mxu0 %v4779
    %6805 = vmatpush1.bf16.msra.mxu0 %v4778
    %6806 = vmatprep.subr.bf16.mxu0 %v4797
    %6807 = vmatpush1.bf16.msra.mxu0 %v4796
    %6808 = vmatprep.subr.bf16.mxu0 %v4815
    %6809 = vmatpush1.bf16.msra.mxu0 %v4814
    %6810 = vmatprep.subr.bf16.mxu0 %v4833
    %6811 = vmatpush1.bf16.msra.mxu0 %v4832
    %6812 = vmatprep.subr.bf16.mxu0 %v4851
    %6813 = vmatpush1.bf16.msra.mxu0 %v4850
    %6814 = vmatprep.subr.bf16.mxu0 %v4869
    %6815 = vmatpush1.bf16.msra.mxu0 %v4868
    %6816 = vmatprep.subr.bf16.mxu0 %v4887
    %6817 = vmatpush1.bf16.msra.mxu0 %v4886
    %6818 = vmatprep.mubr.bf16.mxu0 %v155
    %6819 = vmatmul.mubr.bf16.gmra.mrb[0].mxu0 %v154
    %v6820 = vpop.f32.mrb[0].mxu0
    %v6821 = vadd.f32 %v6780, %v6820
    %v6822 = vpop.f32.mrb[0].mxu0
    %v6823 = vadd.f32 %v6782, %v6822
    %v6824 = vpop.f32.mrb[0].mxu0
    %v6825 = vpop.f32.mrb[0].mxu0
    %6826 = vdwg.mxu0
    %6827 = vmatprep.subr.bf16.mxu0 %v4905
    %6828 = vmatpush1.bf16.msra.mxu0 %v4904
    %6829 = vmatprep.subr.bf16.mxu0 %v4923
    %6830 = vmatpush1.bf16.msra.mxu0 %v4922
    %6831 = vmatprep.subr.bf16.mxu0 %v4941
    %6832 = vmatpush1.bf16.msra.mxu0 %v4940
    %6833 = vmatprep.subr.bf16.mxu0 %v4959
    %6834 = vmatpush1.bf16.msra.mxu0 %v4958
    %6835 = vmatprep.subr.bf16.mxu0 %v4977
    %6836 = vmatpush1.bf16.msra.mxu0 %v4976
    %6837 = vmatprep.subr.bf16.mxu0 %v4995
    %6838 = vmatpush1.bf16.msra.mxu0 %v4994
    %6839 = vmatprep.subr.bf16.mxu0 %v5013
    %6840 = vmatpush1.bf16.msra.mxu0 %v5012
    %6841 = vmatprep.subr.bf16.mxu0 %v5031
    %6842 = vmatpush1.bf16.msra.mxu0 %v5030
    %6843 = vmatprep.subr.bf16.mxu0 %v5049
    %6844 = vmatpush1.bf16.msra.mxu0 %v5048
    %6845 = vmatprep.subr.bf16.mxu0 %v5067
    %6846 = vmatpush1.bf16.msra.mxu0 %v5066
    %6847 = vmatprep.subr.bf16.mxu0 %v5085
    %6848 = vmatpush1.bf16.msra.mxu0 %v5084
    %6849 = vmatprep.subr.bf16.mxu0 %v5103
    %6850 = vmatpush1.bf16.msra.mxu0 %v5102
    %6851 = vmatprep.subr.bf16.mxu0 %v5121
    %6852 = vmatpush1.bf16.msra.mxu0 %v5120
    %6853 = vmatprep.subr.bf16.mxu0 %v5139
    %6854 = vmatpush1.bf16.msra.mxu0 %v5138
    %6855 = vmatprep.subr.bf16.mxu0 %v5157
    %6856 = vmatpush1.bf16.msra.mxu0 %v5156
    %6857 = vmatprep.subr.bf16.mxu0 %v5175
    %6858 = vmatpush1.bf16.msra.mxu0 %v5174
    %6859 = vmatprep.mubr.bf16.mxu0 %v157
    %6860 = vmatmul.mubr.bf16.gmra.mrb[0].mxu0 %v156
    %v6861 = vpop.f32.mrb[0].mxu0
    %v6862 = vadd.f32 %v6821, %v6861
    %v6863 = vpop.f32.mrb[0].mxu0
    %v6864 = vadd.f32 %v6823, %v6863
    %v6865 = vpop.f32.mrb[0].mxu0
    %v6866 = vpop.f32.mrb[0].mxu0
    %6867 = vdwg.mxu0
    %6868 = vmatprep.subr.bf16.mxu0 %v5193
    %6869 = vmatpush1.bf16.msra.mxu0 %v5192
    %6870 = vmatprep.subr.bf16.mxu0 %v5211
    %6871 = vmatpush1.bf16.msra.mxu0 %v5210
    %6872 = vmatprep.subr.bf16.mxu0 %v5229
    %6873 = vmatpush1.bf16.msra.mxu0 %v5228
    %6874 = vmatprep.subr.bf16.mxu0 %v5247
    %6875 = vmatpush1.bf16.msra.mxu0 %v5246
    %6876 = vmatprep.subr.bf16.mxu0 %v5265
    %6877 = vmatpush1.bf16.msra.mxu0 %v5264
    %6878 = vmatprep.subr.bf16.mxu0 %v5283
    %6879 = vmatpush1.bf16.msra.mxu0 %v5282
    %6880 = vmatprep.subr.bf16.mxu0 %v5301
    %6881 = vmatpush1.bf16.msra.mxu0 %v5300
    %6882 = vmatprep.subr.bf16.mxu0 %v5319
    %6883 = vmatpush1.bf16.msra.mxu0 %v5318
    %6884 = vmatprep.subr.bf16.mxu0 %v6379
    %6885 = vmatpush1.bf16.msra.mxu0 %v6376
    %6886 = vmatprep.subr.bf16.mxu0 0
    %6887 = vmatpush1.bf16.msra.mxu0 0
    %6888 = vmatprep.subr.bf16.mxu0 0
    %6889 = vmatpush1.bf16.msra.mxu0 0
    %6890 = vmatprep.subr.bf16.mxu0 0
    %6891 = vmatpush1.bf16.msra.mxu0 0
    %6892 = vmatprep.subr.bf16.mxu0 0
    %6893 = vmatpush1.bf16.msra.mxu0 0
    %6894 = vmatprep.subr.bf16.mxu0 0
    %6895 = vmatpush1.bf16.msra.mxu0 0
    %6896 = vmatprep.subr.bf16.mxu0 0
    %6897 = vmatpush1.bf16.msra.mxu0 0
    %6898 = vmatprep.subr.bf16.mxu0 0
    %6899 = vmatpush1.bf16.msra.mxu0 0
    %6900 = vmatprep.mubr.bf16.mxu0 %v6360
    %6901 = vmatmul.mubr.bf16.gmra.mrb[0].mxu0 %v158
    %v6902 = vpop.f32.mrb[0].mxu0
    %v6903 = vadd.f32 %v6862, %v6902
    %v6904 = vpop.f32.mrb[0].mxu0
    %v6905 = vadd.f32 %v6864, %v6904
    %v6906 = vpop.f32.mrb[0].mxu0
    %v6907 = vpop.f32.mrb[0].mxu0
    %6908 = vdwg.mxu0
    %6909 = vmatprep.subr.bf16.mxu0 %v4331
    %6910 = vmatpush1.bf16.msra.mxu0 %v4330
    %6911 = vmatprep.subr.bf16.mxu0 %v4349
    %6912 = vmatpush1.bf16.msra.mxu0 %v4348
    %6913 = vmatprep.subr.bf16.mxu0 %v4367
    %6914 = vmatpush1.bf16.msra.mxu0 %v4366
    %6915 = vmatprep.subr.bf16.mxu0 %v4385
    %6916 = vmatpush1.bf16.msra.mxu0 %v4384
    %6917 = vmatprep.subr.bf16.mxu0 %v4403
    %6918 = vmatpush1.bf16.msra.mxu0 %v4402
    %6919 = vmatprep.subr.bf16.mxu0 %v4421
    %6920 = vmatpush1.bf16.msra.mxu0 %v4420
    %6921 = vmatprep.subr.bf16.mxu0 %v4439
    %6922 = vmatpush1.bf16.msra.mxu0 %v4438
    %6923 = vmatprep.subr.bf16.mxu0 %v4457
    %6924 = vmatpush1.bf16.msra.mxu0 %v4456
    %6925 = vmatprep.subr.bf16.mxu0 %v4475
    %6926 = vmatpush1.bf16.msra.mxu0 %v4474
    %6927 = vmatprep.subr.bf16.mxu0 %v4493
    %6928 = vmatpush1.bf16.msra.mxu0 %v4492
    %6929 = vmatprep.subr.bf16.mxu0 %v4511
    %6930 = vmatpush1.bf16.msra.mxu0 %v4510
    %6931 = vmatprep.subr.bf16.mxu0 %v4529
    %6932 = vmatpush1.bf16.msra.mxu0 %v4528
    %6933 = vmatprep.subr.bf16.mxu0 %v4547
    %6934 = vmatpush1.bf16.msra.mxu0 %v4546
    %6935 = vmatprep.subr.bf16.mxu0 %v4565
    %6936 = vmatpush1.bf16.msra.mxu0 %v4564
    %6937 = vmatprep.subr.bf16.mxu0 %v4583
    %6938 = vmatpush1.bf16.msra.mxu0 %v4582
    %6939 = vmatprep.subr.bf16.mxu0 %v4601
    %6940 = vmatpush1.bf16.msra.mxu0 %v4600
    %6941 = vmatprep.mubr.bf16.mxu0 %v153
    %6942 = vmatmul.mubr.bf16.gmra.mrb[0].mxu0 %v152
    %v6943 = vpop.f32.mrb[0].mxu0
    %v6944 = vadd.f32 %v1210, %v6943
    %v6945 = vpop.f32.mrb[0].mxu0
    %v6946 = vadd.f32 %v1214, %v6945
    %v6947 = vpop.f32.mrb[0].mxu0
    %v6948 = vpop.f32.mrb[0].mxu0
    %6949 = vdwg.mxu0
    %6950 = vmatprep.subr.bf16.mxu0 %v4619
    %6951 = vmatpush1.bf16.msra.mxu0 %v4618
    %6952 = vmatprep.subr.bf16.mxu0 %v4637
    %6953 = vmatpush1.bf16.msra.mxu0 %v4636
    %6954 = vmatprep.subr.bf16.mxu0 %v4655
    %6955 = vmatpush1.bf16.msra.mxu0 %v4654
    %6956 = vmatprep.subr.bf16.mxu0 %v4673
    %6957 = vmatpush1.bf16.msra.mxu0 %v4672
    %6958 = vmatprep.subr.bf16.mxu0 %v4691
    %6959 = vmatpush1.bf16.msra.mxu0 %v4690
    %6960 = vmatprep.subr.bf16.mxu0 %v4709
    %6961 = vmatpush1.bf16.msra.mxu0 %v4708
    %6962 = vmatprep.subr.bf16.mxu0 %v4727
    %6963 = vmatpush1.bf16.msra.mxu0 %v4726
    %6964 = vmatprep.subr.bf16.mxu0 %v4745
    %6965 = vmatpush1.bf16.msra.mxu0 %v4744
    %6966 = vmatprep.subr.bf16.mxu0 %v4763
    %6967 = vmatpush1.bf16.msra.mxu0 %v4762
    %6968 = vmatprep.subr.bf16.mxu0 %v4781
    %6969 = vmatpush1.bf16.msra.mxu0 %v4780
    %6970 = vmatprep.subr.bf16.mxu0 %v4799
    %6971 = vmatpush1.bf16.msra.mxu0 %v4798
    %6972 = vmatprep.subr.bf16.mxu0 %v4817
    %6973 = vmatpush1.bf16.msra.mxu0 %v4816
    %6974 = vmatprep.subr.bf16.mxu0 %v4835
    %6975 = vmatpush1.bf16.msra.mxu0 %v4834
    %6976 = vmatprep.subr.bf16.mxu0 %v4853
    %6977 = vmatpush1.bf16.msra.mxu0 %v4852
    %6978 = vmatprep.subr.bf16.mxu0 %v4871
    %6979 = vmatpush1.bf16.msra.mxu0 %v4870
    %6980 = vmatprep.subr.bf16.mxu0 %v4889
    %6981 = vmatpush1.bf16.msra.mxu0 %v4888
    %6982 = vmatprep.mubr.bf16.mxu0 %v155
    %6983 = vmatmul.mubr.bf16.gmra.mrb[0].mxu0 %v154
    %v6984 = vpop.f32.mrb[0].mxu0
    %v6985 = vadd.f32 %v6944, %v6984
    %v6986 = vpop.f32.mrb[0].mxu0
    %v6987 = vadd.f32 %v6946, %v6986
    %v6988 = vpop.f32.mrb[0].mxu0
    %v6989 = vpop.f32.mrb[0].mxu0
    %6990 = vdwg.mxu0
    %6991 = vmatprep.subr.bf16.mxu0 %v4907
    %6992 = vmatpush1.bf16.msra.mxu0 %v4906
    %6993 = vmatprep.subr.bf16.mxu0 %v4925
    %6994 = vmatpush1.bf16.msra.mxu0 %v4924
    %6995 = vmatprep.subr.bf16.mxu0 %v4943
    %6996 = vmatpush1.bf16.msra.mxu0 %v4942
    %6997 = vmatprep.subr.bf16.mxu0 %v4961
    %6998 = vmatpush1.bf16.msra.mxu0 %v4960
    %6999 = vmatprep.subr.bf16.mxu0 %v4979
    %7000 = vmatpush1.bf16.msra.mxu0 %v4978
    %7001 = vmatprep.subr.bf16.mxu0 %v4997
    %7002 = vmatpush1.bf16.msra.mxu0 %v4996
    %7003 = vmatprep.subr.bf16.mxu0 %v5015
    %7004 = vmatpush1.bf16.msra.mxu0 %v5014
    %7005 = vmatprep.subr.bf16.mxu0 %v5033
    %7006 = vmatpush1.bf16.msra.mxu0 %v5032
    %7007 = vmatprep.subr.bf16.mxu0 %v5051
    %7008 = vmatpush1.bf16.msra.mxu0 %v5050
    %7009 = vmatprep.subr.bf16.mxu0 %v5069
    %7010 = vmatpush1.bf16.msra.mxu0 %v5068
    %7011 = vmatprep.subr.bf16.mxu0 %v5087
    %7012 = vmatpush1.bf16.msra.mxu0 %v5086
    %7013 = vmatprep.subr.bf16.mxu0 %v5105
    %7014 = vmatpush1.bf16.msra.mxu0 %v5104
    %7015 = vmatprep.subr.bf16.mxu0 %v5123
    %7016 = vmatpush1.bf16.msra.mxu0 %v5122
    %7017 = vmatprep.subr.bf16.mxu0 %v5141
    %7018 = vmatpush1.bf16.msra.mxu0 %v5140
    %7019 = vmatprep.subr.bf16.mxu0 %v5159
    %7020 = vmatpush1.bf16.msra.mxu0 %v5158
    %7021 = vmatprep.subr.bf16.mxu0 %v5177
    %7022 = vmatpush1.bf16.msra.mxu0 %v5176
    %7023 = vmatprep.mubr.bf16.mxu0 %v157
    %7024 = vmatmul.mubr.bf16.gmra.mrb[0].mxu0 %v156
    %v7025 = vpop.f32.mrb[0].mxu0
    %v7026 = vadd.f32 %v6985, %v7025
    %v7027 = vpop.f32.mrb[0].mxu0
    %v7028 = vadd.f32 %v6987, %v7027
    %v7029 = vpop.f32.mrb[0].mxu0
    %v7030 = vpop.f32.mrb[0].mxu0
    %7031 = vdwg.mxu0
    %7032 = vmatprep.subr.bf16.mxu0 %v5195
    %7033 = vmatpush1.bf16.msra.mxu0 %v5194
    %7034 = vmatprep.subr.bf16.mxu0 %v5213
    %7035 = vmatpush1.bf16.msra.mxu0 %v5212
    %7036 = vmatprep.subr.bf16.mxu0 %v5231
    %7037 = vmatpush1.bf16.msra.mxu0 %v5230
    %7038 = vmatprep.subr.bf16.mxu0 %v5249
    %7039 = vmatpush1.bf16.msra.mxu0 %v5248
    %7040 = vmatprep.subr.bf16.mxu0 %v5267
    %7041 = vmatpush1.bf16.msra.mxu0 %v5266
    %7042 = vmatprep.subr.bf16.mxu0 %v5285
    %7043 = vmatpush1.bf16.msra.mxu0 %v5284
    %7044 = vmatprep.subr.bf16.mxu0 %v5303
    %7045 = vmatpush1.bf16.msra.mxu0 %v5302
    %7046 = vmatprep.subr.bf16.mxu0 %v5321
    %7047 = vmatpush1.bf16.msra.mxu0 %v5320
    %7048 = vmatprep.subr.bf16.mxu0 %v6385
    %7049 = vmatpush1.bf16.msra.mxu0 %v6382
    %7050 = vmatprep.subr.bf16.mxu0 0
    %7051 = vmatpush1.bf16.msra.mxu0 0
    %7052 = vmatprep.subr.bf16.mxu0 0
    %7053 = vmatpush1.bf16.msra.mxu0 0
    %7054 = vmatprep.subr.bf16.mxu0 0
    %7055 = vmatpush1.bf16.msra.mxu0 0
    %7056 = vmatprep.subr.bf16.mxu0 0
    %7057 = vmatpush1.bf16.msra.mxu0 0
    %7058 = vmatprep.subr.bf16.mxu0 0
    %7059 = vmatpush1.bf16.msra.mxu0 0
    %7060 = vmatprep.subr.bf16.mxu0 0
    %7061 = vmatpush1.bf16.msra.mxu0 0
    %7062 = vmatprep.subr.bf16.mxu0 0
    %7063 = vmatpush1.bf16.msra.mxu0 0
    %7064 = vmatprep.mubr.bf16.mxu0 %v6360
    %7065 = vmatmul.mubr.bf16.gmra.mrb[0].mxu0 %v158
    %v7066 = vpop.f32.mrb[0].mxu0
    %v7067 = vadd.f32 %v7026, %v7066
    %v7068 = vpop.f32.mrb[0].mxu0
    %v7069 = vadd.f32 %v7028, %v7068
    %v7070 = vpop.f32.mrb[0].mxu0
    %v7071 = vpop.f32.mrb[0].mxu0
    %7072 = vdwg.mxu0
    %7073 = vmatprep.subr.bf16.mxu0 %v4333
    %7074 = vmatpush1.bf16.msra.mxu0 %v4332
    %7075 = vmatprep.subr.bf16.mxu0 %v4351
    %7076 = vmatpush1.bf16.msra.mxu0 %v4350
    %7077 = vmatprep.subr.bf16.mxu0 %v4369
    %7078 = vmatpush1.bf16.msra.mxu0 %v4368
    %7079 = vmatprep.subr.bf16.mxu0 %v4387
    %7080 = vmatpush1.bf16.msra.mxu0 %v4386
    %7081 = vmatprep.subr.bf16.mxu0 %v4405
    %7082 = vmatpush1.bf16.msra.mxu0 %v4404
    %7083 = vmatprep.subr.bf16.mxu0 %v4423
    %7084 = vmatpush1.bf16.msra.mxu0 %v4422
    %7085 = vmatprep.subr.bf16.mxu0 %v4441
    %7086 = vmatpush1.bf16.msra.mxu0 %v4440
    %7087 = vmatprep.subr.bf16.mxu0 %v4459
    %7088 = vmatpush1.bf16.msra.mxu0 %v4458
    %7089 = vmatprep.subr.bf16.mxu0 %v4477
    %7090 = vmatpush1.bf16.msra.mxu0 %v4476
    %7091 = vmatprep.subr.bf16.mxu0 %v4495
    %7092 = vmatpush1.bf16.msra.mxu0 %v4494
    %7093 = vmatprep.subr.bf16.mxu0 %v4513
    %7094 = vmatpush1.bf16.msra.mxu0 %v4512
    %7095 = vmatprep.subr.bf16.mxu0 %v4531
    %7096 = vmatpush1.bf16.msra.mxu0 %v4530
    %7097 = vmatprep.subr.bf16.mxu0 %v4549
    %7098 = vmatpush1.bf16.msra.mxu0 %v4548
    %7099 = vmatprep.subr.bf16.mxu0 %v4567
    %7100 = vmatpush1.bf16.msra.mxu0 %v4566
    %7101 = vmatprep.subr.bf16.mxu0 %v4585
    %7102 = vmatpush1.bf16.msra.mxu0 %v4584
    %7103 = vmatprep.subr.bf16.mxu0 %v4603
    %7104 = vmatpush1.bf16.msra.mxu0 %v4602
    %7105 = vmatprep.mubr.bf16.mxu0 %v153
    %7106 = vmatmul.mubr.bf16.gmra.mrb[0].mxu0 %v152
    %v7107 = vpop.f32.mrb[0].mxu0
    %v7108 = vadd.f32 %v1218, %v7107
    %v7109 = vpop.f32.mrb[0].mxu0
    %v7110 = vadd.f32 %v1222, %v7109
    %v7111 = vpop.f32.mrb[0].mxu0
    %v7112 = vpop.f32.mrb[0].mxu0
    %7113 = vdwg.mxu0
    %7114 = vmatprep.subr.bf16.mxu0 %v4621
    %7115 = vmatpush1.bf16.msra.mxu0 %v4620
    %7116 = vmatprep.subr.bf16.mxu0 %v4639
    %7117 = vmatpush1.bf16.msra.mxu0 %v4638
    %7118 = vmatprep.subr.bf16.mxu0 %v4657
    %7119 = vmatpush1.bf16.msra.mxu0 %v4656
    %7120 = vmatprep.subr.bf16.mxu0 %v4675
    %7121 = vmatpush1.bf16.msra.mxu0 %v4674
    %7122 = vmatprep.subr.bf16.mxu0 %v4693
    %7123 = vmatpush1.bf16.msra.mxu0 %v4692
    %7124 = vmatprep.subr.bf16.mxu0 %v4711
    %7125 = vmatpush1.bf16.msra.mxu0 %v4710
    %7126 = vmatprep.subr.bf16.mxu0 %v4729
    %7127 = vmatpush1.bf16.msra.mxu0 %v4728
    %7128 = vmatprep.subr.bf16.mxu0 %v4747
    %7129 = vmatpush1.bf16.msra.mxu0 %v4746
    %7130 = vmatprep.subr.bf16.mxu0 %v4765
    %7131 = vmatpush1.bf16.msra.mxu0 %v4764
    %7132 = vmatprep.subr.bf16.mxu0 %v4783
    %7133 = vmatpush1.bf16.msra.mxu0 %v4782
    %7134 = vmatprep.subr.bf16.mxu0 %v4801
    %7135 = vmatpush1.bf16.msra.mxu0 %v4800
    %7136 = vmatprep.subr.bf16.mxu0 %v4819
    %7137 = vmatpush1.bf16.msra.mxu0 %v4818
    %7138 = vmatprep.subr.bf16.mxu0 %v4837
    %7139 = vmatpush1.bf16.msra.mxu0 %v4836
    %7140 = vmatprep.subr.bf16.mxu0 %v4855
    %7141 = vmatpush1.bf16.msra.mxu0 %v4854
    %7142 = vmatprep.subr.bf16.mxu0 %v4873
    %7143 = vmatpush1.bf16.msra.mxu0 %v4872
    %7144 = vmatprep.subr.bf16.mxu0 %v4891
    %7145 = vmatpush1.bf16.msra.mxu0 %v4890
    %7146 = vmatprep.mubr.bf16.mxu0 %v155
    %7147 = vmatmul.mubr.bf16.gmra.mrb[0].mxu0 %v154
    %v7148 = vpop.f32.mrb[0].mxu0
    %v7149 = vadd.f32 %v7108, %v7148
    %v7150 = vpop.f32.mrb[0].mxu0
    %v7151 = vadd.f32 %v7110, %v7150
    %v7152 = vpop.f32.mrb[0].mxu0
    %v7153 = vpop.f32.mrb[0].mxu0
    %7154 = vdwg.mxu0
    %7155 = vmatprep.subr.bf16.mxu0 %v4909
    %7156 = vmatpush1.bf16.msra.mxu0 %v4908
    %7157 = vmatprep.subr.bf16.mxu0 %v4927
    %7158 = vmatpush1.bf16.msra.mxu0 %v4926
    %7159 = vmatprep.subr.bf16.mxu0 %v4945
    %7160 = vmatpush1.bf16.msra.mxu0 %v4944
    %7161 = vmatprep.subr.bf16.mxu0 %v4963
    %7162 = vmatpush1.bf16.msra.mxu0 %v4962
    %7163 = vmatprep.subr.bf16.mxu0 %v4981
    %7164 = vmatpush1.bf16.msra.mxu0 %v4980
    %7165 = vmatprep.subr.bf16.mxu0 %v4999
    %7166 = vmatpush1.bf16.msra.mxu0 %v4998
    %7167 = vmatprep.subr.bf16.mxu0 %v5017
    %7168 = vmatpush1.bf16.msra.mxu0 %v5016
    %7169 = vmatprep.subr.bf16.mxu0 %v5035
    %7170 = vmatpush1.bf16.msra.mxu0 %v5034
    %7171 = vmatprep.subr.bf16.mxu0 %v5053
    %7172 = vmatpush1.bf16.msra.mxu0 %v5052
    %7173 = vmatprep.subr.bf16.mxu0 %v5071
    %7174 = vmatpush1.bf16.msra.mxu0 %v5070
    %7175 = vmatprep.subr.bf16.mxu0 %v5089
    %7176 = vmatpush1.bf16.msra.mxu0 %v5088
    %7177 = vmatprep.subr.bf16.mxu0 %v5107
    %7178 = vmatpush1.bf16.msra.mxu0 %v5106
    %7179 = vmatprep.subr.bf16.mxu0 %v5125
    %7180 = vmatpush1.bf16.msra.mxu0 %v5124
    %7181 = vmatprep.subr.bf16.mxu0 %v5143
    %7182 = vmatpush1.bf16.msra.mxu0 %v5142
    %7183 = vmatprep.subr.bf16.mxu0 %v5161
    %7184 = vmatpush1.bf16.msra.mxu0 %v5160
    %7185 = vmatprep.subr.bf16.mxu0 %v5179
    %7186 = vmatpush1.bf16.msra.mxu0 %v5178
    %7187 = vmatprep.mubr.bf16.mxu0 %v157
    %7188 = vmatmul.mubr.bf16.gmra.mrb[0].mxu0 %v156
    %v7189 = vpop.f32.mrb[0].mxu0
    %v7190 = vadd.f32 %v7149, %v7189
    %v7191 = vpop.f32.mrb[0].mxu0
    %v7192 = vadd.f32 %v7151, %v7191
    %v7193 = vpop.f32.mrb[0].mxu0
    %v7194 = vpop.f32.mrb[0].mxu0
    %7195 = vdwg.mxu0
    %7196 = vmatprep.subr.bf16.mxu0 %v5197
    %7197 = vmatpush1.bf16.msra.mxu0 %v5196
    %7198 = vmatprep.subr.bf16.mxu0 %v5215
    %7199 = vmatpush1.bf16.msra.mxu0 %v5214
    %7200 = vmatprep.subr.bf16.mxu0 %v5233
    %7201 = vmatpush1.bf16.msra.mxu0 %v5232
    %7202 = vmatprep.subr.bf16.mxu0 %v5251
    %7203 = vmatpush1.bf16.msra.mxu0 %v5250
    %7204 = vmatprep.subr.bf16.mxu0 %v5269
    %7205 = vmatpush1.bf16.msra.mxu0 %v5268
    %7206 = vmatprep.subr.bf16.mxu0 %v5287
    %7207 = vmatpush1.bf16.msra.mxu0 %v5286
    %7208 = vmatprep.subr.bf16.mxu0 %v5305
    %7209 = vmatpush1.bf16.msra.mxu0 %v5304
    %7210 = vmatprep.subr.bf16.mxu0 %v5323
    %7211 = vmatpush1.bf16.msra.mxu0 %v5322
    %7212 = vmatprep.subr.bf16.mxu0 %v6391
    %7213 = vmatpush1.bf16.msra.mxu0 %v6388
    %7214 = vmatprep.subr.bf16.mxu0 0
    %7215 = vmatpush1.bf16.msra.mxu0 0
    %7216 = vmatprep.subr.bf16.mxu0 0
    %7217 = vmatpush1.bf16.msra.mxu0 0
    %7218 = vmatprep.subr.bf16.mxu0 0
    %7219 = vmatpush1.bf16.msra.mxu0 0
    %7220 = vmatprep.subr.bf16.mxu0 0
    %7221 = vmatpush1.bf16.msra.mxu0 0
    %7222 = vmatprep.subr.bf16.mxu0 0
    %7223 = vmatpush1.bf16.msra.mxu0 0
    %7224 = vmatprep.subr.bf16.mxu0 0
    %7225 = vmatpush1.bf16.msra.mxu0 0
    %7226 = vmatprep.subr.bf16.mxu0 0
    %7227 = vmatpush1.bf16.msra.mxu0 0
    %7228 = vmatprep.mubr.bf16.mxu0 %v6360
    %7229 = vmatmul.mubr.bf16.gmra.mrb[0].mxu0 %v158
    %v7230 = vpop.f32.mrb[0].mxu0
    %v7231 = vadd.f32 %v7190, %v7230
    %v7232 = vpop.f32.mrb[0].mxu0
    %v7233 = vadd.f32 %v7192, %v7232
    %v7234 = vpop.f32.mrb[0].mxu0
    %v7235 = vpop.f32.mrb[0].mxu0
    %7236 = vdwg.mxu0
    %7237 = vmatprep.subr.bf16.mxu0 %v4335
    %7238 = vmatpush1.bf16.msra.mxu0 %v4334
    %7239 = vmatprep.subr.bf16.mxu0 %v4353
    %7240 = vmatpush1.bf16.msra.mxu0 %v4352
    %7241 = vmatprep.subr.bf16.mxu0 %v4371
    %7242 = vmatpush1.bf16.msra.mxu0 %v4370
    %7243 = vmatprep.subr.bf16.mxu0 %v4389
    %7244 = vmatpush1.bf16.msra.mxu0 %v4388
    %7245 = vmatprep.subr.bf16.mxu0 %v4407
    %7246 = vmatpush1.bf16.msra.mxu0 %v4406
    %7247 = vmatprep.subr.bf16.mxu0 %v4425
    %7248 = vmatpush1.bf16.msra.mxu0 %v4424
    %7249 = vmatprep.subr.bf16.mxu0 %v4443
    %7250 = vmatpush1.bf16.msra.mxu0 %v4442
    %7251 = vmatprep.subr.bf16.mxu0 %v4461
    %7252 = vmatpush1.bf16.msra.mxu0 %v4460
    %7253 = vmatprep.subr.bf16.mxu0 %v4479
    %7254 = vmatpush1.bf16.msra.mxu0 %v4478
    %7255 = vmatprep.subr.bf16.mxu0 %v4497
    %7256 = vmatpush1.bf16.msra.mxu0 %v4496
    %7257 = vmatprep.subr.bf16.mxu0 %v4515
    %7258 = vmatpush1.bf16.msra.mxu0 %v4514
    %7259 = vmatprep.subr.bf16.mxu0 %v4533
    %7260 = vmatpush1.bf16.msra.mxu0 %v4532
    %7261 = vmatprep.subr.bf16.mxu0 %v4551
    %7262 = vmatpush1.bf16.msra.mxu0 %v4550
    %7263 = vmatprep.subr.bf16.mxu0 %v4569
    %7264 = vmatpush1.bf16.msra.mxu0 %v4568
    %7265 = vmatprep.subr.bf16.mxu0 %v4587
    %7266 = vmatpush1.bf16.msra.mxu0 %v4586
    %7267 = vmatprep.subr.bf16.mxu0 %v4605
    %7268 = vmatpush1.bf16.msra.mxu0 %v4604
    %7269 = vmatprep.mubr.bf16.mxu0 %v153
    %7270 = vmatmul.mubr.bf16.gmra.mrb[0].mxu0 %v152
    %v7271 = vpop.f32.mrb[0].mxu0
    %v7272 = vadd.f32 %v1226, %v7271
    %v7273 = vpop.f32.mrb[0].mxu0
    %v7274 = vadd.f32 %v1230, %v7273
    %v7275 = vpop.f32.mrb[0].mxu0
    %v7276 = vpop.f32.mrb[0].mxu0
    %7277 = vdwg.mxu0
    %7278 = vmatprep.subr.bf16.mxu0 %v4623
    %7279 = vmatpush1.bf16.msra.mxu0 %v4622
    %7280 = vmatprep.subr.bf16.mxu0 %v4641
    %7281 = vmatpush1.bf16.msra.mxu0 %v4640
    %7282 = vmatprep.subr.bf16.mxu0 %v4659
    %7283 = vmatpush1.bf16.msra.mxu0 %v4658
    %7284 = vmatprep.subr.bf16.mxu0 %v4677
    %7285 = vmatpush1.bf16.msra.mxu0 %v4676
    %7286 = vmatprep.subr.bf16.mxu0 %v4695
    %7287 = vmatpush1.bf16.msra.mxu0 %v4694
    %7288 = vmatprep.subr.bf16.mxu0 %v4713
    %7289 = vmatpush1.bf16.msra.mxu0 %v4712
    %7290 = vmatprep.subr.bf16.mxu0 %v4731
    %7291 = vmatpush1.bf16.msra.mxu0 %v4730
    %7292 = vmatprep.subr.bf16.mxu0 %v4749
    %7293 = vmatpush1.bf16.msra.mxu0 %v4748
    %7294 = vmatprep.subr.bf16.mxu0 %v4767
    %7295 = vmatpush1.bf16.msra.mxu0 %v4766
    %7296 = vmatprep.subr.bf16.mxu0 %v4785
    %7297 = vmatpush1.bf16.msra.mxu0 %v4784
    %7298 = vmatprep.subr.bf16.mxu0 %v4803
    %7299 = vmatpush1.bf16.msra.mxu0 %v4802
    %7300 = vmatprep.subr.bf16.mxu0 %v4821
    %7301 = vmatpush1.bf16.msra.mxu0 %v4820
    %7302 = vmatprep.subr.bf16.mxu0 %v4839
    %7303 = vmatpush1.bf16.msra.mxu0 %v4838
    %7304 = vmatprep.subr.bf16.mxu0 %v4857
    %7305 = vmatpush1.bf16.msra.mxu0 %v4856
    %7306 = vmatprep.subr.bf16.mxu0 %v4875
    %7307 = vmatpush1.bf16.msra.mxu0 %v4874
    %7308 = vmatprep.subr.bf16.mxu0 %v4893
    %7309 = vmatpush1.bf16.msra.mxu0 %v4892
    %7310 = vmatprep.mubr.bf16.mxu0 %v155
    %7311 = vmatmul.mubr.bf16.gmra.mrb[0].mxu0 %v154
    %v7312 = vpop.f32.mrb[0].mxu0
    %v7313 = vadd.f32 %v7272, %v7312
    %v7314 = vpop.f32.mrb[0].mxu0
    %v7315 = vadd.f32 %v7274, %v7314
    %v7316 = vpop.f32.mrb[0].mxu0
    %v7317 = vpop.f32.mrb[0].mxu0
    %7318 = vdwg.mxu0
    %7319 = vmatprep.subr.bf16.mxu0 %v4911
    %7320 = vmatpush1.bf16.msra.mxu0 %v4910
    %7321 = vmatprep.subr.bf16.mxu0 %v4929
    %7322 = vmatpush1.bf16.msra.mxu0 %v4928
    %7323 = vmatprep.subr.bf16.mxu0 %v4947
    %7324 = vmatpush1.bf16.msra.mxu0 %v4946
    %7325 = vmatprep.subr.bf16.mxu0 %v4965
    %7326 = vmatpush1.bf16.msra.mxu0 %v4964
    %7327 = vmatprep.subr.bf16.mxu0 %v4983
    %7328 = vmatpush1.bf16.msra.mxu0 %v4982
    %7329 = vmatprep.subr.bf16.mxu0 %v5001
    %7330 = vmatpush1.bf16.msra.mxu0 %v5000
    %7331 = vmatprep.subr.bf16.mxu0 %v5019
    %7332 = vmatpush1.bf16.msra.mxu0 %v5018
    %7333 = vmatprep.subr.bf16.mxu0 %v5037
    %7334 = vmatpush1.bf16.msra.mxu0 %v5036
    %7335 = vmatprep.subr.bf16.mxu0 %v5055
    %7336 = vmatpush1.bf16.msra.mxu0 %v5054
    %7337 = vmatprep.subr.bf16.mxu0 %v5073
    %7338 = vmatpush1.bf16.msra.mxu0 %v5072
    %7339 = vmatprep.subr.bf16.mxu0 %v5091
    %7340 = vmatpush1.bf16.msra.mxu0 %v5090
    %7341 = vmatprep.subr.bf16.mxu0 %v5109
    %7342 = vmatpush1.bf16.msra.mxu0 %v5108
    %7343 = vmatprep.subr.bf16.mxu0 %v5127
    %7344 = vmatpush1.bf16.msra.mxu0 %v5126
    %7345 = vmatprep.subr.bf16.mxu0 %v5145
    %7346 = vmatpush1.bf16.msra.mxu0 %v5144
    %7347 = vmatprep.subr.bf16.mxu0 %v5163
    %7348 = vmatpush1.bf16.msra.mxu0 %v5162
    %7349 = vmatprep.subr.bf16.mxu0 %v5181
    %7350 = vmatpush1.bf16.msra.mxu0 %v5180
    %7351 = vmatprep.mubr.bf16.mxu0 %v157
    %7352 = vmatmul.mubr.bf16.gmra.mrb[0].mxu0 %v156
    %v7353 = vpop.f32.mrb[0].mxu0
    %v7354 = vadd.f32 %v7313, %v7353
    %v7355 = vpop.f32.mrb[0].mxu0
    %v7356 = vadd.f32 %v7315, %v7355
    %v7357 = vpop.f32.mrb[0].mxu0
    %v7358 = vpop.f32.mrb[0].mxu0
    %7359 = vdwg.mxu0
    %7360 = vmatprep.subr.bf16.mxu0 %v5199
    %7361 = vmatpush1.bf16.msra.mxu0 %v5198
    %7362 = vmatprep.subr.bf16.mxu0 %v5217
    %7363 = vmatpush1.bf16.msra.mxu0 %v5216
    %7364 = vmatprep.subr.bf16.mxu0 %v5235
    %7365 = vmatpush1.bf16.msra.mxu0 %v5234
    %7366 = vmatprep.subr.bf16.mxu0 %v5253
    %7367 = vmatpush1.bf16.msra.mxu0 %v5252
    %7368 = vmatprep.subr.bf16.mxu0 %v5271
    %7369 = vmatpush1.bf16.msra.mxu0 %v5270
    %7370 = vmatprep.subr.bf16.mxu0 %v5289
    %7371 = vmatpush1.bf16.msra.mxu0 %v5288
    %7372 = vmatprep.subr.bf16.mxu0 %v5307
    %7373 = vmatpush1.bf16.msra.mxu0 %v5306
    %7374 = vmatprep.subr.bf16.mxu0 %v5325
    %7375 = vmatpush1.bf16.msra.mxu0 %v5324
    %7376 = vmatprep.subr.bf16.mxu0 %v6397
    %7377 = vmatpush1.bf16.msra.mxu0 %v6394
    %7378 = vmatprep.subr.bf16.mxu0 0
    %7379 = vmatpush1.bf16.msra.mxu0 0
    %7380 = vmatprep.subr.bf16.mxu0 0
    %7381 = vmatpush1.bf16.msra.mxu0 0
    %7382 = vmatprep.subr.bf16.mxu0 0
    %7383 = vmatpush1.bf16.msra.mxu0 0
    %7384 = vmatprep.subr.bf16.mxu0 0
    %7385 = vmatpush1.bf16.msra.mxu0 0
    %7386 = vmatprep.subr.bf16.mxu0 0
    %7387 = vmatpush1.bf16.msra.mxu0 0
    %7388 = vmatprep.subr.bf16.mxu0 0
    %7389 = vmatpush1.bf16.msra.mxu0 0
    %7390 = vmatprep.subr.bf16.mxu0 0
    %7391 = vmatpush1.bf16.msra.mxu0 0
    %7392 = vmatprep.mubr.bf16.mxu0 %v6360
    %7393 = vmatmul.mubr.bf16.gmra.mrb[0].mxu0 %v158
    %v7394 = vpop.f32.mrb[0].mxu0
    %v7395 = vadd.f32 %v7354, %v7394
    %v7396 = vpop.f32.mrb[0].mxu0
    %v7397 = vadd.f32 %v7356, %v7396
    %v7398 = vpop.f32.mrb[0].mxu0
    %v7399 = vpop.f32.mrb[0].mxu0
    %7400 = vdwg.mxu0
    %7401 = vmatprep.subr.bf16.mxu0 %v4337
    %7402 = vmatpush1.bf16.msra.mxu0 %v4336
    %7403 = vmatprep.subr.bf16.mxu0 %v4355
    %7404 = vmatpush1.bf16.msra.mxu0 %v4354
    %7405 = vmatprep.subr.bf16.mxu0 %v4373
    %7406 = vmatpush1.bf16.msra.mxu0 %v4372
    %7407 = vmatprep.subr.bf16.mxu0 %v4391
    %7408 = vmatpush1.bf16.msra.mxu0 %v4390
    %7409 = vmatprep.subr.bf16.mxu0 %v4409
    %7410 = vmatpush1.bf16.msra.mxu0 %v4408
    %7411 = vmatprep.subr.bf16.mxu0 %v4427
    %7412 = vmatpush1.bf16.msra.mxu0 %v4426
    %7413 = vmatprep.subr.bf16.mxu0 %v4445
    %7414 = vmatpush1.bf16.msra.mxu0 %v4444
    %7415 = vmatprep.subr.bf16.mxu0 %v4463
    %7416 = vmatpush1.bf16.msra.mxu0 %v4462
    %7417 = vmatprep.subr.bf16.mxu0 %v4481
    %7418 = vmatpush1.bf16.msra.mxu0 %v4480
    %7419 = vmatprep.subr.bf16.mxu0 %v4499
    %7420 = vmatpush1.bf16.msra.mxu0 %v4498
    %7421 = vmatprep.subr.bf16.mxu0 %v4517
    %7422 = vmatpush1.bf16.msra.mxu0 %v4516
    %7423 = vmatprep.subr.bf16.mxu0 %v4535
    %7424 = vmatpush1.bf16.msra.mxu0 %v4534
    %7425 = vmatprep.subr.bf16.mxu0 %v4553
    %7426 = vmatpush1.bf16.msra.mxu0 %v4552
    %7427 = vmatprep.subr.bf16.mxu0 %v4571
    %7428 = vmatpush1.bf16.msra.mxu0 %v4570
    %7429 = vmatprep.subr.bf16.mxu0 %v4589
    %7430 = vmatpush1.bf16.msra.mxu0 %v4588
    %7431 = vmatprep.subr.bf16.mxu0 %v4607
    %7432 = vmatpush1.bf16.msra.mxu0 %v4606
    %7433 = vmatprep.mubr.bf16.mxu0 %v153
    %7434 = vmatmul.mubr.bf16.gmra.mrb[0].mxu0 %v152
    %v7435 = vpop.f32.mrb[0].mxu0
    %v7436 = vadd.f32 %v1234, %v7435
    %v7437 = vpop.f32.mrb[0].mxu0
    %v7438 = vadd.f32 %v1238, %v7437
    %v7439 = vpop.f32.mrb[0].mxu0
    %v7440 = vpop.f32.mrb[0].mxu0
    %7441 = vdwg.mxu0
    %7442 = vmatprep.subr.bf16.mxu0 %v4625
    %7443 = vmatpush1.bf16.msra.mxu0 %v4624
    %7444 = vmatprep.subr.bf16.mxu0 %v4643
    %7445 = vmatpush1.bf16.msra.mxu0 %v4642
    %7446 = vmatprep.subr.bf16.mxu0 %v4661
    %7447 = vmatpush1.bf16.msra.mxu0 %v4660
    %7448 = vmatprep.subr.bf16.mxu0 %v4679
    %7449 = vmatpush1.bf16.msra.mxu0 %v4678
    %7450 = vmatprep.subr.bf16.mxu0 %v4697
    %7451 = vmatpush1.bf16.msra.mxu0 %v4696
    %7452 = vmatprep.subr.bf16.mxu0 %v4715
    %7453 = vmatpush1.bf16.msra.mxu0 %v4714
    %7454 = vmatprep.subr.bf16.mxu0 %v4733
    %7455 = vmatpush1.bf16.msra.mxu0 %v4732
    %7456 = vmatprep.subr.bf16.mxu0 %v4751
    %7457 = vmatpush1.bf16.msra.mxu0 %v4750
    %7458 = vmatprep.subr.bf16.mxu0 %v4769
    %7459 = vmatpush1.bf16.msra.mxu0 %v4768
    %7460 = vmatprep.subr.bf16.mxu0 %v4787
    %7461 = vmatpush1.bf16.msra.mxu0 %v4786
    %7462 = vmatprep.subr.bf16.mxu0 %v4805
    %7463 = vmatpush1.bf16.msra.mxu0 %v4804
    %7464 = vmatprep.subr.bf16.mxu0 %v4823
    %7465 = vmatpush1.bf16.msra.mxu0 %v4822
    %7466 = vmatprep.subr.bf16.mxu0 %v4841
    %7467 = vmatpush1.bf16.msra.mxu0 %v4840
    %7468 = vmatprep.subr.bf16.mxu0 %v4859
    %7469 = vmatpush1.bf16.msra.mxu0 %v4858
    %7470 = vmatprep.subr.bf16.mxu0 %v4877
    %7471 = vmatpush1.bf16.msra.mxu0 %v4876
    %7472 = vmatprep.subr.bf16.mxu0 %v4895
    %7473 = vmatpush1.bf16.msra.mxu0 %v4894
    %7474 = vmatprep.mubr.bf16.mxu0 %v155
    %7475 = vmatmul.mubr.bf16.gmra.mrb[0].mxu0 %v154
    %v7476 = vpop.f32.mrb[0].mxu0
    %v7477 = vadd.f32 %v7436, %v7476
    %v7478 = vpop.f32.mrb[0].mxu0
    %v7479 = vadd.f32 %v7438, %v7478
    %v7480 = vpop.f32.mrb[0].mxu0
    %v7481 = vpop.f32.mrb[0].mxu0
    %7482 = vdwg.mxu0
    %7483 = vmatprep.subr.bf16.mxu0 %v4913
    %7484 = vmatpush1.bf16.msra.mxu0 %v4912
    %7485 = vmatprep.subr.bf16.mxu0 %v4931
    %7486 = vmatpush1.bf16.msra.mxu0 %v4930
    %7487 = vmatprep.subr.bf16.mxu0 %v4949
    %7488 = vmatpush1.bf16.msra.mxu0 %v4948
    %7489 = vmatprep.subr.bf16.mxu0 %v4967
    %7490 = vmatpush1.bf16.msra.mxu0 %v4966
    %7491 = vmatprep.subr.bf16.mxu0 %v4985
    %7492 = vmatpush1.bf16.msra.mxu0 %v4984
    %7493 = vmatprep.subr.bf16.mxu0 %v5003
    %7494 = vmatpush1.bf16.msra.mxu0 %v5002
    %7495 = vmatprep.subr.bf16.mxu0 %v5021
    %7496 = vmatpush1.bf16.msra.mxu0 %v5020
    %7497 = vmatprep.subr.bf16.mxu0 %v5039
    %7498 = vmatpush1.bf16.msra.mxu0 %v5038
    %7499 = vmatprep.subr.bf16.mxu0 %v5057
    %7500 = vmatpush1.bf16.msra.mxu0 %v5056
    %7501 = vmatprep.subr.bf16.mxu0 %v5075
    %7502 = vmatpush1.bf16.msra.mxu0 %v5074
    %7503 = vmatprep.subr.bf16.mxu0 %v5093
    %7504 = vmatpush1.bf16.msra.mxu0 %v5092
    %7505 = vmatprep.subr.bf16.mxu0 %v5111
    %7506 = vmatpush1.bf16.msra.mxu0 %v5110
    %7507 = vmatprep.subr.bf16.mxu0 %v5129
    %7508 = vmatpush1.bf16.msra.mxu0 %v5128
    %7509 = vmatprep.subr.bf16.mxu0 %v5147
    %7510 = vmatpush1.bf16.msra.mxu0 %v5146
    %7511 = vmatprep.subr.bf16.mxu0 %v5165
    %7512 = vmatpush1.bf16.msra.mxu0 %v5164
    %7513 = vmatprep.subr.bf16.mxu0 %v5183
    %7514 = vmatpush1.bf16.msra.mxu0 %v5182
    %7515 = vmatprep.mubr.bf16.mxu0 %v157
    %7516 = vmatmul.mubr.bf16.gmra.mrb[0].mxu0 %v156
    %v7517 = vpop.f32.mrb[0].mxu0
    %v7518 = vadd.f32 %v7477, %v7517
    %v7519 = vpop.f32.mrb[0].mxu0
    %v7520 = vadd.f32 %v7479, %v7519
    %v7521 = vpop.f32.mrb[0].mxu0
    %v7522 = vpop.f32.mrb[0].mxu0
    %7523 = vdwg.mxu0
    %7524 = vmatprep.subr.bf16.mxu0 %v5201
    %7525 = vmatpush1.bf16.msra.mxu0 %v5200
    %7526 = vmatprep.subr.bf16.mxu0 %v5219
    %7527 = vmatpush1.bf16.msra.mxu0 %v5218
    %7528 = vmatprep.subr.bf16.mxu0 %v5237
    %7529 = vmatpush1.bf16.msra.mxu0 %v5236
    %7530 = vmatprep.subr.bf16.mxu0 %v5255
    %7531 = vmatpush1.bf16.msra.mxu0 %v5254
    %7532 = vmatprep.subr.bf16.mxu0 %v5273
    %7533 = vmatpush1.bf16.msra.mxu0 %v5272
    %7534 = vmatprep.subr.bf16.mxu0 %v5291
    %7535 = vmatpush1.bf16.msra.mxu0 %v5290
    %7536 = vmatprep.subr.bf16.mxu0 %v5309
    %7537 = vmatpush1.bf16.msra.mxu0 %v5308
    %7538 = vmatprep.subr.bf16.mxu0 %v5327
    %7539 = vmatpush1.bf16.msra.mxu0 %v5326
    %7540 = vmatprep.subr.bf16.mxu0 %v6403
    %7541 = vmatpush1.bf16.msra.mxu0 %v6400
    %7542 = vmatprep.subr.bf16.mxu0 0
    %7543 = vmatpush1.bf16.msra.mxu0 0
    %7544 = vmatprep.subr.bf16.mxu0 0
    %7545 = vmatpush1.bf16.msra.mxu0 0
    %7546 = vmatprep.subr.bf16.mxu0 0
    %7547 = vmatpush1.bf16.msra.mxu0 0
    %7548 = vmatprep.subr.bf16.mxu0 0
    %7549 = vmatpush1.bf16.msra.mxu0 0
    %7550 = vmatprep.subr.bf16.mxu0 0
    %7551 = vmatpush1.bf16.msra.mxu0 0
    %7552 = vmatprep.subr.bf16.mxu0 0
    %7553 = vmatpush1.bf16.msra.mxu0 0
    %7554 = vmatprep.subr.bf16.mxu0 0
    %7555 = vmatpush1.bf16.msra.mxu0 0
    %7556 = vmatprep.mubr.bf16.mxu0 %v6360
    %7557 = vmatmul.mubr.bf16.gmra.mrb[0].mxu0 %v158
    %v7558 = vpop.f32.mrb[0].mxu0
    %v7559 = vadd.f32 %v7518, %v7558
    %v7560 = vpop.f32.mrb[0].mxu0
    %v7561 = vadd.f32 %v7520, %v7560
    %v7562 = vpop.f32.mrb[0].mxu0
    %v7563 = vpop.f32.mrb[0].mxu0
    %7564 = vdwg.mxu0
    %7565 = vmatprep.subr.bf16.mxu0 %v4339
    %7566 = vmatpush1.bf16.msra.mxu0 %v4338
    %7567 = vmatprep.subr.bf16.mxu0 %v4357
    %7568 = vmatpush1.bf16.msra.mxu0 %v4356
    %7569 = vmatprep.subr.bf16.mxu0 %v4375
    %7570 = vmatpush1.bf16.msra.mxu0 %v4374
    %7571 = vmatprep.subr.bf16.mxu0 %v4393
    %7572 = vmatpush1.bf16.msra.mxu0 %v4392
    %7573 = vmatprep.subr.bf16.mxu0 %v4411
    %7574 = vmatpush1.bf16.msra.mxu0 %v4410
    %7575 = vmatprep.subr.bf16.mxu0 %v4429
    %7576 = vmatpush1.bf16.msra.mxu0 %v4428
    %7577 = vmatprep.subr.bf16.mxu0 %v4447
    %7578 = vmatpush1.bf16.msra.mxu0 %v4446
    %7579 = vmatprep.subr.bf16.mxu0 %v4465
    %7580 = vmatpush1.bf16.msra.mxu0 %v4464
    %7581 = vmatprep.subr.bf16.mxu0 %v4483
    %7582 = vmatpush1.bf16.msra.mxu0 %v4482
    %7583 = vmatprep.subr.bf16.mxu0 %v4501
    %7584 = vmatpush1.bf16.msra.mxu0 %v4500
    %7585 = vmatprep.subr.bf16.mxu0 %v4519
    %7586 = vmatpush1.bf16.msra.mxu0 %v4518
    %7587 = vmatprep.subr.bf16.mxu0 %v4537
    %7588 = vmatpush1.bf16.msra.mxu0 %v4536
    %7589 = vmatprep.subr.bf16.mxu0 %v4555
    %7590 = vmatpush1.bf16.msra.mxu0 %v4554
    %7591 = vmatprep.subr.bf16.mxu0 %v4573
    %7592 = vmatpush1.bf16.msra.mxu0 %v4572
    %7593 = vmatprep.subr.bf16.mxu0 %v4591
    %7594 = vmatpush1.bf16.msra.mxu0 %v4590
    %7595 = vmatprep.subr.bf16.mxu0 %v4609
    %7596 = vmatpush1.bf16.msra.mxu0 %v4608
    %7597 = vmatprep.mubr.bf16.mxu0 %v153
    %7598 = vmatmul.mubr.bf16.gmra.mrb[0].mxu0 %v152
    %v7599 = vpop.f32.mrb[0].mxu0
    %v7600 = vadd.f32 %v1242, %v7599
    %v7601 = vpop.f32.mrb[0].mxu0
    %v7602 = vadd.f32 %v1246, %v7601
    %v7603 = vpop.f32.mrb[0].mxu0
    %v7604 = vpop.f32.mrb[0].mxu0
    %7605 = vdwg.mxu0
    %7606 = vmatprep.subr.bf16.mxu0 %v4627
    %7607 = vmatpush1.bf16.msra.mxu0 %v4626
    %7608 = vmatprep.subr.bf16.mxu0 %v4645
    %7609 = vmatpush1.bf16.msra.mxu0 %v4644
    %7610 = vmatprep.subr.bf16.mxu0 %v4663
    %7611 = vmatpush1.bf16.msra.mxu0 %v4662
    %7612 = vmatprep.subr.bf16.mxu0 %v4681
    %7613 = vmatpush1.bf16.msra.mxu0 %v4680
    %7614 = vmatprep.subr.bf16.mxu0 %v4699
    %7615 = vmatpush1.bf16.msra.mxu0 %v4698
    %7616 = vmatprep.subr.bf16.mxu0 %v4717
    %7617 = vmatpush1.bf16.msra.mxu0 %v4716
    %7618 = vmatprep.subr.bf16.mxu0 %v4735
    %7619 = vmatpush1.bf16.msra.mxu0 %v4734
    %7620 = vmatprep.subr.bf16.mxu0 %v4753
    %7621 = vmatpush1.bf16.msra.mxu0 %v4752
    %7622 = vmatprep.subr.bf16.mxu0 %v4771
    %7623 = vmatpush1.bf16.msra.mxu0 %v4770
    %7624 = vmatprep.subr.bf16.mxu0 %v4789
    %7625 = vmatpush1.bf16.msra.mxu0 %v4788
    %7626 = vmatprep.subr.bf16.mxu0 %v4807
    %7627 = vmatpush1.bf16.msra.mxu0 %v4806
    %7628 = vmatprep.subr.bf16.mxu0 %v4825
    %7629 = vmatpush1.bf16.msra.mxu0 %v4824
    %7630 = vmatprep.subr.bf16.mxu0 %v4843
    %7631 = vmatpush1.bf16.msra.mxu0 %v4842
    %7632 = vmatprep.subr.bf16.mxu0 %v4861
    %7633 = vmatpush1.bf16.msra.mxu0 %v4860
    %7634 = vmatprep.subr.bf16.mxu0 %v4879
    %7635 = vmatpush1.bf16.msra.mxu0 %v4878
    %7636 = vmatprep.subr.bf16.mxu0 %v4897
    %7637 = vmatpush1.bf16.msra.mxu0 %v4896
    %7638 = vmatprep.mubr.bf16.mxu0 %v155
    %7639 = vmatmul.mubr.bf16.gmra.mrb[0].mxu0 %v154
    %v7640 = vpop.f32.mrb[0].mxu0
    %v7641 = vadd.f32 %v7600, %v7640
    %v7642 = vpop.f32.mrb[0].mxu0
    %v7643 = vadd.f32 %v7602, %v7642
    %v7644 = vpop.f32.mrb[0].mxu0
    %v7645 = vpop.f32.mrb[0].mxu0
    %7646 = vdwg.mxu0
    %7647 = vmatprep.subr.bf16.mxu0 %v4915
    %7648 = vmatpush1.bf16.msra.mxu0 %v4914
    %7649 = vmatprep.subr.bf16.mxu0 %v4933
    %7650 = vmatpush1.bf16.msra.mxu0 %v4932
    %7651 = vmatprep.subr.bf16.mxu0 %v4951
    %7652 = vmatpush1.bf16.msra.mxu0 %v4950
    %7653 = vmatprep.subr.bf16.mxu0 %v4969
    %7654 = vmatpush1.bf16.msra.mxu0 %v4968
    %7655 = vmatprep.subr.bf16.mxu0 %v4987
    %7656 = vmatpush1.bf16.msra.mxu0 %v4986
    %7657 = vmatprep.subr.bf16.mxu0 %v5005
    %7658 = vmatpush1.bf16.msra.mxu0 %v5004
    %7659 = vmatprep.subr.bf16.mxu0 %v5023
    %7660 = vmatpush1.bf16.msra.mxu0 %v5022
    %7661 = vmatprep.subr.bf16.mxu0 %v5041
    %7662 = vmatpush1.bf16.msra.mxu0 %v5040
    %7663 = vmatprep.subr.bf16.mxu0 %v5059
    %7664 = vmatpush1.bf16.msra.mxu0 %v5058
    %7665 = vmatprep.subr.bf16.mxu0 %v5077
    %7666 = vmatpush1.bf16.msra.mxu0 %v5076
    %7667 = vmatprep.subr.bf16.mxu0 %v5095
    %7668 = vmatpush1.bf16.msra.mxu0 %v5094
    %7669 = vmatprep.subr.bf16.mxu0 %v5113
    %7670 = vmatpush1.bf16.msra.mxu0 %v5112
    %7671 = vmatprep.subr.bf16.mxu0 %v5131
    %7672 = vmatpush1.bf16.msra.mxu0 %v5130
    %7673 = vmatprep.subr.bf16.mxu0 %v5149
    %7674 = vmatpush1.bf16.msra.mxu0 %v5148
    %7675 = vmatprep.subr.bf16.mxu0 %v5167
    %7676 = vmatpush1.bf16.msra.mxu0 %v5166
    %7677 = vmatprep.subr.bf16.mxu0 %v5185
    %7678 = vmatpush1.bf16.msra.mxu0 %v5184
    %7679 = vmatprep.mubr.bf16.mxu0 %v157
    %7680 = vmatmul.mubr.bf16.gmra.mrb[0].mxu0 %v156
    %v7681 = vpop.f32.mrb[0].mxu0
    %v7682 = vadd.f32 %v7641, %v7681
    %v7683 = vpop.f32.mrb[0].mxu0
    %v7684 = vadd.f32 %v7643, %v7683
    %v7685 = vpop.f32.mrb[0].mxu0
    %v7686 = vpop.f32.mrb[0].mxu0
    %7687 = vdwg.mxu0
    %7688 = vmatprep.subr.bf16.mxu0 %v5203
    %7689 = vmatpush1.bf16.msra.mxu0 %v5202
    %7690 = vmatprep.subr.bf16.mxu0 %v5221
    %7691 = vmatpush1.bf16.msra.mxu0 %v5220
    %7692 = vmatprep.subr.bf16.mxu0 %v5239
    %7693 = vmatpush1.bf16.msra.mxu0 %v5238
    %7694 = vmatprep.subr.bf16.mxu0 %v5257
    %7695 = vmatpush1.bf16.msra.mxu0 %v5256
    %7696 = vmatprep.subr.bf16.mxu0 %v5275
    %7697 = vmatpush1.bf16.msra.mxu0 %v5274
    %7698 = vmatprep.subr.bf16.mxu0 %v5293
    %7699 = vmatpush1.bf16.msra.mxu0 %v5292
    %7700 = vmatprep.subr.bf16.mxu0 %v5311
    %7701 = vmatpush1.bf16.msra.mxu0 %v5310
    %7702 = vmatprep.subr.bf16.mxu0 %v5329
    %7703 = vmatpush1.bf16.msra.mxu0 %v5328
    %7704 = vmatprep.subr.bf16.mxu0 %v6409
    %7705 = vmatpush1.bf16.msra.mxu0 %v6406
    %7706 = vmatprep.subr.bf16.mxu0 0
    %7707 = vmatpush1.bf16.msra.mxu0 0
    %7708 = vmatprep.subr.bf16.mxu0 0
    %7709 = vmatpush1.bf16.msra.mxu0 0
    %7710 = vmatprep.subr.bf16.mxu0 0
    %7711 = vmatpush1.bf16.msra.mxu0 0
    %7712 = vmatprep.subr.bf16.mxu0 0
    %7713 = vmatpush1.bf16.msra.mxu0 0
    %7714 = vmatprep.subr.bf16.mxu0 0
    %7715 = vmatpush1.bf16.msra.mxu0 0
    %7716 = vmatprep.subr.bf16.mxu0 0
    %7717 = vmatpush1.bf16.msra.mxu0 0
    %7718 = vmatprep.subr.bf16.mxu0 0
    %7719 = vmatpush1.bf16.msra.mxu0 0
    %7720 = vmatprep.mubr.bf16.mxu0 %v6360
    %7721 = vmatmul.mubr.bf16.gmra.mrb[0].mxu0 %v158
    %v7722 = vpop.f32.mrb[0].mxu0
    %v7723 = vadd.f32 %v7682, %v7722
    %v7724 = vpop.f32.mrb[0].mxu0
    %v7725 = vadd.f32 %v7684, %v7724
    %v7726 = vpop.f32.mrb[0].mxu0
    %v7727 = vpop.f32.mrb[0].mxu0
    %7728 = vdwg.mxu0
    %7729 = vmatprep.subr.bf16.mxu0 %v4341
    %7730 = vmatpush1.bf16.msra.mxu0 %v4340
    %7731 = vmatprep.subr.bf16.mxu0 %v4359
    %7732 = vmatpush1.bf16.msra.mxu0 %v4358
    %7733 = vmatprep.subr.bf16.mxu0 %v4377
    %7734 = vmatpush1.bf16.msra.mxu0 %v4376
    %7735 = vmatprep.subr.bf16.mxu0 %v4395
    %7736 = vmatpush1.bf16.msra.mxu0 %v4394
    %7737 = vmatprep.subr.bf16.mxu0 %v4413
    %7738 = vmatpush1.bf16.msra.mxu0 %v4412
    %7739 = vmatprep.subr.bf16.mxu0 %v4431
    %7740 = vmatpush1.bf16.msra.mxu0 %v4430
    %7741 = vmatprep.subr.bf16.mxu0 %v4449
    %7742 = vmatpush1.bf16.msra.mxu0 %v4448
    %7743 = vmatprep.subr.bf16.mxu0 %v4467
    %7744 = vmatpush1.bf16.msra.mxu0 %v4466
    %7745 = vmatprep.subr.bf16.mxu0 %v4485
    %7746 = vmatpush1.bf16.msra.mxu0 %v4484
    %7747 = vmatprep.subr.bf16.mxu0 %v4503
    %7748 = vmatpush1.bf16.msra.mxu0 %v4502
    %7749 = vmatprep.subr.bf16.mxu0 %v4521
    %7750 = vmatpush1.bf16.msra.mxu0 %v4520
    %7751 = vmatprep.subr.bf16.mxu0 %v4539
    %7752 = vmatpush1.bf16.msra.mxu0 %v4538
    %7753 = vmatprep.subr.bf16.mxu0 %v4557
    %7754 = vmatpush1.bf16.msra.mxu0 %v4556
    %7755 = vmatprep.subr.bf16.mxu0 %v4575
    %7756 = vmatpush1.bf16.msra.mxu0 %v4574
    %7757 = vmatprep.subr.bf16.mxu0 %v4593
    %7758 = vmatpush1.bf16.msra.mxu0 %v4592
    %7759 = vmatprep.subr.bf16.mxu0 %v4611
    %7760 = vmatpush1.bf16.msra.mxu0 %v4610
    %7761 = vmatprep.mubr.bf16.mxu0 %v153
    %7762 = vmatmul.mubr.bf16.gmra.mrb[0].mxu0 %v152
    %v7763 = vpop.f32.mrb[0].mxu0
    %v7764 = vadd.f32 %v1250, %v7763
    %v7765 = vpop.f32.mrb[0].mxu0
    %v7766 = vadd.f32 %v1254, %v7765
    %v7767 = vpop.f32.mrb[0].mxu0
    %v7768 = vpop.f32.mrb[0].mxu0
    %7769 = vdwg.mxu0
    %7770 = vmatprep.subr.bf16.mxu0 %v4629
    %7771 = vmatpush1.bf16.msra.mxu0 %v4628
    %7772 = vmatprep.subr.bf16.mxu0 %v4647
    %7773 = vmatpush1.bf16.msra.mxu0 %v4646
    %7774 = vmatprep.subr.bf16.mxu0 %v4665
    %7775 = vmatpush1.bf16.msra.mxu0 %v4664
    %7776 = vmatprep.subr.bf16.mxu0 %v4683
    %7777 = vmatpush1.bf16.msra.mxu0 %v4682
    %7778 = vmatprep.subr.bf16.mxu0 %v4701
    %7779 = vmatpush1.bf16.msra.mxu0 %v4700
    %7780 = vmatprep.subr.bf16.mxu0 %v4719
    %7781 = vmatpush1.bf16.msra.mxu0 %v4718
    %7782 = vmatprep.subr.bf16.mxu0 %v4737
    %7783 = vmatpush1.bf16.msra.mxu0 %v4736
    %7784 = vmatprep.subr.bf16.mxu0 %v4755
    %7785 = vmatpush1.bf16.msra.mxu0 %v4754
    %7786 = vmatprep.subr.bf16.mxu0 %v4773
    %7787 = vmatpush1.bf16.msra.mxu0 %v4772
    %7788 = vmatprep.subr.bf16.mxu0 %v4791
    %7789 = vmatpush1.bf16.msra.mxu0 %v4790
    %7790 = vmatprep.subr.bf16.mxu0 %v4809
    %7791 = vmatpush1.bf16.msra.mxu0 %v4808
    %7792 = vmatprep.subr.bf16.mxu0 %v4827
    %7793 = vmatpush1.bf16.msra.mxu0 %v4826
    %7794 = vmatprep.subr.bf16.mxu0 %v4845
    %7795 = vmatpush1.bf16.msra.mxu0 %v4844
    %7796 = vmatprep.subr.bf16.mxu0 %v4863
    %7797 = vmatpush1.bf16.msra.mxu0 %v4862
    %7798 = vmatprep.subr.bf16.mxu0 %v4881
    %7799 = vmatpush1.bf16.msra.mxu0 %v4880
    %7800 = vmatprep.subr.bf16.mxu0 %v4899
    %7801 = vmatpush1.bf16.msra.mxu0 %v4898
    %7802 = vmatprep.mubr.bf16.mxu0 %v155
    %7803 = vmatmul.mubr.bf16.gmra.mrb[0].mxu0 %v154
    %v7804 = vpop.f32.mrb[0].mxu0
    %v7805 = vadd.f32 %v7764, %v7804
    %v7806 = vpop.f32.mrb[0].mxu0
    %v7807 = vadd.f32 %v7766, %v7806
    %v7808 = vpop.f32.mrb[0].mxu0
    %v7809 = vpop.f32.mrb[0].mxu0
    %7810 = vdwg.mxu0
    %7811 = vmatprep.subr.bf16.mxu0 %v4917
    %7812 = vmatpush1.bf16.msra.mxu0 %v4916
    %7813 = vmatprep.subr.bf16.mxu0 %v4935
    %7814 = vmatpush1.bf16.msra.mxu0 %v4934
    %7815 = vmatprep.subr.bf16.mxu0 %v4953
    %7816 = vmatpush1.bf16.msra.mxu0 %v4952
    %7817 = vmatprep.subr.bf16.mxu0 %v4971
    %7818 = vmatpush1.bf16.msra.mxu0 %v4970
    %7819 = vmatprep.subr.bf16.mxu0 %v4989
    %7820 = vmatpush1.bf16.msra.mxu0 %v4988
    %7821 = vmatprep.subr.bf16.mxu0 %v5007
    %7822 = vmatpush1.bf16.msra.mxu0 %v5006
    %7823 = vmatprep.subr.bf16.mxu0 %v5025
    %7824 = vmatpush1.bf16.msra.mxu0 %v5024
    %7825 = vmatprep.subr.bf16.mxu0 %v5043
    %7826 = vmatpush1.bf16.msra.mxu0 %v5042
    %7827 = vmatprep.subr.bf16.mxu0 %v5061
    %7828 = vmatpush1.bf16.msra.mxu0 %v5060
    %7829 = vmatprep.subr.bf16.mxu0 %v5079
    %7830 = vmatpush1.bf16.msra.mxu0 %v5078
    %7831 = vmatprep.subr.bf16.mxu0 %v5097
    %7832 = vmatpush1.bf16.msra.mxu0 %v5096
    %7833 = vmatprep.subr.bf16.mxu0 %v5115
    %7834 = vmatpush1.bf16.msra.mxu0 %v5114
    %7835 = vmatprep.subr.bf16.mxu0 %v5133
    %7836 = vmatpush1.bf16.msra.mxu0 %v5132
    %7837 = vmatprep.subr.bf16.mxu0 %v5151
    %7838 = vmatpush1.bf16.msra.mxu0 %v5150
    %7839 = vmatprep.subr.bf16.mxu0 %v5169
    %7840 = vmatpush1.bf16.msra.mxu0 %v5168
    %7841 = vmatprep.subr.bf16.mxu0 %v5187
    %7842 = vmatpush1.bf16.msra.mxu0 %v5186
    %7843 = vmatprep.mubr.bf16.mxu0 %v157
    %7844 = vmatmul.mubr.bf16.gmra.mrb[0].mxu0 %v156
    %v7845 = vpop.f32.mrb[0].mxu0
    %v7846 = vadd.f32 %v7805, %v7845
    %v7847 = vpop.f32.mrb[0].mxu0
    %v7848 = vadd.f32 %v7807, %v7847
    %v7849 = vpop.f32.mrb[0].mxu0
    %v7850 = vpop.f32.mrb[0].mxu0
    %7851 = vdwg.mxu0
    %7852 = vmatprep.subr.bf16.mxu0 %v5205
    %7853 = vmatpush1.bf16.msra.mxu0 %v5204
    %7854 = vmatprep.subr.bf16.mxu0 %v5223
    %7855 = vmatpush1.bf16.msra.mxu0 %v5222
    %7856 = vmatprep.subr.bf16.mxu0 %v5241
    %7857 = vmatpush1.bf16.msra.mxu0 %v5240
    %7858 = vmatprep.subr.bf16.mxu0 %v5259
    %7859 = vmatpush1.bf16.msra.mxu0 %v5258
    %7860 = vmatprep.subr.bf16.mxu0 %v5277
    %7861 = vmatpush1.bf16.msra.mxu0 %v5276
    %7862 = vmatprep.subr.bf16.mxu0 %v5295
    %7863 = vmatpush1.bf16.msra.mxu0 %v5294
    %7864 = vmatprep.subr.bf16.mxu0 %v5313
    %7865 = vmatpush1.bf16.msra.mxu0 %v5312
    %7866 = vmatprep.subr.bf16.mxu0 %v5331
    %7867 = vmatpush1.bf16.msra.mxu0 %v5330
    %7868 = vmatprep.subr.bf16.mxu0 %v6415
    %7869 = vmatpush1.bf16.msra.mxu0 %v6412
    %7870 = vmatprep.subr.bf16.mxu0 0
    %7871 = vmatpush1.bf16.msra.mxu0 0
    %7872 = vmatprep.subr.bf16.mxu0 0
    %7873 = vmatpush1.bf16.msra.mxu0 0
    %7874 = vmatprep.subr.bf16.mxu0 0
    %7875 = vmatpush1.bf16.msra.mxu0 0
    %7876 = vmatprep.subr.bf16.mxu0 0
    %7877 = vmatpush1.bf16.msra.mxu0 0
    %7878 = vmatprep.subr.bf16.mxu0 0
    %7879 = vmatpush1.bf16.msra.mxu0 0
    %7880 = vmatprep.subr.bf16.mxu0 0
    %7881 = vmatpush1.bf16.msra.mxu0 0
    %7882 = vmatprep.subr.bf16.mxu0 0
    %7883 = vmatpush1.bf16.msra.mxu0 0
    %7884 = vmatprep.mubr.bf16.mxu0 %v6360
    %7885 = vmatmul.mubr.bf16.gmra.mrb[0].mxu0 %v158
    %v7886 = vpop.f32.mrb[0].mxu0
    %v7887 = vadd.f32 %v7846, %v7886
    %v7888 = vpop.f32.mrb[0].mxu0
    %v7889 = vadd.f32 %v7848, %v7888
    %v7890 = vpop.f32.mrb[0].mxu0
    %v7891 = vpop.f32.mrb[0].mxu0
    %7892 = vdwg.mxu0
    %v7893 = vmax.f32 %v6575, 0.0
    %v7894 = vmax.f32 %v6577, 0.0
    %v7895 = vmax.f32 %v6739, 0.0
    %v7896 = vmax.f32 %v6741, 0.0
    %v7897 = vmax.f32 %v6903, 0.0
    %v7898 = vmax.f32 %v6905, 0.0
    %v7899 = vmax.f32 %v7067, 0.0
    %v7900 = vmax.f32 %v7069, 0.0
    %v7901 = vmax.f32 %v7231, 0.0
    %v7902 = vmax.f32 %v7233, 0.0
    %v7903 = vmax.f32 %v7395, 0.0
    %v7904 = vmax.f32 %v7397, 0.0
    %v7905 = vmax.f32 %v7559, 0.0
    %v7906 = vmax.f32 %v7561, 0.0
    %v7907 = vmax.f32 %v7723, 0.0
    %v7908 = vmax.f32 %v7725, 0.0
    %v7909 = vmax.f32 %v7887, 0.0
    %v7910 = vmax.f32 %v7889, 0.0
    %v7911 = vpack.c.bf16 %v7893, %v7893
    %v7912 = vpack.c.bf16 %v7894, %v7894
    %v7913 = vpack.c.bf16 %v7895, %v7895
    %v7914 = vpack.c.bf16 %v7896, %v7896
    %v7915 = vpack.c.bf16 %v7897, %v7897
    %v7916 = vpack.c.bf16 %v7898, %v7898
    %v7917 = vpack.c.bf16 %v7899, %v7899
    %v7918 = vpack.c.bf16 %v7900, %v7900
    %v7919 = vpack.c.bf16 %v7901, %v7901
    %v7920 = vpack.c.bf16 %v7902, %v7902
    %v7921 = vpack.c.bf16 %v7903, %v7903
    %v7922 = vpack.c.bf16 %v7904, %v7904
    %v7923 = vpack.c.bf16 %v7905, %v7905
    %v7924 = vpack.c.bf16 %v7906, %v7906
    %v7925 = vpack.c.bf16 %v7907, %v7907
    %v7926 = vpack.c.bf16 %v7908, %v7908
    %v7927 = vpack.c.bf16 %v7909, %v7909
    %v7928 = vpack.c.bf16 %v7910, %v7910
    %v7929 = vld [vmem:[%s3] sm:$0xf]
    %v7930 = vld [vmem:[%s3 + $0x4] sm:$0xf]
    %v7931 = vld [vmem:[%s3 + $0x8] sm:$0xf]
    %v7932 = vld [vmem:[%s3 + $0xc] sm:$0xf]
    %v7933 = vld [vmem:[%s3 + $0x10] sm:$0xf]
    %v7934 = vld [vmem:[%s3 + $0x14] sm:$0xf]
    %v7935 = vld [vmem:[%s3 + $0x18] sm:$0xf]
    %v7936 = vld [vmem:[%s3 + $0x1c] sm:$0xf]
    %v7937 = vld [vmem:[%s3 + $0x20] sm:$0xf]
    %v7938 = vld [vmem:[%s3 + $0x24] sm:$0xf]
    %v7939 = vld [vmem:[%s3 + $0x28] sm:$0xf]
    %v7940 = vld [vmem:[%s3 + $0x2c] sm:$0xf]
    %v7941 = vld [vmem:[%s3 + $0x30] sm:$0xf]
    %v7942 = vld [vmem:[%s3 + $0x34] sm:$0xf]
    %v7943 = vld [vmem:[%s3 + $0x38] sm:$0xf]
    %v7944 = vld [vmem:[%s3 + $0x3c] sm:$0xf]
    %v7945 = vld [vmem:[%s3 + $0x40] sm:$0xf]
    %v7946 = vld [vmem:[%s3 + $0x44] sm:$0xf]
    %v7947 = vld [vmem:[%s3 + $0x48] sm:$0xf]
    %v7948 = vld [vmem:[%s3 + $0x4c] sm:$0xf]
    %v7949 = vld [vmem:[%s3 + $0x50] sm:$0xf]
    %v7950 = vld [vmem:[%s3 + $0x54] sm:$0xf]
    %v7951 = vld [vmem:[%s3 + $0x58] sm:$0xf]
    %v7952 = vld [vmem:[%s3 + $0x5c] sm:$0xf]
    %v7953 = vld [vmem:[%s3 + $0x60] sm:$0xf]
    %v7954 = vld [vmem:[%s3 + $0x64] sm:$0xf]
    %v7955 = vld [vmem:[%s3 + $0x68] sm:$0xf]
    %v7956 = vld [vmem:[%s3 + $0x6c] sm:$0xf]
    %v7957 = vld [vmem:[%s3 + $0x70] sm:$0xf]
    %v7958 = vld [vmem:[%s3 + $0x74] sm:$0xf]
    %v7959 = vld [vmem:[%s3 + $0x78] sm:$0xf]
    %v7960 = vld [vmem:[%s3 + $0x7c] sm:$0xf]
    %v7961 = vld [vmem:[#allocation8] sm:$0x1]
    %v7963 = vlaneseq
    %v7964 = vshrl.u32 %v7963, 7
    %v7965 = vsub.s32 0, %v7964
    %v7966 = vrot.slane %v7961, %v7965
    %v8000 = vunpack.c.l.b16 %v7929
    %v8001 = vunpack.c.l.b16 %v7930
    %v8002 = vunpack.c.l.b16 %v7931
    %v8003 = vunpack.c.l.b16 %v7932
    %v8004 = vunpack.c.l.b16 %v7933
    %v8005 = vunpack.c.l.b16 %v7934
    %v8006 = vunpack.c.l.b16 %v7935
    %v8007 = vunpack.c.l.b16 %v7936
    %v8008 = vunpack.c.l.b16 %v7937
    %v8009 = vunpack.c.l.b16 %v7938
    %v8010 = vunpack.c.l.b16 %v7939
    %v8011 = vunpack.c.l.b16 %v7940
    %v8012 = vunpack.c.l.b16 %v7941
    %v8013 = vunpack.c.l.b16 %v7942
    %v8014 = vunpack.c.l.b16 %v7943
    %v8015 = vunpack.c.l.b16 %v7944
    %v8016 = vunpack.c.l.b16 %v7945
    %v8017 = vunpack.c.l.b16 %v7946
    %v8018 = vunpack.c.l.b16 %v7947
    %v8019 = vunpack.c.l.b16 %v7948
    %v8020 = vunpack.c.l.b16 %v7949
    %v8021 = vunpack.c.l.b16 %v7950
    %v8022 = vunpack.c.l.b16 %v7951
    %v8023 = vunpack.c.l.b16 %v7952
    %v8024 = vunpack.c.l.b16 %v7953
    %v8025 = vunpack.c.l.b16 %v7954
    %v8026 = vunpack.c.l.b16 %v7955
    %v8027 = vunpack.c.l.b16 %v7956
    %v8028 = vunpack.c.l.b16 %v7957
    %v8029 = vunpack.c.l.b16 %v7958
    %v8030 = vunpack.c.l.b16 %v7959
    %v8031 = vunpack.c.l.b16 %v7960
    %v8032 = vpack.c.b16 %v8001, %v8000
    %v8033 = vpack.c.b16 %v8003, %v8002
    %v8034 = vpack.c.b16 %v8005, %v8004
    %v8035 = vpack.c.b16 %v8007, %v8006
    %v8036 = vpack.c.b16 %v8009, %v8008
    %v8037 = vpack.c.b16 %v8011, %v8010
    %v8038 = vpack.c.b16 %v8013, %v8012
    %v8039 = vpack.c.b16 %v8015, %v8014
    %v8040 = vpack.c.b16 %v8017, %v8016
    %v8041 = vpack.c.b16 %v8019, %v8018
    %v8042 = vpack.c.b16 %v8021, %v8020
    %v8043 = vpack.c.b16 %v8023, %v8022
    %v8044 = vpack.c.b16 %v8025, %v8024
    %v8045 = vpack.c.b16 %v8027, %v8026
    %v8046 = vpack.c.b16 %v8029, %v8028
    %v8047 = vpack.c.b16 %v8031, %v8030
    %8064 = vmatprep.subr.bf16.mxu0 0
    %8065 = vmatpush1.bf16.msra.mxu0 %v8032
    %8066 = vmatprep.subr.bf16.mxu0 0
    %8067 = vmatpush1.bf16.msra.mxu0 %v8033
    %8068 = vmatprep.subr.bf16.mxu0 0
    %8069 = vmatpush1.bf16.msra.mxu0 %v8034
    %8070 = vmatprep.subr.bf16.mxu0 0
    %8071 = vmatpush1.bf16.msra.mxu0 %v8035
    %8072 = vmatprep.subr.bf16.mxu0 0
    %8073 = vmatpush1.bf16.msra.mxu0 %v8036
    %8074 = vmatprep.subr.bf16.mxu0 0
    %8075 = vmatpush1.bf16.msra.mxu0 %v8037
    %8076 = vmatprep.subr.bf16.mxu0 0
    %8077 = vmatpush1.bf16.msra.mxu0 %v8038
    %8078 = vmatprep.subr.bf16.mxu0 0
    %8079 = vmatpush1.bf16.msra.mxu0 %v8039
    %8080 = vmatprep.subr.bf16.mxu0 0
    %8081 = vmatpush1.bf16.msra.mxu0 %v8040
    %8082 = vmatprep.subr.bf16.mxu0 0
    %8083 = vmatpush1.bf16.msra.mxu0 %v8041
    %8084 = vmatprep.subr.bf16.mxu0 0
    %8085 = vmatpush1.bf16.msra.mxu0 %v8042
    %8086 = vmatprep.subr.bf16.mxu0 0
    %8087 = vmatpush1.bf16.msra.mxu0 %v8043
    %8088 = vmatprep.subr.bf16.mxu0 0
    %8089 = vmatpush1.bf16.msra.mxu0 %v8044
    %8090 = vmatprep.subr.bf16.mxu0 0
    %8091 = vmatpush1.bf16.msra.mxu0 %v8045
    %8092 = vmatprep.subr.bf16.mxu0 0
    %8093 = vmatpush1.bf16.msra.mxu0 %v8046
    %8094 = vmatprep.subr.bf16.mxu0 0
    %8095 = vmatpush1.bf16.msra.mxu0 %v8047
    %8096 = vmatprep.mubr.bf16.mxu0 %v7928
    %8097 = vmatmul.mubr.bf16.gmra.mrb[0].mxu0 %v7927
    %v8098 = vpop.f32.mrb[0].mxu0
    %v8099 = vadd.f32 %v7966, %v8098
    %v8100 = vpop.f32.mrb[0].mxu0
    %v8101 = vpop.f32.mrb[0].mxu0
    %v8102 = vpop.f32.mrb[0].mxu0
    %8103 = vdwg.mxu0
    %v8104 = vmax.f32 %v8099, 0.0
    %v8105 = vpack.c.bf16 %v8104, %v8104
    %v8106 = vld [vmem:[%s5] sm:$0xff]
    %v8107 = vld [vmem:[%s5 + $0x8] sm:$0xff]
    %v8108 = vld [vmem:[%s5 + $0x10] sm:$0xff]
    %v8109 = vld [vmem:[%s5 + $0x18] sm:$0xff]
    %v8110 = vld [vmem:[%s5 + $0x20] sm:$0xff]
    %v8111 = vld [vmem:[%s5 + $0x28] sm:$0xff]
    %v8112 = vld [vmem:[%s5 + $0x30] sm:$0xff]
    %v8113 = vld [vmem:[%s5 + $0x38] sm:$0xff]
    %v8114 = vld [vmem:[%s5 + $0x40] sm:$0xff]
    %v8115 = vld [vmem:[%s5 + $0x48] sm:$0xff]
    %v8116 = vld [vmem:[%s5 + $0x50] sm:$0xff]
    %v8117 = vld [vmem:[%s5 + $0x58] sm:$0xff]
    %v8118 = vld [vmem:[%s5 + $0x60] sm:$0xff]
    %v8119 = vld [vmem:[%s5 + $0x68] sm:$0xff]
    %v8120 = vld [vmem:[%s5 + $0x70] sm:$0xff]
    %v8121 = vld [vmem:[%s5 + $0x78] sm:$0xff]
    %v8122 = vld [vmem:[%s5 + $0x80] sm:$0xff]
    %v8123 = vld [vmem:[%s5 + $0x88] sm:$0xff]
    %v8124 = vld [vmem:[%s5 + $0x90] sm:$0xff]
    %v8125 = vld [vmem:[%s5 + $0x98] sm:$0xff]
    %v8126 = vld [vmem:[%s5 + $0xa0] sm:$0xff]
    %v8127 = vld [vmem:[%s5 + $0xa8] sm:$0xff]
    %v8128 = vld [vmem:[%s5 + $0xb0] sm:$0xff]
    %v8129 = vld [vmem:[%s5 + $0xb8] sm:$0xff]
    %v8130 = vld [vmem:[%s5 + $0xc0] sm:$0xff]
    %v8131 = vld [vmem:[%s5 + $0xc8] sm:$0xff]
    %v8132 = vld [vmem:[%s5 + $0xd0] sm:$0xff]
    %v8133 = vld [vmem:[%s5 + $0xd8] sm:$0xff]
    %v8134 = vld [vmem:[%s5 + $0xe0] sm:$0xff]
    %v8135 = vld [vmem:[%s5 + $0xe8] sm:$0xff]
    %v8136 = vld [vmem:[%s5 + $0xf0] sm:$0xff]
    %v8137 = vld [vmem:[%s5 + $0xf8] sm:$0xff]
    %v8138 = vld [vmem:[%s5 + $0x100] sm:$0xff]
    %v8139 = vld [vmem:[%s5 + $0x108] sm:$0xff]
    %v8140 = vld [vmem:[%s5 + $0x110] sm:$0xff]
    %v8141 = vld [vmem:[%s5 + $0x118] sm:$0xff]
    %v8142 = vld [vmem:[%s5 + $0x120] sm:$0xff]
    %v8143 = vld [vmem:[%s5 + $0x128] sm:$0xff]
    %v8144 = vld [vmem:[%s5 + $0x130] sm:$0xff]
    %v8145 = vld [vmem:[%s5 + $0x138] sm:$0xff]
    %v8146 = vld [vmem:[%s5 + $0x140] sm:$0xff]
    %v8147 = vld [vmem:[%s5 + $0x148] sm:$0xff]
    %v8148 = vld [vmem:[%s5 + $0x150] sm:$0xff]
    %v8149 = vld [vmem:[%s5 + $0x158] sm:$0xff]
    %v8150 = vld [vmem:[%s5 + $0x160] sm:$0xff]
    %v8151 = vld [vmem:[%s5 + $0x168] sm:$0xff]
    %v8152 = vld [vmem:[%s5 + $0x170] sm:$0xff]
    %v8153 = vld [vmem:[%s5 + $0x178] sm:$0xff]
    %v8154 = vld [vmem:[%s5 + $0x180] sm:$0xff]
    %v8155 = vld [vmem:[%s5 + $0x188] sm:$0xff]
    %v8156 = vld [vmem:[%s5 + $0x190] sm:$0xff]
    %v8157 = vld [vmem:[%s5 + $0x198] sm:$0xff]
    %v8158 = vld [vmem:[%s5 + $0x1a0] sm:$0xff]
    %v8159 = vld [vmem:[%s5 + $0x1a8] sm:$0xff]
    %v8160 = vld [vmem:[%s5 + $0x1b0] sm:$0xff]
    %v8161 = vld [vmem:[%s5 + $0x1b8] sm:$0xff]
    %v8162 = vld [vmem:[%s5 + $0x1c0] sm:$0xff]
    %v8163 = vld [vmem:[%s5 + $0x1c8] sm:$0xff]
    %v8164 = vld [vmem:[%s5 + $0x1d0] sm:$0xff]
    %v8165 = vld [vmem:[%s5 + $0x1d8] sm:$0xff]
    %v8166 = vld [vmem:[%s5 + $0x1e0] sm:$0xff]
    %v8167 = vld [vmem:[%s5 + $0x1e8] sm:$0xff]
    %v8168 = vld [vmem:[%s5 + $0x1f0] sm:$0xff]
    %v8169 = vld [vmem:[%s5 + $0x1f8] sm:$0xff]
    %v8170 = vld [vmem:[%s5 + $0x200] sm:$0xff]
    %v8171 = vld [vmem:[%s5 + $0x208] sm:$0xff]
    %v8172 = vld [vmem:[%s5 + $0x210] sm:$0xff]
    %v8173 = vld [vmem:[%s5 + $0x218] sm:$0xff]
    %v8174 = vld [vmem:[%s5 + $0x220] sm:$0xff]
    %v8175 = vld [vmem:[%s5 + $0x228] sm:$0xff]
    %v8176 = vld [vmem:[%s5 + $0x230] sm:$0xff]
    %v8177 = vld [vmem:[%s5 + $0x238] sm:$0xff]
    %v8178 = vld [vmem:[%s5 + $0x240] sm:$0xff]
    %v8179 = vld [vmem:[%s5 + $0x248] sm:$0xff]
    %v8180 = vld [vmem:[%s5 + $0x250] sm:$0xff]
    %v8181 = vld [vmem:[%s5 + $0x258] sm:$0xff]
    %v8182 = vld [vmem:[%s5 + $0x260] sm:$0xff]
    %v8183 = vld [vmem:[%s5 + $0x268] sm:$0xff]
    %v8184 = vld [vmem:[%s5 + $0x270] sm:$0xff]
    %v8185 = vld [vmem:[%s5 + $0x278] sm:$0xff]
    %v8186 = vld [vmem:[%s5 + $0x280] sm:$0xff]
    %v8187 = vld [vmem:[%s5 + $0x288] sm:$0xff]
    %v8188 = vld [vmem:[%s5 + $0x290] sm:$0xff]
    %v8189 = vld [vmem:[%s5 + $0x298] sm:$0xff]
    %v8190 = vld [vmem:[%s5 + $0x2a0] sm:$0xff]
    %v8191 = vld [vmem:[%s5 + $0x2a8] sm:$0xff]
    %v8192 = vld [vmem:[%s5 + $0x2b0] sm:$0xff]
    %v8193 = vld [vmem:[%s5 + $0x2b8] sm:$0xff]
    %v8194 = vld [vmem:[%s5 + $0x2c0] sm:$0xff]
    %v8195 = vld [vmem:[%s5 + $0x2c8] sm:$0xff]
    %v8196 = vld [vmem:[%s5 + $0x2d0] sm:$0xff]
    %v8197 = vld [vmem:[%s5 + $0x2d8] sm:$0xff]
    %v8198 = vld [vmem:[%s5 + $0x2e0] sm:$0xff]
    %v8199 = vld [vmem:[%s5 + $0x2e8] sm:$0xff]
    %v8200 = vld [vmem:[%s5 + $0x2f0] sm:$0xff]
    %v8201 = vld [vmem:[%s5 + $0x2f8] sm:$0xff]
    %v8202 = vld [vmem:[%s5 + $0x300] sm:$0xff]
    %v8203 = vld [vmem:[%s5 + $0x308] sm:$0xff]
    %v8204 = vld [vmem:[%s5 + $0x310] sm:$0xff]
    %v8205 = vld [vmem:[%s5 + $0x318] sm:$0xff]
    %v8206 = vld [vmem:[%s5 + $0x320] sm:$0xff]
    %v8207 = vld [vmem:[%s5 + $0x328] sm:$0xff]
    %v8208 = vld [vmem:[%s5 + $0x330] sm:$0xff]
    %v8209 = vld [vmem:[%s5 + $0x338] sm:$0xff]
    %v8210 = vld [vmem:[%s5 + $0x340] sm:$0xff]
    %v8211 = vld [vmem:[%s5 + $0x348] sm:$0xff]
    %v8212 = vld [vmem:[%s5 + $0x350] sm:$0xff]
    %v8213 = vld [vmem:[%s5 + $0x358] sm:$0xff]
    %v8214 = vld [vmem:[%s5 + $0x360] sm:$0xff]
    %v8215 = vld [vmem:[%s5 + $0x368] sm:$0xff]
    %v8216 = vld [vmem:[%s5 + $0x370] sm:$0xff]
    %v8217 = vld [vmem:[%s5 + $0x378] sm:$0xff]
    %v8218 = vld [vmem:[%s5 + $0x380] sm:$0xff]
    %v8219 = vld [vmem:[%s5 + $0x388] sm:$0xff]
    %v8220 = vld [vmem:[%s5 + $0x390] sm:$0xff]
    %v8221 = vld [vmem:[%s5 + $0x398] sm:$0xff]
    %v8222 = vld [vmem:[%s5 + $0x3a0] sm:$0xff]
    %v8223 = vld [vmem:[%s5 + $0x3a8] sm:$0xff]
    %v8224 = vld [vmem:[%s5 + $0x3b0] sm:$0xff]
    %v8225 = vld [vmem:[%s5 + $0x3b8] sm:$0xff]
    %v8226 = vld [vmem:[%s5 + $0x3c0] sm:$0xff]
    %v8227 = vld [vmem:[%s5 + $0x3c8] sm:$0xff]
    %v8228 = vld [vmem:[%s5 + $0x3d0] sm:$0xff]
    %v8229 = vld [vmem:[%s5 + $0x3d8] sm:$0xff]
    %v8230 = vld [vmem:[%s5 + $0x3e0] sm:$0xff]
    %v8231 = vld [vmem:[%s5 + $0x3e8] sm:$0xff]
    %v8232 = vld [vmem:[%s5 + $0x3f0] sm:$0xff]
    %v8233 = vld [vmem:[%s5 + $0x3f8] sm:$0xff]
    %v8234 = vld [vmem:[%s5 + $0x400] sm:$0xff]
    %v8235 = vld [vmem:[%s5 + $0x408] sm:$0xff]
    %v8236 = vld [vmem:[%s5 + $0x410] sm:$0xff]
    %v8237 = vld [vmem:[%s5 + $0x418] sm:$0xff]
    %v8238 = vld [vmem:[%s5 + $0x420] sm:$0xff]
    %v8239 = vld [vmem:[%s5 + $0x428] sm:$0xff]
    %v8240 = vld [vmem:[%s5 + $0x430] sm:$0xff]
    %v8241 = vld [vmem:[%s5 + $0x438] sm:$0xff]
    %v8242 = vld [vmem:[%s5 + $0x440] sm:$0xff]
    %v8243 = vld [vmem:[%s5 + $0x448] sm:$0xff]
    %v8244 = vld [vmem:[%s5 + $0x450] sm:$0xff]
    %v8245 = vld [vmem:[%s5 + $0x458] sm:$0xff]
    %v8246 = vld [vmem:[%s5 + $0x460] sm:$0xff]
    %v8247 = vld [vmem:[%s5 + $0x468] sm:$0xff]
    %v8248 = vld [vmem:[%s5 + $0x470] sm:$0xff]
    %v8249 = vld [vmem:[%s5 + $0x478] sm:$0xff]
    %v8250 = vld [vmem:[%s5 + $0x480] sm:$0xff]
    %v8251 = vld [vmem:[%s5 + $0x488] sm:$0xff]
    %v8252 = vld [vmem:[%s5 + $0x490] sm:$0xff]
    %v8253 = vld [vmem:[%s5 + $0x498] sm:$0xff]
    %v8254 = vld [vmem:[%s5 + $0x4a0] sm:$0xff]
    %v8255 = vld [vmem:[%s5 + $0x4a8] sm:$0xff]
    %v8256 = vld [vmem:[%s5 + $0x4b0] sm:$0xff]
    %v8257 = vld [vmem:[%s5 + $0x4b8] sm:$0xff]
    %v8258 = vld [vmem:[%s5 + $0x4c0] sm:$0xff]
    %v8259 = vld [vmem:[%s5 + $0x4c8] sm:$0xff]
    %v8260 = vld [vmem:[%s5 + $0x4d0] sm:$0xff]
    %v8261 = vld [vmem:[%s5 + $0x4d8] sm:$0xff]
    %v8262 = vld [vmem:[%s5 + $0x4e0] sm:$0xff]
    %v8263 = vld [vmem:[%s5 + $0x4e8] sm:$0xff]
    %v8264 = vld [vmem:[%s5 + $0x4f0] sm:$0xff]
    %v8265 = vld [vmem:[%s5 + $0x4f8] sm:$0xff]
    %v8266 = vld [vmem:[%s5 + $0x500] sm:$0xff]
    %v8267 = vld [vmem:[%s5 + $0x508] sm:$0xff]
    %v8268 = vld [vmem:[%s5 + $0x510] sm:$0xff]
    %v8269 = vld [vmem:[%s5 + $0x518] sm:$0xff]
    %v8270 = vld [vmem:[%s5 + $0x520] sm:$0xff]
    %v8271 = vld [vmem:[%s5 + $0x528] sm:$0xff]
    %v8272 = vld [vmem:[%s5 + $0x530] sm:$0xff]
    %v8273 = vld [vmem:[%s5 + $0x538] sm:$0xff]
    %v8274 = vld [vmem:[%s5 + $0x540] sm:$0xff]
    %v8275 = vld [vmem:[%s5 + $0x548] sm:$0xff]
    %v8276 = vld [vmem:[%s5 + $0x550] sm:$0xff]
    %v8277 = vld [vmem:[%s5 + $0x558] sm:$0xff]
    %v8278 = vld [vmem:[%s5 + $0x560] sm:$0xff]
    %v8279 = vld [vmem:[%s5 + $0x568] sm:$0xff]
    %v8280 = vld [vmem:[%s5 + $0x570] sm:$0xff]
    %v8281 = vld [vmem:[%s5 + $0x578] sm:$0xff]
    %v8282 = vld [vmem:[%s5 + $0x580] sm:$0xff]
    %v8283 = vld [vmem:[%s5 + $0x588] sm:$0xff]
    %v8284 = vld [vmem:[%s5 + $0x590] sm:$0xff]
    %v8285 = vld [vmem:[%s5 + $0x598] sm:$0xff]
    %v8286 = vld [vmem:[%s5 + $0x5a0] sm:$0xff]
    %v8287 = vld [vmem:[%s5 + $0x5a8] sm:$0xff]
    %v8288 = vld [vmem:[%s5 + $0x5b0] sm:$0xff]
    %v8289 = vld [vmem:[%s5 + $0x5b8] sm:$0xff]
    %v8290 = vld [vmem:[%s5 + $0x5c0] sm:$0xff]
    %v8291 = vld [vmem:[%s5 + $0x5c8] sm:$0xff]
    %v8292 = vld [vmem:[%s5 + $0x5d0] sm:$0xff]
    %v8293 = vld [vmem:[%s5 + $0x5d8] sm:$0xff]
    %v8294 = vld [vmem:[%s5 + $0x5e0] sm:$0xff]
    %v8295 = vld [vmem:[%s5 + $0x5e8] sm:$0xff]
    %v8296 = vld [vmem:[%s5 + $0x5f0] sm:$0xff]
    %v8297 = vld [vmem:[%s5 + $0x5f8] sm:$0xff]
    %v8298 = vld [vmem:[%s5 + $0x600] sm:$0xff]
    %v8299 = vld [vmem:[%s5 + $0x608] sm:$0xff]
    %v8300 = vld [vmem:[%s5 + $0x610] sm:$0xff]
    %v8301 = vld [vmem:[%s5 + $0x618] sm:$0xff]
    %v8302 = vld [vmem:[%s5 + $0x620] sm:$0xff]
    %v8303 = vld [vmem:[%s5 + $0x628] sm:$0xff]
    %v8304 = vld [vmem:[%s5 + $0x630] sm:$0xff]
    %v8305 = vld [vmem:[%s5 + $0x638] sm:$0xff]
    %v8306 = vld [vmem:[%s5 + $0x640] sm:$0xff]
    %v8307 = vld [vmem:[%s5 + $0x648] sm:$0xff]
    %v8308 = vld [vmem:[%s5 + $0x650] sm:$0xff]
    %v8309 = vld [vmem:[%s5 + $0x658] sm:$0xff]
    %v8310 = vld [vmem:[%s5 + $0x660] sm:$0xff]
    %v8311 = vld [vmem:[%s5 + $0x668] sm:$0xff]
    %v8312 = vld [vmem:[%s5 + $0x670] sm:$0xff]
    %v8313 = vld [vmem:[%s5 + $0x678] sm:$0xff]
    %v8314 = vld [vmem:[%s5 + $0x680] sm:$0xff]
    %v8315 = vld [vmem:[%s5 + $0x688] sm:$0xff]
    %v8316 = vld [vmem:[%s5 + $0x690] sm:$0xff]
    %v8317 = vld [vmem:[%s5 + $0x698] sm:$0xff]
    %v8318 = vld [vmem:[%s5 + $0x6a0] sm:$0xff]
    %v8319 = vld [vmem:[%s5 + $0x6a8] sm:$0xff]
    %v8320 = vld [vmem:[%s5 + $0x6b0] sm:$0xff]
    %v8321 = vld [vmem:[%s5 + $0x6b8] sm:$0xff]
    %v8322 = vld [vmem:[%s5 + $0x6c0] sm:$0xff]
    %v8323 = vld [vmem:[%s5 + $0x6c8] sm:$0xff]
    %v8324 = vld [vmem:[%s5 + $0x6d0] sm:$0xff]
    %v8325 = vld [vmem:[%s5 + $0x6d8] sm:$0xff]
    %v8326 = vld [vmem:[%s5 + $0x6e0] sm:$0xff]
    %v8327 = vld [vmem:[%s5 + $0x6e8] sm:$0xff]
    %v8328 = vld [vmem:[%s5 + $0x6f0] sm:$0xff]
    %v8329 = vld [vmem:[%s5 + $0x6f8] sm:$0xff]
    %v8330 = vld [vmem:[%s5 + $0x700] sm:$0xff]
    %v8331 = vld [vmem:[%s5 + $0x708] sm:$0xff]
    %v8332 = vld [vmem:[%s5 + $0x710] sm:$0xff]
    %v8333 = vld [vmem:[%s5 + $0x718] sm:$0xff]
    %v8334 = vld [vmem:[%s5 + $0x720] sm:$0xff]
    %v8335 = vld [vmem:[%s5 + $0x728] sm:$0xff]
    %v8336 = vld [vmem:[%s5 + $0x730] sm:$0xff]
    %v8337 = vld [vmem:[%s5 + $0x738] sm:$0xff]
    %v8338 = vld [vmem:[%s5 + $0x740] sm:$0xff]
    %v8339 = vld [vmem:[%s5 + $0x748] sm:$0xff]
    %v8340 = vld [vmem:[%s5 + $0x750] sm:$0xff]
    %v8341 = vld [vmem:[%s5 + $0x758] sm:$0xff]
    %v8342 = vld [vmem:[%s5 + $0x760] sm:$0xff]
    %v8343 = vld [vmem:[%s5 + $0x768] sm:$0xff]
    %v8344 = vld [vmem:[%s5 + $0x770] sm:$0xff]
    %v8345 = vld [vmem:[%s5 + $0x778] sm:$0xff]
    %v8346 = vld [vmem:[%s5 + $0x780] sm:$0xff]
    %v8347 = vld [vmem:[%s5 + $0x788] sm:$0xff]
    %v8348 = vld [vmem:[%s5 + $0x790] sm:$0xff]
    %v8349 = vld [vmem:[%s5 + $0x798] sm:$0xff]
    %v8350 = vld [vmem:[%s5 + $0x7a0] sm:$0xff]
    %v8351 = vld [vmem:[%s5 + $0x7a8] sm:$0xff]
    %v8352 = vld [vmem:[%s5 + $0x7b0] sm:$0xff]
    %v8353 = vld [vmem:[%s5 + $0x7b8] sm:$0xff]
    %v8354 = vld [vmem:[%s5 + $0x7c0] sm:$0xff]
    %v8355 = vld [vmem:[%s5 + $0x7c8] sm:$0xff]
    %v8356 = vld [vmem:[%s5 + $0x7d0] sm:$0xff]
    %v8357 = vld [vmem:[%s5 + $0x7d8] sm:$0xff]
    %v8358 = vld [vmem:[%s5 + $0x7e0] sm:$0xff]
    %v8359 = vld [vmem:[%s5 + $0x7e8] sm:$0xff]
    %v8360 = vld [vmem:[%s5 + $0x7f0] sm:$0xff]
    %v8361 = vld [vmem:[%s5 + $0x7f8] sm:$0xff]
    %v8362 = vld [vmem:[#allocation10] sm:$0x3]
    %v8364 = vlaneseq
    %v8365 = vshrl.u32 %v8364, 7
    %v8366 = vsub.s32 0, %v8365
    %v8367 = vrot.slane %v8362, %v8366
    %v8368 = vlaneseq
    %v8369 = vshrl.u32 %v8368, 7
    %v8370 = vsub.s32 1, %v8369
    %v8371 = vrot.slane %v8362, %v8370
    %v8630 = vunpack.c.l.b16 %v8106
    %v8631 = vunpack.c.h.b16 %v8106
    %v8632 = vunpack.c.l.b16 %v8107
    %v8633 = vunpack.c.h.b16 %v8107
    %v8634 = vunpack.c.l.b16 %v8108
    %v8635 = vunpack.c.h.b16 %v8108
    %v8636 = vunpack.c.l.b16 %v8109
    %v8637 = vunpack.c.h.b16 %v8109
    %v8638 = vunpack.c.l.b16 %v8110
    %v8639 = vunpack.c.h.b16 %v8110
    %v8640 = vunpack.c.l.b16 %v8111
    %v8641 = vunpack.c.h.b16 %v8111
    %v8642 = vunpack.c.l.b16 %v8112
    %v8643 = vunpack.c.h.b16 %v8112
    %v8644 = vunpack.c.l.b16 %v8113
    %v8645 = vunpack.c.h.b16 %v8113
    %v8646 = vunpack.c.l.b16 %v8114
    %v8647 = vunpack.c.h.b16 %v8114
    %v8648 = vunpack.c.l.b16 %v8115
    %v8649 = vunpack.c.h.b16 %v8115
    %v8650 = vunpack.c.l.b16 %v8116
    %v8651 = vunpack.c.h.b16 %v8116
    %v8652 = vunpack.c.l.b16 %v8117
    %v8653 = vunpack.c.h.b16 %v8117
    %v8654 = vunpack.c.l.b16 %v8118
    %v8655 = vunpack.c.h.b16 %v8118
    %v8656 = vunpack.c.l.b16 %v8119
    %v8657 = vunpack.c.h.b16 %v8119
    %v8658 = vunpack.c.l.b16 %v8120
    %v8659 = vunpack.c.h.b16 %v8120
    %v8660 = vunpack.c.l.b16 %v8121
    %v8661 = vunpack.c.h.b16 %v8121
    %v8662 = vunpack.c.l.b16 %v8122
    %v8663 = vunpack.c.h.b16 %v8122
    %v8664 = vunpack.c.l.b16 %v8123
    %v8665 = vunpack.c.h.b16 %v8123
    %v8666 = vunpack.c.l.b16 %v8124
    %v8667 = vunpack.c.h.b16 %v8124
    %v8668 = vunpack.c.l.b16 %v8125
    %v8669 = vunpack.c.h.b16 %v8125
    %v8670 = vunpack.c.l.b16 %v8126
    %v8671 = vunpack.c.h.b16 %v8126
    %v8672 = vunpack.c.l.b16 %v8127
    %v8673 = vunpack.c.h.b16 %v8127
    %v8674 = vunpack.c.l.b16 %v8128
    %v8675 = vunpack.c.h.b16 %v8128
    %v8676 = vunpack.c.l.b16 %v8129
    %v8677 = vunpack.c.h.b16 %v8129
    %v8678 = vunpack.c.l.b16 %v8130
    %v8679 = vunpack.c.h.b16 %v8130
    %v8680 = vunpack.c.l.b16 %v8131
    %v8681 = vunpack.c.h.b16 %v8131
    %v8682 = vunpack.c.l.b16 %v8132
    %v8683 = vunpack.c.h.b16 %v8132
    %v8684 = vunpack.c.l.b16 %v8133
    %v8685 = vunpack.c.h.b16 %v8133
    %v8686 = vunpack.c.l.b16 %v8134
    %v8687 = vunpack.c.h.b16 %v8134
    %v8688 = vunpack.c.l.b16 %v8135
    %v8689 = vunpack.c.h.b16 %v8135
    %v8690 = vunpack.c.l.b16 %v8136
    %v8691 = vunpack.c.h.b16 %v8136
    %v8692 = vunpack.c.l.b16 %v8137
    %v8693 = vunpack.c.h.b16 %v8137
    %v8694 = vunpack.c.l.b16 %v8138
    %v8695 = vunpack.c.h.b16 %v8138
    %v8696 = vunpack.c.l.b16 %v8139
    %v8697 = vunpack.c.h.b16 %v8139
    %v8698 = vunpack.c.l.b16 %v8140
    %v8699 = vunpack.c.h.b16 %v8140
    %v8700 = vunpack.c.l.b16 %v8141
    %v8701 = vunpack.c.h.b16 %v8141
    %v8702 = vunpack.c.l.b16 %v8142
    %v8703 = vunpack.c.h.b16 %v8142
    %v8704 = vunpack.c.l.b16 %v8143
    %v8705 = vunpack.c.h.b16 %v8143
    %v8706 = vunpack.c.l.b16 %v8144
    %v8707 = vunpack.c.h.b16 %v8144
    %v8708 = vunpack.c.l.b16 %v8145
    %v8709 = vunpack.c.h.b16 %v8145
    %v8710 = vunpack.c.l.b16 %v8146
    %v8711 = vunpack.c.h.b16 %v8146
    %v8712 = vunpack.c.l.b16 %v8147
    %v8713 = vunpack.c.h.b16 %v8147
    %v8714 = vunpack.c.l.b16 %v8148
    %v8715 = vunpack.c.h.b16 %v8148
    %v8716 = vunpack.c.l.b16 %v8149
    %v8717 = vunpack.c.h.b16 %v8149
    %v8718 = vunpack.c.l.b16 %v8150
    %v8719 = vunpack.c.h.b16 %v8150
    %v8720 = vunpack.c.l.b16 %v8151
    %v8721 = vunpack.c.h.b16 %v8151
    %v8722 = vunpack.c.l.b16 %v8152
    %v8723 = vunpack.c.h.b16 %v8152
    %v8724 = vunpack.c.l.b16 %v8153
    %v8725 = vunpack.c.h.b16 %v8153
    %v8726 = vunpack.c.l.b16 %v8154
    %v8727 = vunpack.c.h.b16 %v8154
    %v8728 = vunpack.c.l.b16 %v8155
    %v8729 = vunpack.c.h.b16 %v8155
    %v8730 = vunpack.c.l.b16 %v8156
    %v8731 = vunpack.c.h.b16 %v8156
    %v8732 = vunpack.c.l.b16 %v8157
    %v8733 = vunpack.c.h.b16 %v8157
    %v8734 = vunpack.c.l.b16 %v8158
    %v8735 = vunpack.c.h.b16 %v8158
    %v8736 = vunpack.c.l.b16 %v8159
    %v8737 = vunpack.c.h.b16 %v8159
    %v8738 = vunpack.c.l.b16 %v8160
    %v8739 = vunpack.c.h.b16 %v8160
    %v8740 = vunpack.c.l.b16 %v8161
    %v8741 = vunpack.c.h.b16 %v8161
    %v8742 = vunpack.c.l.b16 %v8162
    %v8743 = vunpack.c.h.b16 %v8162
    %v8744 = vunpack.c.l.b16 %v8163
    %v8745 = vunpack.c.h.b16 %v8163
    %v8746 = vunpack.c.l.b16 %v8164
    %v8747 = vunpack.c.h.b16 %v8164
    %v8748 = vunpack.c.l.b16 %v8165
    %v8749 = vunpack.c.h.b16 %v8165
    %v8750 = vunpack.c.l.b16 %v8166
    %v8751 = vunpack.c.h.b16 %v8166
    %v8752 = vunpack.c.l.b16 %v8167
    %v8753 = vunpack.c.h.b16 %v8167
    %v8754 = vunpack.c.l.b16 %v8168
    %v8755 = vunpack.c.h.b16 %v8168
    %v8756 = vunpack.c.l.b16 %v8169
    %v8757 = vunpack.c.h.b16 %v8169
    %v8758 = vunpack.c.l.b16 %v8170
    %v8759 = vunpack.c.h.b16 %v8170
    %v8760 = vunpack.c.l.b16 %v8171
    %v8761 = vunpack.c.h.b16 %v8171
    %v8762 = vunpack.c.l.b16 %v8172
    %v8763 = vunpack.c.h.b16 %v8172
    %v8764 = vunpack.c.l.b16 %v8173
    %v8765 = vunpack.c.h.b16 %v8173
    %v8766 = vunpack.c.l.b16 %v8174
    %v8767 = vunpack.c.h.b16 %v8174
    %v8768 = vunpack.c.l.b16 %v8175
    %v8769 = vunpack.c.h.b16 %v8175
    %v8770 = vunpack.c.l.b16 %v8176
    %v8771 = vunpack.c.h.b16 %v8176
    %v8772 = vunpack.c.l.b16 %v8177
    %v8773 = vunpack.c.h.b16 %v8177
    %v8774 = vunpack.c.l.b16 %v8178
    %v8775 = vunpack.c.h.b16 %v8178
    %v8776 = vunpack.c.l.b16 %v8179
    %v8777 = vunpack.c.h.b16 %v8179
    %v8778 = vunpack.c.l.b16 %v8180
    %v8779 = vunpack.c.h.b16 %v8180
    %v8780 = vunpack.c.l.b16 %v8181
    %v8781 = vunpack.c.h.b16 %v8181
    %v8782 = vunpack.c.l.b16 %v8182
    %v8783 = vunpack.c.h.b16 %v8182
    %v8784 = vunpack.c.l.b16 %v8183
    %v8785 = vunpack.c.h.b16 %v8183
    %v8786 = vunpack.c.l.b16 %v8184
    %v8787 = vunpack.c.h.b16 %v8184
    %v8788 = vunpack.c.l.b16 %v8185
    %v8789 = vunpack.c.h.b16 %v8185
    %v8790 = vunpack.c.l.b16 %v8186
    %v8791 = vunpack.c.h.b16 %v8186
    %v8792 = vunpack.c.l.b16 %v8187
    %v8793 = vunpack.c.h.b16 %v8187
    %v8794 = vunpack.c.l.b16 %v8188
    %v8795 = vunpack.c.h.b16 %v8188
    %v8796 = vunpack.c.l.b16 %v8189
    %v8797 = vunpack.c.h.b16 %v8189
    %v8798 = vunpack.c.l.b16 %v8190
    %v8799 = vunpack.c.h.b16 %v8190
    %v8800 = vunpack.c.l.b16 %v8191
    %v8801 = vunpack.c.h.b16 %v8191
    %v8802 = vunpack.c.l.b16 %v8192
    %v8803 = vunpack.c.h.b16 %v8192
    %v8804 = vunpack.c.l.b16 %v8193
    %v8805 = vunpack.c.h.b16 %v8193
    %v8806 = vunpack.c.l.b16 %v8194
    %v8807 = vunpack.c.h.b16 %v8194
    %v8808 = vunpack.c.l.b16 %v8195
    %v8809 = vunpack.c.h.b16 %v8195
    %v8810 = vunpack.c.l.b16 %v8196
    %v8811 = vunpack.c.h.b16 %v8196
    %v8812 = vunpack.c.l.b16 %v8197
    %v8813 = vunpack.c.h.b16 %v8197
    %v8814 = vunpack.c.l.b16 %v8198
    %v8815 = vunpack.c.h.b16 %v8198
    %v8816 = vunpack.c.l.b16 %v8199
    %v8817 = vunpack.c.h.b16 %v8199
    %v8818 = vunpack.c.l.b16 %v8200
    %v8819 = vunpack.c.h.b16 %v8200
    %v8820 = vunpack.c.l.b16 %v8201
    %v8821 = vunpack.c.h.b16 %v8201
    %v8822 = vunpack.c.l.b16 %v8202
    %v8823 = vunpack.c.h.b16 %v8202
    %v8824 = vunpack.c.l.b16 %v8203
    %v8825 = vunpack.c.h.b16 %v8203
    %v8826 = vunpack.c.l.b16 %v8204
    %v8827 = vunpack.c.h.b16 %v8204
    %v8828 = vunpack.c.l.b16 %v8205
    %v8829 = vunpack.c.h.b16 %v8205
    %v8830 = vunpack.c.l.b16 %v8206
    %v8831 = vunpack.c.h.b16 %v8206
    %v8832 = vunpack.c.l.b16 %v8207
    %v8833 = vunpack.c.h.b16 %v8207
    %v8834 = vunpack.c.l.b16 %v8208
    %v8835 = vunpack.c.h.b16 %v8208
    %v8836 = vunpack.c.l.b16 %v8209
    %v8837 = vunpack.c.h.b16 %v8209
    %v8838 = vunpack.c.l.b16 %v8210
    %v8839 = vunpack.c.h.b16 %v8210
    %v8840 = vunpack.c.l.b16 %v8211
    %v8841 = vunpack.c.h.b16 %v8211
    %v8842 = vunpack.c.l.b16 %v8212
    %v8843 = vunpack.c.h.b16 %v8212
    %v8844 = vunpack.c.l.b16 %v8213
    %v8845 = vunpack.c.h.b16 %v8213
    %v8846 = vunpack.c.l.b16 %v8214
    %v8847 = vunpack.c.h.b16 %v8214
    %v8848 = vunpack.c.l.b16 %v8215
    %v8849 = vunpack.c.h.b16 %v8215
    %v8850 = vunpack.c.l.b16 %v8216
    %v8851 = vunpack.c.h.b16 %v8216
    %v8852 = vunpack.c.l.b16 %v8217
    %v8853 = vunpack.c.h.b16 %v8217
    %v8854 = vunpack.c.l.b16 %v8218
    %v8855 = vunpack.c.h.b16 %v8218
    %v8856 = vunpack.c.l.b16 %v8219
    %v8857 = vunpack.c.h.b16 %v8219
    %v8858 = vunpack.c.l.b16 %v8220
    %v8859 = vunpack.c.h.b16 %v8220
    %v8860 = vunpack.c.l.b16 %v8221
    %v8861 = vunpack.c.h.b16 %v8221
    %v8862 = vunpack.c.l.b16 %v8222
    %v8863 = vunpack.c.h.b16 %v8222
    %v8864 = vunpack.c.l.b16 %v8223
    %v8865 = vunpack.c.h.b16 %v8223
    %v8866 = vunpack.c.l.b16 %v8224
    %v8867 = vunpack.c.h.b16 %v8224
    %v8868 = vunpack.c.l.b16 %v8225
    %v8869 = vunpack.c.h.b16 %v8225
    %v8870 = vunpack.c.l.b16 %v8226
    %v8871 = vunpack.c.h.b16 %v8226
    %v8872 = vunpack.c.l.b16 %v8227
    %v8873 = vunpack.c.h.b16 %v8227
    %v8874 = vunpack.c.l.b16 %v8228
    %v8875 = vunpack.c.h.b16 %v8228
    %v8876 = vunpack.c.l.b16 %v8229
    %v8877 = vunpack.c.h.b16 %v8229
    %v8878 = vunpack.c.l.b16 %v8230
    %v8879 = vunpack.c.h.b16 %v8230
    %v8880 = vunpack.c.l.b16 %v8231
    %v8881 = vunpack.c.h.b16 %v8231
    %v8882 = vunpack.c.l.b16 %v8232
    %v8883 = vunpack.c.h.b16 %v8232
    %v8884 = vunpack.c.l.b16 %v8233
    %v8885 = vunpack.c.h.b16 %v8233
    %v8886 = vunpack.c.l.b16 %v8234
    %v8887 = vunpack.c.h.b16 %v8234
    %v8888 = vunpack.c.l.b16 %v8235
    %v8889 = vunpack.c.h.b16 %v8235
    %v8890 = vunpack.c.l.b16 %v8236
    %v8891 = vunpack.c.h.b16 %v8236
    %v8892 = vunpack.c.l.b16 %v8237
    %v8893 = vunpack.c.h.b16 %v8237
    %v8894 = vunpack.c.l.b16 %v8238
    %v8895 = vunpack.c.h.b16 %v8238
    %v8896 = vunpack.c.l.b16 %v8239
    %v8897 = vunpack.c.h.b16 %v8239
    %v8898 = vunpack.c.l.b16 %v8240
    %v8899 = vunpack.c.h.b16 %v8240
    %v8900 = vunpack.c.l.b16 %v8241
    %v8901 = vunpack.c.h.b16 %v8241
    %v8902 = vunpack.c.l.b16 %v8242
    %v8903 = vunpack.c.h.b16 %v8242
    %v8904 = vunpack.c.l.b16 %v8243
    %v8905 = vunpack.c.h.b16 %v8243
    %v8906 = vunpack.c.l.b16 %v8244
    %v8907 = vunpack.c.h.b16 %v8244
    %v8908 = vunpack.c.l.b16 %v8245
    %v8909 = vunpack.c.h.b16 %v8245
    %v8910 = vunpack.c.l.b16 %v8246
    %v8911 = vunpack.c.h.b16 %v8246
    %v8912 = vunpack.c.l.b16 %v8247
    %v8913 = vunpack.c.h.b16 %v8247
    %v8914 = vunpack.c.l.b16 %v8248
    %v8915 = vunpack.c.h.b16 %v8248
    %v8916 = vunpack.c.l.b16 %v8249
    %v8917 = vunpack.c.h.b16 %v8249
    %v8918 = vunpack.c.l.b16 %v8250
    %v8919 = vunpack.c.h.b16 %v8250
    %v8920 = vunpack.c.l.b16 %v8251
    %v8921 = vunpack.c.h.b16 %v8251
    %v8922 = vunpack.c.l.b16 %v8252
    %v8923 = vunpack.c.h.b16 %v8252
    %v8924 = vunpack.c.l.b16 %v8253
    %v8925 = vunpack.c.h.b16 %v8253
    %v8926 = vunpack.c.l.b16 %v8254
    %v8927 = vunpack.c.h.b16 %v8254
    %v8928 = vunpack.c.l.b16 %v8255
    %v8929 = vunpack.c.h.b16 %v8255
    %v8930 = vunpack.c.l.b16 %v8256
    %v8931 = vunpack.c.h.b16 %v8256
    %v8932 = vunpack.c.l.b16 %v8257
    %v8933 = vunpack.c.h.b16 %v8257
    %v8934 = vunpack.c.l.b16 %v8258
    %v8935 = vunpack.c.h.b16 %v8258
    %v8936 = vunpack.c.l.b16 %v8259
    %v8937 = vunpack.c.h.b16 %v8259
    %v8938 = vunpack.c.l.b16 %v8260
    %v8939 = vunpack.c.h.b16 %v8260
    %v8940 = vunpack.c.l.b16 %v8261
    %v8941 = vunpack.c.h.b16 %v8261
    %v8942 = vunpack.c.l.b16 %v8262
    %v8943 = vunpack.c.h.b16 %v8262
    %v8944 = vunpack.c.l.b16 %v8263
    %v8945 = vunpack.c.h.b16 %v8263
    %v8946 = vunpack.c.l.b16 %v8264
    %v8947 = vunpack.c.h.b16 %v8264
    %v8948 = vunpack.c.l.b16 %v8265
    %v8949 = vunpack.c.h.b16 %v8265
    %v8950 = vunpack.c.l.b16 %v8266
    %v8951 = vunpack.c.h.b16 %v8266
    %v8952 = vunpack.c.l.b16 %v8267
    %v8953 = vunpack.c.h.b16 %v8267
    %v8954 = vunpack.c.l.b16 %v8268
    %v8955 = vunpack.c.h.b16 %v8268
    %v8956 = vunpack.c.l.b16 %v8269
    %v8957 = vunpack.c.h.b16 %v8269
    %v8958 = vunpack.c.l.b16 %v8270
    %v8959 = vunpack.c.h.b16 %v8270
    %v8960 = vunpack.c.l.b16 %v8271
    %v8961 = vunpack.c.h.b16 %v8271
    %v8962 = vunpack.c.l.b16 %v8272
    %v8963 = vunpack.c.h.b16 %v8272
    %v8964 = vunpack.c.l.b16 %v8273
    %v8965 = vunpack.c.h.b16 %v8273
    %v8966 = vunpack.c.l.b16 %v8274
    %v8967 = vunpack.c.h.b16 %v8274
    %v8968 = vunpack.c.l.b16 %v8275
    %v8969 = vunpack.c.h.b16 %v8275
    %v8970 = vunpack.c.l.b16 %v8276
    %v8971 = vunpack.c.h.b16 %v8276
    %v8972 = vunpack.c.l.b16 %v8277
    %v8973 = vunpack.c.h.b16 %v8277
    %v8974 = vunpack.c.l.b16 %v8278
    %v8975 = vunpack.c.h.b16 %v8278
    %v8976 = vunpack.c.l.b16 %v8279
    %v8977 = vunpack.c.h.b16 %v8279
    %v8978 = vunpack.c.l.b16 %v8280
    %v8979 = vunpack.c.h.b16 %v8280
    %v8980 = vunpack.c.l.b16 %v8281
    %v8981 = vunpack.c.h.b16 %v8281
    %v8982 = vunpack.c.l.b16 %v8282
    %v8983 = vunpack.c.h.b16 %v8282
    %v8984 = vunpack.c.l.b16 %v8283
    %v8985 = vunpack.c.h.b16 %v8283
    %v8986 = vunpack.c.l.b16 %v8284
    %v8987 = vunpack.c.h.b16 %v8284
    %v8988 = vunpack.c.l.b16 %v8285
    %v8989 = vunpack.c.h.b16 %v8285
    %v8990 = vunpack.c.l.b16 %v8286
    %v8991 = vunpack.c.h.b16 %v8286
    %v8992 = vunpack.c.l.b16 %v8287
    %v8993 = vunpack.c.h.b16 %v8287
    %v8994 = vunpack.c.l.b16 %v8288
    %v8995 = vunpack.c.h.b16 %v8288
    %v8996 = vunpack.c.l.b16 %v8289
    %v8997 = vunpack.c.h.b16 %v8289
    %v8998 = vunpack.c.l.b16 %v8290
    %v8999 = vunpack.c.h.b16 %v8290
    %v9000 = vunpack.c.l.b16 %v8291
    %v9001 = vunpack.c.h.b16 %v8291
    %v9002 = vunpack.c.l.b16 %v8292
    %v9003 = vunpack.c.h.b16 %v8292
    %v9004 = vunpack.c.l.b16 %v8293
    %v9005 = vunpack.c.h.b16 %v8293
    %v9006 = vunpack.c.l.b16 %v8294
    %v9007 = vunpack.c.h.b16 %v8294
    %v9008 = vunpack.c.l.b16 %v8295
    %v9009 = vunpack.c.h.b16 %v8295
    %v9010 = vunpack.c.l.b16 %v8296
    %v9011 = vunpack.c.h.b16 %v8296
    %v9012 = vunpack.c.l.b16 %v8297
    %v9013 = vunpack.c.h.b16 %v8297
    %v9014 = vunpack.c.l.b16 %v8298
    %v9015 = vunpack.c.h.b16 %v8298
    %v9016 = vunpack.c.l.b16 %v8299
    %v9017 = vunpack.c.h.b16 %v8299
    %v9018 = vunpack.c.l.b16 %v8300
    %v9019 = vunpack.c.h.b16 %v8300
    %v9020 = vunpack.c.l.b16 %v8301
    %v9021 = vunpack.c.h.b16 %v8301
    %v9022 = vunpack.c.l.b16 %v8302
    %v9023 = vunpack.c.h.b16 %v8302
    %v9024 = vunpack.c.l.b16 %v8303
    %v9025 = vunpack.c.h.b16 %v8303
    %v9026 = vunpack.c.l.b16 %v8304
    %v9027 = vunpack.c.h.b16 %v8304
    %v9028 = vunpack.c.l.b16 %v8305
    %v9029 = vunpack.c.h.b16 %v8305
    %v9030 = vunpack.c.l.b16 %v8306
    %v9031 = vunpack.c.h.b16 %v8306
    %v9032 = vunpack.c.l.b16 %v8307
    %v9033 = vunpack.c.h.b16 %v8307
    %v9034 = vunpack.c.l.b16 %v8308
    %v9035 = vunpack.c.h.b16 %v8308
    %v9036 = vunpack.c.l.b16 %v8309
    %v9037 = vunpack.c.h.b16 %v8309
    %v9038 = vunpack.c.l.b16 %v8310
    %v9039 = vunpack.c.h.b16 %v8310
    %v9040 = vunpack.c.l.b16 %v8311
    %v9041 = vunpack.c.h.b16 %v8311
    %v9042 = vunpack.c.l.b16 %v8312
    %v9043 = vunpack.c.h.b16 %v8312
    %v9044 = vunpack.c.l.b16 %v8313
    %v9045 = vunpack.c.h.b16 %v8313
    %v9046 = vunpack.c.l.b16 %v8314
    %v9047 = vunpack.c.h.b16 %v8314
    %v9048 = vunpack.c.l.b16 %v8315
    %v9049 = vunpack.c.h.b16 %v8315
    %v9050 = vunpack.c.l.b16 %v8316
    %v9051 = vunpack.c.h.b16 %v8316
    %v9052 = vunpack.c.l.b16 %v8317
    %v9053 = vunpack.c.h.b16 %v8317
    %v9054 = vunpack.c.l.b16 %v8318
    %v9055 = vunpack.c.h.b16 %v8318
    %v9056 = vunpack.c.l.b16 %v8319
    %v9057 = vunpack.c.h.b16 %v8319
    %v9058 = vunpack.c.l.b16 %v8320
    %v9059 = vunpack.c.h.b16 %v8320
    %v9060 = vunpack.c.l.b16 %v8321
    %v9061 = vunpack.c.h.b16 %v8321
    %v9062 = vunpack.c.l.b16 %v8322
    %v9063 = vunpack.c.h.b16 %v8322
    %v9064 = vunpack.c.l.b16 %v8323
    %v9065 = vunpack.c.h.b16 %v8323
    %v9066 = vunpack.c.l.b16 %v8324
    %v9067 = vunpack.c.h.b16 %v8324
    %v9068 = vunpack.c.l.b16 %v8325
    %v9069 = vunpack.c.h.b16 %v8325
    %v9070 = vunpack.c.l.b16 %v8326
    %v9071 = vunpack.c.h.b16 %v8326
    %v9072 = vunpack.c.l.b16 %v8327
    %v9073 = vunpack.c.h.b16 %v8327
    %v9074 = vunpack.c.l.b16 %v8328
    %v9075 = vunpack.c.h.b16 %v8328
    %v9076 = vunpack.c.l.b16 %v8329
    %v9077 = vunpack.c.h.b16 %v8329
    %v9078 = vunpack.c.l.b16 %v8330
    %v9079 = vunpack.c.h.b16 %v8330
    %v9080 = vunpack.c.l.b16 %v8331
    %v9081 = vunpack.c.h.b16 %v8331
    %v9082 = vunpack.c.l.b16 %v8332
    %v9083 = vunpack.c.h.b16 %v8332
    %v9084 = vunpack.c.l.b16 %v8333
    %v9085 = vunpack.c.h.b16 %v8333
    %v9086 = vunpack.c.l.b16 %v8334
    %v9087 = vunpack.c.h.b16 %v8334
    %v9088 = vunpack.c.l.b16 %v8335
    %v9089 = vunpack.c.h.b16 %v8335
    %v9090 = vunpack.c.l.b16 %v8336
    %v9091 = vunpack.c.h.b16 %v8336
    %v9092 = vunpack.c.l.b16 %v8337
    %v9093 = vunpack.c.h.b16 %v8337
    %v9094 = vunpack.c.l.b16 %v8338
    %v9095 = vunpack.c.h.b16 %v8338
    %v9096 = vunpack.c.l.b16 %v8339
    %v9097 = vunpack.c.h.b16 %v8339
    %v9098 = vunpack.c.l.b16 %v8340
    %v9099 = vunpack.c.h.b16 %v8340
    %v9100 = vunpack.c.l.b16 %v8341
    %v9101 = vunpack.c.h.b16 %v8341
    %v9102 = vunpack.c.l.b16 %v8342
    %v9103 = vunpack.c.h.b16 %v8342
    %v9104 = vunpack.c.l.b16 %v8343
    %v9105 = vunpack.c.h.b16 %v8343
    %v9106 = vunpack.c.l.b16 %v8344
    %v9107 = vunpack.c.h.b16 %v8344
    %v9108 = vunpack.c.l.b16 %v8345
    %v9109 = vunpack.c.h.b16 %v8345
    %v9110 = vunpack.c.l.b16 %v8346
    %v9111 = vunpack.c.h.b16 %v8346
    %v9112 = vunpack.c.l.b16 %v8347
    %v9113 = vunpack.c.h.b16 %v8347
    %v9114 = vunpack.c.l.b16 %v8348
    %v9115 = vunpack.c.h.b16 %v8348
    %v9116 = vunpack.c.l.b16 %v8349
    %v9117 = vunpack.c.h.b16 %v8349
    %v9118 = vunpack.c.l.b16 %v8350
    %v9119 = vunpack.c.h.b16 %v8350
    %v9120 = vunpack.c.l.b16 %v8351
    %v9121 = vunpack.c.h.b16 %v8351
    %v9122 = vunpack.c.l.b16 %v8352
    %v9123 = vunpack.c.h.b16 %v8352
    %v9124 = vunpack.c.l.b16 %v8353
    %v9125 = vunpack.c.h.b16 %v8353
    %v9126 = vunpack.c.l.b16 %v8354
    %v9127 = vunpack.c.h.b16 %v8354
    %v9128 = vunpack.c.l.b16 %v8355
    %v9129 = vunpack.c.h.b16 %v8355
    %v9130 = vunpack.c.l.b16 %v8356
    %v9131 = vunpack.c.h.b16 %v8356
    %v9132 = vunpack.c.l.b16 %v8357
    %v9133 = vunpack.c.h.b16 %v8357
    %v9134 = vunpack.c.l.b16 %v8358
    %v9135 = vunpack.c.h.b16 %v8358
    %v9136 = vunpack.c.l.b16 %v8359
    %v9137 = vunpack.c.h.b16 %v8359
    %v9138 = vunpack.c.l.b16 %v8360
    %v9139 = vunpack.c.h.b16 %v8360
    %v9140 = vunpack.c.l.b16 %v8361
    %v9141 = vunpack.c.h.b16 %v8361
    %v9142 = vpack.c.b16 %v8632, %v8630
    %v9143 = vpack.c.b16 %v8633, %v8631
    %v9144 = vpack.c.b16 %v8636, %v8634
    %v9145 = vpack.c.b16 %v8637, %v8635
    %v9146 = vpack.c.b16 %v8640, %v8638
    %v9147 = vpack.c.b16 %v8641, %v8639
    %v9148 = vpack.c.b16 %v8644, %v8642
    %v9149 = vpack.c.b16 %v8645, %v8643
    %v9150 = vpack.c.b16 %v8648, %v8646
    %v9151 = vpack.c.b16 %v8649, %v8647
    %v9152 = vpack.c.b16 %v8652, %v8650
    %v9153 = vpack.c.b16 %v8653, %v8651
    %v9154 = vpack.c.b16 %v8656, %v8654
    %v9155 = vpack.c.b16 %v8657, %v8655
    %v9156 = vpack.c.b16 %v8660, %v8658
    %v9157 = vpack.c.b16 %v8661, %v8659
    %v9158 = vpack.c.b16 %v8664, %v8662
    %v9159 = vpack.c.b16 %v8665, %v8663
    %v9160 = vpack.c.b16 %v8668, %v8666
    %v9161 = vpack.c.b16 %v8669, %v8667
    %v9162 = vpack.c.b16 %v8672, %v8670
    %v9163 = vpack.c.b16 %v8673, %v8671
    %v9164 = vpack.c.b16 %v8676, %v8674
    %v9165 = vpack.c.b16 %v8677, %v8675
    %v9166 = vpack.c.b16 %v8680, %v8678
    %v9167 = vpack.c.b16 %v8681, %v8679
    %v9168 = vpack.c.b16 %v8684, %v8682
    %v9169 = vpack.c.b16 %v8685, %v8683
    %v9170 = vpack.c.b16 %v8688, %v8686
    %v9171 = vpack.c.b16 %v8689, %v8687
    %v9172 = vpack.c.b16 %v8692, %v8690
    %v9173 = vpack.c.b16 %v8693, %v8691
    %v9174 = vpack.c.b16 %v8696, %v8694
    %v9175 = vpack.c.b16 %v8697, %v8695
    %v9176 = vpack.c.b16 %v8700, %v8698
    %v9177 = vpack.c.b16 %v8701, %v8699
    %v9178 = vpack.c.b16 %v8704, %v8702
    %v9179 = vpack.c.b16 %v8705, %v8703
    %v9180 = vpack.c.b16 %v8708, %v8706
    %v9181 = vpack.c.b16 %v8709, %v8707
    %v9182 = vpack.c.b16 %v8712, %v8710
    %v9183 = vpack.c.b16 %v8713, %v8711
    %v9184 = vpack.c.b16 %v8716, %v8714
    %v9185 = vpack.c.b16 %v8717, %v8715
    %v9186 = vpack.c.b16 %v8720, %v8718
    %v9187 = vpack.c.b16 %v8721, %v8719
    %v9188 = vpack.c.b16 %v8724, %v8722
    %v9189 = vpack.c.b16 %v8725, %v8723
    %v9190 = vpack.c.b16 %v8728, %v8726
    %v9191 = vpack.c.b16 %v8729, %v8727
    %v9192 = vpack.c.b16 %v8732, %v8730
    %v9193 = vpack.c.b16 %v8733, %v8731
    %v9194 = vpack.c.b16 %v8736, %v8734
    %v9195 = vpack.c.b16 %v8737, %v8735
    %v9196 = vpack.c.b16 %v8740, %v8738
    %v9197 = vpack.c.b16 %v8741, %v8739
    %v9198 = vpack.c.b16 %v8744, %v8742
    %v9199 = vpack.c.b16 %v8745, %v8743
    %v9200 = vpack.c.b16 %v8748, %v8746
    %v9201 = vpack.c.b16 %v8749, %v8747
    %v9202 = vpack.c.b16 %v8752, %v8750
    %v9203 = vpack.c.b16 %v8753, %v8751
    %v9204 = vpack.c.b16 %v8756, %v8754
    %v9205 = vpack.c.b16 %v8757, %v8755
    %v9206 = vpack.c.b16 %v8760, %v8758
    %v9207 = vpack.c.b16 %v8761, %v8759
    %v9208 = vpack.c.b16 %v8764, %v8762
    %v9209 = vpack.c.b16 %v8765, %v8763
    %v9210 = vpack.c.b16 %v8768, %v8766
    %v9211 = vpack.c.b16 %v8769, %v8767
    %v9212 = vpack.c.b16 %v8772, %v8770
    %v9213 = vpack.c.b16 %v8773, %v8771
    %v9214 = vpack.c.b16 %v8776, %v8774
    %v9215 = vpack.c.b16 %v8777, %v8775
    %v9216 = vpack.c.b16 %v8780, %v8778
    %v9217 = vpack.c.b16 %v8781, %v8779
    %v9218 = vpack.c.b16 %v8784, %v8782
    %v9219 = vpack.c.b16 %v8785, %v8783
    %v9220 = vpack.c.b16 %v8788, %v8786
    %v9221 = vpack.c.b16 %v8789, %v8787
    %v9222 = vpack.c.b16 %v8792, %v8790
    %v9223 = vpack.c.b16 %v8793, %v8791
    %v9224 = vpack.c.b16 %v8796, %v8794
    %v9225 = vpack.c.b16 %v8797, %v8795
    %v9226 = vpack.c.b16 %v8800, %v8798
    %v9227 = vpack.c.b16 %v8801, %v8799
    %v9228 = vpack.c.b16 %v8804, %v8802
    %v9229 = vpack.c.b16 %v8805, %v8803
    %v9230 = vpack.c.b16 %v8808, %v8806
    %v9231 = vpack.c.b16 %v8809, %v8807
    %v9232 = vpack.c.b16 %v8812, %v8810
    %v9233 = vpack.c.b16 %v8813, %v8811
    %v9234 = vpack.c.b16 %v8816, %v8814
    %v9235 = vpack.c.b16 %v8817, %v8815
    %v9236 = vpack.c.b16 %v8820, %v8818
    %v9237 = vpack.c.b16 %v8821, %v8819
    %v9238 = vpack.c.b16 %v8824, %v8822
    %v9239 = vpack.c.b16 %v8825, %v8823
    %v9240 = vpack.c.b16 %v8828, %v8826
    %v9241 = vpack.c.b16 %v8829, %v8827
    %v9242 = vpack.c.b16 %v8832, %v8830
    %v9243 = vpack.c.b16 %v8833, %v8831
    %v9244 = vpack.c.b16 %v8836, %v8834
    %v9245 = vpack.c.b16 %v8837, %v8835
    %v9246 = vpack.c.b16 %v8840, %v8838
    %v9247 = vpack.c.b16 %v8841, %v8839
    %v9248 = vpack.c.b16 %v8844, %v8842
    %v9249 = vpack.c.b16 %v8845, %v8843
    %v9250 = vpack.c.b16 %v8848, %v8846
    %v9251 = vpack.c.b16 %v8849, %v8847
    %v9252 = vpack.c.b16 %v8852, %v8850
    %v9253 = vpack.c.b16 %v8853, %v8851
    %v9254 = vpack.c.b16 %v8856, %v8854
    %v9255 = vpack.c.b16 %v8857, %v8855
    %v9256 = vpack.c.b16 %v8860, %v8858
    %v9257 = vpack.c.b16 %v8861, %v8859
    %v9258 = vpack.c.b16 %v8864, %v8862
    %v9259 = vpack.c.b16 %v8865, %v8863
    %v9260 = vpack.c.b16 %v8868, %v8866
    %v9261 = vpack.c.b16 %v8869, %v8867
    %v9262 = vpack.c.b16 %v8872, %v8870
    %v9263 = vpack.c.b16 %v8873, %v8871
    %v9264 = vpack.c.b16 %v8876, %v8874
    %v9265 = vpack.c.b16 %v8877, %v8875
    %v9266 = vpack.c.b16 %v8880, %v8878
    %v9267 = vpack.c.b16 %v8881, %v8879
    %v9268 = vpack.c.b16 %v8884, %v8882
    %v9269 = vpack.c.b16 %v8885, %v8883
    %v9270 = vpack.c.b16 %v8888, %v8886
    %v9271 = vpack.c.b16 %v8889, %v8887
    %v9272 = vpack.c.b16 %v8892, %v8890
    %v9273 = vpack.c.b16 %v8893, %v8891
    %v9274 = vpack.c.b16 %v8896, %v8894
    %v9275 = vpack.c.b16 %v8897, %v8895
    %v9276 = vpack.c.b16 %v8900, %v8898
    %v9277 = vpack.c.b16 %v8901, %v8899
    %v9278 = vpack.c.b16 %v8904, %v8902
    %v9279 = vpack.c.b16 %v8905, %v8903
    %v9280 = vpack.c.b16 %v8908, %v8906
    %v9281 = vpack.c.b16 %v8909, %v8907
    %v9282 = vpack.c.b16 %v8912, %v8910
    %v9283 = vpack.c.b16 %v8913, %v8911
    %v9284 = vpack.c.b16 %v8916, %v8914
    %v9285 = vpack.c.b16 %v8917, %v8915
    %v9286 = vpack.c.b16 %v8920, %v8918
    %v9287 = vpack.c.b16 %v8921, %v8919
    %v9288 = vpack.c.b16 %v8924, %v8922
    %v9289 = vpack.c.b16 %v8925, %v8923
    %v9290 = vpack.c.b16 %v8928, %v8926
    %v9291 = vpack.c.b16 %v8929, %v8927
    %v9292 = vpack.c.b16 %v8932, %v8930
    %v9293 = vpack.c.b16 %v8933, %v8931
    %v9294 = vpack.c.b16 %v8936, %v8934
    %v9295 = vpack.c.b16 %v8937, %v8935
    %v9296 = vpack.c.b16 %v8940, %v8938
    %v9297 = vpack.c.b16 %v8941, %v8939
    %v9298 = vpack.c.b16 %v8944, %v8942
    %v9299 = vpack.c.b16 %v8945, %v8943
    %v9300 = vpack.c.b16 %v8948, %v8946
    %v9301 = vpack.c.b16 %v8949, %v8947
    %v9302 = vpack.c.b16 %v8952, %v8950
    %v9303 = vpack.c.b16 %v8953, %v8951
    %v9304 = vpack.c.b16 %v8956, %v8954
    %v9305 = vpack.c.b16 %v8957, %v8955
    %v9306 = vpack.c.b16 %v8960, %v8958
    %v9307 = vpack.c.b16 %v8961, %v8959
    %v9308 = vpack.c.b16 %v8964, %v8962
    %v9309 = vpack.c.b16 %v8965, %v8963
    %v9310 = vpack.c.b16 %v8968, %v8966
    %v9311 = vpack.c.b16 %v8969, %v8967
    %v9312 = vpack.c.b16 %v8972, %v8970
    %v9313 = vpack.c.b16 %v8973, %v8971
    %v9314 = vpack.c.b16 %v8976, %v8974
    %v9315 = vpack.c.b16 %v8977, %v8975
    %v9316 = vpack.c.b16 %v8980, %v8978
    %v9317 = vpack.c.b16 %v8981, %v8979
    %v9318 = vpack.c.b16 %v8984, %v8982
    %v9319 = vpack.c.b16 %v8985, %v8983
    %v9320 = vpack.c.b16 %v8988, %v8986
    %v9321 = vpack.c.b16 %v8989, %v8987
    %v9322 = vpack.c.b16 %v8992, %v8990
    %v9323 = vpack.c.b16 %v8993, %v8991
    %v9324 = vpack.c.b16 %v8996, %v8994
    %v9325 = vpack.c.b16 %v8997, %v8995
    %v9326 = vpack.c.b16 %v9000, %v8998
    %v9327 = vpack.c.b16 %v9001, %v8999
    %v9328 = vpack.c.b16 %v9004, %v9002
    %v9329 = vpack.c.b16 %v9005, %v9003
    %v9330 = vpack.c.b16 %v9008, %v9006
    %v9331 = vpack.c.b16 %v9009, %v9007
    %v9332 = vpack.c.b16 %v9012, %v9010
    %v9333 = vpack.c.b16 %v9013, %v9011
    %v9334 = vpack.c.b16 %v9016, %v9014
    %v9335 = vpack.c.b16 %v9017, %v9015
    %v9336 = vpack.c.b16 %v9020, %v9018
    %v9337 = vpack.c.b16 %v9021, %v9019
    %v9338 = vpack.c.b16 %v9024, %v9022
    %v9339 = vpack.c.b16 %v9025, %v9023
    %v9340 = vpack.c.b16 %v9028, %v9026
    %v9341 = vpack.c.b16 %v9029, %v9027
    %v9342 = vpack.c.b16 %v9032, %v9030
    %v9343 = vpack.c.b16 %v9033, %v9031
    %v9344 = vpack.c.b16 %v9036, %v9034
    %v9345 = vpack.c.b16 %v9037, %v9035
    %v9346 = vpack.c.b16 %v9040, %v9038
    %v9347 = vpack.c.b16 %v9041, %v9039
    %v9348 = vpack.c.b16 %v9044, %v9042
    %v9349 = vpack.c.b16 %v9045, %v9043
    %v9350 = vpack.c.b16 %v9048, %v9046
    %v9351 = vpack.c.b16 %v9049, %v9047
    %v9352 = vpack.c.b16 %v9052, %v9050
    %v9353 = vpack.c.b16 %v9053, %v9051
    %v9354 = vpack.c.b16 %v9056, %v9054
    %v9355 = vpack.c.b16 %v9057, %v9055
    %v9356 = vpack.c.b16 %v9060, %v9058
    %v9357 = vpack.c.b16 %v9061, %v9059
    %v9358 = vpack.c.b16 %v9064, %v9062
    %v9359 = vpack.c.b16 %v9065, %v9063
    %v9360 = vpack.c.b16 %v9068, %v9066
    %v9361 = vpack.c.b16 %v9069, %v9067
    %v9362 = vpack.c.b16 %v9072, %v9070
    %v9363 = vpack.c.b16 %v9073, %v9071
    %v9364 = vpack.c.b16 %v9076, %v9074
    %v9365 = vpack.c.b16 %v9077, %v9075
    %v9366 = vpack.c.b16 %v9080, %v9078
    %v9367 = vpack.c.b16 %v9081, %v9079
    %v9368 = vpack.c.b16 %v9084, %v9082
    %v9369 = vpack.c.b16 %v9085, %v9083
    %v9370 = vpack.c.b16 %v9088, %v9086
    %v9371 = vpack.c.b16 %v9089, %v9087
    %v9372 = vpack.c.b16 %v9092, %v9090
    %v9373 = vpack.c.b16 %v9093, %v9091
    %v9374 = vpack.c.b16 %v9096, %v9094
    %v9375 = vpack.c.b16 %v9097, %v9095
    %v9376 = vpack.c.b16 %v9100, %v9098
    %v9377 = vpack.c.b16 %v9101, %v9099
    %v9378 = vpack.c.b16 %v9104, %v9102
    %v9379 = vpack.c.b16 %v9105, %v9103
    %v9380 = vpack.c.b16 %v9108, %v9106
    %v9381 = vpack.c.b16 %v9109, %v9107
    %v9382 = vpack.c.b16 %v9112, %v9110
    %v9383 = vpack.c.b16 %v9113, %v9111
    %v9384 = vpack.c.b16 %v9116, %v9114
    %v9385 = vpack.c.b16 %v9117, %v9115
    %v9386 = vpack.c.b16 %v9120, %v9118
    %v9387 = vpack.c.b16 %v9121, %v9119
    %v9388 = vpack.c.b16 %v9124, %v9122
    %v9389 = vpack.c.b16 %v9125, %v9123
    %v9390 = vpack.c.b16 %v9128, %v9126
    %v9391 = vpack.c.b16 %v9129, %v9127
    %v9392 = vpack.c.b16 %v9132, %v9130
    %v9393 = vpack.c.b16 %v9133, %v9131
    %v9394 = vpack.c.b16 %v9136, %v9134
    %v9395 = vpack.c.b16 %v9137, %v9135
    %v9396 = vpack.c.b16 %v9140, %v9138
    %v9397 = vpack.c.b16 %v9141, %v9139
    %9654 = vmatprep.subr.bf16.mxu0 %v9143
    %9655 = vmatpush1.bf16.msra.mxu0 %v9142
    %9656 = vmatprep.subr.bf16.mxu0 %v9145
    %9657 = vmatpush1.bf16.msra.mxu0 %v9144
    %9658 = vmatprep.subr.bf16.mxu0 %v9147
    %9659 = vmatpush1.bf16.msra.mxu0 %v9146
    %9660 = vmatprep.subr.bf16.mxu0 %v9149
    %9661 = vmatpush1.bf16.msra.mxu0 %v9148
    %9662 = vmatprep.subr.bf16.mxu0 %v9151
    %9663 = vmatpush1.bf16.msra.mxu0 %v9150
    %9664 = vmatprep.subr.bf16.mxu0 %v9153
    %9665 = vmatpush1.bf16.msra.mxu0 %v9152
    %9666 = vmatprep.subr.bf16.mxu0 %v9155
    %9667 = vmatpush1.bf16.msra.mxu0 %v9154
    %9668 = vmatprep.subr.bf16.mxu0 %v9157
    %9669 = vmatpush1.bf16.msra.mxu0 %v9156
    %9670 = vmatprep.subr.bf16.mxu0 %v9159
    %9671 = vmatpush1.bf16.msra.mxu0 %v9158
    %9672 = vmatprep.subr.bf16.mxu0 %v9161
    %9673 = vmatpush1.bf16.msra.mxu0 %v9160
    %9674 = vmatprep.subr.bf16.mxu0 %v9163
    %9675 = vmatpush1.bf16.msra.mxu0 %v9162
    %9676 = vmatprep.subr.bf16.mxu0 %v9165
    %9677 = vmatpush1.bf16.msra.mxu0 %v9164
    %9678 = vmatprep.subr.bf16.mxu0 %v9167
    %9679 = vmatpush1.bf16.msra.mxu0 %v9166
    %9680 = vmatprep.subr.bf16.mxu0 %v9169
    %9681 = vmatpush1.bf16.msra.mxu0 %v9168
    %9682 = vmatprep.subr.bf16.mxu0 %v9171
    %9683 = vmatpush1.bf16.msra.mxu0 %v9170
    %9684 = vmatprep.subr.bf16.mxu0 %v9173
    %9685 = vmatpush1.bf16.msra.mxu0 %v9172
    %9686 = vmatprep.mubr.bf16.mxu0 %v7912
    %9687 = vmatmul.mubr.bf16.gmra.mrb[0].mxu0 %v7911
    %v9688 = vpop.f32.mrb[0].mxu0
    %v9689 = vadd.f32 %v8367, %v9688
    %v9690 = vpop.f32.mrb[0].mxu0
    %v9691 = vadd.f32 %v8371, %v9690
    %v9692 = vpop.f32.mrb[0].mxu0
    %v9693 = vpop.f32.mrb[0].mxu0
    %9694 = vdwg.mxu0
    %9695 = vmatprep.subr.bf16.mxu0 %v9175
    %9696 = vmatpush1.bf16.msra.mxu0 %v9174
    %9697 = vmatprep.subr.bf16.mxu0 %v9177
    %9698 = vmatpush1.bf16.msra.mxu0 %v9176
    %9699 = vmatprep.subr.bf16.mxu0 %v9179
    %9700 = vmatpush1.bf16.msra.mxu0 %v9178
    %9701 = vmatprep.subr.bf16.mxu0 %v9181
    %9702 = vmatpush1.bf16.msra.mxu0 %v9180
    %9703 = vmatprep.subr.bf16.mxu0 %v9183
    %9704 = vmatpush1.bf16.msra.mxu0 %v9182
    %9705 = vmatprep.subr.bf16.mxu0 %v9185
    %9706 = vmatpush1.bf16.msra.mxu0 %v9184
    %9707 = vmatprep.subr.bf16.mxu0 %v9187
    %9708 = vmatpush1.bf16.msra.mxu0 %v9186
    %9709 = vmatprep.subr.bf16.mxu0 %v9189
    %9710 = vmatpush1.bf16.msra.mxu0 %v9188
    %9711 = vmatprep.subr.bf16.mxu0 %v9191
    %9712 = vmatpush1.bf16.msra.mxu0 %v9190
    %9713 = vmatprep.subr.bf16.mxu0 %v9193
    %9714 = vmatpush1.bf16.msra.mxu0 %v9192
    %9715 = vmatprep.subr.bf16.mxu0 %v9195
    %9716 = vmatpush1.bf16.msra.mxu0 %v9194
    %9717 = vmatprep.subr.bf16.mxu0 %v9197
    %9718 = vmatpush1.bf16.msra.mxu0 %v9196
    %9719 = vmatprep.subr.bf16.mxu0 %v9199
    %9720 = vmatpush1.bf16.msra.mxu0 %v9198
    %9721 = vmatprep.subr.bf16.mxu0 %v9201
    %9722 = vmatpush1.bf16.msra.mxu0 %v9200
    %9723 = vmatprep.subr.bf16.mxu0 %v9203
    %9724 = vmatpush1.bf16.msra.mxu0 %v9202
    %9725 = vmatprep.subr.bf16.mxu0 %v9205
    %9726 = vmatpush1.bf16.msra.mxu0 %v9204
    %9727 = vmatprep.mubr.bf16.mxu0 %v7914
    %9728 = vmatmul.mubr.bf16.gmra.mrb[0].mxu0 %v7913
    %v9729 = vpop.f32.mrb[0].mxu0
    %v9730 = vadd.f32 %v9689, %v9729
    %v9731 = vpop.f32.mrb[0].mxu0
    %v9732 = vadd.f32 %v9691, %v9731
    %v9733 = vpop.f32.mrb[0].mxu0
    %v9734 = vpop.f32.mrb[0].mxu0
    %9735 = vdwg.mxu0
    %9736 = vmatprep.subr.bf16.mxu0 %v9207
    %9737 = vmatpush1.bf16.msra.mxu0 %v9206
    %9738 = vmatprep.subr.bf16.mxu0 %v9209
    %9739 = vmatpush1.bf16.msra.mxu0 %v9208
    %9740 = vmatprep.subr.bf16.mxu0 %v9211
    %9741 = vmatpush1.bf16.msra.mxu0 %v9210
    %9742 = vmatprep.subr.bf16.mxu0 %v9213
    %9743 = vmatpush1.bf16.msra.mxu0 %v9212
    %9744 = vmatprep.subr.bf16.mxu0 %v9215
    %9745 = vmatpush1.bf16.msra.mxu0 %v9214
    %9746 = vmatprep.subr.bf16.mxu0 %v9217
    %9747 = vmatpush1.bf16.msra.mxu0 %v9216
    %9748 = vmatprep.subr.bf16.mxu0 %v9219
    %9749 = vmatpush1.bf16.msra.mxu0 %v9218
    %9750 = vmatprep.subr.bf16.mxu0 %v9221
    %9751 = vmatpush1.bf16.msra.mxu0 %v9220
    %9752 = vmatprep.subr.bf16.mxu0 %v9223
    %9753 = vmatpush1.bf16.msra.mxu0 %v9222
    %9754 = vmatprep.subr.bf16.mxu0 %v9225
    %9755 = vmatpush1.bf16.msra.mxu0 %v9224
    %9756 = vmatprep.subr.bf16.mxu0 %v9227
    %9757 = vmatpush1.bf16.msra.mxu0 %v9226
    %9758 = vmatprep.subr.bf16.mxu0 %v9229
    %9759 = vmatpush1.bf16.msra.mxu0 %v9228
    %9760 = vmatprep.subr.bf16.mxu0 %v9231
    %9761 = vmatpush1.bf16.msra.mxu0 %v9230
    %9762 = vmatprep.subr.bf16.mxu0 %v9233
    %9763 = vmatpush1.bf16.msra.mxu0 %v9232
    %9764 = vmatprep.subr.bf16.mxu0 %v9235
    %9765 = vmatpush1.bf16.msra.mxu0 %v9234
    %9766 = vmatprep.subr.bf16.mxu0 %v9237
    %9767 = vmatpush1.bf16.msra.mxu0 %v9236
    %9768 = vmatprep.mubr.bf16.mxu0 %v7916
    %9769 = vmatmul.mubr.bf16.gmra.mrb[0].mxu0 %v7915
    %v9770 = vpop.f32.mrb[0].mxu0
    %v9771 = vadd.f32 %v9730, %v9770
    %v9772 = vpop.f32.mrb[0].mxu0
    %v9773 = vadd.f32 %v9732, %v9772
    %v9774 = vpop.f32.mrb[0].mxu0
    %v9775 = vpop.f32.mrb[0].mxu0
    %9776 = vdwg.mxu0
    %9777 = vmatprep.subr.bf16.mxu0 %v9239
    %9778 = vmatpush1.bf16.msra.mxu0 %v9238
    %9779 = vmatprep.subr.bf16.mxu0 %v9241
    %9780 = vmatpush1.bf16.msra.mxu0 %v9240
    %9781 = vmatprep.subr.bf16.mxu0 %v9243
    %9782 = vmatpush1.bf16.msra.mxu0 %v9242
    %9783 = vmatprep.subr.bf16.mxu0 %v9245
    %9784 = vmatpush1.bf16.msra.mxu0 %v9244
    %9785 = vmatprep.subr.bf16.mxu0 %v9247
    %9786 = vmatpush1.bf16.msra.mxu0 %v9246
    %9787 = vmatprep.subr.bf16.mxu0 %v9249
    %9788 = vmatpush1.bf16.msra.mxu0 %v9248
    %9789 = vmatprep.subr.bf16.mxu0 %v9251
    %9790 = vmatpush1.bf16.msra.mxu0 %v9250
    %9791 = vmatprep.subr.bf16.mxu0 %v9253
    %9792 = vmatpush1.bf16.msra.mxu0 %v9252
    %9793 = vmatprep.subr.bf16.mxu0 %v9255
    %9794 = vmatpush1.bf16.msra.mxu0 %v9254
    %9795 = vmatprep.subr.bf16.mxu0 %v9257
    %9796 = vmatpush1.bf16.msra.mxu0 %v9256
    %9797 = vmatprep.subr.bf16.mxu0 %v9259
    %9798 = vmatpush1.bf16.msra.mxu0 %v9258
    %9799 = vmatprep.subr.bf16.mxu0 %v9261
    %9800 = vmatpush1.bf16.msra.mxu0 %v9260
    %9801 = vmatprep.subr.bf16.mxu0 %v9263
    %9802 = vmatpush1.bf16.msra.mxu0 %v9262
    %9803 = vmatprep.subr.bf16.mxu0 %v9265
    %9804 = vmatpush1.bf16.msra.mxu0 %v9264
    %9805 = vmatprep.subr.bf16.mxu0 %v9267
    %9806 = vmatpush1.bf16.msra.mxu0 %v9266
    %9807 = vmatprep.subr.bf16.mxu0 %v9269
    %9808 = vmatpush1.bf16.msra.mxu0 %v9268
    %9809 = vmatprep.mubr.bf16.mxu0 %v7918
    %9810 = vmatmul.mubr.bf16.gmra.mrb[0].mxu0 %v7917
    %v9811 = vpop.f32.mrb[0].mxu0
    %v9812 = vadd.f32 %v9771, %v9811
    %v9813 = vpop.f32.mrb[0].mxu0
    %v9814 = vadd.f32 %v9773, %v9813
    %v9815 = vpop.f32.mrb[0].mxu0
    %v9816 = vpop.f32.mrb[0].mxu0
    %9817 = vdwg.mxu0
    %9818 = vmatprep.subr.bf16.mxu0 %v9271
    %9819 = vmatpush1.bf16.msra.mxu0 %v9270
    %9820 = vmatprep.subr.bf16.mxu0 %v9273
    %9821 = vmatpush1.bf16.msra.mxu0 %v9272
    %9822 = vmatprep.subr.bf16.mxu0 %v9275
    %9823 = vmatpush1.bf16.msra.mxu0 %v9274
    %9824 = vmatprep.subr.bf16.mxu0 %v9277
    %9825 = vmatpush1.bf16.msra.mxu0 %v9276
    %9826 = vmatprep.subr.bf16.mxu0 %v9279
    %9827 = vmatpush1.bf16.msra.mxu0 %v9278
    %9828 = vmatprep.subr.bf16.mxu0 %v9281
    %9829 = vmatpush1.bf16.msra.mxu0 %v9280
    %9830 = vmatprep.subr.bf16.mxu0 %v9283
    %9831 = vmatpush1.bf16.msra.mxu0 %v9282
    %9832 = vmatprep.subr.bf16.mxu0 %v9285
    %9833 = vmatpush1.bf16.msra.mxu0 %v9284
    %9834 = vmatprep.subr.bf16.mxu0 %v9287
    %9835 = vmatpush1.bf16.msra.mxu0 %v9286
    %9836 = vmatprep.subr.bf16.mxu0 %v9289
    %9837 = vmatpush1.bf16.msra.mxu0 %v9288
    %9838 = vmatprep.subr.bf16.mxu0 %v9291
    %9839 = vmatpush1.bf16.msra.mxu0 %v9290
    %9840 = vmatprep.subr.bf16.mxu0 %v9293
    %9841 = vmatpush1.bf16.msra.mxu0 %v9292
    %9842 = vmatprep.subr.bf16.mxu0 %v9295
    %9843 = vmatpush1.bf16.msra.mxu0 %v9294
    %9844 = vmatprep.subr.bf16.mxu0 %v9297
    %9845 = vmatpush1.bf16.msra.mxu0 %v9296
    %9846 = vmatprep.subr.bf16.mxu0 %v9299
    %9847 = vmatpush1.bf16.msra.mxu0 %v9298
    %9848 = vmatprep.subr.bf16.mxu0 %v9301
    %9849 = vmatpush1.bf16.msra.mxu0 %v9300
    %9850 = vmatprep.mubr.bf16.mxu0 %v7920
    %9851 = vmatmul.mubr.bf16.gmra.mrb[0].mxu0 %v7919
    %v9852 = vpop.f32.mrb[0].mxu0
    %v9853 = vadd.f32 %v9812, %v9852
    %v9854 = vpop.f32.mrb[0].mxu0
    %v9855 = vadd.f32 %v9814, %v9854
    %v9856 = vpop.f32.mrb[0].mxu0
    %v9857 = vpop.f32.mrb[0].mxu0
    %9858 = vdwg.mxu0
    %9859 = vmatprep.subr.bf16.mxu0 %v9303
    %9860 = vmatpush1.bf16.msra.mxu0 %v9302
    %9861 = vmatprep.subr.bf16.mxu0 %v9305
    %9862 = vmatpush1.bf16.msra.mxu0 %v9304
    %9863 = vmatprep.subr.bf16.mxu0 %v9307
    %9864 = vmatpush1.bf16.msra.mxu0 %v9306
    %9865 = vmatprep.subr.bf16.mxu0 %v9309
    %9866 = vmatpush1.bf16.msra.mxu0 %v9308
    %9867 = vmatprep.subr.bf16.mxu0 %v9311
    %9868 = vmatpush1.bf16.msra.mxu0 %v9310
    %9869 = vmatprep.subr.bf16.mxu0 %v9313
    %9870 = vmatpush1.bf16.msra.mxu0 %v9312
    %9871 = vmatprep.subr.bf16.mxu0 %v9315
    %9872 = vmatpush1.bf16.msra.mxu0 %v9314
    %9873 = vmatprep.subr.bf16.mxu0 %v9317
    %9874 = vmatpush1.bf16.msra.mxu0 %v9316
    %9875 = vmatprep.subr.bf16.mxu0 %v9319
    %9876 = vmatpush1.bf16.msra.mxu0 %v9318
    %9877 = vmatprep.subr.bf16.mxu0 %v9321
    %9878 = vmatpush1.bf16.msra.mxu0 %v9320
    %9879 = vmatprep.subr.bf16.mxu0 %v9323
    %9880 = vmatpush1.bf16.msra.mxu0 %v9322
    %9881 = vmatprep.subr.bf16.mxu0 %v9325
    %9882 = vmatpush1.bf16.msra.mxu0 %v9324
    %9883 = vmatprep.subr.bf16.mxu0 %v9327
    %9884 = vmatpush1.bf16.msra.mxu0 %v9326
    %9885 = vmatprep.subr.bf16.mxu0 %v9329
    %9886 = vmatpush1.bf16.msra.mxu0 %v9328
    %9887 = vmatprep.subr.bf16.mxu0 %v9331
    %9888 = vmatpush1.bf16.msra.mxu0 %v9330
    %9889 = vmatprep.subr.bf16.mxu0 %v9333
    %9890 = vmatpush1.bf16.msra.mxu0 %v9332
    %9891 = vmatprep.mubr.bf16.mxu0 %v7922
    %9892 = vmatmul.mubr.bf16.gmra.mrb[0].mxu0 %v7921
    %v9893 = vpop.f32.mrb[0].mxu0
    %v9894 = vadd.f32 %v9853, %v9893
    %v9895 = vpop.f32.mrb[0].mxu0
    %v9896 = vadd.f32 %v9855, %v9895
    %v9897 = vpop.f32.mrb[0].mxu0
    %v9898 = vpop.f32.mrb[0].mxu0
    %9899 = vdwg.mxu0
    %9900 = vmatprep.subr.bf16.mxu0 %v9335
    %9901 = vmatpush1.bf16.msra.mxu0 %v9334
    %9902 = vmatprep.subr.bf16.mxu0 %v9337
    %9903 = vmatpush1.bf16.msra.mxu0 %v9336
    %9904 = vmatprep.subr.bf16.mxu0 %v9339
    %9905 = vmatpush1.bf16.msra.mxu0 %v9338
    %9906 = vmatprep.subr.bf16.mxu0 %v9341
    %9907 = vmatpush1.bf16.msra.mxu0 %v9340
    %9908 = vmatprep.subr.bf16.mxu0 %v9343
    %9909 = vmatpush1.bf16.msra.mxu0 %v9342
    %9910 = vmatprep.subr.bf16.mxu0 %v9345
    %9911 = vmatpush1.bf16.msra.mxu0 %v9344
    %9912 = vmatprep.subr.bf16.mxu0 %v9347
    %9913 = vmatpush1.bf16.msra.mxu0 %v9346
    %9914 = vmatprep.subr.bf16.mxu0 %v9349
    %9915 = vmatpush1.bf16.msra.mxu0 %v9348
    %9916 = vmatprep.subr.bf16.mxu0 %v9351
    %9917 = vmatpush1.bf16.msra.mxu0 %v9350
    %9918 = vmatprep.subr.bf16.mxu0 %v9353
    %9919 = vmatpush1.bf16.msra.mxu0 %v9352
    %9920 = vmatprep.subr.bf16.mxu0 %v9355
    %9921 = vmatpush1.bf16.msra.mxu0 %v9354
    %9922 = vmatprep.subr.bf16.mxu0 %v9357
    %9923 = vmatpush1.bf16.msra.mxu0 %v9356
    %9924 = vmatprep.subr.bf16.mxu0 %v9359
    %9925 = vmatpush1.bf16.msra.mxu0 %v9358
    %9926 = vmatprep.subr.bf16.mxu0 %v9361
    %9927 = vmatpush1.bf16.msra.mxu0 %v9360
    %9928 = vmatprep.subr.bf16.mxu0 %v9363
    %9929 = vmatpush1.bf16.msra.mxu0 %v9362
    %9930 = vmatprep.subr.bf16.mxu0 %v9365
    %9931 = vmatpush1.bf16.msra.mxu0 %v9364
    %9932 = vmatprep.mubr.bf16.mxu0 %v7924
    %9933 = vmatmul.mubr.bf16.gmra.mrb[0].mxu0 %v7923
    %v9934 = vpop.f32.mrb[0].mxu0
    %v9935 = vadd.f32 %v9894, %v9934
    %v9936 = vpop.f32.mrb[0].mxu0
    %v9937 = vadd.f32 %v9896, %v9936
    %v9938 = vpop.f32.mrb[0].mxu0
    %v9939 = vpop.f32.mrb[0].mxu0
    %9940 = vdwg.mxu0
    %9941 = vmatprep.subr.bf16.mxu0 %v9367
    %9942 = vmatpush1.bf16.msra.mxu0 %v9366
    %9943 = vmatprep.subr.bf16.mxu0 %v9369
    %9944 = vmatpush1.bf16.msra.mxu0 %v9368
    %9945 = vmatprep.subr.bf16.mxu0 %v9371
    %9946 = vmatpush1.bf16.msra.mxu0 %v9370
    %9947 = vmatprep.subr.bf16.mxu0 %v9373
    %9948 = vmatpush1.bf16.msra.mxu0 %v9372
    %9949 = vmatprep.subr.bf16.mxu0 %v9375
    %9950 = vmatpush1.bf16.msra.mxu0 %v9374
    %9951 = vmatprep.subr.bf16.mxu0 %v9377
    %9952 = vmatpush1.bf16.msra.mxu0 %v9376
    %9953 = vmatprep.subr.bf16.mxu0 %v9379
    %9954 = vmatpush1.bf16.msra.mxu0 %v9378
    %9955 = vmatprep.subr.bf16.mxu0 %v9381
    %9956 = vmatpush1.bf16.msra.mxu0 %v9380
    %9957 = vmatprep.subr.bf16.mxu0 %v9383
    %9958 = vmatpush1.bf16.msra.mxu0 %v9382
    %9959 = vmatprep.subr.bf16.mxu0 %v9385
    %9960 = vmatpush1.bf16.msra.mxu0 %v9384
    %9961 = vmatprep.subr.bf16.mxu0 %v9387
    %9962 = vmatpush1.bf16.msra.mxu0 %v9386
    %9963 = vmatprep.subr.bf16.mxu0 %v9389
    %9964 = vmatpush1.bf16.msra.mxu0 %v9388
    %9965 = vmatprep.subr.bf16.mxu0 %v9391
    %9966 = vmatpush1.bf16.msra.mxu0 %v9390
    %9967 = vmatprep.subr.bf16.mxu0 %v9393
    %9968 = vmatpush1.bf16.msra.mxu0 %v9392
    %9969 = vmatprep.subr.bf16.mxu0 %v9395
    %9970 = vmatpush1.bf16.msra.mxu0 %v9394
    %9971 = vmatprep.subr.bf16.mxu0 %v9397
    %9972 = vmatpush1.bf16.msra.mxu0 %v9396
    %9973 = vmatprep.mubr.bf16.mxu0 %v7926
    %9974 = vmatmul.mubr.bf16.gmra.mrb[0].mxu0 %v7925
    %v9975 = vpop.f32.mrb[0].mxu0
    %v9976 = vadd.f32 %v9935, %v9975
    %v9977 = vpop.f32.mrb[0].mxu0
    %v9978 = vadd.f32 %v9937, %v9977
    %v9979 = vpop.f32.mrb[0].mxu0
    %v9980 = vpop.f32.mrb[0].mxu0
    %9981 = vdwg.mxu0
    %v9982 = vld [vmem:[%s7] sm:$0xf]
    %v9983 = vld [vmem:[%s7 + $0x4] sm:$0xf]
    %v9984 = vld [vmem:[%s7 + $0x8] sm:$0xf]
    %v9985 = vld [vmem:[%s7 + $0xc] sm:$0xf]
    %v9986 = vld [vmem:[%s7 + $0x10] sm:$0xf]
    %v9987 = vld [vmem:[%s7 + $0x14] sm:$0xf]
    %v9988 = vld [vmem:[%s7 + $0x18] sm:$0xf]
    %v9989 = vld [vmem:[%s7 + $0x1c] sm:$0xf]
    %v9990 = vld [vmem:[%s7 + $0x20] sm:$0xf]
    %v9991 = vld [vmem:[%s7 + $0x24] sm:$0xf]
    %v9992 = vld [vmem:[%s7 + $0x28] sm:$0xf]
    %v9993 = vld [vmem:[%s7 + $0x2c] sm:$0xf]
    %v9994 = vld [vmem:[%s7 + $0x30] sm:$0x3]
    %v9995 = vld [vmem:[#allocation11] sm:$0x1]
    %v9997 = vlaneseq
    %v9998 = vshrl.u32 %v9997, 7
    %v9999 = vsub.s32 0, %v9998
    %v10000 = vrot.slane %v9995, %v9999
    %v10015 = vunpack.c.l.b16 %v9982
    %v10016 = vunpack.c.l.b16 %v9983
    %v10017 = vunpack.c.l.b16 %v9984
    %v10018 = vunpack.c.l.b16 %v9985
    %v10019 = vunpack.c.l.b16 %v9986
    %v10020 = vunpack.c.l.b16 %v9987
    %v10021 = vunpack.c.l.b16 %v9988
    %v10022 = vunpack.c.l.b16 %v9989
    %v10023 = vunpack.c.l.b16 %v9990
    %v10024 = vunpack.c.l.b16 %v9991
    %v10025 = vunpack.c.l.b16 %v9992
    %v10026 = vunpack.c.l.b16 %v9993
    %v10027 = vunpack.c.l.b16 %v9994
    %v10028 = vpack.c.b16 %v10016, %v10015
    %v10029 = vpack.c.b16 %v10018, %v10017
    %v10030 = vpack.c.b16 %v10020, %v10019
    %v10031 = vpack.c.b16 %v10022, %v10021
    %v10032 = vpack.c.b16 %v10024, %v10023
    %v10033 = vpack.c.b16 %v10026, %v10025
    %v10034 = vpack.c.b16 %v10027, %v10027
    %vm10041 = vcmask 818176
    %v10043 = vsel %vm10041, %v8105, 0
    %v10046 = vsel %vm6362, %v10034, 0
    %10048 = vmatprep.subr.bf16.mxu0 0
    %10049 = vmatpush1.bf16.msra.mxu0 %v10028
    %10050 = vmatprep.subr.bf16.mxu0 0
    %10051 = vmatpush1.bf16.msra.mxu0 %v10029
    %10052 = vmatprep.subr.bf16.mxu0 0
    %10053 = vmatpush1.bf16.msra.mxu0 %v10030
    %10054 = vmatprep.subr.bf16.mxu0 0
    %10055 = vmatpush1.bf16.msra.mxu0 %v10031
    %10056 = vmatprep.subr.bf16.mxu0 0
    %10057 = vmatpush1.bf16.msra.mxu0 %v10032
    %10058 = vmatprep.subr.bf16.mxu0 0
    %10059 = vmatpush1.bf16.msra.mxu0 %v10033
    %10060 = vmatprep.subr.bf16.mxu0 0
    %10061 = vmatpush1.bf16.msra.mxu0 %v10046
    %10062 = vmatprep.subr.bf16.mxu0 0
    %10063 = vmatpush1.bf16.msra.mxu0 0
    %10064 = vmatprep.subr.bf16.mxu0 0
    %10065 = vmatpush1.bf16.msra.mxu0 0
    %10066 = vmatprep.subr.bf16.mxu0 0
    %10067 = vmatpush1.bf16.msra.mxu0 0
    %10068 = vmatprep.subr.bf16.mxu0 0
    %10069 = vmatpush1.bf16.msra.mxu0 0
    %10070 = vmatprep.subr.bf16.mxu0 0
    %10071 = vmatpush1.bf16.msra.mxu0 0
    %10072 = vmatprep.subr.bf16.mxu0 0
    %10073 = vmatpush1.bf16.msra.mxu0 0
    %10074 = vmatprep.subr.bf16.mxu0 0
    %10075 = vmatpush1.bf16.msra.mxu0 0
    %10076 = vmatprep.subr.bf16.mxu0 0
    %10077 = vmatpush1.bf16.msra.mxu0 0
    %10078 = vmatprep.subr.bf16.mxu0 0
    %10079 = vmatpush1.bf16.msra.mxu0 0
    %10080 = vmatprep.mubr.bf16.mxu0 0
    %10081 = vmatmul.mubr.bf16.gmra.mrb[0].mxu0 %v10043
    %v10082 = vpop.f32.mrb[0].mxu0
    %v10083 = vadd.f32 %v10000, %v10082
    %v10084 = vpop.f32.mrb[0].mxu0
    %v10085 = vpop.f32.mrb[0].mxu0
    %v10086 = vpop.f32.mrb[0].mxu0
    %10087 = vdwg.mxu0
    %10088 = vst [vmem:[#allocation13] sm:$0xf] 0.0
    %v10091 = vcombine.low %v9976, %v9978
    %v10093 = vunpack.c.l.s4 1983009808
    %v10094 = vunpack.c.0.s8 %v10093
    %v10095 = vlaneseq
    %v10096 = vshrl.u32 %v10095, 7
    %v10097 = vsub.s32 %v10094, %v10096
    %v10098 = vrot.slane %v10091, %v10097
    %vm10100 = vcmask 420866
    %vm10101 = vmor %vm10100, %vm6362
    %10102 = vst.msk [vmem:[#allocation13] sm:$0xf] %vm10101, %v10098
    %v10105 = vunpack.c.l.s4 1983009808
    %v10106 = vunpack.c.0.s8 %v10105
    %v10107 = vlaneseq
    %v10108 = vshrl.u32 %v10107, 7
    %v10109 = vsub.s32 %v10106, %v10108
    %v10110 = vrot.slane %v10083, %v10109
    %10111 = vrot.lane.b32.xlu0 %v10110, 52
    %v10112 = vpop.permute.xlu0 %10111
    %vm10114 = vcmask 746912
    %10115 = vst.msk [vmem:[#allocation13 + $0x2] sm:$0x3] %vm10114, %v10112
    // Predicated region
    $region62: #{tpu_custom_call.1} parent=1 // pred_check
      _
    $region63: #{tpu_custom_call.1} parent=1 // pred_check_branch
      %10117 = sbr.rel (0) target = $region65
    $region64: #{tpu_custom_call.1} parent=1 // pred_region
      %s10119 = ssub.s32 64, 64
      %10120 = vsyncadd [#allocation4], %s10119
      %s10122 = sshll.u32 [#allocation13], 4
      %s10123 = int_to_ptr.vmem [resolvable:$true] %s10122
      %10125 = dma.vmem_to_hbm [thread:$0]  %s10123, 64, %s9, [#allocation4]
    $region65: #{tpu_custom_call.1} parent=1 // pred_fallthru
      _
    // Predicated region
    $region66: #{tpu_custom_call.1} parent=1 // pred_check
      _
    $region67: #{tpu_custom_call.1} parent=1 // pred_check_branch
      %10127 = sbr.rel (0) target = $region69
    $region68: #{tpu_custom_call.1} parent=1 // pred_region
      %10128 = dma.done [#allocation4], 64
    $region69: #{tpu_custom_call.1} parent=1 // pred_fallthru
      _
    %10129 = vsyncpa [#allocation3], 1
    %10130 = vsyncpa [#allocation6], 1
    %10131 = vsyncpa [#allocation9], 1
    %10132 = vsyncpa [#allocation12], 1
    %10133 = vsyncpa [#allocation4], 1

</llo_original>
